<compile_context>
chip_gen: v5e
topology: v5e:2x2
jax: 0.10.0
libtpu: 0.0.40
codegen_flags: <defaults>
</compile_context>

<pallas_src>
import functools

import jax
import jax.numpy as jnp
from jax.experimental import pallas as pl
from jax.experimental.pallas import tpu as pltpu

BN_EPS = 1e-5
KSZ = 3      # conv_kernel / conv_search spatial kernel size
OPAD = 128   # lane-dense padding of each branch's head output channels


# ----------------------------- fused Pallas kernel -----------------------------

def _rpn_branch_kernel(z_ref, x_ref,
                       wk_ref, ksc_ref, ksh_ref,
                       ws_ref, ssc_ref, ssh_ref,
                       w1_ref, h1s_ref, h1b_ref,
                       w2_ref, b2_ref,
                       o_ref,
                       zf_s, xf_s, feat_s,
                       *, ksz, hz, wz, hx, wx):
    """One (branch, batch) grid step: conv(z), conv(x), depthwise xcorr, head.

    All spatial maps live on a flattened width-w_in grid so that every conv /
    xcorr tap is one contiguous 2-D slice:
        out_flat[p] += src_flat[p + u*w_in + v] * W[u, v]
    Columns j >= (w_in - ksz + 1) of each flat row are wrap-around garbage;
    valid downstream entries never read them and the wrapper slices them off.
    """
    f32, bf16 = jnp.float32, jnp.bfloat16
    hzo, wzo = hz - ksz + 1, wz - ksz + 1
    hxo = hx - ksz + 1
    ho = hxo - hzo + 1

    def conv3x3_bn_relu(src_ref, w_ref, sc_ref, sh_ref, dst_s, w_in, m):
        # 9 whole-slab MXU matmuls (M = m = out_rows * w_in), accumulated in VMEM.
        for t in range(ksz * ksz):
            u, v = divmod(t, ksz)
            patch = src_ref[0, pl.ds(u * w_in + v, m), :].astype(bf16)
            prod = jnp.dot(patch, w_ref[0, t], preferred_element_type=f32)
            if t == 0:
                dst_s[pl.ds(0, m), :] = prod
            else:
                dst_s[pl.ds(0, m), :] += prod
        # folded BN + ReLU in one f32 VPU pass
        dst_s[pl.ds(0, m), :] = jnp.maximum(
            dst_s[pl.ds(0, m), :] * sc_ref[0] + sh_ref[0], 0.0)

    # conv_kernel(z) and conv_search(x)
    conv3x3_bn_relu(z_ref, wk_ref, ksc_ref, ksh_ref, zf_s, wz, hzo * wz)
    conv3x3_bn_relu(x_ref, ws_ref, ssc_ref, ssh_ref, xf_s, wx, hxo * wx)

    # Zero the xcorr over-read pad rows of xf_s (otherwise uninitialized VMEM;
    # only garbage feat columns ever read them, but keep them finite).
    if wzo > 1:
        xf_s[pl.ds(hxo * wx, wzo - 1), :] = jnp.zeros(
            (wzo - 1, xf_s.shape[-1]), f32)

    # Depthwise cross-correlation (groups = batch*channel), VMEM-accumulated.
    m_feat = ho * wx
    for t in range(hzo * wzo):
        u, v = divmod(t, wzo)
        contrib = (xf_s[pl.ds(u * wx + v, m_feat), :]
                   * zf_s[pl.ds(u * wz + v, 1), :])
        if t == 0:
            feat_s[...] = contrib
        else:
            feat_s[...] += contrib

    # 1x1 head: two whole-slab matmuls + single lane-dense slab store.
    f = feat_s[...].astype(bf16)                                   # (m_feat, hidden)
    hmid = jnp.dot(f, w1_ref[0], preferred_element_type=f32)
    hmid = jnp.maximum(hmid * h1s_ref[0] + h1b_ref[0], 0.0).astype(bf16)
    o_ref[0] = (jnp.dot(hmid, w2_ref[0], preferred_element_type=f32)
                + b2_ref[0]).astype(o_ref.dtype)


# ------------------------------ wrapper ------------------------------

def depthwise_rpn_forward(fused, z_f_nchw, x_f_nchw, *, n_cls, n_loc):
    """DepthwiseRPN.forward.  Inputs NCHW (PyTorch convention); outputs NCHW."""
    B, cin, hz, wz = z_f_nchw.shape
    _, _, hx, wx = x_f_nchw.shape
    hidden = fused["w1"].shape[-1]
    opad = fused["w2"].shape[-1]
    pad = KSZ - 1
    hzo, wzo = hz - KSZ + 1, wz - KSZ + 1
    hxo, wxo = hx - KSZ + 1, wx - KSZ + 1
    ho, wo = hxo - hzo + 1, wxo - wzo + 1
    m_feat = ho * wx

    def flatten(a, h, w):
        # NCHW -> flattened (B, h*w + pad, C); pad covers the conv over-read.
        a = jnp.transpose(a, (0, 2, 3, 1)).reshape(B, h * w, cin)
        return jnp.pad(a, ((0, 0), (0, pad), (0, 0)))

    z = flatten(z_f_nchw, hz, wz)
    x = flatten(x_f_nchw, hx, wx)
    lz, lx = z.shape[1], x.shape[1]

    weight_order = ("wk", "k_scale", "k_shift", "ws", "s_scale", "s_shift",
                    "w1", "h1_scale", "h1_shift", "w2", "b2")
    weights = [fused[k] for k in weight_order]

    def wspec(a):
        nd = a.ndim
        return pl.BlockSpec((1,) + a.shape[1:],
                            lambda s, b, _nd=nd: (s,) + (0,) * (_nd - 1))

    out = pl.pallas_call(
        functools.partial(_rpn_branch_kernel,
                          ksz=KSZ, hz=hz, wz=wz, hx=hx, wx=wx),
        out_shape=jax.ShapeDtypeStruct((B, m_feat, 2 * opad), jnp.float32),
        grid=(2, B),   # (branch, batch): weights stay VMEM-resident over batch
        in_specs=[pl.BlockSpec((1, lz, cin), lambda s, b: (b, 0, 0)),
                  pl.BlockSpec((1, lx, cin), lambda s, b: (b, 0, 0))]
                 + [wspec(w) for w in weights],
        out_specs=pl.BlockSpec((1, m_feat, opad), lambda s, b: (b, 0, s)),
        scratch_shapes=[pltpu.VMEM((hzo * wz, hidden), jnp.float32),
                        pltpu.VMEM((hxo * wx + wzo - 1, hidden), jnp.float32),
                        pltpu.VMEM((m_feat, hidden), jnp.float32)],
        compiler_params=pltpu.CompilerParams(
            dimension_semantics=("parallel", "parallel"),
            vmem_limit_bytes=48 * 1024 * 1024,
        ),
    )(z, x, *weights)

    # (B, ho*wx, 2*opad) -> (B, ho, wx, branch, opad); drop garbage cols / pads.
    out = out.reshape(B, ho, wx, 2, opad)
    cls = jnp.transpose(out[:, :, :wo, 0, :n_cls], (0, 3, 1, 2))
    loc = jnp.transpose(out[:, :, :wo, 1, :n_loc], (0, 3, 1, 2))
    return cls, loc


# ------------------------ deterministic parameter init ------------------------

def _bn_fold(kg, kb, km, kv, c):
    gamma = 1.0 + 0.1 * jax.random.normal(kg, (c,), jnp.float32)
    beta = 0.1 * jax.random.normal(kb, (c,), jnp.float32)
    mean = 0.1 * jax.random.normal(km, (c,), jnp.float32)
    var = 0.5 + jax.random.uniform(kv, (c,), jnp.float32)
    scale = gamma / jnp.sqrt(var + BN_EPS)
    shift = beta - mean * scale
    return scale, shift


def init_dwxcorr_params(key, in_ch, hidden, out_ch):
    ks = jax.random.split(key, 16)
    p = {}
    # conv_kernel: Conv2d(in_ch, hidden, 3, bias=False) + BN + ReLU
    p["ck_w"] = 0.1 * jax.random.normal(ks[0], (hidden, in_ch, 3, 3), jnp.float32)
    p["ck_scale"], p["ck_shift"] = _bn_fold(ks[1], ks[2], ks[3], ks[4], hidden)
    # conv_search: same structure
    p["cs_w"] = 0.1 * jax.random.normal(ks[5], (hidden, in_ch, 3, 3), jnp.float32)
    p["cs_scale"], p["cs_shift"] = _bn_fold(ks[6], ks[7], ks[8], ks[9], hidden)
    # head[0]: Conv2d(hidden, hidden, 1, bias=False) + BN + ReLU
    w1 = 0.1 * jax.random.normal(ks[10], (hidden, hidden, 1, 1), jnp.float32)
    p["h1_w"] = jnp.transpose(w1[:, :, 0, 0], (1, 0))              # (in, out)
    p["h1_scale"], p["h1_shift"] = _bn_fold(ks[11], ks[12], ks[13], ks[14], hidden)
    # head[3]: Conv2d(hidden, out_ch, 1) with bias
    w2 = 0.1 * jax.random.normal(ks[15], (out_ch, hidden, 1, 1), jnp.float32)
    p["h2_w"] = jnp.transpose(w2[:, :, 0, 0], (1, 0))              # (in, out)
    p["h2_b"] = 0.01 * jnp.arange(out_ch, dtype=jnp.float32)
    return p


def init_rpn_params(key, anchor_num, in_channels, out_channels):
    # Matches the given module: cls head has 1*anchor_num channels (sigmoid cls).
    kc, kl = jax.random.split(key)
    return {
        "cls": init_dwxcorr_params(kc, in_channels, out_channels, 1 * anchor_num),
        "loc": init_dwxcorr_params(kl, in_channels, out_channels, 4 * anchor_num),
    }


def fuse_rpn_params(params, anchor_num):
    """Stack cls/loc branch weights on a leading branch axis (cls=0, loc=1).

    MXU operands stored bf16; BN scale/shift and bias stay f32.  Head output
    channels are zero-padded to a 128-lane multiple so the final matmul and
    output stores are lane-dense; the wrapper slices the valid channels out.
    """
    cls, loc = params["cls"], params["loc"]
    bf16 = jnp.bfloat16
    n_cls, n_loc = 1 * anchor_num, 4 * anchor_num
    opad = max(OPAD, -(-max(n_cls, n_loc) // 128) * 128)

    def conv_w(w):        # torch (O, Cin, 3, 3) -> (9, Cin, O), tap-major (u, v)
        o, cin, kh, kw = w.shape
        return jnp.transpose(w, (2, 3, 1, 0)).reshape(kh * kw, cin, o)

    def stack(a, b):
        return jnp.stack([a, b], axis=0)

    def vec(x):
        return x.reshape(1, -1).astype(jnp.float32)

    def pad_w2(w, n):
        return jnp.pad(w, ((0, 0), (0, opad - n)))

    def pad_b2(b, n):
        return jnp.pad(b, (0, opad - n)).reshape(1, opad)

    return {
        "wk": stack(conv_w(cls["ck_w"]), conv_w(loc["ck_w"])).astype(bf16),
        "k_scale": stack(vec(cls["ck_scale"]), vec(loc["ck_scale"])),
        "k_shift": stack(vec(cls["ck_shift"]), vec(loc["ck_shift"])),
        "ws": stack(conv_w(cls["cs_w"]), conv_w(loc["cs_w"])).astype(bf16),
        "s_scale": stack(vec(cls["cs_scale"]), vec(loc["cs_scale"])),
        "s_shift": stack(vec(cls["cs_shift"]), vec(loc["cs_shift"])),
        "w1": stack(cls["h1_w"], loc["h1_w"]).astype(bf16),
        "h1_scale": stack(vec(cls["h1_scale"]), vec(loc["h1_scale"])),
        "h1_shift": stack(vec(cls["h1_shift"]), vec(loc["h1_shift"])),
        "w2": stack(pad_w2(cls["h2_w"], n_cls), pad_w2(loc["h2_w"], n_loc)).astype(bf16),
        "b2": stack(pad_b2(cls["h2_b"], n_cls),
                    pad_b2(loc["h2_b"], n_loc)).astype(jnp.float32),
    }


# ------------------------- pure-JAX reference (for checking) -------------------------

def _ref_forward(params, z_nchw, x_nchw):
    """Plain-XLA DepthwiseXCorr forward with the same bf16-MXU / f32-accum numerics."""
    bf16 = jnp.bfloat16
    z = jnp.transpose(z_nchw, (0, 2, 3, 1))
    x = jnp.transpose(x_nchw, (0, 2, 3, 1))

    def branch(p):
        def conv3(inp, w, scale, shift):
            out = jax.lax.conv_general_dilated(
                inp.astype(bf16),
                jnp.transpose(w, (2, 3, 1, 0)).astype(bf16),   # HWIO
                window_strides=(1, 1), padding="VALID",
                dimension_numbers=("NHWC", "HWIO", "NHWC"),
                preferred_element_type=jnp.float32)
            return jnp.maximum(out * scale + shift, 0.0)

        zf = conv3(z, p["ck_w"], p["ck_scale"], p["ck_shift"])
        xf = conv3(x, p["cs_w"], p["cs_scale"], p["cs_shift"])
        _, hzo, wzo, c = zf.shape
        _, hxo, wxo, _ = xf.shape
        ho, wo = hxo - hzo + 1, wxo - wzo + 1
        feat = jnp.zeros((zf.shape[0], ho, wo, c), jnp.float32)
        for u in range(hzo):
            for v in range(wzo):
                feat = feat + xf[:, u:u + ho, v:v + wo, :] * zf[:, u:u + 1, v:v + 1, :]
        hmid = jnp.dot(feat.astype(bf16), p["h1_w"].astype(bf16),
                       preferred_element_type=jnp.float32)
        hmid = jnp.maximum(hmid * p["h1_scale"] + p["h1_shift"], 0.0)
        out = jnp.dot(hmid.astype(bf16), p["h2_w"].astype(bf16),
                      preferred_element_type=jnp.float32) + p["h2_b"]
        return jnp.transpose(out, (0, 3, 1, 2))

    return branch(params["cls"]), branch(params["loc"])


# --------------------------------- main ---------------------------------

if __name__ == "__main__":
    # Small shapes consistent with the module: template z_f and search x_f
    # with the same channel count; xcorr output is 9x9.
    B, IN_CH, HIDDEN, ANCHORS = 2, 8, 16, 5
    HZ, WZ = 8, 8      # template spatial
    HX, WX = 16, 16    # search spatial

    key = jax.random.PRNGKey(0)
    kp, kz, kx = jax.random.split(key, 3)
    params = init_rpn_params(kp, ANCHORS, IN_CH, HIDDEN)
    fused = fuse_rpn_params(params, ANCHORS)

    z_f = jax.random.normal(kz, (B, IN_CH, HZ, WZ), jnp.float32)   # NCHW like PyTorch
    x_f = jax.random.normal(kx, (B, IN_CH, HX, WX), jnp.float32)

    fwd = jax.jit(depthwise_rpn_forward, static_argnames=("n_cls", "n_loc"))
    cls, loc = fwd(fused, z_f, x_f, n_cls=1 * ANCHORS, n_loc=4 * ANCHORS)
    cls, loc = jax.block_until_ready((cls, loc))

    assert cls.shape == (B, 1 * ANCHORS, 9, 9), cls.shape
    assert loc.shape == (B, 4 * ANCHORS, 9, 9), loc.shape
    assert bool(jnp.all(jnp.isfinite(cls))) and bool(jnp.all(jnp.isfinite(loc)))

    cls_ref, loc_ref = _ref_forward(params, z_f, x_f)
    cls_err = float(jnp.max(jnp.abs(cls - cls_ref)))
    loc_err = float(jnp.max(jnp.abs(loc - loc_ref)))
    assert cls_err < 5e-2 and loc_err < 5e-2, (cls_err, loc_err)
    print("KERNEL_OK")
</pallas_src>

<mosaic_0001>
module attributes {stable_mosaic.version = 11 : i64} {
  func.func @_rpn_branch_kernel(%arg0: i32, %arg1: i32, %arg2: memref<1x66x8xf32, #tpu.memory_space<vmem>>, %arg3: memref<1x258x8xf32, #tpu.memory_space<vmem>>, %arg4: memref<1x9x8x16xbf16, #tpu.memory_space<vmem>>, %arg5: memref<1x1x16xf32, #tpu.memory_space<vmem>>, %arg6: memref<1x1x16xf32, #tpu.memory_space<vmem>>, %arg7: memref<1x9x8x16xbf16, #tpu.memory_space<vmem>>, %arg8: memref<1x1x16xf32, #tpu.memory_space<vmem>>, %arg9: memref<1x1x16xf32, #tpu.memory_space<vmem>>, %arg10: memref<1x16x16xbf16, #tpu.memory_space<vmem>>, %arg11: memref<1x1x16xf32, #tpu.memory_space<vmem>>, %arg12: memref<1x1x16xf32, #tpu.memory_space<vmem>>, %arg13: memref<1x16x128xbf16, #tpu.memory_space<vmem>>, %arg14: memref<1x1x128xf32, #tpu.memory_space<vmem>>, %arg15: memref<1x144x128xf32, #tpu.memory_space<vmem>>, %arg16: memref<48x16xf32, #tpu.memory_space<vmem>>, %arg17: memref<229x16xf32, #tpu.memory_space<vmem>>, %arg18: memref<144x16xf32, #tpu.memory_space<vmem>>) attributes {dimension_semantics = [#tpu.dimension_semantics<parallel>, #tpu.dimension_semantics<parallel>], iteration_bounds = array<i64: 2, 2>, scalar_prefetch = 0 : i64, scratch_operands = 3 : i64, tpu.core_type = #tpu.core_type<tc>, window_params = [{transform_indices = @transform_0, window_bounds = array<i64: 1, 66, 8>}, {transform_indices = @transform_1, window_bounds = array<i64: 1, 258, 8>}, {transform_indices = @transform_2, window_bounds = array<i64: 1, 9, 8, 16>}, {transform_indices = @transform_3, window_bounds = array<i64: 1, 1, 16>}, {transform_indices = @transform_4, window_bounds = array<i64: 1, 1, 16>}, {transform_indices = @transform_5, window_bounds = array<i64: 1, 9, 8, 16>}, {transform_indices = @transform_6, window_bounds = array<i64: 1, 1, 16>}, {transform_indices = @transform_7, window_bounds = array<i64: 1, 1, 16>}, {transform_indices = @transform_8, window_bounds = array<i64: 1, 16, 16>}, {transform_indices = @transform_9, window_bounds = array<i64: 1, 1, 16>}, {transform_indices = @transform_10, window_bounds = array<i64: 1, 1, 16>}, {transform_indices = @transform_11, window_bounds = array<i64: 1, 16, 128>}, {transform_indices = @transform_12, window_bounds = array<i64: 1, 1, 128>}, {transform_indices = @transform_13, window_bounds = array<i64: 1, 144, 128>}]} {
    %c0 = arith.constant 0 : index
    %c0_0 = arith.constant 0 : index
    %c0_1 = arith.constant 0 : index
    %0 = vector.load %arg2[%c0, %c0_0, %c0_1] : memref<1x66x8xf32, #tpu.memory_space<vmem>>, vector<1x48x8xf32>
    %1 = vector.shape_cast %0 : vector<1x48x8xf32> to vector<48x8xf32>
    %2 = arith.truncf %1 : vector<48x8xf32> to vector<48x8xbf16>
    %c0_2 = arith.constant 0 : index
    %c0_3 = arith.constant 0 : index
    %c0_4 = arith.constant 0 : index
    %c0_5 = arith.constant 0 : index
    %3 = vector.load %arg4[%c0_2, %c0_3, %c0_4, %c0_5] : memref<1x9x8x16xbf16, #tpu.memory_space<vmem>>, vector<1x1x8x16xbf16>
    %4 = vector.shape_cast %3 : vector<1x1x8x16xbf16> to vector<8x16xbf16>
    %cst = arith.constant dense<0.000000e+00> : vector<48x16xf32>
    %5 = tpu.matmul %2, %4, %cst {dimension_numbers = #tpu.dot_dimension_numbers<[1], [0], [0], [1], [0, 0, 1, 1], [], []>} : vector<48x8xbf16>, vector<8x16xbf16>, vector<48x16xf32> -> vector<48x16xf32>
    %c0_6 = arith.constant 0 : index
    %c0_7 = arith.constant 0 : index
    %6 = vector.load %arg16[%c0_6, %c0_7] : memref<48x16xf32, #tpu.memory_space<vmem>>, vector<48x16xf32>
    tpu.vector_store %arg16[%c0_6, %c0_7], %5 {strides = array<i32>} : memref<48x16xf32, #tpu.memory_space<vmem>>, vector<48x16xf32>,
    %c0_8 = arith.constant 0 : index
    %c1 = arith.constant 1 : index
    %c0_9 = arith.constant 0 : index
    %7 = vector.load %arg2[%c0_8, %c1, %c0_9] : memref<1x66x8xf32, #tpu.memory_space<vmem>>, vector<1x48x8xf32>
    %8 = vector.shape_cast %7 : vector<1x48x8xf32> to vector<48x8xf32>
    %9 = arith.truncf %8 : vector<48x8xf32> to vector<48x8xbf16>
    %c0_10 = arith.constant 0 : index
    %c1_11 = arith.constant 1 : index
    %c0_12 = arith.constant 0 : index
    %c0_13 = arith.constant 0 : index
    %10 = vector.load %arg4[%c0_10, %c1_11, %c0_12, %c0_13] : memref<1x9x8x16xbf16, #tpu.memory_space<vmem>>, vector<1x1x8x16xbf16>
    %11 = vector.shape_cast %10 : vector<1x1x8x16xbf16> to vector<8x16xbf16>
    %cst_14 = arith.constant dense<0.000000e+00> : vector<48x16xf32>
    %12 = tpu.matmul %9, %11, %cst_14 {dimension_numbers = #tpu.dot_dimension_numbers<[1], [0], [0], [1], [0, 0, 1, 1], [], []>} : vector<48x8xbf16>, vector<8x16xbf16>, vector<48x16xf32> -> vector<48x16xf32>
    %c0_15 = arith.constant 0 : index
    %c0_16 = arith.constant 0 : index
    %13 = vector.load %arg16[%c0_15, %c0_16] : memref<48x16xf32, #tpu.memory_space<vmem>>, vector<48x16xf32>
    %14 = arith.addf %13, %12 : vector<48x16xf32>
    %c0_17 = arith.constant 0 : index
    %c0_18 = arith.constant 0 : index
    %15 = vector.load %arg16[%c0_17, %c0_18] : memref<48x16xf32, #tpu.memory_space<vmem>>, vector<48x16xf32>
    tpu.vector_store %arg16[%c0_17, %c0_18], %14 {strides = array<i32>} : memref<48x16xf32, #tpu.memory_space<vmem>>, vector<48x16xf32>,
    %c0_19 = arith.constant 0 : index
    %c2 = arith.constant 2 : index
    %c0_20 = arith.constant 0 : index
    %16 = vector.load %arg2[%c0_19, %c2, %c0_20] : memref<1x66x8xf32, #tpu.memory_space<vmem>>, vector<1x48x8xf32>
    %17 = vector.shape_cast %16 : vector<1x48x8xf32> to vector<48x8xf32>
    %18 = arith.truncf %17 : vector<48x8xf32> to vector<48x8xbf16>
    %c0_21 = arith.constant 0 : index
    %c2_22 = arith.constant 2 : index
    %c0_23 = arith.constant 0 : index
    %c0_24 = arith.constant 0 : index
    %19 = vector.load %arg4[%c0_21, %c2_22, %c0_23, %c0_24] : memref<1x9x8x16xbf16, #tpu.memory_space<vmem>>, vector<1x1x8x16xbf16>
    %20 = vector.shape_cast %19 : vector<1x1x8x16xbf16> to vector<8x16xbf16>
    %cst_25 = arith.constant dense<0.000000e+00> : vector<48x16xf32>
    %21 = tpu.matmul %18, %20, %cst_25 {dimension_numbers = #tpu.dot_dimension_numbers<[1], [0], [0], [1], [0, 0, 1, 1], [], []>} : vector<48x8xbf16>, vector<8x16xbf16>, vector<48x16xf32> -> vector<48x16xf32>
    %c0_26 = arith.constant 0 : index
    %c0_27 = arith.constant 0 : index
    %22 = vector.load %arg16[%c0_26, %c0_27] : memref<48x16xf32, #tpu.memory_space<vmem>>, vector<48x16xf32>
    %23 = arith.addf %22, %21 : vector<48x16xf32>
    %c0_28 = arith.constant 0 : index
    %c0_29 = arith.constant 0 : index
    %24 = vector.load %arg16[%c0_28, %c0_29] : memref<48x16xf32, #tpu.memory_space<vmem>>, vector<48x16xf32>
    tpu.vector_store %arg16[%c0_28, %c0_29], %23 {strides = array<i32>} : memref<48x16xf32, #tpu.memory_space<vmem>>, vector<48x16xf32>,
    %c0_30 = arith.constant 0 : index
    %c8 = arith.constant 8 : index
    %c0_31 = arith.constant 0 : index
    %25 = vector.load %arg2[%c0_30, %c8, %c0_31] : memref<1x66x8xf32, #tpu.memory_space<vmem>>, vector<1x48x8xf32>
    %26 = vector.shape_cast %25 : vector<1x48x8xf32> to vector<48x8xf32>
    %27 = arith.truncf %26 : vector<48x8xf32> to vector<48x8xbf16>
    %c0_32 = arith.constant 0 : index
    %c3 = arith.constant 3 : index
    %c0_33 = arith.constant 0 : index
    %c0_34 = arith.constant 0 : index
    %28 = vector.load %arg4[%c0_32, %c3, %c0_33, %c0_34] : memref<1x9x8x16xbf16, #tpu.memory_space<vmem>>, vector<1x1x8x16xbf16>
    %29 = vector.shape_cast %28 : vector<1x1x8x16xbf16> to vector<8x16xbf16>
    %cst_35 = arith.constant dense<0.000000e+00> : vector<48x16xf32>
    %30 = tpu.matmul %27, %29, %cst_35 {dimension_numbers = #tpu.dot_dimension_numbers<[1], [0], [0], [1], [0, 0, 1, 1], [], []>} : vector<48x8xbf16>, vector<8x16xbf16>, vector<48x16xf32> -> vector<48x16xf32>
    %c0_36 = arith.constant 0 : index
    %c0_37 = arith.constant 0 : index
    %31 = vector.load %arg16[%c0_36, %c0_37] : memref<48x16xf32, #tpu.memory_space<vmem>>, vector<48x16xf32>
    %32 = arith.addf %31, %30 : vector<48x16xf32>
    %c0_38 = arith.constant 0 : index
    %c0_39 = arith.constant 0 : index
    %33 = vector.load %arg16[%c0_38, %c0_39] : memref<48x16xf32, #tpu.memory_space<vmem>>, vector<48x16xf32>
    tpu.vector_store %arg16[%c0_38, %c0_39], %32 {strides = array<i32>} : memref<48x16xf32, #tpu.memory_space<vmem>>, vector<48x16xf32>,
    %c0_40 = arith.constant 0 : index
    %c9 = arith.constant 9 : index
    %c0_41 = arith.constant 0 : index
    %34 = vector.load %arg2[%c0_40, %c9, %c0_41] : memref<1x66x8xf32, #tpu.memory_space<vmem>>, vector<1x48x8xf32>
    %35 = vector.shape_cast %34 : vector<1x48x8xf32> to vector<48x8xf32>
    %36 = arith.truncf %35 : vector<48x8xf32> to vector<48x8xbf16>
    %c0_42 = arith.constant 0 : index
    %c4 = arith.constant 4 : index
    %c0_43 = arith.constant 0 : index
    %c0_44 = arith.constant 0 : index
    %37 = vector.load %arg4[%c0_42, %c4, %c0_43, %c0_44] : memref<1x9x8x16xbf16, #tpu.memory_space<vmem>>, vector<1x1x8x16xbf16>
    %38 = vector.shape_cast %37 : vector<1x1x8x16xbf16> to vector<8x16xbf16>
    %cst_45 = arith.constant dense<0.000000e+00> : vector<48x16xf32>
    %39 = tpu.matmul %36, %38, %cst_45 {dimension_numbers = #tpu.dot_dimension_numbers<[1], [0], [0], [1], [0, 0, 1, 1], [], []>} : vector<48x8xbf16>, vector<8x16xbf16>, vector<48x16xf32> -> vector<48x16xf32>
    %c0_46 = arith.constant 0 : index
    %c0_47 = arith.constant 0 : index
    %40 = vector.load %arg16[%c0_46, %c0_47] : memref<48x16xf32, #tpu.memory_space<vmem>>, vector<48x16xf32>
    %41 = arith.addf %40, %39 : vector<48x16xf32>
    %c0_48 = arith.constant 0 : index
    %c0_49 = arith.constant 0 : index
    %42 = vector.load %arg16[%c0_48, %c0_49] : memref<48x16xf32, #tpu.memory_space<vmem>>, vector<48x16xf32>
    tpu.vector_store %arg16[%c0_48, %c0_49], %41 {strides = array<i32>} : memref<48x16xf32, #tpu.memory_space<vmem>>, vector<48x16xf32>,
    %c0_50 = arith.constant 0 : index
    %c10 = arith.constant 10 : index
    %c0_51 = arith.constant 0 : index
    %43 = vector.load %arg2[%c0_50, %c10, %c0_51] : memref<1x66x8xf32, #tpu.memory_space<vmem>>, vector<1x48x8xf32>
    %44 = vector.shape_cast %43 : vector<1x48x8xf32> to vector<48x8xf32>
    %45 = arith.truncf %44 : vector<48x8xf32> to vector<48x8xbf16>
    %c0_52 = arith.constant 0 : index
    %c5 = arith.constant 5 : index
    %c0_53 = arith.constant 0 : index
    %c0_54 = arith.constant 0 : index
    %46 = vector.load %arg4[%c0_52, %c5, %c0_53, %c0_54] : memref<1x9x8x16xbf16, #tpu.memory_space<vmem>>, vector<1x1x8x16xbf16>
    %47 = vector.shape_cast %46 : vector<1x1x8x16xbf16> to vector<8x16xbf16>
    %cst_55 = arith.constant dense<0.000000e+00> : vector<48x16xf32>
    %48 = tpu.matmul %45, %47, %cst_55 {dimension_numbers = #tpu.dot_dimension_numbers<[1], [0], [0], [1], [0, 0, 1, 1], [], []>} : vector<48x8xbf16>, vector<8x16xbf16>, vector<48x16xf32> -> vector<48x16xf32>
    %c0_56 = arith.constant 0 : index
    %c0_57 = arith.constant 0 : index
    %49 = vector.load %arg16[%c0_56, %c0_57] : memref<48x16xf32, #tpu.memory_space<vmem>>, vector<48x16xf32>
    %50 = arith.addf %49, %48 : vector<48x16xf32>
    %c0_58 = arith.constant 0 : index
    %c0_59 = arith.constant 0 : index
    %51 = vector.load %arg16[%c0_58, %c0_59] : memref<48x16xf32, #tpu.memory_space<vmem>>, vector<48x16xf32>
    tpu.vector_store %arg16[%c0_58, %c0_59], %50 {strides = array<i32>} : memref<48x16xf32, #tpu.memory_space<vmem>>, vector<48x16xf32>,
    %c0_60 = arith.constant 0 : index
    %c16 = arith.constant 16 : index
    %c0_61 = arith.constant 0 : index
    %52 = vector.load %arg2[%c0_60, %c16, %c0_61] : memref<1x66x8xf32, #tpu.memory_space<vmem>>, vector<1x48x8xf32>
    %53 = vector.shape_cast %52 : vector<1x48x8xf32> to vector<48x8xf32>
    %54 = arith.truncf %53 : vector<48x8xf32> to vector<48x8xbf16>
    %c0_62 = arith.constant 0 : index
    %c6 = arith.constant 6 : index
    %c0_63 = arith.constant 0 : index
    %c0_64 = arith.constant 0 : index
    %55 = vector.load %arg4[%c0_62, %c6, %c0_63, %c0_64] : memref<1x9x8x16xbf16, #tpu.memory_space<vmem>>, vector<1x1x8x16xbf16>
    %56 = vector.shape_cast %55 : vector<1x1x8x16xbf16> to vector<8x16xbf16>
    %cst_65 = arith.constant dense<0.000000e+00> : vector<48x16xf32>
    %57 = tpu.matmul %54, %56, %cst_65 {dimension_numbers = #tpu.dot_dimension_numbers<[1], [0], [0], [1], [0, 0, 1, 1], [], []>} : vector<48x8xbf16>, vector<8x16xbf16>, vector<48x16xf32> -> vector<48x16xf32>
    %c0_66 = arith.constant 0 : index
    %c0_67 = arith.constant 0 : index
    %58 = vector.load %arg16[%c0_66, %c0_67] : memref<48x16xf32, #tpu.memory_space<vmem>>, vector<48x16xf32>
    %59 = arith.addf %58, %57 : vector<48x16xf32>
    %c0_68 = arith.constant 0 : index
    %c0_69 = arith.constant 0 : index
    %60 = vector.load %arg16[%c0_68, %c0_69] : memref<48x16xf32, #tpu.memory_space<vmem>>, vector<48x16xf32>
    tpu.vector_store %arg16[%c0_68, %c0_69], %59 {strides = array<i32>} : memref<48x16xf32, #tpu.memory_space<vmem>>, vector<48x16xf32>,
    %c0_70 = arith.constant 0 : index
    %c17 = arith.constant 17 : index
    %c0_71 = arith.constant 0 : index
    %61 = vector.load %arg2[%c0_70, %c17, %c0_71] : memref<1x66x8xf32, #tpu.memory_space<vmem>>, vector<1x48x8xf32>
    %62 = vector.shape_cast %61 : vector<1x48x8xf32> to vector<48x8xf32>
    %63 = arith.truncf %62 : vector<48x8xf32> to vector<48x8xbf16>
    %c0_72 = arith.constant 0 : index
    %c7 = arith.constant 7 : index
    %c0_73 = arith.constant 0 : index
    %c0_74 = arith.constant 0 : index
    %64 = vector.load %arg4[%c0_72, %c7, %c0_73, %c0_74] : memref<1x9x8x16xbf16, #tpu.memory_space<vmem>>, vector<1x1x8x16xbf16>
    %65 = vector.shape_cast %64 : vector<1x1x8x16xbf16> to vector<8x16xbf16>
    %cst_75 = arith.constant dense<0.000000e+00> : vector<48x16xf32>
    %66 = tpu.matmul %63, %65, %cst_75 {dimension_numbers = #tpu.dot_dimension_numbers<[1], [0], [0], [1], [0, 0, 1, 1], [], []>} : vector<48x8xbf16>, vector<8x16xbf16>, vector<48x16xf32> -> vector<48x16xf32>
    %c0_76 = arith.constant 0 : index
    %c0_77 = arith.constant 0 : index
    %67 = vector.load %arg16[%c0_76, %c0_77] : memref<48x16xf32, #tpu.memory_space<vmem>>, vector<48x16xf32>
    %68 = arith.addf %67, %66 : vector<48x16xf32>
    %c0_78 = arith.constant 0 : index
    %c0_79 = arith.constant 0 : index
    %69 = vector.load %arg16[%c0_78, %c0_79] : memref<48x16xf32, #tpu.memory_space<vmem>>, vector<48x16xf32>
    tpu.vector_store %arg16[%c0_78, %c0_79], %68 {strides = array<i32>} : memref<48x16xf32, #tpu.memory_space<vmem>>, vector<48x16xf32>,
    %c0_80 = arith.constant 0 : index
    %c18 = arith.constant 18 : index
    %c0_81 = arith.constant 0 : index
    %70 = vector.load %arg2[%c0_80, %c18, %c0_81] : memref<1x66x8xf32, #tpu.memory_space<vmem>>, vector<1x48x8xf32>
    %71 = vector.shape_cast %70 : vector<1x48x8xf32> to vector<48x8xf32>
    %72 = arith.truncf %71 : vector<48x8xf32> to vector<48x8xbf16>
    %c0_82 = arith.constant 0 : index
    %c8_83 = arith.constant 8 : index
    %c0_84 = arith.constant 0 : index
    %c0_85 = arith.constant 0 : index
    %73 = vector.load %arg4[%c0_82, %c8_83, %c0_84, %c0_85] : memref<1x9x8x16xbf16, #tpu.memory_space<vmem>>, vector<1x1x8x16xbf16>
    %74 = vector.shape_cast %73 : vector<1x1x8x16xbf16> to vector<8x16xbf16>
    %cst_86 = arith.constant dense<0.000000e+00> : vector<48x16xf32>
    %75 = tpu.matmul %72, %74, %cst_86 {dimension_numbers = #tpu.dot_dimension_numbers<[1], [0], [0], [1], [0, 0, 1, 1], [], []>} : vector<48x8xbf16>, vector<8x16xbf16>, vector<48x16xf32> -> vector<48x16xf32>
    %c0_87 = arith.constant 0 : index
    %c0_88 = arith.constant 0 : index
    %76 = vector.load %arg16[%c0_87, %c0_88] : memref<48x16xf32, #tpu.memory_space<vmem>>, vector<48x16xf32>
    %77 = arith.addf %76, %75 : vector<48x16xf32>
    %c0_89 = arith.constant 0 : index
    %c0_90 = arith.constant 0 : index
    %78 = vector.load %arg16[%c0_89, %c0_90] : memref<48x16xf32, #tpu.memory_space<vmem>>, vector<48x16xf32>
    tpu.vector_store %arg16[%c0_89, %c0_90], %77 {strides = array<i32>} : memref<48x16xf32, #tpu.memory_space<vmem>>, vector<48x16xf32>,
    %c0_91 = arith.constant 0 : index
    %c0_92 = arith.constant 0 : index
    %79 = vector.load %arg16[%c0_91, %c0_92] : memref<48x16xf32, #tpu.memory_space<vmem>>, vector<48x16xf32>
    %c0_93 = arith.constant 0 : index
    %c0_94 = arith.constant 0 : index
    %c0_95 = arith.constant 0 : index
    %80 = vector.load %arg5[%c0_93, %c0_94, %c0_95] : memref<1x1x16xf32, #tpu.memory_space<vmem>>, vector<1x1x16xf32>
    %81 = vector.shape_cast %80 : vector<1x1x16xf32> to vector<1x16xf32>
    %82 = vector.broadcast %81 : vector<1x16xf32> to vector<48x16xf32>
    %83 = arith.mulf %79, %82 : vector<48x16xf32>
    %c0_96 = arith.constant 0 : index
    %c0_97 = arith.constant 0 : index
    %c0_98 = arith.constant 0 : index
    %84 = vector.load %arg6[%c0_96, %c0_97, %c0_98] : memref<1x1x16xf32, #tpu.memory_space<vmem>>, vector<1x1x16xf32>
    %85 = vector.shape_cast %84 : vector<1x1x16xf32> to vector<1x16xf32>
    %86 = vector.broadcast %85 : vector<1x16xf32> to vector<48x16xf32>
    %87 = arith.addf %83, %86 : vector<48x16xf32>
    %cst_99 = arith.constant 0.000000e+00 : f32
    %88 = vector.broadcast %cst_99 : f32 to vector<48x16xf32>
    %89 = arith.maximumf %87, %88 : vector<48x16xf32>
    %c0_100 = arith.constant 0 : index
    %c0_101 = arith.constant 0 : index
    %90 = vector.load %arg16[%c0_100, %c0_101] : memref<48x16xf32, #tpu.memory_space<vmem>>, vector<48x16xf32>
    tpu.vector_store %arg16[%c0_100, %c0_101], %89 {strides = array<i32>} : memref<48x16xf32, #tpu.memory_space<vmem>>, vector<48x16xf32>,
    %c0_102 = arith.constant 0 : index
    %c0_103 = arith.constant 0 : index
    %c0_104 = arith.constant 0 : index
    %91 = vector.load %arg3[%c0_102, %c0_103, %c0_104] : memref<1x258x8xf32, #tpu.memory_space<vmem>>, vector<1x224x8xf32>
    %92 = vector.shape_cast %91 : vector<1x224x8xf32> to vector<224x8xf32>
    %93 = arith.truncf %92 : vector<224x8xf32> to vector<224x8xbf16>
    %c0_105 = arith.constant 0 : index
    %c0_106 = arith.constant 0 : index
    %c0_107 = arith.constant 0 : index
    %c0_108 = arith.constant 0 : index
    %94 = vector.load %arg7[%c0_105, %c0_106, %c0_107, %c0_108] : memref<1x9x8x16xbf16, #tpu.memory_space<vmem>>, vector<1x1x8x16xbf16>
    %95 = vector.shape_cast %94 : vector<1x1x8x16xbf16> to vector<8x16xbf16>
    %cst_109 = arith.constant dense<0.000000e+00> : vector<224x16xf32>
    %96 = tpu.matmul %93, %95, %cst_109 {dimension_numbers = #tpu.dot_dimension_numbers<[1], [0], [0], [1], [0, 0, 1, 1], [], []>} : vector<224x8xbf16>, vector<8x16xbf16>, vector<224x16xf32> -> vector<224x16xf32>
    %c0_110 = arith.constant 0 : index
    %c0_111 = arith.constant 0 : index
    %97 = vector.load %arg17[%c0_110, %c0_111] : memref<229x16xf32, #tpu.memory_space<vmem>>, vector<224x16xf32>
    tpu.vector_store %arg17[%c0_110, %c0_111], %96 {strides = array<i32>} : memref<229x16xf32, #tpu.memory_space<vmem>>, vector<224x16xf32>,
    %c0_112 = arith.constant 0 : index
    %c1_113 = arith.constant 1 : index
    %c0_114 = arith.constant 0 : index
    %98 = vector.load %arg3[%c0_112, %c1_113, %c0_114] : memref<1x258x8xf32, #tpu.memory_space<vmem>>, vector<1x224x8xf32>
    %99 = vector.shape_cast %98 : vector<1x224x8xf32> to vector<224x8xf32>
    %100 = arith.truncf %99 : vector<224x8xf32> to vector<224x8xbf16>
    %c0_115 = arith.constant 0 : index
    %c1_116 = arith.constant 1 : index
    %c0_117 = arith.constant 0 : index
    %c0_118 = arith.constant 0 : index
    %101 = vector.load %arg7[%c0_115, %c1_116, %c0_117, %c0_118] : memref<1x9x8x16xbf16, #tpu.memory_space<vmem>>, vector<1x1x8x16xbf16>
    %102 = vector.shape_cast %101 : vector<1x1x8x16xbf16> to vector<8x16xbf16>
    %cst_119 = arith.constant dense<0.000000e+00> : vector<224x16xf32>
    %103 = tpu.matmul %100, %102, %cst_119 {dimension_numbers = #tpu.dot_dimension_numbers<[1], [0], [0], [1], [0, 0, 1, 1], [], []>} : vector<224x8xbf16>, vector<8x16xbf16>, vector<224x16xf32> -> vector<224x16xf32>
    %c0_120 = arith.constant 0 : index
    %c0_121 = arith.constant 0 : index
    %104 = vector.load %arg17[%c0_120, %c0_121] : memref<229x16xf32, #tpu.memory_space<vmem>>, vector<224x16xf32>
    %105 = arith.addf %104, %103 : vector<224x16xf32>
    %c0_122 = arith.constant 0 : index
    %c0_123 = arith.constant 0 : index
    %106 = vector.load %arg17[%c0_122, %c0_123] : memref<229x16xf32, #tpu.memory_space<vmem>>, vector<224x16xf32>
    tpu.vector_store %arg17[%c0_122, %c0_123], %105 {strides = array<i32>} : memref<229x16xf32, #tpu.memory_space<vmem>>, vector<224x16xf32>,
    %c0_124 = arith.constant 0 : index
    %c2_125 = arith.constant 2 : index
    %c0_126 = arith.constant 0 : index
    %107 = vector.load %arg3[%c0_124, %c2_125, %c0_126] : memref<1x258x8xf32, #tpu.memory_space<vmem>>, vector<1x224x8xf32>
    %108 = vector.shape_cast %107 : vector<1x224x8xf32> to vector<224x8xf32>
    %109 = arith.truncf %108 : vector<224x8xf32> to vector<224x8xbf16>
    %c0_127 = arith.constant 0 : index
    %c2_128 = arith.constant 2 : index
    %c0_129 = arith.constant 0 : index
    %c0_130 = arith.constant 0 : index
    %110 = vector.load %arg7[%c0_127, %c2_128, %c0_129, %c0_130] : memref<1x9x8x16xbf16, #tpu.memory_space<vmem>>, vector<1x1x8x16xbf16>
    %111 = vector.shape_cast %110 : vector<1x1x8x16xbf16> to vector<8x16xbf16>
    %cst_131 = arith.constant dense<0.000000e+00> : vector<224x16xf32>
    %112 = tpu.matmul %109, %111, %cst_131 {dimension_numbers = #tpu.dot_dimension_numbers<[1], [0], [0], [1], [0, 0, 1, 1], [], []>} : vector<224x8xbf16>, vector<8x16xbf16>, vector<224x16xf32> -> vector<224x16xf32>
    %c0_132 = arith.constant 0 : index
    %c0_133 = arith.constant 0 : index
    %113 = vector.load %arg17[%c0_132, %c0_133] : memref<229x16xf32, #tpu.memory_space<vmem>>, vector<224x16xf32>
    %114 = arith.addf %113, %112 : vector<224x16xf32>
    %c0_134 = arith.constant 0 : index
    %c0_135 = arith.constant 0 : index
    %115 = vector.load %arg17[%c0_134, %c0_135] : memref<229x16xf32, #tpu.memory_space<vmem>>, vector<224x16xf32>
    tpu.vector_store %arg17[%c0_134, %c0_135], %114 {strides = array<i32>} : memref<229x16xf32, #tpu.memory_space<vmem>>, vector<224x16xf32>,
    %c0_136 = arith.constant 0 : index
    %c16_137 = arith.constant 16 : index
    %c0_138 = arith.constant 0 : index
    %116 = vector.load %arg3[%c0_136, %c16_137, %c0_138] : memref<1x258x8xf32, #tpu.memory_space<vmem>>, vector<1x224x8xf32>
    %117 = vector.shape_cast %116 : vector<1x224x8xf32> to vector<224x8xf32>
    %118 = arith.truncf %117 : vector<224x8xf32> to vector<224x8xbf16>
    %c0_139 = arith.constant 0 : index
    %c3_140 = arith.constant 3 : index
    %c0_141 = arith.constant 0 : index
    %c0_142 = arith.constant 0 : index
    %119 = vector.load %arg7[%c0_139, %c3_140, %c0_141, %c0_142] : memref<1x9x8x16xbf16, #tpu.memory_space<vmem>>, vector<1x1x8x16xbf16>
    %120 = vector.shape_cast %119 : vector<1x1x8x16xbf16> to vector<8x16xbf16>
    %cst_143 = arith.constant dense<0.000000e+00> : vector<224x16xf32>
    %121 = tpu.matmul %118, %120, %cst_143 {dimension_numbers = #tpu.dot_dimension_numbers<[1], [0], [0], [1], [0, 0, 1, 1], [], []>} : vector<224x8xbf16>, vector<8x16xbf16>, vector<224x16xf32> -> vector<224x16xf32>
    %c0_144 = arith.constant 0 : index
    %c0_145 = arith.constant 0 : index
    %122 = vector.load %arg17[%c0_144, %c0_145] : memref<229x16xf32, #tpu.memory_space<vmem>>, vector<224x16xf32>
    %123 = arith.addf %122, %121 : vector<224x16xf32>
    %c0_146 = arith.constant 0 : index
    %c0_147 = arith.constant 0 : index
    %124 = vector.load %arg17[%c0_146, %c0_147] : memref<229x16xf32, #tpu.memory_space<vmem>>, vector<224x16xf32>
    tpu.vector_store %arg17[%c0_146, %c0_147], %123 {strides = array<i32>} : memref<229x16xf32, #tpu.memory_space<vmem>>, vector<224x16xf32>,
    %c0_148 = arith.constant 0 : index
    %c17_149 = arith.constant 17 : index
    %c0_150 = arith.constant 0 : index
    %125 = vector.load %arg3[%c0_148, %c17_149, %c0_150] : memref<1x258x8xf32, #tpu.memory_space<vmem>>, vector<1x224x8xf32>
    %126 = vector.shape_cast %125 : vector<1x224x8xf32> to vector<224x8xf32>
    %127 = arith.truncf %126 : vector<224x8xf32> to vector<224x8xbf16>
    %c0_151 = arith.constant 0 : index
    %c4_152 = arith.constant 4 : index
    %c0_153 = arith.constant 0 : index
    %c0_154 = arith.constant 0 : index
    %128 = vector.load %arg7[%c0_151, %c4_152, %c0_153, %c0_154] : memref<1x9x8x16xbf16, #tpu.memory_space<vmem>>, vector<1x1x8x16xbf16>
    %129 = vector.shape_cast %128 : vector<1x1x8x16xbf16> to vector<8x16xbf16>
    %cst_155 = arith.constant dense<0.000000e+00> : vector<224x16xf32>
    %130 = tpu.matmul %127, %129, %cst_155 {dimension_numbers = #tpu.dot_dimension_numbers<[1], [0], [0], [1], [0, 0, 1, 1], [], []>} : vector<224x8xbf16>, vector<8x16xbf16>, vector<224x16xf32> -> vector<224x16xf32>
    %c0_156 = arith.constant 0 : index
    %c0_157 = arith.constant 0 : index
    %131 = vector.load %arg17[%c0_156, %c0_157] : memref<229x16xf32, #tpu.memory_space<vmem>>, vector<224x16xf32>
    %132 = arith.addf %131, %130 : vector<224x16xf32>
    %c0_158 = arith.constant 0 : index
    %c0_159 = arith.constant 0 : index
    %133 = vector.load %arg17[%c0_158, %c0_159] : memref<229x16xf32, #tpu.memory_space<vmem>>, vector<224x16xf32>
    tpu.vector_store %arg17[%c0_158, %c0_159], %132 {strides = array<i32>} : memref<229x16xf32, #tpu.memory_space<vmem>>, vector<224x16xf32>,
    %c0_160 = arith.constant 0 : index
    %c18_161 = arith.constant 18 : index
    %c0_162 = arith.constant 0 : index
    %134 = vector.load %arg3[%c0_160, %c18_161, %c0_162] : memref<1x258x8xf32, #tpu.memory_space<vmem>>, vector<1x224x8xf32>
    %135 = vector.shape_cast %134 : vector<1x224x8xf32> to vector<224x8xf32>
    %136 = arith.truncf %135 : vector<224x8xf32> to vector<224x8xbf16>
    %c0_163 = arith.constant 0 : index
    %c5_164 = arith.constant 5 : index
    %c0_165 = arith.constant 0 : index
    %c0_166 = arith.constant 0 : index
    %137 = vector.load %arg7[%c0_163, %c5_164, %c0_165, %c0_166] : memref<1x9x8x16xbf16, #tpu.memory_space<vmem>>, vector<1x1x8x16xbf16>
    %138 = vector.shape_cast %137 : vector<1x1x8x16xbf16> to vector<8x16xbf16>
    %cst_167 = arith.constant dense<0.000000e+00> : vector<224x16xf32>
    %139 = tpu.matmul %136, %138, %cst_167 {dimension_numbers = #tpu.dot_dimension_numbers<[1], [0], [0], [1], [0, 0, 1, 1], [], []>} : vector<224x8xbf16>, vector<8x16xbf16>, vector<224x16xf32> -> vector<224x16xf32>
    %c0_168 = arith.constant 0 : index
    %c0_169 = arith.constant 0 : index
    %140 = vector.load %arg17[%c0_168, %c0_169] : memref<229x16xf32, #tpu.memory_space<vmem>>, vector<224x16xf32>
    %141 = arith.addf %140, %139 : vector<224x16xf32>
    %c0_170 = arith.constant 0 : index
    %c0_171 = arith.constant 0 : index
    %142 = vector.load %arg17[%c0_170, %c0_171] : memref<229x16xf32, #tpu.memory_space<vmem>>, vector<224x16xf32>
    tpu.vector_store %arg17[%c0_170, %c0_171], %141 {strides = array<i32>} : memref<229x16xf32, #tpu.memory_space<vmem>>, vector<224x16xf32>,
    %c0_172 = arith.constant 0 : index
    %c32 = arith.constant 32 : index
    %c0_173 = arith.constant 0 : index
    %143 = vector.load %arg3[%c0_172, %c32, %c0_173] : memref<1x258x8xf32, #tpu.memory_space<vmem>>, vector<1x224x8xf32>
    %144 = vector.shape_cast %143 : vector<1x224x8xf32> to vector<224x8xf32>
    %145 = arith.truncf %144 : vector<224x8xf32> to vector<224x8xbf16>
    %c0_174 = arith.constant 0 : index
    %c6_175 = arith.constant 6 : index
    %c0_176 = arith.constant 0 : index
    %c0_177 = arith.constant 0 : index
    %146 = vector.load %arg7[%c0_174, %c6_175, %c0_176, %c0_177] : memref<1x9x8x16xbf16, #tpu.memory_space<vmem>>, vector<1x1x8x16xbf16>
    %147 = vector.shape_cast %146 : vector<1x1x8x16xbf16> to vector<8x16xbf16>
    %cst_178 = arith.constant dense<0.000000e+00> : vector<224x16xf32>
    %148 = tpu.matmul %145, %147, %cst_178 {dimension_numbers = #tpu.dot_dimension_numbers<[1], [0], [0], [1], [0, 0, 1, 1], [], []>} : vector<224x8xbf16>, vector<8x16xbf16>, vector<224x16xf32> -> vector<224x16xf32>
    %c0_179 = arith.constant 0 : index
    %c0_180 = arith.constant 0 : index
    %149 = vector.load %arg17[%c0_179, %c0_180] : memref<229x16xf32, #tpu.memory_space<vmem>>, vector<224x16xf32>
    %150 = arith.addf %149, %148 : vector<224x16xf32>
    %c0_181 = arith.constant 0 : index
    %c0_182 = arith.constant 0 : index
    %151 = vector.load %arg17[%c0_181, %c0_182] : memref<229x16xf32, #tpu.memory_space<vmem>>, vector<224x16xf32>
    tpu.vector_store %arg17[%c0_181, %c0_182], %150 {strides = array<i32>} : memref<229x16xf32, #tpu.memory_space<vmem>>, vector<224x16xf32>,
    %c0_183 = arith.constant 0 : index
    %c33 = arith.constant 33 : index
    %c0_184 = arith.constant 0 : index
    %152 = vector.load %arg3[%c0_183, %c33, %c0_184] : memref<1x258x8xf32, #tpu.memory_space<vmem>>, vector<1x224x8xf32>
    %153 = vector.shape_cast %152 : vector<1x224x8xf32> to vector<224x8xf32>
    %154 = arith.truncf %153 : vector<224x8xf32> to vector<224x8xbf16>
    %c0_185 = arith.constant 0 : index
    %c7_186 = arith.constant 7 : index
    %c0_187 = arith.constant 0 : index
    %c0_188 = arith.constant 0 : index
    %155 = vector.load %arg7[%c0_185, %c7_186, %c0_187, %c0_188] : memref<1x9x8x16xbf16, #tpu.memory_space<vmem>>, vector<1x1x8x16xbf16>
    %156 = vector.shape_cast %155 : vector<1x1x8x16xbf16> to vector<8x16xbf16>
    %cst_189 = arith.constant dense<0.000000e+00> : vector<224x16xf32>
    %157 = tpu.matmul %154, %156, %cst_189 {dimension_numbers = #tpu.dot_dimension_numbers<[1], [0], [0], [1], [0, 0, 1, 1], [], []>} : vector<224x8xbf16>, vector<8x16xbf16>, vector<224x16xf32> -> vector<224x16xf32>
    %c0_190 = arith.constant 0 : index
    %c0_191 = arith.constant 0 : index
    %158 = vector.load %arg17[%c0_190, %c0_191] : memref<229x16xf32, #tpu.memory_space<vmem>>, vector<224x16xf32>
    %159 = arith.addf %158, %157 : vector<224x16xf32>
    %c0_192 = arith.constant 0 : index
    %c0_193 = arith.constant 0 : index
    %160 = vector.load %arg17[%c0_192, %c0_193] : memref<229x16xf32, #tpu.memory_space<vmem>>, vector<224x16xf32>
    tpu.vector_store %arg17[%c0_192, %c0_193], %159 {strides = array<i32>} : memref<229x16xf32, #tpu.memory_space<vmem>>, vector<224x16xf32>,
    %c0_194 = arith.constant 0 : index
    %c34 = arith.constant 34 : index
    %c0_195 = arith.constant 0 : index
    %161 = vector.load %arg3[%c0_194, %c34, %c0_195] : memref<1x258x8xf32, #tpu.memory_space<vmem>>, vector<1x224x8xf32>
    %162 = vector.shape_cast %161 : vector<1x224x8xf32> to vector<224x8xf32>
    %163 = arith.truncf %162 : vector<224x8xf32> to vector<224x8xbf16>
    %c0_196 = arith.constant 0 : index
    %c8_197 = arith.constant 8 : index
    %c0_198 = arith.constant 0 : index
    %c0_199 = arith.constant 0 : index
    %164 = vector.load %arg7[%c0_196, %c8_197, %c0_198, %c0_199] : memref<1x9x8x16xbf16, #tpu.memory_space<vmem>>, vector<1x1x8x16xbf16>
    %165 = vector.shape_cast %164 : vector<1x1x8x16xbf16> to vector<8x16xbf16>
    %cst_200 = arith.constant dense<0.000000e+00> : vector<224x16xf32>
    %166 = tpu.matmul %163, %165, %cst_200 {dimension_numbers = #tpu.dot_dimension_numbers<[1], [0], [0], [1], [0, 0, 1, 1], [], []>} : vector<224x8xbf16>, vector<8x16xbf16>, vector<224x16xf32> -> vector<224x16xf32>
    %c0_201 = arith.constant 0 : index
    %c0_202 = arith.constant 0 : index
    %167 = vector.load %arg17[%c0_201, %c0_202] : memref<229x16xf32, #tpu.memory_space<vmem>>, vector<224x16xf32>
    %168 = arith.addf %167, %166 : vector<224x16xf32>
    %c0_203 = arith.constant 0 : index
    %c0_204 = arith.constant 0 : index
    %169 = vector.load %arg17[%c0_203, %c0_204] : memref<229x16xf32, #tpu.memory_space<vmem>>, vector<224x16xf32>
    tpu.vector_store %arg17[%c0_203, %c0_204], %168 {strides = array<i32>} : memref<229x16xf32, #tpu.memory_space<vmem>>, vector<224x16xf32>,
    %c0_205 = arith.constant 0 : index
    %c0_206 = arith.constant 0 : index
    %170 = vector.load %arg17[%c0_205, %c0_206] : memref<229x16xf32, #tpu.memory_space<vmem>>, vector<224x16xf32>
    %c0_207 = arith.constant 0 : index
    %c0_208 = arith.constant 0 : index
    %c0_209 = arith.constant 0 : index
    %171 = vector.load %arg8[%c0_207, %c0_208, %c0_209] : memref<1x1x16xf32, #tpu.memory_space<vmem>>, vector<1x1x16xf32>
    %172 = vector.shape_cast %171 : vector<1x1x16xf32> to vector<1x16xf32>
    %173 = vector.broadcast %172 : vector<1x16xf32> to vector<224x16xf32>
    %174 = arith.mulf %170, %173 : vector<224x16xf32>
    %c0_210 = arith.constant 0 : index
    %c0_211 = arith.constant 0 : index
    %c0_212 = arith.constant 0 : index
    %175 = vector.load %arg9[%c0_210, %c0_211, %c0_212] : memref<1x1x16xf32, #tpu.memory_space<vmem>>, vector<1x1x16xf32>
    %176 = vector.shape_cast %175 : vector<1x1x16xf32> to vector<1x16xf32>
    %177 = vector.broadcast %176 : vector<1x16xf32> to vector<224x16xf32>
    %178 = arith.addf %174, %177 : vector<224x16xf32>
    %cst_213 = arith.constant 0.000000e+00 : f32
    %179 = vector.broadcast %cst_213 : f32 to vector<224x16xf32>
    %180 = arith.maximumf %178, %179 : vector<224x16xf32>
    %c0_214 = arith.constant 0 : index
    %c0_215 = arith.constant 0 : index
    %181 = vector.load %arg17[%c0_214, %c0_215] : memref<229x16xf32, #tpu.memory_space<vmem>>, vector<224x16xf32>
    tpu.vector_store %arg17[%c0_214, %c0_215], %180 {strides = array<i32>} : memref<229x16xf32, #tpu.memory_space<vmem>>, vector<224x16xf32>,
    %cst_216 = arith.constant 0.000000e+00 : f32
    %182 = vector.broadcast %cst_216 : f32 to vector<5x16xf32>
    %c224 = arith.constant 224 : index
    %c0_217 = arith.constant 0 : index
    %183 = vector.load %arg17[%c224, %c0_217] : memref<229x16xf32, #tpu.memory_space<vmem>>, vector<5x16xf32>
    tpu.vector_store %arg17[%c224, %c0_217], %182 {strides = array<i32>} : memref<229x16xf32, #tpu.memory_space<vmem>>, vector<5x16xf32>,
    %c0_218 = arith.constant 0 : index
    %c0_219 = arith.constant 0 : index
    %184 = vector.load %arg17[%c0_218, %c0_219] : memref<229x16xf32, #tpu.memory_space<vmem>>, vector<144x16xf32>
    %c0_220 = arith.constant 0 : index
    %c0_221 = arith.constant 0 : index
    %185 = vector.load %arg16[%c0_220, %c0_221] : memref<48x16xf32, #tpu.memory_space<vmem>>, vector<1x16xf32>
    %186 = vector.broadcast %185 : vector<1x16xf32> to vector<144x16xf32>
    %187 = arith.mulf %184, %186 : vector<144x16xf32>
    %c0_222 = arith.constant 0 : index
    %c0_223 = arith.constant 0 : index
    %188 = vector.load %arg18[%c0_222, %c0_223] : memref<144x16xf32, #tpu.memory_space<vmem>>, vector<144x16xf32>
    tpu.vector_store %arg18[%c0_222, %c0_223], %187 {strides = array<i32>} : memref<144x16xf32, #tpu.memory_space<vmem>>, vector<144x16xf32>,
    %c1_224 = arith.constant 1 : index
    %c0_225 = arith.constant 0 : index
    %189 = vector.load %arg17[%c1_224, %c0_225] : memref<229x16xf32, #tpu.memory_space<vmem>>, vector<144x16xf32>
    %c1_226 = arith.constant 1 : index
    %c0_227 = arith.constant 0 : index
    %190 = vector.load %arg16[%c1_226, %c0_227] : memref<48x16xf32, #tpu.memory_space<vmem>>, vector<1x16xf32>
    %191 = vector.broadcast %190 : vector<1x16xf32> to vector<144x16xf32>
    %192 = arith.mulf %189, %191 : vector<144x16xf32>
    %c0_228 = arith.constant 0 : index
    %c0_229 = arith.constant 0 : index
    %193 = vector.load %arg18[%c0_228, %c0_229] : memref<144x16xf32, #tpu.memory_space<vmem>>, vector<144x16xf32>
    %194 = arith.addf %193, %192 : vector<144x16xf32>
    %c0_230 = arith.constant 0 : index
    %c0_231 = arith.constant 0 : index
    %195 = vector.load %arg18[%c0_230, %c0_231] : memref<144x16xf32, #tpu.memory_space<vmem>>, vector<144x16xf32>
    tpu.vector_store %arg18[%c0_230, %c0_231], %194 {strides = array<i32>} : memref<144x16xf32, #tpu.memory_space<vmem>>, vector<144x16xf32>,
    %c2_232 = arith.constant 2 : index
    %c0_233 = arith.constant 0 : index
    %196 = vector.load %arg17[%c2_232, %c0_233] : memref<229x16xf32, #tpu.memory_space<vmem>>, vector<144x16xf32>
    %c2_234 = arith.constant 2 : index
    %c0_235 = arith.constant 0 : index
    %197 = vector.load %arg16[%c2_234, %c0_235] : memref<48x16xf32, #tpu.memory_space<vmem>>, vector<1x16xf32>
    %198 = vector.broadcast %197 : vector<1x16xf32> to vector<144x16xf32>
    %199 = arith.mulf %196, %198 : vector<144x16xf32>
    %c0_236 = arith.constant 0 : index
    %c0_237 = arith.constant 0 : index
    %200 = vector.load %arg18[%c0_236, %c0_237] : memref<144x16xf32, #tpu.memory_space<vmem>>, vector<144x16xf32>
    %201 = arith.addf %200, %199 : vector<144x16xf32>
    %c0_238 = arith.constant 0 : index
    %c0_239 = arith.constant 0 : index
    %202 = vector.load %arg18[%c0_238, %c0_239] : memref<144x16xf32, #tpu.memory_space<vmem>>, vector<144x16xf32>
    tpu.vector_store %arg18[%c0_238, %c0_239], %201 {strides = array<i32>} : memref<144x16xf32, #tpu.memory_space<vmem>>, vector<144x16xf32>,
    %c3_240 = arith.constant 3 : index
    %c0_241 = arith.constant 0 : index
    %203 = vector.load %arg17[%c3_240, %c0_241] : memref<229x16xf32, #tpu.memory_space<vmem>>, vector<144x16xf32>
    %c3_242 = arith.constant 3 : index
    %c0_243 = arith.constant 0 : index
    %204 = vector.load %arg16[%c3_242, %c0_243] : memref<48x16xf32, #tpu.memory_space<vmem>>, vector<1x16xf32>
    %205 = vector.broadcast %204 : vector<1x16xf32> to vector<144x16xf32>
    %206 = arith.mulf %203, %205 : vector<144x16xf32>
    %c0_244 = arith.constant 0 : index
    %c0_245 = arith.constant 0 : index
    %207 = vector.load %arg18[%c0_244, %c0_245] : memref<144x16xf32, #tpu.memory_space<vmem>>, vector<144x16xf32>
    %208 = arith.addf %207, %206 : vector<144x16xf32>
    %c0_246 = arith.constant 0 : index
    %c0_247 = arith.constant 0 : index
    %209 = vector.load %arg18[%c0_246, %c0_247] : memref<144x16xf32, #tpu.memory_space<vmem>>, vector<144x16xf32>
    tpu.vector_store %arg18[%c0_246, %c0_247], %208 {strides = array<i32>} : memref<144x16xf32, #tpu.memory_space<vmem>>, vector<144x16xf32>,
    %c4_248 = arith.constant 4 : index
    %c0_249 = arith.constant 0 : index
    %210 = vector.load %arg17[%c4_248, %c0_249] : memref<229x16xf32, #tpu.memory_space<vmem>>, vector<144x16xf32>
    %c4_250 = arith.constant 4 : index
    %c0_251 = arith.constant 0 : index
    %211 = vector.load %arg16[%c4_250, %c0_251] : memref<48x16xf32, #tpu.memory_space<vmem>>, vector<1x16xf32>
    %212 = vector.broadcast %211 : vector<1x16xf32> to vector<144x16xf32>
    %213 = arith.mulf %210, %212 : vector<144x16xf32>
    %c0_252 = arith.constant 0 : index
    %c0_253 = arith.constant 0 : index
    %214 = vector.load %arg18[%c0_252, %c0_253] : memref<144x16xf32, #tpu.memory_space<vmem>>, vector<144x16xf32>
    %215 = arith.addf %214, %213 : vector<144x16xf32>
    %c0_254 = arith.constant 0 : index
    %c0_255 = arith.constant 0 : index
    %216 = vector.load %arg18[%c0_254, %c0_255] : memref<144x16xf32, #tpu.memory_space<vmem>>, vector<144x16xf32>
    tpu.vector_store %arg18[%c0_254, %c0_255], %215 {strides = array<i32>} : memref<144x16xf32, #tpu.memory_space<vmem>>, vector<144x16xf32>,
    %c5_256 = arith.constant 5 : index
    %c0_257 = arith.constant 0 : index
    %217 = vector.load %arg17[%c5_256, %c0_257] : memref<229x16xf32, #tpu.memory_space<vmem>>, vector<144x16xf32>
    %c5_258 = arith.constant 5 : index
    %c0_259 = arith.constant 0 : index
    %218 = vector.load %arg16[%c5_258, %c0_259] : memref<48x16xf32, #tpu.memory_space<vmem>>, vector<1x16xf32>
    %219 = vector.broadcast %218 : vector<1x16xf32> to vector<144x16xf32>
    %220 = arith.mulf %217, %219 : vector<144x16xf32>
    %c0_260 = arith.constant 0 : index
    %c0_261 = arith.constant 0 : index
    %221 = vector.load %arg18[%c0_260, %c0_261] : memref<144x16xf32, #tpu.memory_space<vmem>>, vector<144x16xf32>
    %222 = arith.addf %221, %220 : vector<144x16xf32>
    %c0_262 = arith.constant 0 : index
    %c0_263 = arith.constant 0 : index
    %223 = vector.load %arg18[%c0_262, %c0_263] : memref<144x16xf32, #tpu.memory_space<vmem>>, vector<144x16xf32>
    tpu.vector_store %arg18[%c0_262, %c0_263], %222 {strides = array<i32>} : memref<144x16xf32, #tpu.memory_space<vmem>>, vector<144x16xf32>,
    %c16_264 = arith.constant 16 : index
    %c0_265 = arith.constant 0 : index
    %224 = vector.load %arg17[%c16_264, %c0_265] : memref<229x16xf32, #tpu.memory_space<vmem>>, vector<144x16xf32>
    %c8_266 = arith.constant 8 : index
    %c0_267 = arith.constant 0 : index
    %225 = vector.load %arg16[%c8_266, %c0_267] : memref<48x16xf32, #tpu.memory_space<vmem>>, vector<1x16xf32>
    %226 = vector.broadcast %225 : vector<1x16xf32> to vector<144x16xf32>
    %227 = arith.mulf %224, %226 : vector<144x16xf32>
    %c0_268 = arith.constant 0 : index
    %c0_269 = arith.constant 0 : index
    %228 = vector.load %arg18[%c0_268, %c0_269] : memref<144x16xf32, #tpu.memory_space<vmem>>, vector<144x16xf32>
    %229 = arith.addf %228, %227 : vector<144x16xf32>
    %c0_270 = arith.constant 0 : index
    %c0_271 = arith.constant 0 : index
    %230 = vector.load %arg18[%c0_270, %c0_271] : memref<144x16xf32, #tpu.memory_space<vmem>>, vector<144x16xf32>
    tpu.vector_store %arg18[%c0_270, %c0_271], %229 {strides = array<i32>} : memref<144x16xf32, #tpu.memory_space<vmem>>, vector<144x16xf32>,
    %c17_272 = arith.constant 17 : index
    %c0_273 = arith.constant 0 : index
    %231 = vector.load %arg17[%c17_272, %c0_273] : memref<229x16xf32, #tpu.memory_space<vmem>>, vector<144x16xf32>
    %c9_274 = arith.constant 9 : index
    %c0_275 = arith.constant 0 : index
    %232 = vector.load %arg16[%c9_274, %c0_275] : memref<48x16xf32, #tpu.memory_space<vmem>>, vector<1x16xf32>
    %233 = vector.broadcast %232 : vector<1x16xf32> to vector<144x16xf32>
    %234 = arith.mulf %231, %233 : vector<144x16xf32>
    %c0_276 = arith.constant 0 : index
    %c0_277 = arith.constant 0 : index
    %235 = vector.load %arg18[%c0_276, %c0_277] : memref<144x16xf32, #tpu.memory_space<vmem>>, vector<144x16xf32>
    %236 = arith.addf %235, %234 : vector<144x16xf32>
    %c0_278 = arith.constant 0 : index
    %c0_279 = arith.constant 0 : index
    %237 = vector.load %arg18[%c0_278, %c0_279] : memref<144x16xf32, #tpu.memory_space<vmem>>, vector<144x16xf32>
    tpu.vector_store %arg18[%c0_278, %c0_279], %236 {strides = array<i32>} : memref<144x16xf32, #tpu.memory_space<vmem>>, vector<144x16xf32>,
    %c18_280 = arith.constant 18 : index
    %c0_281 = arith.constant 0 : index
    %238 = vector.load %arg17[%c18_280, %c0_281] : memref<229x16xf32, #tpu.memory_space<vmem>>, vector<144x16xf32>
    %c10_282 = arith.constant 10 : index
    %c0_283 = arith.constant 0 : index
    %239 = vector.load %arg16[%c10_282, %c0_283] : memref<48x16xf32, #tpu.memory_space<vmem>>, vector<1x16xf32>
    %240 = vector.broadcast %239 : vector<1x16xf32> to vector<144x16xf32>
    %241 = arith.mulf %238, %240 : vector<144x16xf32>
    %c0_284 = arith.constant 0 : index
    %c0_285 = arith.constant 0 : index
    %242 = vector.load %arg18[%c0_284, %c0_285] : memref<144x16xf32, #tpu.memory_space<vmem>>, vector<144x16xf32>
    %243 = arith.addf %242, %241 : vector<144x16xf32>
    %c0_286 = arith.constant 0 : index
    %c0_287 = arith.constant 0 : index
    %244 = vector.load %arg18[%c0_286, %c0_287] : memref<144x16xf32, #tpu.memory_space<vmem>>, vector<144x16xf32>
    tpu.vector_store %arg18[%c0_286, %c0_287], %243 {strides = array<i32>} : memref<144x16xf32, #tpu.memory_space<vmem>>, vector<144x16xf32>,
    %c19 = arith.constant 19 : index
    %c0_288 = arith.constant 0 : index
    %245 = vector.load %arg17[%c19, %c0_288] : memref<229x16xf32, #tpu.memory_space<vmem>>, vector<144x16xf32>
    %c11 = arith.constant 11 : index
    %c0_289 = arith.constant 0 : index
    %246 = vector.load %arg16[%c11, %c0_289] : memref<48x16xf32, #tpu.memory_space<vmem>>, vector<1x16xf32>
    %247 = vector.broadcast %246 : vector<1x16xf32> to vector<144x16xf32>
    %248 = arith.mulf %245, %247 : vector<144x16xf32>
    %c0_290 = arith.constant 0 : index
    %c0_291 = arith.constant 0 : index
    %249 = vector.load %arg18[%c0_290, %c0_291] : memref<144x16xf32, #tpu.memory_space<vmem>>, vector<144x16xf32>
    %250 = arith.addf %249, %248 : vector<144x16xf32>
    %c0_292 = arith.constant 0 : index
    %c0_293 = arith.constant 0 : index
    %251 = vector.load %arg18[%c0_292, %c0_293] : memref<144x16xf32, #tpu.memory_space<vmem>>, vector<144x16xf32>
    tpu.vector_store %arg18[%c0_292, %c0_293], %250 {strides = array<i32>} : memref<144x16xf32, #tpu.memory_space<vmem>>, vector<144x16xf32>,
    %c20 = arith.constant 20 : index
    %c0_294 = arith.constant 0 : index
    %252 = vector.load %arg17[%c20, %c0_294] : memref<229x16xf32, #tpu.memory_space<vmem>>, vector<144x16xf32>
    %c12 = arith.constant 12 : index
    %c0_295 = arith.constant 0 : index
    %253 = vector.load %arg16[%c12, %c0_295] : memref<48x16xf32, #tpu.memory_space<vmem>>, vector<1x16xf32>
    %254 = vector.broadcast %253 : vector<1x16xf32> to vector<144x16xf32>
    %255 = arith.mulf %252, %254 : vector<144x16xf32>
    %c0_296 = arith.constant 0 : index
    %c0_297 = arith.constant 0 : index
    %256 = vector.load %arg18[%c0_296, %c0_297] : memref<144x16xf32, #tpu.memory_space<vmem>>, vector<144x16xf32>
    %257 = arith.addf %256, %255 : vector<144x16xf32>
    %c0_298 = arith.constant 0 : index
    %c0_299 = arith.constant 0 : index
    %258 = vector.load %arg18[%c0_298, %c0_299] : memref<144x16xf32, #tpu.memory_space<vmem>>, vector<144x16xf32>
    tpu.vector_store %arg18[%c0_298, %c0_299], %257 {strides = array<i32>} : memref<144x16xf32, #tpu.memory_space<vmem>>, vector<144x16xf32>,
    %c21 = arith.constant 21 : index
    %c0_300 = arith.constant 0 : index
    %259 = vector.load %arg17[%c21, %c0_300] : memref<229x16xf32, #tpu.memory_space<vmem>>, vector<144x16xf32>
    %c13 = arith.constant 13 : index
    %c0_301 = arith.constant 0 : index
    %260 = vector.load %arg16[%c13, %c0_301] : memref<48x16xf32, #tpu.memory_space<vmem>>, vector<1x16xf32>
    %261 = vector.broadcast %260 : vector<1x16xf32> to vector<144x16xf32>
    %262 = arith.mulf %259, %261 : vector<144x16xf32>
    %c0_302 = arith.constant 0 : index
    %c0_303 = arith.constant 0 : index
    %263 = vector.load %arg18[%c0_302, %c0_303] : memref<144x16xf32, #tpu.memory_space<vmem>>, vector<144x16xf32>
    %264 = arith.addf %263, %262 : vector<144x16xf32>
    %c0_304 = arith.constant 0 : index
    %c0_305 = arith.constant 0 : index
    %265 = vector.load %arg18[%c0_304, %c0_305] : memref<144x16xf32, #tpu.memory_space<vmem>>, vector<144x16xf32>
    tpu.vector_store %arg18[%c0_304, %c0_305], %264 {strides = array<i32>} : memref<144x16xf32, #tpu.memory_space<vmem>>, vector<144x16xf32>,
    %c32_306 = arith.constant 32 : index
    %c0_307 = arith.constant 0 : index
    %266 = vector.load %arg17[%c32_306, %c0_307] : memref<229x16xf32, #tpu.memory_space<vmem>>, vector<144x16xf32>
    %c16_308 = arith.constant 16 : index
    %c0_309 = arith.constant 0 : index
    %267 = vector.load %arg16[%c16_308, %c0_309] : memref<48x16xf32, #tpu.memory_space<vmem>>, vector<1x16xf32>
    %268 = vector.broadcast %267 : vector<1x16xf32> to vector<144x16xf32>
    %269 = arith.mulf %266, %268 : vector<144x16xf32>
    %c0_310 = arith.constant 0 : index
    %c0_311 = arith.constant 0 : index
    %270 = vector.load %arg18[%c0_310, %c0_311] : memref<144x16xf32, #tpu.memory_space<vmem>>, vector<144x16xf32>
    %271 = arith.addf %270, %269 : vector<144x16xf32>
    %c0_312 = arith.constant 0 : index
    %c0_313 = arith.constant 0 : index
    %272 = vector.load %arg18[%c0_312, %c0_313] : memref<144x16xf32, #tpu.memory_space<vmem>>, vector<144x16xf32>
    tpu.vector_store %arg18[%c0_312, %c0_313], %271 {strides = array<i32>} : memref<144x16xf32, #tpu.memory_space<vmem>>, vector<144x16xf32>,
    %c33_314 = arith.constant 33 : index
    %c0_315 = arith.constant 0 : index
    %273 = vector.load %arg17[%c33_314, %c0_315] : memref<229x16xf32, #tpu.memory_space<vmem>>, vector<144x16xf32>
    %c17_316 = arith.constant 17 : index
    %c0_317 = arith.constant 0 : index
    %274 = vector.load %arg16[%c17_316, %c0_317] : memref<48x16xf32, #tpu.memory_space<vmem>>, vector<1x16xf32>
    %275 = vector.broadcast %274 : vector<1x16xf32> to vector<144x16xf32>
    %276 = arith.mulf %273, %275 : vector<144x16xf32>
    %c0_318 = arith.constant 0 : index
    %c0_319 = arith.constant 0 : index
    %277 = vector.load %arg18[%c0_318, %c0_319] : memref<144x16xf32, #tpu.memory_space<vmem>>, vector<144x16xf32>
    %278 = arith.addf %277, %276 : vector<144x16xf32>
    %c0_320 = arith.constant 0 : index
    %c0_321 = arith.constant 0 : index
    %279 = vector.load %arg18[%c0_320, %c0_321] : memref<144x16xf32, #tpu.memory_space<vmem>>, vector<144x16xf32>
    tpu.vector_store %arg18[%c0_320, %c0_321], %278 {strides = array<i32>} : memref<144x16xf32, #tpu.memory_space<vmem>>, vector<144x16xf32>,
    %c34_322 = arith.constant 34 : index
    %c0_323 = arith.constant 0 : index
    %280 = vector.load %arg17[%c34_322, %c0_323] : memref<229x16xf32, #tpu.memory_space<vmem>>, vector<144x16xf32>
    %c18_324 = arith.constant 18 : index
    %c0_325 = arith.constant 0 : index
    %281 = vector.load %arg16[%c18_324, %c0_325] : memref<48x16xf32, #tpu.memory_space<vmem>>, vector<1x16xf32>
    %282 = vector.broadcast %281 : vector<1x16xf32> to vector<144x16xf32>
    %283 = arith.mulf %280, %282 : vector<144x16xf32>
    %c0_326 = arith.constant 0 : index
    %c0_327 = arith.constant 0 : index
    %284 = vector.load %arg18[%c0_326, %c0_327] : memref<144x16xf32, #tpu.memory_space<vmem>>, vector<144x16xf32>
    %285 = arith.addf %284, %283 : vector<144x16xf32>
    %c0_328 = arith.constant 0 : index
    %c0_329 = arith.constant 0 : index
    %286 = vector.load %arg18[%c0_328, %c0_329] : memref<144x16xf32, #tpu.memory_space<vmem>>, vector<144x16xf32>
    tpu.vector_store %arg18[%c0_328, %c0_329], %285 {strides = array<i32>} : memref<144x16xf32, #tpu.memory_space<vmem>>, vector<144x16xf32>,
    %c35 = arith.constant 35 : index
    %c0_330 = arith.constant 0 : index
    %287 = vector.load %arg17[%c35, %c0_330] : memref<229x16xf32, #tpu.memory_space<vmem>>, vector<144x16xf32>
    %c19_331 = arith.constant 19 : index
    %c0_332 = arith.constant 0 : index
    %288 = vector.load %arg16[%c19_331, %c0_332] : memref<48x16xf32, #tpu.memory_space<vmem>>, vector<1x16xf32>
    %289 = vector.broadcast %288 : vector<1x16xf32> to vector<144x16xf32>
    %290 = arith.mulf %287, %289 : vector<144x16xf32>
    %c0_333 = arith.constant 0 : index
    %c0_334 = arith.constant 0 : index
    %291 = vector.load %arg18[%c0_333, %c0_334] : memref<144x16xf32, #tpu.memory_space<vmem>>, vector<144x16xf32>
    %292 = arith.addf %291, %290 : vector<144x16xf32>
    %c0_335 = arith.constant 0 : index
    %c0_336 = arith.constant 0 : index
    %293 = vector.load %arg18[%c0_335, %c0_336] : memref<144x16xf32, #tpu.memory_space<vmem>>, vector<144x16xf32>
    tpu.vector_store %arg18[%c0_335, %c0_336], %292 {strides = array<i32>} : memref<144x16xf32, #tpu.memory_space<vmem>>, vector<144x16xf32>,
    %c36 = arith.constant 36 : index
    %c0_337 = arith.constant 0 : index
    %294 = vector.load %arg17[%c36, %c0_337] : memref<229x16xf32, #tpu.memory_space<vmem>>, vector<144x16xf32>
    %c20_338 = arith.constant 20 : index
    %c0_339 = arith.constant 0 : index
    %295 = vector.load %arg16[%c20_338, %c0_339] : memref<48x16xf32, #tpu.memory_space<vmem>>, vector<1x16xf32>
    %296 = vector.broadcast %295 : vector<1x16xf32> to vector<144x16xf32>
    %297 = arith.mulf %294, %296 : vector<144x16xf32>
    %c0_340 = arith.constant 0 : index
    %c0_341 = arith.constant 0 : index
    %298 = vector.load %arg18[%c0_340, %c0_341] : memref<144x16xf32, #tpu.memory_space<vmem>>, vector<144x16xf32>
    %299 = arith.addf %298, %297 : vector<144x16xf32>
    %c0_342 = arith.constant 0 : index
    %c0_343 = arith.constant 0 : index
    %300 = vector.load %arg18[%c0_342, %c0_343] : memref<144x16xf32, #tpu.memory_space<vmem>>, vector<144x16xf32>
    tpu.vector_store %arg18[%c0_342, %c0_343], %299 {strides = array<i32>} : memref<144x16xf32, #tpu.memory_space<vmem>>, vector<144x16xf32>,
    %c37 = arith.constant 37 : index
    %c0_344 = arith.constant 0 : index
    %301 = vector.load %arg17[%c37, %c0_344] : memref<229x16xf32, #tpu.memory_space<vmem>>, vector<144x16xf32>
    %c21_345 = arith.constant 21 : index
    %c0_346 = arith.constant 0 : index
    %302 = vector.load %arg16[%c21_345, %c0_346] : memref<48x16xf32, #tpu.memory_space<vmem>>, vector<1x16xf32>
    %303 = vector.broadcast %302 : vector<1x16xf32> to vector<144x16xf32>
    %304 = arith.mulf %301, %303 : vector<144x16xf32>
    %c0_347 = arith.constant 0 : index
    %c0_348 = arith.constant 0 : index
    %305 = vector.load %arg18[%c0_347, %c0_348] : memref<144x16xf32, #tpu.memory_space<vmem>>, vector<144x16xf32>
    %306 = arith.addf %305, %304 : vector<144x16xf32>
    %c0_349 = arith.constant 0 : index
    %c0_350 = arith.constant 0 : index
    %307 = vector.load %arg18[%c0_349, %c0_350] : memref<144x16xf32, #tpu.memory_space<vmem>>, vector<144x16xf32>
    tpu.vector_store %arg18[%c0_349, %c0_350], %306 {strides = array<i32>} : memref<144x16xf32, #tpu.memory_space<vmem>>, vector<144x16xf32>,
    %c48 = arith.constant 48 : index
    %c0_351 = arith.constant 0 : index
    %308 = vector.load %arg17[%c48, %c0_351] : memref<229x16xf32, #tpu.memory_space<vmem>>, vector<144x16xf32>
    %c24 = arith.constant 24 : index
    %c0_352 = arith.constant 0 : index
    %309 = vector.load %arg16[%c24, %c0_352] : memref<48x16xf32, #tpu.memory_space<vmem>>, vector<1x16xf32>
    %310 = vector.broadcast %309 : vector<1x16xf32> to vector<144x16xf32>
    %311 = arith.mulf %308, %310 : vector<144x16xf32>
    %c0_353 = arith.constant 0 : index
    %c0_354 = arith.constant 0 : index
    %312 = vector.load %arg18[%c0_353, %c0_354] : memref<144x16xf32, #tpu.memory_space<vmem>>, vector<144x16xf32>
    %313 = arith.addf %312, %311 : vector<144x16xf32>
    %c0_355 = arith.constant 0 : index
    %c0_356 = arith.constant 0 : index
    %314 = vector.load %arg18[%c0_355, %c0_356] : memref<144x16xf32, #tpu.memory_space<vmem>>, vector<144x16xf32>
    tpu.vector_store %arg18[%c0_355, %c0_356], %313 {strides = array<i32>} : memref<144x16xf32, #tpu.memory_space<vmem>>, vector<144x16xf32>,
    %c49 = arith.constant 49 : index
    %c0_357 = arith.constant 0 : index
    %315 = vector.load %arg17[%c49, %c0_357] : memref<229x16xf32, #tpu.memory_space<vmem>>, vector<144x16xf32>
    %c25 = arith.constant 25 : index
    %c0_358 = arith.constant 0 : index
    %316 = vector.load %arg16[%c25, %c0_358] : memref<48x16xf32, #tpu.memory_space<vmem>>, vector<1x16xf32>
    %317 = vector.broadcast %316 : vector<1x16xf32> to vector<144x16xf32>
    %318 = arith.mulf %315, %317 : vector<144x16xf32>
    %c0_359 = arith.constant 0 : index
    %c0_360 = arith.constant 0 : index
    %319 = vector.load %arg18[%c0_359, %c0_360] : memref<144x16xf32, #tpu.memory_space<vmem>>, vector<144x16xf32>
    %320 = arith.addf %319, %318 : vector<144x16xf32>
    %c0_361 = arith.constant 0 : index
    %c0_362 = arith.constant 0 : index
    %321 = vector.load %arg18[%c0_361, %c0_362] : memref<144x16xf32, #tpu.memory_space<vmem>>, vector<144x16xf32>
    tpu.vector_store %arg18[%c0_361, %c0_362], %320 {strides = array<i32>} : memref<144x16xf32, #tpu.memory_space<vmem>>, vector<144x16xf32>,
    %c50 = arith.constant 50 : index
    %c0_363 = arith.constant 0 : index
    %322 = vector.load %arg17[%c50, %c0_363] : memref<229x16xf32, #tpu.memory_space<vmem>>, vector<144x16xf32>
    %c26 = arith.constant 26 : index
    %c0_364 = arith.constant 0 : index
    %323 = vector.load %arg16[%c26, %c0_364] : memref<48x16xf32, #tpu.memory_space<vmem>>, vector<1x16xf32>
    %324 = vector.broadcast %323 : vector<1x16xf32> to vector<144x16xf32>
    %325 = arith.mulf %322, %324 : vector<144x16xf32>
    %c0_365 = arith.constant 0 : index
    %c0_366 = arith.constant 0 : index
    %326 = vector.load %arg18[%c0_365, %c0_366] : memref<144x16xf32, #tpu.memory_space<vmem>>, vector<144x16xf32>
    %327 = arith.addf %326, %325 : vector<144x16xf32>
    %c0_367 = arith.constant 0 : index
    %c0_368 = arith.constant 0 : index
    %328 = vector.load %arg18[%c0_367, %c0_368] : memref<144x16xf32, #tpu.memory_space<vmem>>, vector<144x16xf32>
    tpu.vector_store %arg18[%c0_367, %c0_368], %327 {strides = array<i32>} : memref<144x16xf32, #tpu.memory_space<vmem>>, vector<144x16xf32>,
    %c51 = arith.constant 51 : index
    %c0_369 = arith.constant 0 : index
    %329 = vector.load %arg17[%c51, %c0_369] : memref<229x16xf32, #tpu.memory_space<vmem>>, vector<144x16xf32>
    %c27 = arith.constant 27 : index
    %c0_370 = arith.constant 0 : index
    %330 = vector.load %arg16[%c27, %c0_370] : memref<48x16xf32, #tpu.memory_space<vmem>>, vector<1x16xf32>
    %331 = vector.broadcast %330 : vector<1x16xf32> to vector<144x16xf32>
    %332 = arith.mulf %329, %331 : vector<144x16xf32>
    %c0_371 = arith.constant 0 : index
    %c0_372 = arith.constant 0 : index
    %333 = vector.load %arg18[%c0_371, %c0_372] : memref<144x16xf32, #tpu.memory_space<vmem>>, vector<144x16xf32>
    %334 = arith.addf %333, %332 : vector<144x16xf32>
    %c0_373 = arith.constant 0 : index
    %c0_374 = arith.constant 0 : index
    %335 = vector.load %arg18[%c0_373, %c0_374] : memref<144x16xf32, #tpu.memory_space<vmem>>, vector<144x16xf32>
    tpu.vector_store %arg18[%c0_373, %c0_374], %334 {strides = array<i32>} : memref<144x16xf32, #tpu.memory_space<vmem>>, vector<144x16xf32>,
    %c52 = arith.constant 52 : index
    %c0_375 = arith.constant 0 : index
    %336 = vector.load %arg17[%c52, %c0_375] : memref<229x16xf32, #tpu.memory_space<vmem>>, vector<144x16xf32>
    %c28 = arith.constant 28 : index
    %c0_376 = arith.constant 0 : index
    %337 = vector.load %arg16[%c28, %c0_376] : memref<48x16xf32, #tpu.memory_space<vmem>>, vector<1x16xf32>
    %338 = vector.broadcast %337 : vector<1x16xf32> to vector<144x16xf32>
    %339 = arith.mulf %336, %338 : vector<144x16xf32>
    %c0_377 = arith.constant 0 : index
    %c0_378 = arith.constant 0 : index
    %340 = vector.load %arg18[%c0_377, %c0_378] : memref<144x16xf32, #tpu.memory_space<vmem>>, vector<144x16xf32>
    %341 = arith.addf %340, %339 : vector<144x16xf32>
    %c0_379 = arith.constant 0 : index
    %c0_380 = arith.constant 0 : index
    %342 = vector.load %arg18[%c0_379, %c0_380] : memref<144x16xf32, #tpu.memory_space<vmem>>, vector<144x16xf32>
    tpu.vector_store %arg18[%c0_379, %c0_380], %341 {strides = array<i32>} : memref<144x16xf32, #tpu.memory_space<vmem>>, vector<144x16xf32>,
    %c53 = arith.constant 53 : index
    %c0_381 = arith.constant 0 : index
    %343 = vector.load %arg17[%c53, %c0_381] : memref<229x16xf32, #tpu.memory_space<vmem>>, vector<144x16xf32>
    %c29 = arith.constant 29 : index
    %c0_382 = arith.constant 0 : index
    %344 = vector.load %arg16[%c29, %c0_382] : memref<48x16xf32, #tpu.memory_space<vmem>>, vector<1x16xf32>
    %345 = vector.broadcast %344 : vector<1x16xf32> to vector<144x16xf32>
    %346 = arith.mulf %343, %345 : vector<144x16xf32>
    %c0_383 = arith.constant 0 : index
    %c0_384 = arith.constant 0 : index
    %347 = vector.load %arg18[%c0_383, %c0_384] : memref<144x16xf32, #tpu.memory_space<vmem>>, vector<144x16xf32>
    %348 = arith.addf %347, %346 : vector<144x16xf32>
    %c0_385 = arith.constant 0 : index
    %c0_386 = arith.constant 0 : index
    %349 = vector.load %arg18[%c0_385, %c0_386] : memref<144x16xf32, #tpu.memory_space<vmem>>, vector<144x16xf32>
    tpu.vector_store %arg18[%c0_385, %c0_386], %348 {strides = array<i32>} : memref<144x16xf32, #tpu.memory_space<vmem>>, vector<144x16xf32>,
    %c64 = arith.constant 64 : index
    %c0_387 = arith.constant 0 : index
    %350 = vector.load %arg17[%c64, %c0_387] : memref<229x16xf32, #tpu.memory_space<vmem>>, vector<144x16xf32>
    %c32_388 = arith.constant 32 : index
    %c0_389 = arith.constant 0 : index
    %351 = vector.load %arg16[%c32_388, %c0_389] : memref<48x16xf32, #tpu.memory_space<vmem>>, vector<1x16xf32>
    %352 = vector.broadcast %351 : vector<1x16xf32> to vector<144x16xf32>
    %353 = arith.mulf %350, %352 : vector<144x16xf32>
    %c0_390 = arith.constant 0 : index
    %c0_391 = arith.constant 0 : index
    %354 = vector.load %arg18[%c0_390, %c0_391] : memref<144x16xf32, #tpu.memory_space<vmem>>, vector<144x16xf32>
    %355 = arith.addf %354, %353 : vector<144x16xf32>
    %c0_392 = arith.constant 0 : index
    %c0_393 = arith.constant 0 : index
    %356 = vector.load %arg18[%c0_392, %c0_393] : memref<144x16xf32, #tpu.memory_space<vmem>>, vector<144x16xf32>
    tpu.vector_store %arg18[%c0_392, %c0_393], %355 {strides = array<i32>} : memref<144x16xf32, #tpu.memory_space<vmem>>, vector<144x16xf32>,
    %c65 = arith.constant 65 : index
    %c0_394 = arith.constant 0 : index
    %357 = vector.load %arg17[%c65, %c0_394] : memref<229x16xf32, #tpu.memory_space<vmem>>, vector<144x16xf32>
    %c33_395 = arith.constant 33 : index
    %c0_396 = arith.constant 0 : index
    %358 = vector.load %arg16[%c33_395, %c0_396] : memref<48x16xf32, #tpu.memory_space<vmem>>, vector<1x16xf32>
    %359 = vector.broadcast %358 : vector<1x16xf32> to vector<144x16xf32>
    %360 = arith.mulf %357, %359 : vector<144x16xf32>
    %c0_397 = arith.constant 0 : index
    %c0_398 = arith.constant 0 : index
    %361 = vector.load %arg18[%c0_397, %c0_398] : memref<144x16xf32, #tpu.memory_space<vmem>>, vector<144x16xf32>
    %362 = arith.addf %361, %360 : vector<144x16xf32>
    %c0_399 = arith.constant 0 : index
    %c0_400 = arith.constant 0 : index
    %363 = vector.load %arg18[%c0_399, %c0_400] : memref<144x16xf32, #tpu.memory_space<vmem>>, vector<144x16xf32>
    tpu.vector_store %arg18[%c0_399, %c0_400], %362 {strides = array<i32>} : memref<144x16xf32, #tpu.memory_space<vmem>>, vector<144x16xf32>,
    %c66 = arith.constant 66 : index
    %c0_401 = arith.constant 0 : index
    %364 = vector.load %arg17[%c66, %c0_401] : memref<229x16xf32, #tpu.memory_space<vmem>>, vector<144x16xf32>
    %c34_402 = arith.constant 34 : index
    %c0_403 = arith.constant 0 : index
    %365 = vector.load %arg16[%c34_402, %c0_403] : memref<48x16xf32, #tpu.memory_space<vmem>>, vector<1x16xf32>
    %366 = vector.broadcast %365 : vector<1x16xf32> to vector<144x16xf32>
    %367 = arith.mulf %364, %366 : vector<144x16xf32>
    %c0_404 = arith.constant 0 : index
    %c0_405 = arith.constant 0 : index
    %368 = vector.load %arg18[%c0_404, %c0_405] : memref<144x16xf32, #tpu.memory_space<vmem>>, vector<144x16xf32>
    %369 = arith.addf %368, %367 : vector<144x16xf32>
    %c0_406 = arith.constant 0 : index
    %c0_407 = arith.constant 0 : index
    %370 = vector.load %arg18[%c0_406, %c0_407] : memref<144x16xf32, #tpu.memory_space<vmem>>, vector<144x16xf32>
    tpu.vector_store %arg18[%c0_406, %c0_407], %369 {strides = array<i32>} : memref<144x16xf32, #tpu.memory_space<vmem>>, vector<144x16xf32>,
    %c67 = arith.constant 67 : index
    %c0_408 = arith.constant 0 : index
    %371 = vector.load %arg17[%c67, %c0_408] : memref<229x16xf32, #tpu.memory_space<vmem>>, vector<144x16xf32>
    %c35_409 = arith.constant 35 : index
    %c0_410 = arith.constant 0 : index
    %372 = vector.load %arg16[%c35_409, %c0_410] : memref<48x16xf32, #tpu.memory_space<vmem>>, vector<1x16xf32>
    %373 = vector.broadcast %372 : vector<1x16xf32> to vector<144x16xf32>
    %374 = arith.mulf %371, %373 : vector<144x16xf32>
    %c0_411 = arith.constant 0 : index
    %c0_412 = arith.constant 0 : index
    %375 = vector.load %arg18[%c0_411, %c0_412] : memref<144x16xf32, #tpu.memory_space<vmem>>, vector<144x16xf32>
    %376 = arith.addf %375, %374 : vector<144x16xf32>
    %c0_413 = arith.constant 0 : index
    %c0_414 = arith.constant 0 : index
    %377 = vector.load %arg18[%c0_413, %c0_414] : memref<144x16xf32, #tpu.memory_space<vmem>>, vector<144x16xf32>
    tpu.vector_store %arg18[%c0_413, %c0_414], %376 {strides = array<i32>} : memref<144x16xf32, #tpu.memory_space<vmem>>, vector<144x16xf32>,
    %c68 = arith.constant 68 : index
    %c0_415 = arith.constant 0 : index
    %378 = vector.load %arg17[%c68, %c0_415] : memref<229x16xf32, #tpu.memory_space<vmem>>, vector<144x16xf32>
    %c36_416 = arith.constant 36 : index
    %c0_417 = arith.constant 0 : index
    %379 = vector.load %arg16[%c36_416, %c0_417] : memref<48x16xf32, #tpu.memory_space<vmem>>, vector<1x16xf32>
    %380 = vector.broadcast %379 : vector<1x16xf32> to vector<144x16xf32>
    %381 = arith.mulf %378, %380 : vector<144x16xf32>
    %c0_418 = arith.constant 0 : index
    %c0_419 = arith.constant 0 : index
    %382 = vector.load %arg18[%c0_418, %c0_419] : memref<144x16xf32, #tpu.memory_space<vmem>>, vector<144x16xf32>
    %383 = arith.addf %382, %381 : vector<144x16xf32>
    %c0_420 = arith.constant 0 : index
    %c0_421 = arith.constant 0 : index
    %384 = vector.load %arg18[%c0_420, %c0_421] : memref<144x16xf32, #tpu.memory_space<vmem>>, vector<144x16xf32>
    tpu.vector_store %arg18[%c0_420, %c0_421], %383 {strides = array<i32>} : memref<144x16xf32, #tpu.memory_space<vmem>>, vector<144x16xf32>,
    %c69 = arith.constant 69 : index
    %c0_422 = arith.constant 0 : index
    %385 = vector.load %arg17[%c69, %c0_422] : memref<229x16xf32, #tpu.memory_space<vmem>>, vector<144x16xf32>
    %c37_423 = arith.constant 37 : index
    %c0_424 = arith.constant 0 : index
    %386 = vector.load %arg16[%c37_423, %c0_424] : memref<48x16xf32, #tpu.memory_space<vmem>>, vector<1x16xf32>
    %387 = vector.broadcast %386 : vector<1x16xf32> to vector<144x16xf32>
    %388 = arith.mulf %385, %387 : vector<144x16xf32>
    %c0_425 = arith.constant 0 : index
    %c0_426 = arith.constant 0 : index
    %389 = vector.load %arg18[%c0_425, %c0_426] : memref<144x16xf32, #tpu.memory_space<vmem>>, vector<144x16xf32>
    %390 = arith.addf %389, %388 : vector<144x16xf32>
    %c0_427 = arith.constant 0 : index
    %c0_428 = arith.constant 0 : index
    %391 = vector.load %arg18[%c0_427, %c0_428] : memref<144x16xf32, #tpu.memory_space<vmem>>, vector<144x16xf32>
    tpu.vector_store %arg18[%c0_427, %c0_428], %390 {strides = array<i32>} : memref<144x16xf32, #tpu.memory_space<vmem>>, vector<144x16xf32>,
    %c80 = arith.constant 80 : index
    %c0_429 = arith.constant 0 : index
    %392 = vector.load %arg17[%c80, %c0_429] : memref<229x16xf32, #tpu.memory_space<vmem>>, vector<144x16xf32>
    %c40 = arith.constant 40 : index
    %c0_430 = arith.constant 0 : index
    %393 = vector.load %arg16[%c40, %c0_430] : memref<48x16xf32, #tpu.memory_space<vmem>>, vector<1x16xf32>
    %394 = vector.broadcast %393 : vector<1x16xf32> to vector<144x16xf32>
    %395 = arith.mulf %392, %394 : vector<144x16xf32>
    %c0_431 = arith.constant 0 : index
    %c0_432 = arith.constant 0 : index
    %396 = vector.load %arg18[%c0_431, %c0_432] : memref<144x16xf32, #tpu.memory_space<vmem>>, vector<144x16xf32>
    %397 = arith.addf %396, %395 : vector<144x16xf32>
    %c0_433 = arith.constant 0 : index
    %c0_434 = arith.constant 0 : index
    %398 = vector.load %arg18[%c0_433, %c0_434] : memref<144x16xf32, #tpu.memory_space<vmem>>, vector<144x16xf32>
    tpu.vector_store %arg18[%c0_433, %c0_434], %397 {strides = array<i32>} : memref<144x16xf32, #tpu.memory_space<vmem>>, vector<144x16xf32>,
    %c81 = arith.constant 81 : index
    %c0_435 = arith.constant 0 : index
    %399 = vector.load %arg17[%c81, %c0_435] : memref<229x16xf32, #tpu.memory_space<vmem>>, vector<144x16xf32>
    %c41 = arith.constant 41 : index
    %c0_436 = arith.constant 0 : index
    %400 = vector.load %arg16[%c41, %c0_436] : memref<48x16xf32, #tpu.memory_space<vmem>>, vector<1x16xf32>
    %401 = vector.broadcast %400 : vector<1x16xf32> to vector<144x16xf32>
    %402 = arith.mulf %399, %401 : vector<144x16xf32>
    %c0_437 = arith.constant 0 : index
    %c0_438 = arith.constant 0 : index
    %403 = vector.load %arg18[%c0_437, %c0_438] : memref<144x16xf32, #tpu.memory_space<vmem>>, vector<144x16xf32>
    %404 = arith.addf %403, %402 : vector<144x16xf32>
    %c0_439 = arith.constant 0 : index
    %c0_440 = arith.constant 0 : index
    %405 = vector.load %arg18[%c0_439, %c0_440] : memref<144x16xf32, #tpu.memory_space<vmem>>, vector<144x16xf32>
    tpu.vector_store %arg18[%c0_439, %c0_440], %404 {strides = array<i32>} : memref<144x16xf32, #tpu.memory_space<vmem>>, vector<144x16xf32>,
    %c82 = arith.constant 82 : index
    %c0_441 = arith.constant 0 : index
    %406 = vector.load %arg17[%c82, %c0_441] : memref<229x16xf32, #tpu.memory_space<vmem>>, vector<144x16xf32>
    %c42 = arith.constant 42 : index
    %c0_442 = arith.constant 0 : index
    %407 = vector.load %arg16[%c42, %c0_442] : memref<48x16xf32, #tpu.memory_space<vmem>>, vector<1x16xf32>
    %408 = vector.broadcast %407 : vector<1x16xf32> to vector<144x16xf32>
    %409 = arith.mulf %406, %408 : vector<144x16xf32>
    %c0_443 = arith.constant 0 : index
    %c0_444 = arith.constant 0 : index
    %410 = vector.load %arg18[%c0_443, %c0_444] : memref<144x16xf32, #tpu.memory_space<vmem>>, vector<144x16xf32>
    %411 = arith.addf %410, %409 : vector<144x16xf32>
    %c0_445 = arith.constant 0 : index
    %c0_446 = arith.constant 0 : index
    %412 = vector.load %arg18[%c0_445, %c0_446] : memref<144x16xf32, #tpu.memory_space<vmem>>, vector<144x16xf32>
    tpu.vector_store %arg18[%c0_445, %c0_446], %411 {strides = array<i32>} : memref<144x16xf32, #tpu.memory_space<vmem>>, vector<144x16xf32>,
    %c83 = arith.constant 83 : index
    %c0_447 = arith.constant 0 : index
    %413 = vector.load %arg17[%c83, %c0_447] : memref<229x16xf32, #tpu.memory_space<vmem>>, vector<144x16xf32>
    %c43 = arith.constant 43 : index
    %c0_448 = arith.constant 0 : index
    %414 = vector.load %arg16[%c43, %c0_448] : memref<48x16xf32, #tpu.memory_space<vmem>>, vector<1x16xf32>
    %415 = vector.broadcast %414 : vector<1x16xf32> to vector<144x16xf32>
    %416 = arith.mulf %413, %415 : vector<144x16xf32>
    %c0_449 = arith.constant 0 : index
    %c0_450 = arith.constant 0 : index
    %417 = vector.load %arg18[%c0_449, %c0_450] : memref<144x16xf32, #tpu.memory_space<vmem>>, vector<144x16xf32>
    %418 = arith.addf %417, %416 : vector<144x16xf32>
    %c0_451 = arith.constant 0 : index
    %c0_452 = arith.constant 0 : index
    %419 = vector.load %arg18[%c0_451, %c0_452] : memref<144x16xf32, #tpu.memory_space<vmem>>, vector<144x16xf32>
    tpu.vector_store %arg18[%c0_451, %c0_452], %418 {strides = array<i32>} : memref<144x16xf32, #tpu.memory_space<vmem>>, vector<144x16xf32>,
    %c84 = arith.constant 84 : index
    %c0_453 = arith.constant 0 : index
    %420 = vector.load %arg17[%c84, %c0_453] : memref<229x16xf32, #tpu.memory_space<vmem>>, vector<144x16xf32>
    %c44 = arith.constant 44 : index
    %c0_454 = arith.constant 0 : index
    %421 = vector.load %arg16[%c44, %c0_454] : memref<48x16xf32, #tpu.memory_space<vmem>>, vector<1x16xf32>
    %422 = vector.broadcast %421 : vector<1x16xf32> to vector<144x16xf32>
    %423 = arith.mulf %420, %422 : vector<144x16xf32>
    %c0_455 = arith.constant 0 : index
    %c0_456 = arith.constant 0 : index
    %424 = vector.load %arg18[%c0_455, %c0_456] : memref<144x16xf32, #tpu.memory_space<vmem>>, vector<144x16xf32>
    %425 = arith.addf %424, %423 : vector<144x16xf32>
    %c0_457 = arith.constant 0 : index
    %c0_458 = arith.constant 0 : index
    %426 = vector.load %arg18[%c0_457, %c0_458] : memref<144x16xf32, #tpu.memory_space<vmem>>, vector<144x16xf32>
    tpu.vector_store %arg18[%c0_457, %c0_458], %425 {strides = array<i32>} : memref<144x16xf32, #tpu.memory_space<vmem>>, vector<144x16xf32>,
    %c85 = arith.constant 85 : index
    %c0_459 = arith.constant 0 : index
    %427 = vector.load %arg17[%c85, %c0_459] : memref<229x16xf32, #tpu.memory_space<vmem>>, vector<144x16xf32>
    %c45 = arith.constant 45 : index
    %c0_460 = arith.constant 0 : index
    %428 = vector.load %arg16[%c45, %c0_460] : memref<48x16xf32, #tpu.memory_space<vmem>>, vector<1x16xf32>
    %429 = vector.broadcast %428 : vector<1x16xf32> to vector<144x16xf32>
    %430 = arith.mulf %427, %429 : vector<144x16xf32>
    %c0_461 = arith.constant 0 : index
    %c0_462 = arith.constant 0 : index
    %431 = vector.load %arg18[%c0_461, %c0_462] : memref<144x16xf32, #tpu.memory_space<vmem>>, vector<144x16xf32>
    %432 = arith.addf %431, %430 : vector<144x16xf32>
    %c0_463 = arith.constant 0 : index
    %c0_464 = arith.constant 0 : index
    %433 = vector.load %arg18[%c0_463, %c0_464] : memref<144x16xf32, #tpu.memory_space<vmem>>, vector<144x16xf32>
    tpu.vector_store %arg18[%c0_463, %c0_464], %432 {strides = array<i32>} : memref<144x16xf32, #tpu.memory_space<vmem>>, vector<144x16xf32>,
    %c0_465 = arith.constant 0 : index
    %c0_466 = arith.constant 0 : index
    %434 = vector.load %arg18[%c0_465, %c0_466] : memref<144x16xf32, #tpu.memory_space<vmem>>, vector<144x16xf32>
    %435 = arith.truncf %434 : vector<144x16xf32> to vector<144x16xbf16>
    %c0_467 = arith.constant 0 : index
    %c0_468 = arith.constant 0 : index
    %c0_469 = arith.constant 0 : index
    %436 = vector.load %arg10[%c0_467, %c0_468, %c0_469] : memref<1x16x16xbf16, #tpu.memory_space<vmem>>, vector<1x16x16xbf16>
    %437 = vector.shape_cast %436 : vector<1x16x16xbf16> to vector<16x16xbf16>
    %cst_470 = arith.constant dense<0.000000e+00> : vector<144x16xf32>
    %438 = tpu.matmul %435, %437, %cst_470 {dimension_numbers = #tpu.dot_dimension_numbers<[1], [0], [0], [1], [0, 0, 1, 1], [], []>} : vector<144x16xbf16>, vector<16x16xbf16>, vector<144x16xf32> -> vector<144x16xf32>
    %c0_471 = arith.constant 0 : index
    %c0_472 = arith.constant 0 : index
    %c0_473 = arith.constant 0 : index
    %439 = vector.load %arg11[%c0_471, %c0_472, %c0_473] : memref<1x1x16xf32, #tpu.memory_space<vmem>>, vector<1x1x16xf32>
    %440 = vector.shape_cast %439 : vector<1x1x16xf32> to vector<1x16xf32>
    %441 = vector.broadcast %440 : vector<1x16xf32> to vector<144x16xf32>
    %442 = arith.mulf %438, %441 : vector<144x16xf32>
    %c0_474 = arith.constant 0 : index
    %c0_475 = arith.constant 0 : index
    %c0_476 = arith.constant 0 : index
    %443 = vector.load %arg12[%c0_474, %c0_475, %c0_476] : memref<1x1x16xf32, #tpu.memory_space<vmem>>, vector<1x1x16xf32>
    %444 = vector.shape_cast %443 : vector<1x1x16xf32> to vector<1x16xf32>
    %445 = vector.broadcast %444 : vector<1x16xf32> to vector<144x16xf32>
    %446 = arith.addf %442, %445 : vector<144x16xf32>
    %cst_477 = arith.constant 0.000000e+00 : f32
    %447 = vector.broadcast %cst_477 : f32 to vector<144x16xf32>
    %448 = arith.maximumf %446, %447 : vector<144x16xf32>
    %449 = arith.truncf %448 : vector<144x16xf32> to vector<144x16xbf16>
    %c0_478 = arith.constant 0 : index
    %c0_479 = arith.constant 0 : index
    %c0_480 = arith.constant 0 : index
    %450 = vector.load %arg13[%c0_478, %c0_479, %c0_480] : memref<1x16x128xbf16, #tpu.memory_space<vmem>>, vector<1x16x128xbf16>
    %451 = vector.shape_cast %450 : vector<1x16x128xbf16> to vector<16x128xbf16>
    %cst_481 = arith.constant dense<0.000000e+00> : vector<144x128xf32>
    %452 = tpu.matmul %449, %451, %cst_481 {dimension_numbers = #tpu.dot_dimension_numbers<[1], [0], [0], [1], [0, 0, 1, 1], [], []>} : vector<144x16xbf16>, vector<16x128xbf16>, vector<144x128xf32> -> vector<144x128xf32>
    %c0_482 = arith.constant 0 : index
    %c0_483 = arith.constant 0 : index
    %c0_484 = arith.constant 0 : index
    %453 = vector.load %arg14[%c0_482, %c0_483, %c0_484] : memref<1x1x128xf32, #tpu.memory_space<vmem>>, vector<1x1x128xf32>
    %454 = vector.shape_cast %453 : vector<1x1x128xf32> to vector<1x128xf32>
    %455 = vector.broadcast %454 : vector<1x128xf32> to vector<144x128xf32>
    %456 = arith.addf %452, %455 : vector<144x128xf32>
    %c0_485 = arith.constant 0 : index
    %c0_486 = arith.constant 0 : index
    %c0_487 = arith.constant 0 : index
    %457 = vector.load %arg15[%c0_485, %c0_486, %c0_487] : memref<1x144x128xf32, #tpu.memory_space<vmem>>, vector<1x144x128xf32>
    %458 = vector.shape_cast %457 : vector<1x144x128xf32> to vector<144x128xf32>
    %459 = vector.shape_cast %456 : vector<144x128xf32> to vector<1x144x128xf32>
    tpu.vector_store %arg15[%c0_485, %c0_486, %c0_487], %459 {strides = array<i32>} : memref<1x144x128xf32, #tpu.memory_space<vmem>>, vector<1x144x128xf32>,
    return
  }
  func.func @transform_0(%arg0: i32, %arg1: i32) -> (i32, i32, i32) {
    %c0_i32 = arith.constant 0 : i32
    %c0_i32_0 = arith.constant 0 : i32
    %c0_i32_1 = arith.constant 0 : i32
    return %arg1, %c0_i32, %c0_i32_0 : i32, i32, i32
  }
  func.func @transform_1(%arg0: i32, %arg1: i32) -> (i32, i32, i32) {
    %c0_i32 = arith.constant 0 : i32
    %c0_i32_0 = arith.constant 0 : i32
    %c0_i32_1 = arith.constant 0 : i32
    return %arg1, %c0_i32, %c0_i32_0 : i32, i32, i32
  }
  func.func @transform_2(%arg0: i32, %arg1: i32) -> (i32, i32, i32, i32) {
    %c0_i32 = arith.constant 0 : i32
    %c0_i32_0 = arith.constant 0 : i32
    %c0_i32_1 = arith.constant 0 : i32
    %c0_i32_2 = arith.constant 0 : i32
    return %arg0, %c0_i32, %c0_i32_0, %c0_i32_1 : i32, i32, i32, i32
  }
  func.func @transform_3(%arg0: i32, %arg1: i32) -> (i32, i32, i32) {
    %c0_i32 = arith.constant 0 : i32
    %c0_i32_0 = arith.constant 0 : i32
    %c0_i32_1 = arith.constant 0 : i32
    return %arg0, %c0_i32, %c0_i32_0 : i32, i32, i32
  }
  func.func @transform_4(%arg0: i32, %arg1: i32) -> (i32, i32, i32) {
    %c0_i32 = arith.constant 0 : i32
    %c0_i32_0 = arith.constant 0 : i32
    %c0_i32_1 = arith.constant 0 : i32
    return %arg0, %c0_i32, %c0_i32_0 : i32, i32, i32
  }
  func.func @transform_5(%arg0: i32, %arg1: i32) -> (i32, i32, i32, i32) {
    %c0_i32 = arith.constant 0 : i32
    %c0_i32_0 = arith.constant 0 : i32
    %c0_i32_1 = arith.constant 0 : i32
    %c0_i32_2 = arith.constant 0 : i32
    return %arg0, %c0_i32, %c0_i32_0, %c0_i32_1 : i32, i32, i32, i32
  }
  func.func @transform_6(%arg0: i32, %arg1: i32) -> (i32, i32, i32) {
    %c0_i32 = arith.constant 0 : i32
    %c0_i32_0 = arith.constant 0 : i32
    %c0_i32_1 = arith.constant 0 : i32
    return %arg0, %c0_i32, %c0_i32_0 : i32, i32, i32
  }
  func.func @transform_7(%arg0: i32, %arg1: i32) -> (i32, i32, i32) {
    %c0_i32 = arith.constant 0 : i32
    %c0_i32_0 = arith.constant 0 : i32
    %c0_i32_1 = arith.constant 0 : i32
    return %arg0, %c0_i32, %c0_i32_0 : i32, i32, i32
  }
  func.func @transform_8(%arg0: i32, %arg1: i32) -> (i32, i32, i32) {
    %c0_i32 = arith.constant 0 : i32
    %c0_i32_0 = arith.constant 0 : i32
    %c0_i32_1 = arith.constant 0 : i32
    return %arg0, %c0_i32, %c0_i32_0 : i32, i32, i32
  }
  func.func @transform_9(%arg0: i32, %arg1: i32) -> (i32, i32, i32) {
    %c0_i32 = arith.constant 0 : i32
    %c0_i32_0 = arith.constant 0 : i32
    %c0_i32_1 = arith.constant 0 : i32
    return %arg0, %c0_i32, %c0_i32_0 : i32, i32, i32
  }
  func.func @transform_10(%arg0: i32, %arg1: i32) -> (i32, i32, i32) {
    %c0_i32 = arith.constant 0 : i32
    %c0_i32_0 = arith.constant 0 : i32
    %c0_i32_1 = arith.constant 0 : i32
    return %arg0, %c0_i32, %c0_i32_0 : i32, i32, i32
  }
  func.func @transform_11(%arg0: i32, %arg1: i32) -> (i32, i32, i32) {
    %c0_i32 = arith.constant 0 : i32
    %c0_i32_0 = arith.constant 0 : i32
    %c0_i32_1 = arith.constant 0 : i32
    return %arg0, %c0_i32, %c0_i32_0 : i32, i32, i32
  }
  func.func @transform_12(%arg0: i32, %arg1: i32) -> (i32, i32, i32) {
    %c0_i32 = arith.constant 0 : i32
    %c0_i32_0 = arith.constant 0 : i32
    %c0_i32_1 = arith.constant 0 : i32
    return %arg0, %c0_i32, %c0_i32_0 : i32, i32, i32
  }
  func.func @transform_13(%arg0: i32, %arg1: i32) -> (i32, i32, i32) {
    %c0_i32 = arith.constant 0 : i32
    %c0_i32_0 = arith.constant 0 : i32
    return %arg1, %c0_i32, %arg0 : i32, i32, i32
  }
}

</mosaic_0001>

<llo_original>
// kernel: depthwise_rpn_forward.1
$region0: #{depthwise_rpn_forward.1}
  #allocation0 [shape = 'u32[]', space=smem, size = 0x4, offset = 0x4, fixed_abs, tag = 'smem constant byte address 0x4 - core index']
  #allocation1 [shape = 'u32[72,128]{1,0:T(1,128)}', space=vmem, size = 0x9000, scoped, tag = 'internal scratch']
  #allocation2 [shape = 'f32[48,16]{1,0:T(8,128)}', space=vmem, size = 0x6000, scoped, tag = 'scratch operand']
  #allocation3 [shape = 'f32[229,16]{1,0:T(8,128)}', space=vmem, size = 0x1d000, scoped, tag = 'scratch operand']
  #allocation4 [shape = 'f32[144,16]{1,0:T(8,128)}', space=vmem, size = 0x12000, scoped, tag = 'scratch operand']
  %s0 = inlined_call_operand.vmem [shape: f32[2,66,8], index: 0, kind: input, shape index: {}]
  %s1 = inlined_call_operand.vmem [shape: f32[2,258,8], index: 1, kind: input, shape index: {}]
  %s2 = inlined_call_operand.vmem [shape: bf16[2,9,8,16], index: 2, kind: input, shape index: {}]
  %s3 = inlined_call_operand.vmem [shape: f32[2,1,16], index: 3, kind: input, shape index: {}]
  %s4 = inlined_call_operand.vmem [shape: f32[2,1,16], index: 4, kind: input, shape index: {}]
  %s5 = inlined_call_operand.vmem [shape: bf16[2,9,8,16], index: 5, kind: input, shape index: {}]
  %s6 = inlined_call_operand.vmem [shape: f32[2,1,16], index: 6, kind: input, shape index: {}]
  %s7 = inlined_call_operand.vmem [shape: f32[2,1,16], index: 7, kind: input, shape index: {}]
  %s8 = inlined_call_operand.vmem [shape: bf16[2,16,16], index: 8, kind: input, shape index: {}]
  %s9 = inlined_call_operand.vmem [shape: f32[2,1,16], index: 9, kind: input, shape index: {}]
  %s10 = inlined_call_operand.vmem [shape: f32[2,1,16], index: 10, kind: input, shape index: {}]
  %s11 = inlined_call_operand.vmem [shape: bf16[2,16,128], index: 11, kind: input, shape index: {}]
  %s12 = inlined_call_operand.vmem [shape: f32[2,1,128], index: 12, kind: input, shape index: {}]
  %s13 = inlined_call_operand.vmem [shape: f32[2,144,256], index: 13, kind: output, shape index: {}]
  %s14 = sld [smem:[#allocation0]]
  $region119: #{depthwise_rpn_forward.1} parent=0
    _
  %s16 = ssub.s32 1, %s14
  %s17 = scalar_select 0, %s16, %s14
  $region1: #{depthwise_rpn_forward.1} parent=0
    #allocation5 [shape = 'u8[147456]{0}', space=vmem, size = 0x24000, scoped, tag = 'output window, operand 0']
    loop: start=0, step=1, limit=6
    $region2: #{depthwise_rpn_forward.1} parent=1 // loop_pre_header
      _
    $region3: #{depthwise_rpn_forward.1} parent=1 // loop_header
      %s19 = sphi 0, %s23
      %p20 = scmp.ge.s32.totalorder %s19, 6
      %s26 = sphi 0, %s38
      %s27 = sphi 0, %s34
      %s28 = sphi 0, %s26
      %s29 = sphi 0, %s27
      %s30 = sphi 0, %s28
      %s31 = sphi 0, %s29
      %s41 = sphi 0, %s43
      %s44 = sphi 0, %s41
      %s45 = sphi 0, %s44
      %s61 = sphi 0, %s45
      %s67 = sphi 0, %s69
      %s70 = sphi 0, %s67
      %s71 = sphi 0, %s70
      %s87 = sphi 0, %s71
      %s93 = sphi 0, %s95
      %s96 = sphi 0, %s93
      %s97 = sphi 0, %s96
      %s113 = sphi 0, %s97
      %s119 = sphi 0, %s121
      %s122 = sphi 0, %s119
      %s123 = sphi 0, %s122
      %s139 = sphi 0, %s123
      %s145 = sphi 0, %s147
      %s148 = sphi 0, %s145
      %s149 = sphi 0, %s148
      %s165 = sphi 0, %s149
      %s171 = sphi 0, %s173
      %s174 = sphi 0, %s171
      %s175 = sphi 0, %s174
      %s191 = sphi 0, %s175
      %s197 = sphi 0, %s199
      %s200 = sphi 0, %s197
      %s201 = sphi 0, %s200
      %s217 = sphi 0, %s201
      %s223 = sphi 0, %s225
      %s226 = sphi 0, %s223
      %s227 = sphi 0, %s226
      %s243 = sphi 0, %s227
      %s249 = sphi 0, %s251
      %s252 = sphi 0, %s249
      %s253 = sphi 0, %s252
      %s269 = sphi 0, %s253
      %s275 = sphi 0, %s277
      %s278 = sphi 0, %s275
      %s279 = sphi 0, %s278
      %s295 = sphi 0, %s279
      %s301 = sphi 0, %s303
      %s304 = sphi 0, %s301
      %s305 = sphi 0, %s304
      %s321 = sphi 0, %s305
      %s327 = sphi 0, %s329
      %s330 = sphi 0, %s327
      %s331 = sphi 0, %s330
      %s347 = sphi 0, %s331
      %s353 = sphi 0, %s355
      %s356 = sphi 0, %s353
      %s357 = sphi 0, %s356
      %s373 = sphi 0, %s357
      %s381 = sphi 0, %s383
      %s384 = sphi 0, %s381
      %s385 = sphi 0, %s384
      %s401 = sphi 0, %s385
    $region4: #{depthwise_rpn_forward.1} parent=1 // loop_header_branch
      %22 = sbr.rel (%p20) target = $region8
    $region5: #{depthwise_rpn_forward.1} parent=1 // loop_body
      %s24 = ssub.s32 %s19, 1
      %s25 = ssub.s32 %s19, 2
      %s32 = sadd.s32 1, %s27
      %p33 = scmp.ge.s32.totalorder %s32, 2
      %s34 = scalar_select %p33, 0, %s32
      %s35 = sadd.s32 1, %s26
      %s36 = scalar_select %p33, %s35, %s26
      %p37 = scmp.ge.s32.totalorder %s36, 2
      %s38 = scalar_select %p37, 0, %s36
      %s39 = ssub.s32 %s27, %s34
      %p40 = scmp.eq.s32.totalorder %s39, 0
      %s42 = sadd.s32 %s41, 1
      %s43 = scalar_select %p40, %s41, %s42
      %p46 = pneg %p40
      %p47 = scmp.eq.s32.totalorder %s19, 3
      %p48 = por %p46, %p47
      %p49 = scmp.ne.s32.totalorder %s41, %s44
      %p50 = scmp.eq.s32.totalorder %s19, 0
      %p51 = por %p49, %p50
      %p52 = scmp.ne.s32.totalorder %s41, %s44
      %p53 = scmp.eq.s32.totalorder %s24, 3
      %p54 = por %p52, %p53
      %p55 = scmp.ne.s32.totalorder %s44, %s45
      %p56 = scmp.eq.s32.totalorder %s24, 0
      %p57 = por %p55, %p56
      %p58 = scmp.ne.s32.totalorder %s44, %s45
      %p59 = scmp.eq.s32.totalorder %s25, 3
      %p60 = por %p58, %p59
      %p62 = scmp.ne.s32.totalorder %s45, %s61
      %p63 = scmp.eq.s32.totalorder %s25, 0
      %p64 = por %p62, %p63
      %s65 = ssub.s32 %s27, %s34
      %p66 = scmp.eq.s32.totalorder %s65, 0
      %s68 = sadd.s32 %s67, 1
      %s69 = scalar_select %p66, %s67, %s68
      %p72 = pneg %p66
      %p73 = scmp.eq.s32.totalorder %s19, 3
      %p74 = por %p72, %p73
      %p75 = scmp.ne.s32.totalorder %s67, %s70
      %p76 = scmp.eq.s32.totalorder %s19, 0
      %p77 = por %p75, %p76
      %p78 = scmp.ne.s32.totalorder %s67, %s70
      %p79 = scmp.eq.s32.totalorder %s24, 3
      %p80 = por %p78, %p79
      %p81 = scmp.ne.s32.totalorder %s70, %s71
      %p82 = scmp.eq.s32.totalorder %s24, 0
      %p83 = por %p81, %p82
      %p84 = scmp.ne.s32.totalorder %s70, %s71
      %p85 = scmp.eq.s32.totalorder %s25, 3
      %p86 = por %p84, %p85
      %p88 = scmp.ne.s32.totalorder %s71, %s87
      %p89 = scmp.eq.s32.totalorder %s25, 0
      %p90 = por %p88, %p89
      %s91 = ssub.s32 %s26, %s38
      %p92 = scmp.eq.s32.totalorder %s91, 0
      %s94 = sadd.s32 %s93, 1
      %s95 = scalar_select %p92, %s93, %s94
      %p98 = pneg %p92
      %p99 = scmp.eq.s32.totalorder %s19, 3
      %p100 = por %p98, %p99
      %p101 = scmp.ne.s32.totalorder %s93, %s96
      %p102 = scmp.eq.s32.totalorder %s19, 0
      %p103 = por %p101, %p102
      %p104 = scmp.ne.s32.totalorder %s93, %s96
      %p105 = scmp.eq.s32.totalorder %s24, 3
      %p106 = por %p104, %p105
      %p107 = scmp.ne.s32.totalorder %s96, %s97
      %p108 = scmp.eq.s32.totalorder %s24, 0
      %p109 = por %p107, %p108
      %p110 = scmp.ne.s32.totalorder %s96, %s97
      %p111 = scmp.eq.s32.totalorder %s25, 3
      %p112 = por %p110, %p111
      %p114 = scmp.ne.s32.totalorder %s97, %s113
      %p115 = scmp.eq.s32.totalorder %s25, 0
      %p116 = por %p114, %p115
      %s117 = ssub.s32 %s26, %s38
      %p118 = scmp.eq.s32.totalorder %s117, 0
      %s120 = sadd.s32 %s119, 1
      %s121 = scalar_select %p118, %s119, %s120
      %p124 = pneg %p118
      %p125 = scmp.eq.s32.totalorder %s19, 3
      %p126 = por %p124, %p125
      %p127 = scmp.ne.s32.totalorder %s119, %s122
      %p128 = scmp.eq.s32.totalorder %s19, 0
      %p129 = por %p127, %p128
      %p130 = scmp.ne.s32.totalorder %s119, %s122
      %p131 = scmp.eq.s32.totalorder %s24, 3
      %p132 = por %p130, %p131
      %p133 = scmp.ne.s32.totalorder %s122, %s123
      %p134 = scmp.eq.s32.totalorder %s24, 0
      %p135 = por %p133, %p134
      %p136 = scmp.ne.s32.totalorder %s122, %s123
      %p137 = scmp.eq.s32.totalorder %s25, 3
      %p138 = por %p136, %p137
      %p140 = scmp.ne.s32.totalorder %s123, %s139
      %p141 = scmp.eq.s32.totalorder %s25, 0
      %p142 = por %p140, %p141
      %s143 = ssub.s32 %s26, %s38
      %p144 = scmp.eq.s32.totalorder %s143, 0
      %s146 = sadd.s32 %s145, 1
      %s147 = scalar_select %p144, %s145, %s146
      %p150 = pneg %p144
      %p151 = scmp.eq.s32.totalorder %s19, 3
      %p152 = por %p150, %p151
      %p153 = scmp.ne.s32.totalorder %s145, %s148
      %p154 = scmp.eq.s32.totalorder %s19, 0
      %p155 = por %p153, %p154
      %p156 = scmp.ne.s32.totalorder %s145, %s148
      %p157 = scmp.eq.s32.totalorder %s24, 3
      %p158 = por %p156, %p157
      %p159 = scmp.ne.s32.totalorder %s148, %s149
      %p160 = scmp.eq.s32.totalorder %s24, 0
      %p161 = por %p159, %p160
      %p162 = scmp.ne.s32.totalorder %s148, %s149
      %p163 = scmp.eq.s32.totalorder %s25, 3
      %p164 = por %p162, %p163
      %p166 = scmp.ne.s32.totalorder %s149, %s165
      %p167 = scmp.eq.s32.totalorder %s25, 0
      %p168 = por %p166, %p167
      %s169 = ssub.s32 %s26, %s38
      %p170 = scmp.eq.s32.totalorder %s169, 0
      %s172 = sadd.s32 %s171, 1
      %s173 = scalar_select %p170, %s171, %s172
      %p176 = pneg %p170
      %p177 = scmp.eq.s32.totalorder %s19, 3
      %p178 = por %p176, %p177
      %p179 = scmp.ne.s32.totalorder %s171, %s174
      %p180 = scmp.eq.s32.totalorder %s19, 0
      %p181 = por %p179, %p180
      %p182 = scmp.ne.s32.totalorder %s171, %s174
      %p183 = scmp.eq.s32.totalorder %s24, 3
      %p184 = por %p182, %p183
      %p185 = scmp.ne.s32.totalorder %s174, %s175
      %p186 = scmp.eq.s32.totalorder %s24, 0
      %p187 = por %p185, %p186
      %p188 = scmp.ne.s32.totalorder %s174, %s175
      %p189 = scmp.eq.s32.totalorder %s25, 3
      %p190 = por %p188, %p189
      %p192 = scmp.ne.s32.totalorder %s175, %s191
      %p193 = scmp.eq.s32.totalorder %s25, 0
      %p194 = por %p192, %p193
      %s195 = ssub.s32 %s26, %s38
      %p196 = scmp.eq.s32.totalorder %s195, 0
      %s198 = sadd.s32 %s197, 1
      %s199 = scalar_select %p196, %s197, %s198
      %p202 = pneg %p196
      %p203 = scmp.eq.s32.totalorder %s19, 3
      %p204 = por %p202, %p203
      %p205 = scmp.ne.s32.totalorder %s197, %s200
      %p206 = scmp.eq.s32.totalorder %s19, 0
      %p207 = por %p205, %p206
      %p208 = scmp.ne.s32.totalorder %s197, %s200
      %p209 = scmp.eq.s32.totalorder %s24, 3
      %p210 = por %p208, %p209
      %p211 = scmp.ne.s32.totalorder %s200, %s201
      %p212 = scmp.eq.s32.totalorder %s24, 0
      %p213 = por %p211, %p212
      %p214 = scmp.ne.s32.totalorder %s200, %s201
      %p215 = scmp.eq.s32.totalorder %s25, 3
      %p216 = por %p214, %p215
      %p218 = scmp.ne.s32.totalorder %s201, %s217
      %p219 = scmp.eq.s32.totalorder %s25, 0
      %p220 = por %p218, %p219
      %s221 = ssub.s32 %s26, %s38
      %p222 = scmp.eq.s32.totalorder %s221, 0
      %s224 = sadd.s32 %s223, 1
      %s225 = scalar_select %p222, %s223, %s224
      %p228 = pneg %p222
      %p229 = scmp.eq.s32.totalorder %s19, 3
      %p230 = por %p228, %p229
      %p231 = scmp.ne.s32.totalorder %s223, %s226
      %p232 = scmp.eq.s32.totalorder %s19, 0
      %p233 = por %p231, %p232
      %p234 = scmp.ne.s32.totalorder %s223, %s226
      %p235 = scmp.eq.s32.totalorder %s24, 3
      %p236 = por %p234, %p235
      %p237 = scmp.ne.s32.totalorder %s226, %s227
      %p238 = scmp.eq.s32.totalorder %s24, 0
      %p239 = por %p237, %p238
      %p240 = scmp.ne.s32.totalorder %s226, %s227
      %p241 = scmp.eq.s32.totalorder %s25, 3
      %p242 = por %p240, %p241
      %p244 = scmp.ne.s32.totalorder %s227, %s243
      %p245 = scmp.eq.s32.totalorder %s25, 0
      %p246 = por %p244, %p245
      %s247 = ssub.s32 %s26, %s38
      %p248 = scmp.eq.s32.totalorder %s247, 0
      %s250 = sadd.s32 %s249, 1
      %s251 = scalar_select %p248, %s249, %s250
      %p254 = pneg %p248
      %p255 = scmp.eq.s32.totalorder %s19, 3
      %p256 = por %p254, %p255
      %p257 = scmp.ne.s32.totalorder %s249, %s252
      %p258 = scmp.eq.s32.totalorder %s19, 0
      %p259 = por %p257, %p258
      %p260 = scmp.ne.s32.totalorder %s249, %s252
      %p261 = scmp.eq.s32.totalorder %s24, 3
      %p262 = por %p260, %p261
      %p263 = scmp.ne.s32.totalorder %s252, %s253
      %p264 = scmp.eq.s32.totalorder %s24, 0
      %p265 = por %p263, %p264
      %p266 = scmp.ne.s32.totalorder %s252, %s253
      %p267 = scmp.eq.s32.totalorder %s25, 3
      %p268 = por %p266, %p267
      %p270 = scmp.ne.s32.totalorder %s253, %s269
      %p271 = scmp.eq.s32.totalorder %s25, 0
      %p272 = por %p270, %p271
      %s273 = ssub.s32 %s26, %s38
      %p274 = scmp.eq.s32.totalorder %s273, 0
      %s276 = sadd.s32 %s275, 1
      %s277 = scalar_select %p274, %s275, %s276
      %p280 = pneg %p274
      %p281 = scmp.eq.s32.totalorder %s19, 3
      %p282 = por %p280, %p281
      %p283 = scmp.ne.s32.totalorder %s275, %s278
      %p284 = scmp.eq.s32.totalorder %s19, 0
      %p285 = por %p283, %p284
      %p286 = scmp.ne.s32.totalorder %s275, %s278
      %p287 = scmp.eq.s32.totalorder %s24, 3
      %p288 = por %p286, %p287
      %p289 = scmp.ne.s32.totalorder %s278, %s279
      %p290 = scmp.eq.s32.totalorder %s24, 0
      %p291 = por %p289, %p290
      %p292 = scmp.ne.s32.totalorder %s278, %s279
      %p293 = scmp.eq.s32.totalorder %s25, 3
      %p294 = por %p292, %p293
      %p296 = scmp.ne.s32.totalorder %s279, %s295
      %p297 = scmp.eq.s32.totalorder %s25, 0
      %p298 = por %p296, %p297
      %s299 = ssub.s32 %s26, %s38
      %p300 = scmp.eq.s32.totalorder %s299, 0
      %s302 = sadd.s32 %s301, 1
      %s303 = scalar_select %p300, %s301, %s302
      %p306 = pneg %p300
      %p307 = scmp.eq.s32.totalorder %s19, 3
      %p308 = por %p306, %p307
      %p309 = scmp.ne.s32.totalorder %s301, %s304
      %p310 = scmp.eq.s32.totalorder %s19, 0
      %p311 = por %p309, %p310
      %p312 = scmp.ne.s32.totalorder %s301, %s304
      %p313 = scmp.eq.s32.totalorder %s24, 3
      %p314 = por %p312, %p313
      %p315 = scmp.ne.s32.totalorder %s304, %s305
      %p316 = scmp.eq.s32.totalorder %s24, 0
      %p317 = por %p315, %p316
      %p318 = scmp.ne.s32.totalorder %s304, %s305
      %p319 = scmp.eq.s32.totalorder %s25, 3
      %p320 = por %p318, %p319
      %p322 = scmp.ne.s32.totalorder %s305, %s321
      %p323 = scmp.eq.s32.totalorder %s25, 0
      %p324 = por %p322, %p323
      %s325 = ssub.s32 %s26, %s38
      %p326 = scmp.eq.s32.totalorder %s325, 0
      %s328 = sadd.s32 %s327, 1
      %s329 = scalar_select %p326, %s327, %s328
      %p332 = pneg %p326
      %p333 = scmp.eq.s32.totalorder %s19, 3
      %p334 = por %p332, %p333
      %p335 = scmp.ne.s32.totalorder %s327, %s330
      %p336 = scmp.eq.s32.totalorder %s19, 0
      %p337 = por %p335, %p336
      %p338 = scmp.ne.s32.totalorder %s327, %s330
      %p339 = scmp.eq.s32.totalorder %s24, 3
      %p340 = por %p338, %p339
      %p341 = scmp.ne.s32.totalorder %s330, %s331
      %p342 = scmp.eq.s32.totalorder %s24, 0
      %p343 = por %p341, %p342
      %p344 = scmp.ne.s32.totalorder %s330, %s331
      %p345 = scmp.eq.s32.totalorder %s25, 3
      %p346 = por %p344, %p345
      %p348 = scmp.ne.s32.totalorder %s331, %s347
      %p349 = scmp.eq.s32.totalorder %s25, 0
      %p350 = por %p348, %p349
      %s351 = ssub.s32 %s26, %s38
      %p352 = scmp.eq.s32.totalorder %s351, 0
      %s354 = sadd.s32 %s353, 1
      %s355 = scalar_select %p352, %s353, %s354
      %p358 = pneg %p352
      %p359 = scmp.eq.s32.totalorder %s19, 3
      %p360 = por %p358, %p359
      %p361 = scmp.ne.s32.totalorder %s353, %s356
      %p362 = scmp.eq.s32.totalorder %s19, 0
      %p363 = por %p361, %p362
      %p364 = scmp.ne.s32.totalorder %s353, %s356
      %p365 = scmp.eq.s32.totalorder %s24, 3
      %p366 = por %p364, %p365
      %p367 = scmp.ne.s32.totalorder %s356, %s357
      %p368 = scmp.eq.s32.totalorder %s24, 0
      %p369 = por %p367, %p368
      %p370 = scmp.ne.s32.totalorder %s356, %s357
      %p371 = scmp.eq.s32.totalorder %s25, 3
      %p372 = por %p370, %p371
      %p374 = scmp.ne.s32.totalorder %s357, %s373
      %p375 = scmp.eq.s32.totalorder %s25, 0
      %p376 = por %p374, %p375
      %s377 = ssub.s32 %s27, %s34
      %s378 = ssub.s32 %s26, %s38
      %s379 = sor.u32 %s377, %s378
      %p380 = scmp.eq.s32.totalorder %s379, 0
      %s382 = sadd.s32 %s381, 1
      %s383 = scalar_select %p380, %s381, %s382
      %p386 = pneg %p380
      %p387 = scmp.eq.s32.totalorder %s19, 3
      %p388 = por %p386, %p387
      %p389 = scmp.ne.s32.totalorder %s381, %s384
      %p390 = scmp.eq.s32.totalorder %s19, 0
      %p391 = por %p389, %p390
      %p392 = scmp.ne.s32.totalorder %s381, %s384
      %p393 = scmp.eq.s32.totalorder %s24, 3
      %p394 = por %p392, %p393
      %p395 = scmp.ne.s32.totalorder %s384, %s385
      %p396 = scmp.eq.s32.totalorder %s24, 0
      %p397 = por %p395, %p396
      %p398 = scmp.ne.s32.totalorder %s384, %s385
      %p399 = scmp.eq.s32.totalorder %s25, 3
      %p400 = por %p398, %p399
      %p402 = scmp.ne.s32.totalorder %s385, %s401
      %p403 = scmp.eq.s32.totalorder %s25, 0
      %p404 = por %p402, %p403
      %p405 = scmp.le.s32.totalorder 1, %s19
      %p406 = scmp.lt.s32.totalorder %s19, 5
      %p407 = pnand %p405, %p406
      %p408 = pneg %p407
      // Predicated region
      $region9: #{depthwise_rpn_forward.1} parent=5 // pred_check
        _
      $region10: #{depthwise_rpn_forward.1} parent=5 // pred_check_branch
        %410 = sbr.rel (%p407) target = $region12
      $region11: #{depthwise_rpn_forward.1} parent=5 // pred_region
        %s411 = ssub.s32 %s19, 1
      $region12: #{depthwise_rpn_forward.1} parent=5 // pred_fallthru
        _
      %p412 = scmp.lt.s32.totalorder %s19, 4
      // Predicated region
      $region13: #{depthwise_rpn_forward.1} parent=5 // pred_check
        %p413 = pneg %p412
      $region14: #{depthwise_rpn_forward.1} parent=5 // pred_check_branch
        %415 = sbr.rel (%p413) target = $region16
      $region15: #{depthwise_rpn_forward.1} parent=5 // pred_region
        // Predicated region
        $region17: #{depthwise_rpn_forward.1} parent=15 // pred_check
          %p416 = pneg %p51
        $region18: #{depthwise_rpn_forward.1} parent=15 // pred_check_branch
          %418 = sbr.rel (%p416) target = $region20
        $region19: #{depthwise_rpn_forward.1} parent=15 // pred_region
          %p419 = scmp.lt.s32.totalorder %s27, 1
          %s420 = scalar_select %p419, %s27, 1
          %s421 = smul.addr %s420, 9
          %s422 = smul.addr %s421, 8
          %s423 = scalar_lea.vmem %s0, %s422
        $region20: #{depthwise_rpn_forward.1} parent=15 // pred_fallthru
          _
        // Predicated region
        $region21: #{depthwise_rpn_forward.1} parent=15 // pred_check
          %p424 = pneg %p77
        $region22: #{depthwise_rpn_forward.1} parent=15 // pred_check_branch
          %426 = sbr.rel (%p424) target = $region24
        $region23: #{depthwise_rpn_forward.1} parent=15 // pred_region
          %p427 = scmp.lt.s32.totalorder %s27, 1
          %s428 = scalar_select %p427, %s27, 1
          %s429 = smul.addr %s428, 33
          %s430 = smul.addr %s429, 8
          %s431 = scalar_lea.vmem %s1, %s430
        $region24: #{depthwise_rpn_forward.1} parent=15 // pred_fallthru
          _
        // Predicated region
        $region25: #{depthwise_rpn_forward.1} parent=15 // pred_check
          %p432 = pneg %p103
        $region26: #{depthwise_rpn_forward.1} parent=15 // pred_check_branch
          %434 = sbr.rel (%p432) target = $region28
        $region27: #{depthwise_rpn_forward.1} parent=15 // pred_region
          %p435 = scmp.lt.s32.totalorder %s26, 1
          %s436 = scalar_select %p435, %s26, 1
          %s437 = smul.addr %s436, 9
          %s438 = smul.addr %s437, 4
          %s439 = scalar_lea.vmem %s2, %s438
        $region28: #{depthwise_rpn_forward.1} parent=15 // pred_fallthru
          _
        // Predicated region
        $region29: #{depthwise_rpn_forward.1} parent=15 // pred_check
          %p440 = pneg %p129
        $region30: #{depthwise_rpn_forward.1} parent=15 // pred_check_branch
          %442 = sbr.rel (%p440) target = $region32
        $region31: #{depthwise_rpn_forward.1} parent=15 // pred_region
          %p443 = scmp.lt.s32.totalorder %s26, 1
          %s444 = scalar_select %p443, %s26, 1
          %s445 = scalar_lea.vmem %s3, %s444
        $region32: #{depthwise_rpn_forward.1} parent=15 // pred_fallthru
          _
        // Predicated region
        $region33: #{depthwise_rpn_forward.1} parent=15 // pred_check
          %p446 = pneg %p155
        $region34: #{depthwise_rpn_forward.1} parent=15 // pred_check_branch
          %448 = sbr.rel (%p446) target = $region36
        $region35: #{depthwise_rpn_forward.1} parent=15 // pred_region
          %p449 = scmp.lt.s32.totalorder %s26, 1
          %s450 = scalar_select %p449, %s26, 1
          %s451 = scalar_lea.vmem %s4, %s450
        $region36: #{depthwise_rpn_forward.1} parent=15 // pred_fallthru
          _
        // Predicated region
        $region37: #{depthwise_rpn_forward.1} parent=15 // pred_check
          %p452 = pneg %p181
        $region38: #{depthwise_rpn_forward.1} parent=15 // pred_check_branch
          %454 = sbr.rel (%p452) target = $region40
        $region39: #{depthwise_rpn_forward.1} parent=15 // pred_region
          %p455 = scmp.lt.s32.totalorder %s26, 1
          %s456 = scalar_select %p455, %s26, 1
          %s457 = smul.addr %s456, 9
          %s458 = smul.addr %s457, 4
          %s459 = scalar_lea.vmem %s5, %s458
        $region40: #{depthwise_rpn_forward.1} parent=15 // pred_fallthru
          _
        // Predicated region
        $region41: #{depthwise_rpn_forward.1} parent=15 // pred_check
          %p460 = pneg %p207
        $region42: #{depthwise_rpn_forward.1} parent=15 // pred_check_branch
          %462 = sbr.rel (%p460) target = $region44
        $region43: #{depthwise_rpn_forward.1} parent=15 // pred_region
          %p463 = scmp.lt.s32.totalorder %s26, 1
          %s464 = scalar_select %p463, %s26, 1
          %s465 = scalar_lea.vmem %s6, %s464
        $region44: #{depthwise_rpn_forward.1} parent=15 // pred_fallthru
          _
        // Predicated region
        $region45: #{depthwise_rpn_forward.1} parent=15 // pred_check
          %p466 = pneg %p233
        $region46: #{depthwise_rpn_forward.1} parent=15 // pred_check_branch
          %468 = sbr.rel (%p466) target = $region48
        $region47: #{depthwise_rpn_forward.1} parent=15 // pred_region
          %p469 = scmp.lt.s32.totalorder %s26, 1
          %s470 = scalar_select %p469, %s26, 1
          %s471 = scalar_lea.vmem %s7, %s470
        $region48: #{depthwise_rpn_forward.1} parent=15 // pred_fallthru
          _
        // Predicated region
        $region49: #{depthwise_rpn_forward.1} parent=15 // pred_check
          %p472 = pneg %p259
        $region50: #{depthwise_rpn_forward.1} parent=15 // pred_check_branch
          %474 = sbr.rel (%p472) target = $region52
        $region51: #{depthwise_rpn_forward.1} parent=15 // pred_region
          %p475 = scmp.lt.s32.totalorder %s26, 1
          %s476 = scalar_select %p475, %s26, 1
          %s477 = smul.addr %s476, 2
          %s478 = smul.addr %s477, 4
          %s479 = scalar_lea.vmem %s8, %s478
        $region52: #{depthwise_rpn_forward.1} parent=15 // pred_fallthru
          _
        // Predicated region
        $region53: #{depthwise_rpn_forward.1} parent=15 // pred_check
          %p480 = pneg %p285
        $region54: #{depthwise_rpn_forward.1} parent=15 // pred_check_branch
          %482 = sbr.rel (%p480) target = $region56
        $region55: #{depthwise_rpn_forward.1} parent=15 // pred_region
          %p483 = scmp.lt.s32.totalorder %s26, 1
          %s484 = scalar_select %p483, %s26, 1
          %s485 = scalar_lea.vmem %s9, %s484
        $region56: #{depthwise_rpn_forward.1} parent=15 // pred_fallthru
          _
        // Predicated region
        $region57: #{depthwise_rpn_forward.1} parent=15 // pred_check
          %p486 = pneg %p311
        $region58: #{depthwise_rpn_forward.1} parent=15 // pred_check_branch
          %488 = sbr.rel (%p486) target = $region60
        $region59: #{depthwise_rpn_forward.1} parent=15 // pred_region
          %p489 = scmp.lt.s32.totalorder %s26, 1
          %s490 = scalar_select %p489, %s26, 1
          %s491 = scalar_lea.vmem %s10, %s490
        $region60: #{depthwise_rpn_forward.1} parent=15 // pred_fallthru
          _
        // Predicated region
        $region61: #{depthwise_rpn_forward.1} parent=15 // pred_check
          %p492 = pneg %p337
        $region62: #{depthwise_rpn_forward.1} parent=15 // pred_check_branch
          %494 = sbr.rel (%p492) target = $region64
        $region63: #{depthwise_rpn_forward.1} parent=15 // pred_region
          %p495 = scmp.lt.s32.totalorder %s26, 1
          %s496 = scalar_select %p495, %s26, 1
          %s497 = smul.addr %s496, 2
          %s498 = smul.addr %s497, 4
          %s499 = scalar_lea.vmem %s11, %s498
        $region64: #{depthwise_rpn_forward.1} parent=15 // pred_fallthru
          _
        // Predicated region
        $region65: #{depthwise_rpn_forward.1} parent=15 // pred_check
          %p500 = pneg %p363
        $region66: #{depthwise_rpn_forward.1} parent=15 // pred_check_branch
          %502 = sbr.rel (%p500) target = $region68
        $region67: #{depthwise_rpn_forward.1} parent=15 // pred_region
          %p503 = scmp.lt.s32.totalorder %s26, 1
          %s504 = scalar_select %p503, %s26, 1
          %s505 = scalar_lea.vmem %s12, %s504
        $region68: #{depthwise_rpn_forward.1} parent=15 // pred_fallthru
          _
      $region16: #{depthwise_rpn_forward.1} parent=5 // pred_fallthru
        _
      %p506 = scmp.le.s32.totalorder 1, %s19
      %p507 = scmp.lt.s32.totalorder %s19, 5
      %p508 = pnand %p506, %p507
      %p509 = pneg %p508
      // Predicated region
      $region69: #{depthwise_rpn_forward.1} parent=5 // pred_check
        _
      $region70: #{depthwise_rpn_forward.1} parent=5 // pred_check_branch
        %511 = sbr.rel (%p508) target = $region72
      $region71: #{depthwise_rpn_forward.1} parent=5 // pred_region
        %s512 = ssub.s32 %s19, 1
        %p513 = scmp.lt.s32.totalorder %s29, 1
        %s514 = scalar_select %p513, %s29, 1
        %s515 = smul.addr %s514, 9
        %s516 = smul.addr %s515, 8
        %s517 = scalar_lea.vmem %s0, %s516
        %p518 = pneg %p57
        %p519 = pneg %p54
        %p520 = scmp.lt.s32.totalorder %s29, 1
        %s521 = scalar_select %p520, %s29, 1
        %s522 = smul.addr %s521, 33
        %s523 = smul.addr %s522, 8
        %s524 = scalar_lea.vmem %s1, %s523
        %p525 = pneg %p83
        %p526 = pneg %p80
        %p527 = scmp.lt.s32.totalorder %s28, 1
        %s528 = scalar_select %p527, %s28, 1
        %s529 = smul.addr %s528, 9
        %s530 = smul.addr %s529, 4
        %s531 = scalar_lea.vmem %s2, %s530
        %p532 = pneg %p109
        %p533 = pneg %p106
        %p534 = scmp.lt.s32.totalorder %s28, 1
        %s535 = scalar_select %p534, %s28, 1
        %s536 = scalar_lea.vmem %s3, %s535
        %p537 = pneg %p135
        %p538 = pneg %p132
        %p539 = scmp.lt.s32.totalorder %s28, 1
        %s540 = scalar_select %p539, %s28, 1
        %s541 = scalar_lea.vmem %s4, %s540
        %p542 = pneg %p161
        %p543 = pneg %p158
        %p544 = scmp.lt.s32.totalorder %s28, 1
        %s545 = scalar_select %p544, %s28, 1
        %s546 = smul.addr %s545, 9
        %s547 = smul.addr %s546, 4
        %s548 = scalar_lea.vmem %s5, %s547
        %p549 = pneg %p187
        %p550 = pneg %p184
        %p551 = scmp.lt.s32.totalorder %s28, 1
        %s552 = scalar_select %p551, %s28, 1
        %s553 = scalar_lea.vmem %s6, %s552
        %p554 = pneg %p213
        %p555 = pneg %p210
        %p556 = scmp.lt.s32.totalorder %s28, 1
        %s557 = scalar_select %p556, %s28, 1
        %s558 = scalar_lea.vmem %s7, %s557
        %p559 = pneg %p239
        %p560 = pneg %p236
        %p561 = scmp.lt.s32.totalorder %s28, 1
        %s562 = scalar_select %p561, %s28, 1
        %s563 = smul.addr %s562, 2
        %s564 = smul.addr %s563, 4
        %s565 = scalar_lea.vmem %s8, %s564
        %p566 = pneg %p265
        %p567 = pneg %p262
        %p568 = scmp.lt.s32.totalorder %s28, 1
        %s569 = scalar_select %p568, %s28, 1
        %s570 = scalar_lea.vmem %s9, %s569
        %p571 = pneg %p291
        %p572 = pneg %p288
        %p573 = scmp.lt.s32.totalorder %s28, 1
        %s574 = scalar_select %p573, %s28, 1
        %s575 = scalar_lea.vmem %s10, %s574
        %p576 = pneg %p317
        %p577 = pneg %p314
        %p578 = scmp.lt.s32.totalorder %s28, 1
        %s579 = scalar_select %p578, %s28, 1
        %s580 = smul.addr %s579, 2
        %s581 = smul.addr %s580, 4
        %s582 = scalar_lea.vmem %s11, %s581
        %p583 = pneg %p343
        %p584 = pneg %p340
        %p585 = scmp.lt.s32.totalorder %s28, 1
        %s586 = scalar_select %p585, %s28, 1
        %s587 = scalar_lea.vmem %s12, %s586
        %p588 = pneg %p369
        %p589 = pneg %p366
        %p590 = pneg %p397
        %p591 = pneg %p394
        %s592 = sand.u32 %s384, 1
        %s593 = sand.u32 %s384, 1
        %s594 = smul.addr %s593, 144
        %s595 = scalar_lea.vmem [#allocation5], %s594
        %p596 = scmp.lt.s32.totalorder %s29, 1
        %s597 = scalar_select %p596, %s29, 1
        %s598 = smul.addr %s597, 9
        %s599 = smul.addr %s598, 8
        %s600 = scalar_lea.vmem %s0, %s599
        %p601 = scmp.lt.s32.totalorder %s29, 1
        %s602 = scalar_select %p601, %s29, 1
        %s603 = smul.addr %s602, 33
        %s604 = smul.addr %s603, 8
        %s605 = scalar_lea.vmem %s1, %s604
        %p606 = scmp.lt.s32.totalorder %s28, 1
        %s607 = scalar_select %p606, %s28, 1
        %s608 = smul.addr %s607, 9
        %s609 = smul.addr %s608, 4
        %s610 = scalar_lea.vmem %s2, %s609
        %p611 = scmp.lt.s32.totalorder %s28, 1
        %s612 = scalar_select %p611, %s28, 1
        %s613 = scalar_lea.vmem %s3, %s612
        %p614 = scmp.lt.s32.totalorder %s28, 1
        %s615 = scalar_select %p614, %s28, 1
        %s616 = scalar_lea.vmem %s4, %s615
        %p617 = scmp.lt.s32.totalorder %s28, 1
        %s618 = scalar_select %p617, %s28, 1
        %s619 = smul.addr %s618, 9
        %s620 = smul.addr %s619, 4
        %s621 = scalar_lea.vmem %s5, %s620
        %p622 = scmp.lt.s32.totalorder %s28, 1
        %s623 = scalar_select %p622, %s28, 1
        %s624 = scalar_lea.vmem %s6, %s623
        %p625 = scmp.lt.s32.totalorder %s28, 1
        %s626 = scalar_select %p625, %s28, 1
        %s627 = scalar_lea.vmem %s7, %s626
        %p628 = scmp.lt.s32.totalorder %s28, 1
        %s629 = scalar_select %p628, %s28, 1
        %s630 = smul.addr %s629, 2
        %s631 = smul.addr %s630, 4
        %s632 = scalar_lea.vmem %s8, %s631
        %p633 = scmp.lt.s32.totalorder %s28, 1
        %s634 = scalar_select %p633, %s28, 1
        %s635 = scalar_lea.vmem %s9, %s634
        %p636 = scmp.lt.s32.totalorder %s28, 1
        %s637 = scalar_select %p636, %s28, 1
        %s638 = scalar_lea.vmem %s10, %s637
        %p639 = scmp.lt.s32.totalorder %s28, 1
        %s640 = scalar_select %p639, %s28, 1
        %s641 = smul.addr %s640, 2
        %s642 = smul.addr %s641, 4
        %s643 = scalar_lea.vmem %s11, %s642
        %p644 = scmp.lt.s32.totalorder %s28, 1
        %s645 = scalar_select %p644, %s28, 1
        %s646 = scalar_lea.vmem %s12, %s645
        %v648 = vld [vmem:[%s600] sm:$0xff]
        %v649 = vld [vmem:[%s600 + $0x8] sm:$0xff]
        %v650 = vld [vmem:[%s600 + $0x10] sm:$0xff]
        %v651 = vld [vmem:[%s600 + $0x18] sm:$0xff]
        %v652 = vld [vmem:[%s600 + $0x20] sm:$0xff]
        %v653 = vld [vmem:[%s600 + $0x28] sm:$0xff]
        %v654 = vpack.c.bf16 %v649, %v648
        %v655 = vpack.c.bf16 %v651, %v650
        %v656 = vpack.c.bf16 %v653, %v652
        %v657 = vld [vmem:[%s610] sm:$0xf]
        %vm658 = vcmask 64512
        %v660 = vsel %vm658, %v654, 0
        %v663 = vsel %vm658, %v655, 0
        %v666 = vsel %vm658, %v656, 0
        %vm668 = vcmask 1043456
        %v670 = vsel %vm668, %v657, 0
        %672 = vmatpush.bf16.msra.mxu0 0
        %673 = vmatpush.bf16.msra.mxu0 0
        %674 = vmatpush.bf16.msra.mxu0 0
        %675 = vmatpush.bf16.msra.mxu0 0
        %676 = vmatpush.bf16.msra.mxu0 0
        %677 = vmatpush.bf16.msra.mxu0 0
        %678 = vmatpush.bf16.msra.mxu0 0
        %679 = vmatpush.bf16.msra.mxu0 %v670
        %680 = vmatmul.bf16.gmra.mxu0 %v660
        %v681 = vpop.f32.mrf.mxu0
        %v682 = vadd.f32 0.0, %v681
        %v683 = vpop.f32.mrf.mxu0
        %v684 = vadd.f32 0.0, %v683
        %685 = vmatmul.bf16.gmra.mxu0 %v663
        %v686 = vpop.f32.mrf.mxu0
        %v687 = vadd.f32 0.0, %v686
        %v688 = vpop.f32.mrf.mxu0
        %v689 = vadd.f32 0.0, %v688
        %690 = vmatmul.bf16.gmra.mxu0 %v666
        %v691 = vpop.f32.mrf.mxu0
        %v692 = vadd.f32 0.0, %v691
        %v693 = vpop.f32.mrf.mxu0
        %v694 = vadd.f32 0.0, %v693
        %695 = vdwg.mxu0
        %vm696 = vcmask 130048
        %697 = vst.msk [vmem:[#allocation2] sm:$0xff] %vm696, %v682
        %698 = vst.msk [vmem:[#allocation2 + $0x8] sm:$0xff] %vm696, %v684
        %699 = vst.msk [vmem:[#allocation2 + $0x10] sm:$0xff] %vm696, %v687
        %700 = vst.msk [vmem:[#allocation2 + $0x18] sm:$0xff] %vm696, %v689
        %701 = vst.msk [vmem:[#allocation2 + $0x20] sm:$0xff] %vm696, %v692
        %702 = vst.msk [vmem:[#allocation2 + $0x28] sm:$0xff] %vm696, %v694
        %v703 = vld [vmem:[%s600 + $0x1] sm:$0xff]
        %v704 = vld [vmem:[%s600 + $0x9] sm:$0xff]
        %v705 = vld [vmem:[%s600 + $0x11] sm:$0xff]
        %v706 = vld [vmem:[%s600 + $0x19] sm:$0xff]
        %v707 = vld [vmem:[%s600 + $0x21] sm:$0xff]
        %v708 = vld [vmem:[%s600 + $0x29] sm:$0xff]
        %v709 = vpack.c.bf16 %v704, %v703
        %v710 = vpack.c.bf16 %v706, %v705
        %v711 = vpack.c.bf16 %v708, %v707
        %s712 = scalar_lea.vmem %s610, 4
        %v713 = vld [vmem:[%s712] sm:$0xf]
        %v715 = vsel %vm658, %v709, 0
        %v718 = vsel %vm658, %v710, 0
        %v721 = vsel %vm658, %v711, 0
        %v724 = vsel %vm668, %v713, 0
        %726 = vmatpush.bf16.msra.mxu0 0
        %727 = vmatpush.bf16.msra.mxu0 0
        %728 = vmatpush.bf16.msra.mxu0 0
        %729 = vmatpush.bf16.msra.mxu0 0
        %730 = vmatpush.bf16.msra.mxu0 0
        %731 = vmatpush.bf16.msra.mxu0 0
        %732 = vmatpush.bf16.msra.mxu0 0
        %733 = vmatpush.bf16.msra.mxu0 %v724
        %734 = vmatmul.bf16.gmra.mxu0 %v715
        %v735 = vpop.f32.mrf.mxu0
        %v736 = vadd.f32 0.0, %v735
        %v737 = vpop.f32.mrf.mxu0
        %v738 = vadd.f32 0.0, %v737
        %739 = vmatmul.bf16.gmra.mxu0 %v718
        %v740 = vpop.f32.mrf.mxu0
        %v741 = vadd.f32 0.0, %v740
        %v742 = vpop.f32.mrf.mxu0
        %v743 = vadd.f32 0.0, %v742
        %744 = vmatmul.bf16.gmra.mxu0 %v721
        %v745 = vpop.f32.mrf.mxu0
        %v746 = vadd.f32 0.0, %v745
        %v747 = vpop.f32.mrf.mxu0
        %v748 = vadd.f32 0.0, %v747
        %749 = vdwg.mxu0
        %v750 = vld [vmem:[#allocation2] sm:$0xff]
        %v751 = vld [vmem:[#allocation2 + $0x8] sm:$0xff]
        %v752 = vld [vmem:[#allocation2 + $0x10] sm:$0xff]
        %v753 = vld [vmem:[#allocation2 + $0x18] sm:$0xff]
        %v754 = vld [vmem:[#allocation2 + $0x20] sm:$0xff]
        %v755 = vld [vmem:[#allocation2 + $0x28] sm:$0xff]
        %v756 = vadd.f32 %v750, %v736
        %v757 = vadd.f32 %v751, %v738
        %v758 = vadd.f32 %v752, %v741
        %v759 = vadd.f32 %v753, %v743
        %v760 = vadd.f32 %v754, %v746
        %v761 = vadd.f32 %v755, %v748
        %762 = vst.msk [vmem:[#allocation2] sm:$0xff] %vm696, %v756
        %763 = vst.msk [vmem:[#allocation2 + $0x8] sm:$0xff] %vm696, %v757
        %764 = vst.msk [vmem:[#allocation2 + $0x10] sm:$0xff] %vm696, %v758
        %765 = vst.msk [vmem:[#allocation2 + $0x18] sm:$0xff] %vm696, %v759
        %766 = vst.msk [vmem:[#allocation2 + $0x20] sm:$0xff] %vm696, %v760
        %767 = vst.msk [vmem:[#allocation2 + $0x28] sm:$0xff] %vm696, %v761
        %v768 = vld [vmem:[%s600 + $0x2] sm:$0xff]
        %v769 = vld [vmem:[%s600 + $0xa] sm:$0xff]
        %v770 = vld [vmem:[%s600 + $0x12] sm:$0xff]
        %v771 = vld [vmem:[%s600 + $0x1a] sm:$0xff]
        %v772 = vld [vmem:[%s600 + $0x22] sm:$0xff]
        %v773 = vld [vmem:[%s600 + $0x2a] sm:$0xff]
        %v774 = vpack.c.bf16 %v769, %v768
        %v775 = vpack.c.bf16 %v771, %v770
        %v776 = vpack.c.bf16 %v773, %v772
        %s777 = scalar_lea.vmem %s610, 8
        %v778 = vld [vmem:[%s777] sm:$0xf]
        %v780 = vsel %vm658, %v774, 0
        %v783 = vsel %vm658, %v775, 0
        %v786 = vsel %vm658, %v776, 0
        %v789 = vsel %vm668, %v778, 0
        %791 = vmatpush.bf16.msra.mxu0 0
        %792 = vmatpush.bf16.msra.mxu0 0
        %793 = vmatpush.bf16.msra.mxu0 0
        %794 = vmatpush.bf16.msra.mxu0 0
        %795 = vmatpush.bf16.msra.mxu0 0
        %796 = vmatpush.bf16.msra.mxu0 0
        %797 = vmatpush.bf16.msra.mxu0 0
        %798 = vmatpush.bf16.msra.mxu0 %v789
        %799 = vmatmul.bf16.gmra.mxu0 %v780
        %v800 = vpop.f32.mrf.mxu0
        %v801 = vadd.f32 0.0, %v800
        %v802 = vpop.f32.mrf.mxu0
        %v803 = vadd.f32 0.0, %v802
        %804 = vmatmul.bf16.gmra.mxu0 %v783
        %v805 = vpop.f32.mrf.mxu0
        %v806 = vadd.f32 0.0, %v805
        %v807 = vpop.f32.mrf.mxu0
        %v808 = vadd.f32 0.0, %v807
        %809 = vmatmul.bf16.gmra.mxu0 %v786
        %v810 = vpop.f32.mrf.mxu0
        %v811 = vadd.f32 0.0, %v810
        %v812 = vpop.f32.mrf.mxu0
        %v813 = vadd.f32 0.0, %v812
        %814 = vdwg.mxu0
        %v815 = vld [vmem:[#allocation2] sm:$0xff]
        %v816 = vld [vmem:[#allocation2 + $0x8] sm:$0xff]
        %v817 = vld [vmem:[#allocation2 + $0x10] sm:$0xff]
        %v818 = vld [vmem:[#allocation2 + $0x18] sm:$0xff]
        %v819 = vld [vmem:[#allocation2 + $0x20] sm:$0xff]
        %v820 = vld [vmem:[#allocation2 + $0x28] sm:$0xff]
        %v821 = vadd.f32 %v815, %v801
        %v822 = vadd.f32 %v816, %v803
        %v823 = vadd.f32 %v817, %v806
        %v824 = vadd.f32 %v818, %v808
        %v825 = vadd.f32 %v819, %v811
        %v826 = vadd.f32 %v820, %v813
        %827 = vst.msk [vmem:[#allocation2] sm:$0xff] %vm696, %v821
        %828 = vst.msk [vmem:[#allocation2 + $0x8] sm:$0xff] %vm696, %v822
        %829 = vst.msk [vmem:[#allocation2 + $0x10] sm:$0xff] %vm696, %v823
        %830 = vst.msk [vmem:[#allocation2 + $0x18] sm:$0xff] %vm696, %v824
        %831 = vst.msk [vmem:[#allocation2 + $0x20] sm:$0xff] %vm696, %v825
        %832 = vst.msk [vmem:[#allocation2 + $0x28] sm:$0xff] %vm696, %v826
        %v833 = vld [vmem:[%s600 + $0x8] sm:$0xff]
        %v834 = vld [vmem:[%s600 + $0x10] sm:$0xff]
        %v835 = vld [vmem:[%s600 + $0x18] sm:$0xff]
        %v836 = vld [vmem:[%s600 + $0x20] sm:$0xff]
        %v837 = vld [vmem:[%s600 + $0x28] sm:$0xff]
        %v838 = vld [vmem:[%s600 + $0x30] sm:$0xff]
        %v839 = vpack.c.bf16 %v834, %v833
        %v840 = vpack.c.bf16 %v836, %v835
        %v841 = vpack.c.bf16 %v838, %v837
        %s842 = scalar_lea.vmem %s610, 12
        %v843 = vld [vmem:[%s842] sm:$0xf]
        %v845 = vsel %vm658, %v839, 0
        %v848 = vsel %vm658, %v840, 0
        %v851 = vsel %vm658, %v841, 0
        %v854 = vsel %vm668, %v843, 0
        %856 = vmatpush.bf16.msra.mxu0 0
        %857 = vmatpush.bf16.msra.mxu0 0
        %858 = vmatpush.bf16.msra.mxu0 0
        %859 = vmatpush.bf16.msra.mxu0 0
        %860 = vmatpush.bf16.msra.mxu0 0
        %861 = vmatpush.bf16.msra.mxu0 0
        %862 = vmatpush.bf16.msra.mxu0 0
        %863 = vmatpush.bf16.msra.mxu0 %v854
        %864 = vmatmul.bf16.gmra.mxu0 %v845
        %v865 = vpop.f32.mrf.mxu0
        %v866 = vadd.f32 0.0, %v865
        %v867 = vpop.f32.mrf.mxu0
        %v868 = vadd.f32 0.0, %v867
        %869 = vmatmul.bf16.gmra.mxu0 %v848
        %v870 = vpop.f32.mrf.mxu0
        %v871 = vadd.f32 0.0, %v870
        %v872 = vpop.f32.mrf.mxu0
        %v873 = vadd.f32 0.0, %v872
        %874 = vmatmul.bf16.gmra.mxu0 %v851
        %v875 = vpop.f32.mrf.mxu0
        %v876 = vadd.f32 0.0, %v875
        %v877 = vpop.f32.mrf.mxu0
        %v878 = vadd.f32 0.0, %v877
        %879 = vdwg.mxu0
        %v880 = vld [vmem:[#allocation2] sm:$0xff]
        %v881 = vld [vmem:[#allocation2 + $0x8] sm:$0xff]
        %v882 = vld [vmem:[#allocation2 + $0x10] sm:$0xff]
        %v883 = vld [vmem:[#allocation2 + $0x18] sm:$0xff]
        %v884 = vld [vmem:[#allocation2 + $0x20] sm:$0xff]
        %v885 = vld [vmem:[#allocation2 + $0x28] sm:$0xff]
        %v886 = vadd.f32 %v880, %v866
        %v887 = vadd.f32 %v881, %v868
        %v888 = vadd.f32 %v882, %v871
        %v889 = vadd.f32 %v883, %v873
        %v890 = vadd.f32 %v884, %v876
        %v891 = vadd.f32 %v885, %v878
        %892 = vst.msk [vmem:[#allocation2] sm:$0xff] %vm696, %v886
        %893 = vst.msk [vmem:[#allocation2 + $0x8] sm:$0xff] %vm696, %v887
        %894 = vst.msk [vmem:[#allocation2 + $0x10] sm:$0xff] %vm696, %v888
        %895 = vst.msk [vmem:[#allocation2 + $0x18] sm:$0xff] %vm696, %v889
        %896 = vst.msk [vmem:[#allocation2 + $0x20] sm:$0xff] %vm696, %v890
        %897 = vst.msk [vmem:[#allocation2 + $0x28] sm:$0xff] %vm696, %v891
        %v898 = vld [vmem:[%s600 + $0x9] sm:$0xff]
        %v899 = vld [vmem:[%s600 + $0x11] sm:$0xff]
        %v900 = vld [vmem:[%s600 + $0x19] sm:$0xff]
        %v901 = vld [vmem:[%s600 + $0x21] sm:$0xff]
        %v902 = vld [vmem:[%s600 + $0x29] sm:$0xff]
        %v903 = vld [vmem:[%s600 + $0x31] sm:$0xff]
        %v904 = vpack.c.bf16 %v899, %v898
        %v905 = vpack.c.bf16 %v901, %v900
        %v906 = vpack.c.bf16 %v903, %v902
        %s907 = scalar_lea.vmem %s610, 16
        %v908 = vld [vmem:[%s907] sm:$0xf]
        %v910 = vsel %vm658, %v904, 0
        %v913 = vsel %vm658, %v905, 0
        %v916 = vsel %vm658, %v906, 0
        %v919 = vsel %vm668, %v908, 0
        %921 = vmatpush.bf16.msra.mxu0 0
        %922 = vmatpush.bf16.msra.mxu0 0
        %923 = vmatpush.bf16.msra.mxu0 0
        %924 = vmatpush.bf16.msra.mxu0 0
        %925 = vmatpush.bf16.msra.mxu0 0
        %926 = vmatpush.bf16.msra.mxu0 0
        %927 = vmatpush.bf16.msra.mxu0 0
        %928 = vmatpush.bf16.msra.mxu0 %v919
        %929 = vmatmul.bf16.gmra.mxu0 %v910
        %v930 = vpop.f32.mrf.mxu0
        %v931 = vadd.f32 0.0, %v930
        %v932 = vpop.f32.mrf.mxu0
        %v933 = vadd.f32 0.0, %v932
        %934 = vmatmul.bf16.gmra.mxu0 %v913
        %v935 = vpop.f32.mrf.mxu0
        %v936 = vadd.f32 0.0, %v935
        %v937 = vpop.f32.mrf.mxu0
        %v938 = vadd.f32 0.0, %v937
        %939 = vmatmul.bf16.gmra.mxu0 %v916
        %v940 = vpop.f32.mrf.mxu0
        %v941 = vadd.f32 0.0, %v940
        %v942 = vpop.f32.mrf.mxu0
        %v943 = vadd.f32 0.0, %v942
        %944 = vdwg.mxu0
        %v945 = vld [vmem:[#allocation2] sm:$0xff]
        %v946 = vld [vmem:[#allocation2 + $0x8] sm:$0xff]
        %v947 = vld [vmem:[#allocation2 + $0x10] sm:$0xff]
        %v948 = vld [vmem:[#allocation2 + $0x18] sm:$0xff]
        %v949 = vld [vmem:[#allocation2 + $0x20] sm:$0xff]
        %v950 = vld [vmem:[#allocation2 + $0x28] sm:$0xff]
        %v951 = vadd.f32 %v945, %v931
        %v952 = vadd.f32 %v946, %v933
        %v953 = vadd.f32 %v947, %v936
        %v954 = vadd.f32 %v948, %v938
        %v955 = vadd.f32 %v949, %v941
        %v956 = vadd.f32 %v950, %v943
        %957 = vst.msk [vmem:[#allocation2] sm:$0xff] %vm696, %v951
        %958 = vst.msk [vmem:[#allocation2 + $0x8] sm:$0xff] %vm696, %v952
        %959 = vst.msk [vmem:[#allocation2 + $0x10] sm:$0xff] %vm696, %v953
        %960 = vst.msk [vmem:[#allocation2 + $0x18] sm:$0xff] %vm696, %v954
        %961 = vst.msk [vmem:[#allocation2 + $0x20] sm:$0xff] %vm696, %v955
        %962 = vst.msk [vmem:[#allocation2 + $0x28] sm:$0xff] %vm696, %v956
        %v963 = vld [vmem:[%s600 + $0xa] sm:$0xff]
        %v964 = vld [vmem:[%s600 + $0x12] sm:$0xff]
        %v965 = vld [vmem:[%s600 + $0x1a] sm:$0xff]
        %v966 = vld [vmem:[%s600 + $0x22] sm:$0xff]
        %v967 = vld [vmem:[%s600 + $0x2a] sm:$0xff]
        %v968 = vld [vmem:[%s600 + $0x32] sm:$0xff]
        %v969 = vpack.c.bf16 %v964, %v963
        %v970 = vpack.c.bf16 %v966, %v965
        %v971 = vpack.c.bf16 %v968, %v967
        %s972 = scalar_lea.vmem %s610, 20
        %v973 = vld [vmem:[%s972] sm:$0xf]
        %v975 = vsel %vm658, %v969, 0
        %v978 = vsel %vm658, %v970, 0
        %v981 = vsel %vm658, %v971, 0
        %v984 = vsel %vm668, %v973, 0
        %986 = vmatpush.bf16.msra.mxu0 0
        %987 = vmatpush.bf16.msra.mxu0 0
        %988 = vmatpush.bf16.msra.mxu0 0
        %989 = vmatpush.bf16.msra.mxu0 0
        %990 = vmatpush.bf16.msra.mxu0 0
        %991 = vmatpush.bf16.msra.mxu0 0
        %992 = vmatpush.bf16.msra.mxu0 0
        %993 = vmatpush.bf16.msra.mxu0 %v984
        %994 = vmatmul.bf16.gmra.mxu0 %v975
        %v995 = vpop.f32.mrf.mxu0
        %v996 = vadd.f32 0.0, %v995
        %v997 = vpop.f32.mrf.mxu0
        %v998 = vadd.f32 0.0, %v997
        %999 = vmatmul.bf16.gmra.mxu0 %v978
        %v1000 = vpop.f32.mrf.mxu0
        %v1001 = vadd.f32 0.0, %v1000
        %v1002 = vpop.f32.mrf.mxu0
        %v1003 = vadd.f32 0.0, %v1002
        %1004 = vmatmul.bf16.gmra.mxu0 %v981
        %v1005 = vpop.f32.mrf.mxu0
        %v1006 = vadd.f32 0.0, %v1005
        %v1007 = vpop.f32.mrf.mxu0
        %v1008 = vadd.f32 0.0, %v1007
        %1009 = vdwg.mxu0
        %v1010 = vld [vmem:[#allocation2] sm:$0xff]
        %v1011 = vld [vmem:[#allocation2 + $0x8] sm:$0xff]
        %v1012 = vld [vmem:[#allocation2 + $0x10] sm:$0xff]
        %v1013 = vld [vmem:[#allocation2 + $0x18] sm:$0xff]
        %v1014 = vld [vmem:[#allocation2 + $0x20] sm:$0xff]
        %v1015 = vld [vmem:[#allocation2 + $0x28] sm:$0xff]
        %v1016 = vadd.f32 %v1010, %v996
        %v1017 = vadd.f32 %v1011, %v998
        %v1018 = vadd.f32 %v1012, %v1001
        %v1019 = vadd.f32 %v1013, %v1003
        %v1020 = vadd.f32 %v1014, %v1006
        %v1021 = vadd.f32 %v1015, %v1008
        %1022 = vst.msk [vmem:[#allocation2] sm:$0xff] %vm696, %v1016
        %1023 = vst.msk [vmem:[#allocation2 + $0x8] sm:$0xff] %vm696, %v1017
        %1024 = vst.msk [vmem:[#allocation2 + $0x10] sm:$0xff] %vm696, %v1018
        %1025 = vst.msk [vmem:[#allocation2 + $0x18] sm:$0xff] %vm696, %v1019
        %1026 = vst.msk [vmem:[#allocation2 + $0x20] sm:$0xff] %vm696, %v1020
        %1027 = vst.msk [vmem:[#allocation2 + $0x28] sm:$0xff] %vm696, %v1021
        %v1028 = vld [vmem:[%s600 + $0x10] sm:$0xff]
        %v1029 = vld [vmem:[%s600 + $0x18] sm:$0xff]
        %v1030 = vld [vmem:[%s600 + $0x20] sm:$0xff]
        %v1031 = vld [vmem:[%s600 + $0x28] sm:$0xff]
        %v1032 = vld [vmem:[%s600 + $0x30] sm:$0xff]
        %v1033 = vld [vmem:[%s600 + $0x38] sm:$0xff]
        %v1034 = vpack.c.bf16 %v1029, %v1028
        %v1035 = vpack.c.bf16 %v1031, %v1030
        %v1036 = vpack.c.bf16 %v1033, %v1032
        %s1037 = scalar_lea.vmem %s610, 24
        %v1038 = vld [vmem:[%s1037] sm:$0xf]
        %v1040 = vsel %vm658, %v1034, 0
        %v1043 = vsel %vm658, %v1035, 0
        %v1046 = vsel %vm658, %v1036, 0
        %v1049 = vsel %vm668, %v1038, 0
        %1051 = vmatpush.bf16.msra.mxu0 0
        %1052 = vmatpush.bf16.msra.mxu0 0
        %1053 = vmatpush.bf16.msra.mxu0 0
        %1054 = vmatpush.bf16.msra.mxu0 0
        %1055 = vmatpush.bf16.msra.mxu0 0
        %1056 = vmatpush.bf16.msra.mxu0 0
        %1057 = vmatpush.bf16.msra.mxu0 0
        %1058 = vmatpush.bf16.msra.mxu0 %v1049
        %1059 = vmatmul.bf16.gmra.mxu0 %v1040
        %v1060 = vpop.f32.mrf.mxu0
        %v1061 = vadd.f32 0.0, %v1060
        %v1062 = vpop.f32.mrf.mxu0
        %v1063 = vadd.f32 0.0, %v1062
        %1064 = vmatmul.bf16.gmra.mxu0 %v1043
        %v1065 = vpop.f32.mrf.mxu0
        %v1066 = vadd.f32 0.0, %v1065
        %v1067 = vpop.f32.mrf.mxu0
        %v1068 = vadd.f32 0.0, %v1067
        %1069 = vmatmul.bf16.gmra.mxu0 %v1046
        %v1070 = vpop.f32.mrf.mxu0
        %v1071 = vadd.f32 0.0, %v1070
        %v1072 = vpop.f32.mrf.mxu0
        %v1073 = vadd.f32 0.0, %v1072
        %1074 = vdwg.mxu0
        %v1075 = vld [vmem:[#allocation2] sm:$0xff]
        %v1076 = vld [vmem:[#allocation2 + $0x8] sm:$0xff]
        %v1077 = vld [vmem:[#allocation2 + $0x10] sm:$0xff]
        %v1078 = vld [vmem:[#allocation2 + $0x18] sm:$0xff]
        %v1079 = vld [vmem:[#allocation2 + $0x20] sm:$0xff]
        %v1080 = vld [vmem:[#allocation2 + $0x28] sm:$0xff]
        %v1081 = vadd.f32 %v1075, %v1061
        %v1082 = vadd.f32 %v1076, %v1063
        %v1083 = vadd.f32 %v1077, %v1066
        %v1084 = vadd.f32 %v1078, %v1068
        %v1085 = vadd.f32 %v1079, %v1071
        %v1086 = vadd.f32 %v1080, %v1073
        %1087 = vst.msk [vmem:[#allocation2] sm:$0xff] %vm696, %v1081
        %1088 = vst.msk [vmem:[#allocation2 + $0x8] sm:$0xff] %vm696, %v1082
        %1089 = vst.msk [vmem:[#allocation2 + $0x10] sm:$0xff] %vm696, %v1083
        %1090 = vst.msk [vmem:[#allocation2 + $0x18] sm:$0xff] %vm696, %v1084
        %1091 = vst.msk [vmem:[#allocation2 + $0x20] sm:$0xff] %vm696, %v1085
        %1092 = vst.msk [vmem:[#allocation2 + $0x28] sm:$0xff] %vm696, %v1086
        %v1093 = vld [vmem:[%s600 + $0x11] sm:$0xff]
        %v1094 = vld [vmem:[%s600 + $0x19] sm:$0xff]
        %v1095 = vld [vmem:[%s600 + $0x21] sm:$0xff]
        %v1096 = vld [vmem:[%s600 + $0x29] sm:$0xff]
        %v1097 = vld [vmem:[%s600 + $0x31] sm:$0xff]
        %v1098 = vld [vmem:[%s600 + $0x39] sm:$0xff]
        %v1099 = vpack.c.bf16 %v1094, %v1093
        %v1100 = vpack.c.bf16 %v1096, %v1095
        %v1101 = vpack.c.bf16 %v1098, %v1097
        %s1102 = scalar_lea.vmem %s610, 28
        %v1103 = vld [vmem:[%s1102] sm:$0xf]
        %v1105 = vsel %vm658, %v1099, 0
        %v1108 = vsel %vm658, %v1100, 0
        %v1111 = vsel %vm658, %v1101, 0
        %v1114 = vsel %vm668, %v1103, 0
        %1116 = vmatpush.bf16.msra.mxu0 0
        %1117 = vmatpush.bf16.msra.mxu0 0
        %1118 = vmatpush.bf16.msra.mxu0 0
        %1119 = vmatpush.bf16.msra.mxu0 0
        %1120 = vmatpush.bf16.msra.mxu0 0
        %1121 = vmatpush.bf16.msra.mxu0 0
        %1122 = vmatpush.bf16.msra.mxu0 0
        %1123 = vmatpush.bf16.msra.mxu0 %v1114
        %1124 = vmatmul.bf16.gmra.mxu0 %v1105
        %v1125 = vpop.f32.mrf.mxu0
        %v1126 = vadd.f32 0.0, %v1125
        %v1127 = vpop.f32.mrf.mxu0
        %v1128 = vadd.f32 0.0, %v1127
        %1129 = vmatmul.bf16.gmra.mxu0 %v1108
        %v1130 = vpop.f32.mrf.mxu0
        %v1131 = vadd.f32 0.0, %v1130
        %v1132 = vpop.f32.mrf.mxu0
        %v1133 = vadd.f32 0.0, %v1132
        %1134 = vmatmul.bf16.gmra.mxu0 %v1111
        %v1135 = vpop.f32.mrf.mxu0
        %v1136 = vadd.f32 0.0, %v1135
        %v1137 = vpop.f32.mrf.mxu0
        %v1138 = vadd.f32 0.0, %v1137
        %1139 = vdwg.mxu0
        %v1140 = vld [vmem:[#allocation2] sm:$0xff]
        %v1141 = vld [vmem:[#allocation2 + $0x8] sm:$0xff]
        %v1142 = vld [vmem:[#allocation2 + $0x10] sm:$0xff]
        %v1143 = vld [vmem:[#allocation2 + $0x18] sm:$0xff]
        %v1144 = vld [vmem:[#allocation2 + $0x20] sm:$0xff]
        %v1145 = vld [vmem:[#allocation2 + $0x28] sm:$0xff]
        %v1146 = vadd.f32 %v1140, %v1126
        %v1147 = vadd.f32 %v1141, %v1128
        %v1148 = vadd.f32 %v1142, %v1131
        %v1149 = vadd.f32 %v1143, %v1133
        %v1150 = vadd.f32 %v1144, %v1136
        %v1151 = vadd.f32 %v1145, %v1138
        %1152 = vst.msk [vmem:[#allocation2] sm:$0xff] %vm696, %v1146
        %1153 = vst.msk [vmem:[#allocation2 + $0x8] sm:$0xff] %vm696, %v1147
        %1154 = vst.msk [vmem:[#allocation2 + $0x10] sm:$0xff] %vm696, %v1148
        %1155 = vst.msk [vmem:[#allocation2 + $0x18] sm:$0xff] %vm696, %v1149
        %1156 = vst.msk [vmem:[#allocation2 + $0x20] sm:$0xff] %vm696, %v1150
        %1157 = vst.msk [vmem:[#allocation2 + $0x28] sm:$0xff] %vm696, %v1151
        %v1158 = vld [vmem:[%s600 + $0x12] sm:$0xff]
        %v1159 = vld [vmem:[%s600 + $0x1a] sm:$0xff]
        %v1160 = vld [vmem:[%s600 + $0x22] sm:$0xff]
        %v1161 = vld [vmem:[%s600 + $0x2a] sm:$0xff]
        %v1162 = vld [vmem:[%s600 + $0x32] sm:$0xff]
        %v1163 = vld [vmem:[%s600 + $0x3a] sm:$0xff]
        %v1164 = vpack.c.bf16 %v1159, %v1158
        %v1165 = vpack.c.bf16 %v1161, %v1160
        %v1166 = vpack.c.bf16 %v1163, %v1162
        %s1167 = scalar_lea.vmem %s610, 32
        %v1168 = vld [vmem:[%s1167] sm:$0xf]
        %v1170 = vsel %vm658, %v1164, 0
        %v1173 = vsel %vm658, %v1165, 0
        %v1176 = vsel %vm658, %v1166, 0
        %v1179 = vsel %vm668, %v1168, 0
        %1181 = vmatpush.bf16.msra.mxu0 0
        %1182 = vmatpush.bf16.msra.mxu0 0
        %1183 = vmatpush.bf16.msra.mxu0 0
        %1184 = vmatpush.bf16.msra.mxu0 0
        %1185 = vmatpush.bf16.msra.mxu0 0
        %1186 = vmatpush.bf16.msra.mxu0 0
        %1187 = vmatpush.bf16.msra.mxu0 0
        %1188 = vmatpush.bf16.msra.mxu0 %v1179
        %1189 = vmatmul.bf16.gmra.mxu0 %v1170
        %v1190 = vpop.f32.mrf.mxu0
        %v1191 = vadd.f32 0.0, %v1190
        %v1192 = vpop.f32.mrf.mxu0
        %v1193 = vadd.f32 0.0, %v1192
        %1194 = vmatmul.bf16.gmra.mxu0 %v1173
        %v1195 = vpop.f32.mrf.mxu0
        %v1196 = vadd.f32 0.0, %v1195
        %v1197 = vpop.f32.mrf.mxu0
        %v1198 = vadd.f32 0.0, %v1197
        %1199 = vmatmul.bf16.gmra.mxu0 %v1176
        %v1200 = vpop.f32.mrf.mxu0
        %v1201 = vadd.f32 0.0, %v1200
        %v1202 = vpop.f32.mrf.mxu0
        %v1203 = vadd.f32 0.0, %v1202
        %1204 = vdwg.mxu0
        %v1205 = vld [vmem:[#allocation2] sm:$0xff]
        %v1206 = vld [vmem:[#allocation2 + $0x8] sm:$0xff]
        %v1207 = vld [vmem:[#allocation2 + $0x10] sm:$0xff]
        %v1208 = vld [vmem:[#allocation2 + $0x18] sm:$0xff]
        %v1209 = vld [vmem:[#allocation2 + $0x20] sm:$0xff]
        %v1210 = vld [vmem:[#allocation2 + $0x28] sm:$0xff]
        %v1211 = vadd.f32 %v1205, %v1191
        %v1212 = vadd.f32 %v1206, %v1193
        %v1213 = vadd.f32 %v1207, %v1196
        %v1214 = vadd.f32 %v1208, %v1198
        %v1215 = vadd.f32 %v1209, %v1201
        %v1216 = vadd.f32 %v1210, %v1203
        %1217 = vst.msk [vmem:[#allocation2] sm:$0xff] %vm696, %v1211
        %1218 = vst.msk [vmem:[#allocation2 + $0x8] sm:$0xff] %vm696, %v1212
        %1219 = vst.msk [vmem:[#allocation2 + $0x10] sm:$0xff] %vm696, %v1213
        %1220 = vst.msk [vmem:[#allocation2 + $0x18] sm:$0xff] %vm696, %v1214
        %1221 = vst.msk [vmem:[#allocation2 + $0x20] sm:$0xff] %vm696, %v1215
        %1222 = vst.msk [vmem:[#allocation2 + $0x28] sm:$0xff] %vm696, %v1216
        %v1223 = vld [vmem:[#allocation2] sm:$0xff]
        %v1224 = vld [vmem:[#allocation2 + $0x8] sm:$0xff]
        %v1225 = vld [vmem:[#allocation2 + $0x10] sm:$0xff]
        %v1226 = vld [vmem:[#allocation2 + $0x18] sm:$0xff]
        %v1227 = vld [vmem:[#allocation2 + $0x20] sm:$0xff]
        %v1228 = vld [vmem:[#allocation2 + $0x28] sm:$0xff]
        %v1229 = vld [vmem:[%s613] sm:$0x1]
        %v1231 = vperm.slane %v1229, 0
        %v1233 = vmul.f32 %v1223, %v1231
        %v1234 = vmul.f32 %v1224, %v1231
        %v1235 = vmul.f32 %v1225, %v1231
        %v1236 = vmul.f32 %v1226, %v1231
        %v1237 = vmul.f32 %v1227, %v1231
        %v1238 = vmul.f32 %v1228, %v1231
        %v1239 = vld [vmem:[%s616] sm:$0x1]
        %v1241 = vperm.slane %v1239, 0
        %v1243 = vadd.f32 %v1233, %v1241
        %v1244 = vadd.f32 %v1234, %v1241
        %v1245 = vadd.f32 %v1235, %v1241
        %v1246 = vadd.f32 %v1236, %v1241
        %v1247 = vadd.f32 %v1237, %v1241
        %v1248 = vadd.f32 %v1238, %v1241
        %v1249 = vmax.f32 %v1243, 0.0
        %v1250 = vmax.f32 %v1244, 0.0
        %v1251 = vmax.f32 %v1245, 0.0
        %v1252 = vmax.f32 %v1246, 0.0
        %v1253 = vmax.f32 %v1247, 0.0
        %v1254 = vmax.f32 %v1248, 0.0
        %1255 = vst.msk [vmem:[#allocation2] sm:$0xff] %vm696, %v1249
        %1256 = vst.msk [vmem:[#allocation2 + $0x8] sm:$0xff] %vm696, %v1250
        %1257 = vst.msk [vmem:[#allocation2 + $0x10] sm:$0xff] %vm696, %v1251
        %1258 = vst.msk [vmem:[#allocation2 + $0x18] sm:$0xff] %vm696, %v1252
        %1259 = vst.msk [vmem:[#allocation2 + $0x20] sm:$0xff] %vm696, %v1253
        %1260 = vst.msk [vmem:[#allocation2 + $0x28] sm:$0xff] %vm696, %v1254
        %v1261 = vld [vmem:[%s605] sm:$0xff]
        %v1262 = vld [vmem:[%s605 + $0x8] sm:$0xff]
        %v1263 = vld [vmem:[%s605 + $0x10] sm:$0xff]
        %v1264 = vld [vmem:[%s605 + $0x18] sm:$0xff]
        %v1265 = vld [vmem:[%s605 + $0x20] sm:$0xff]
        %v1266 = vld [vmem:[%s605 + $0x28] sm:$0xff]
        %v1267 = vld [vmem:[%s605 + $0x30] sm:$0xff]
        %v1268 = vld [vmem:[%s605 + $0x38] sm:$0xff]
        %v1269 = vld [vmem:[%s605 + $0x40] sm:$0xff]
        %v1270 = vld [vmem:[%s605 + $0x48] sm:$0xff]
        %v1271 = vld [vmem:[%s605 + $0x50] sm:$0xff]
        %v1272 = vld [vmem:[%s605 + $0x58] sm:$0xff]
        %v1273 = vld [vmem:[%s605 + $0x60] sm:$0xff]
        %v1274 = vld [vmem:[%s605 + $0x68] sm:$0xff]
        %v1275 = vld [vmem:[%s605 + $0x70] sm:$0xff]
        %v1276 = vld [vmem:[%s605 + $0x78] sm:$0xff]
        %v1277 = vld [vmem:[%s605 + $0x80] sm:$0xff]
        %v1278 = vld [vmem:[%s605 + $0x88] sm:$0xff]
        %v1279 = vld [vmem:[%s605 + $0x90] sm:$0xff]
        %v1280 = vld [vmem:[%s605 + $0x98] sm:$0xff]
        %v1281 = vld [vmem:[%s605 + $0xa0] sm:$0xff]
        %v1282 = vld [vmem:[%s605 + $0xa8] sm:$0xff]
        %v1283 = vld [vmem:[%s605 + $0xb0] sm:$0xff]
        %v1284 = vld [vmem:[%s605 + $0xb8] sm:$0xff]
        %v1285 = vld [vmem:[%s605 + $0xc0] sm:$0xff]
        %v1286 = vld [vmem:[%s605 + $0xc8] sm:$0xff]
        %v1287 = vld [vmem:[%s605 + $0xd0] sm:$0xff]
        %v1288 = vld [vmem:[%s605 + $0xd8] sm:$0xff]
        %v1289 = vpack.c.bf16 %v1262, %v1261
        %v1290 = vpack.c.bf16 %v1264, %v1263
        %v1291 = vpack.c.bf16 %v1266, %v1265
        %v1292 = vpack.c.bf16 %v1268, %v1267
        %v1293 = vpack.c.bf16 %v1270, %v1269
        %v1294 = vpack.c.bf16 %v1272, %v1271
        %v1295 = vpack.c.bf16 %v1274, %v1273
        %v1296 = vpack.c.bf16 %v1276, %v1275
        %v1297 = vpack.c.bf16 %v1278, %v1277
        %v1298 = vpack.c.bf16 %v1280, %v1279
        %v1299 = vpack.c.bf16 %v1282, %v1281
        %v1300 = vpack.c.bf16 %v1284, %v1283
        %v1301 = vpack.c.bf16 %v1286, %v1285
        %v1302 = vpack.c.bf16 %v1288, %v1287
        %v1303 = vld [vmem:[%s621] sm:$0xf]
        %v1305 = vsel %vm658, %v1289, 0
        %v1308 = vsel %vm658, %v1290, 0
        %v1311 = vsel %vm658, %v1291, 0
        %v1314 = vsel %vm658, %v1292, 0
        %v1317 = vsel %vm658, %v1293, 0
        %v1320 = vsel %vm658, %v1294, 0
        %v1323 = vsel %vm658, %v1295, 0
        %v1326 = vsel %vm658, %v1296, 0
        %v1329 = vsel %vm658, %v1297, 0
        %v1332 = vsel %vm658, %v1298, 0
        %v1335 = vsel %vm658, %v1299, 0
        %v1338 = vsel %vm658, %v1300, 0
        %v1341 = vsel %vm658, %v1301, 0
        %v1344 = vsel %vm658, %v1302, 0
        %v1347 = vsel %vm668, %v1303, 0
        %1349 = vmatpush.bf16.msra.mxu0 0
        %1350 = vmatpush.bf16.msra.mxu0 0
        %1351 = vmatpush.bf16.msra.mxu0 0
        %1352 = vmatpush.bf16.msra.mxu0 0
        %1353 = vmatpush.bf16.msra.mxu0 0
        %1354 = vmatpush.bf16.msra.mxu0 0
        %1355 = vmatpush.bf16.msra.mxu0 0
        %1356 = vmatpush.bf16.msra.mxu0 %v1347
        %1357 = vmatmul.bf16.gmra.mxu0 %v1305
        %v1358 = vpop.f32.mrf.mxu0
        %v1359 = vadd.f32 0.0, %v1358
        %v1360 = vpop.f32.mrf.mxu0
        %v1361 = vadd.f32 0.0, %v1360
        %1362 = vmatmul.bf16.gmra.mxu0 %v1308
        %v1363 = vpop.f32.mrf.mxu0
        %v1364 = vadd.f32 0.0, %v1363
        %v1365 = vpop.f32.mrf.mxu0
        %v1366 = vadd.f32 0.0, %v1365
        %1367 = vmatmul.bf16.gmra.mxu0 %v1311
        %v1368 = vpop.f32.mrf.mxu0
        %v1369 = vadd.f32 0.0, %v1368
        %v1370 = vpop.f32.mrf.mxu0
        %v1371 = vadd.f32 0.0, %v1370
        %1372 = vmatmul.bf16.gmra.mxu0 %v1314
        %v1373 = vpop.f32.mrf.mxu0
        %v1374 = vadd.f32 0.0, %v1373
        %v1375 = vpop.f32.mrf.mxu0
        %v1376 = vadd.f32 0.0, %v1375
        %1377 = vmatmul.bf16.gmra.mxu0 %v1317
        %v1378 = vpop.f32.mrf.mxu0
        %v1379 = vadd.f32 0.0, %v1378
        %v1380 = vpop.f32.mrf.mxu0
        %v1381 = vadd.f32 0.0, %v1380
        %1382 = vmatmul.bf16.gmra.mxu0 %v1320
        %v1383 = vpop.f32.mrf.mxu0
        %v1384 = vadd.f32 0.0, %v1383
        %v1385 = vpop.f32.mrf.mxu0
        %v1386 = vadd.f32 0.0, %v1385
        %1387 = vmatmul.bf16.gmra.mxu0 %v1323
        %v1388 = vpop.f32.mrf.mxu0
        %v1389 = vadd.f32 0.0, %v1388
        %v1390 = vpop.f32.mrf.mxu0
        %v1391 = vadd.f32 0.0, %v1390
        %1392 = vmatmul.bf16.gmra.mxu0 %v1326
        %v1393 = vpop.f32.mrf.mxu0
        %v1394 = vadd.f32 0.0, %v1393
        %v1395 = vpop.f32.mrf.mxu0
        %v1396 = vadd.f32 0.0, %v1395
        %1397 = vmatmul.bf16.gmra.mxu0 %v1329
        %v1398 = vpop.f32.mrf.mxu0
        %v1399 = vadd.f32 0.0, %v1398
        %v1400 = vpop.f32.mrf.mxu0
        %v1401 = vadd.f32 0.0, %v1400
        %1402 = vmatmul.bf16.gmra.mxu0 %v1332
        %v1403 = vpop.f32.mrf.mxu0
        %v1404 = vadd.f32 0.0, %v1403
        %v1405 = vpop.f32.mrf.mxu0
        %v1406 = vadd.f32 0.0, %v1405
        %1407 = vmatmul.bf16.gmra.mxu0 %v1335
        %v1408 = vpop.f32.mrf.mxu0
        %v1409 = vadd.f32 0.0, %v1408
        %v1410 = vpop.f32.mrf.mxu0
        %v1411 = vadd.f32 0.0, %v1410
        %1412 = vmatmul.bf16.gmra.mxu0 %v1338
        %v1413 = vpop.f32.mrf.mxu0
        %v1414 = vadd.f32 0.0, %v1413
        %v1415 = vpop.f32.mrf.mxu0
        %v1416 = vadd.f32 0.0, %v1415
        %1417 = vmatmul.bf16.gmra.mxu0 %v1341
        %v1418 = vpop.f32.mrf.mxu0
        %v1419 = vadd.f32 0.0, %v1418
        %v1420 = vpop.f32.mrf.mxu0
        %v1421 = vadd.f32 0.0, %v1420
        %1422 = vmatmul.bf16.gmra.mxu0 %v1344
        %v1423 = vpop.f32.mrf.mxu0
        %v1424 = vadd.f32 0.0, %v1423
        %v1425 = vpop.f32.mrf.mxu0
        %v1426 = vadd.f32 0.0, %v1425
        %1427 = vdwg.mxu0
        %1428 = vst.msk [vmem:[#allocation3] sm:$0xff] %vm696, %v1359
        %1429 = vst.msk [vmem:[#allocation3 + $0x8] sm:$0xff] %vm696, %v1361
        %1430 = vst.msk [vmem:[#allocation3 + $0x10] sm:$0xff] %vm696, %v1364
        %1431 = vst.msk [vmem:[#allocation3 + $0x18] sm:$0xff] %vm696, %v1366
        %1432 = vst.msk [vmem:[#allocation3 + $0x20] sm:$0xff] %vm696, %v1369
        %1433 = vst.msk [vmem:[#allocation3 + $0x28] sm:$0xff] %vm696, %v1371
        %1434 = vst.msk [vmem:[#allocation3 + $0x30] sm:$0xff] %vm696, %v1374
        %1435 = vst.msk [vmem:[#allocation3 + $0x38] sm:$0xff] %vm696, %v1376
        %1436 = vst.msk [vmem:[#allocation3 + $0x40] sm:$0xff] %vm696, %v1379
        %1437 = vst.msk [vmem:[#allocation3 + $0x48] sm:$0xff] %vm696, %v1381
        %1438 = vst.msk [vmem:[#allocation3 + $0x50] sm:$0xff] %vm696, %v1384
        %1439 = vst.msk [vmem:[#allocation3 + $0x58] sm:$0xff] %vm696, %v1386
        %1440 = vst.msk [vmem:[#allocation3 + $0x60] sm:$0xff] %vm696, %v1389
        %1441 = vst.msk [vmem:[#allocation3 + $0x68] sm:$0xff] %vm696, %v1391
        %1442 = vst.msk [vmem:[#allocation3 + $0x70] sm:$0xff] %vm696, %v1394
        %1443 = vst.msk [vmem:[#allocation3 + $0x78] sm:$0xff] %vm696, %v1396
        %1444 = vst.msk [vmem:[#allocation3 + $0x80] sm:$0xff] %vm696, %v1399
        %1445 = vst.msk [vmem:[#allocation3 + $0x88] sm:$0xff] %vm696, %v1401
        %1446 = vst.msk [vmem:[#allocation3 + $0x90] sm:$0xff] %vm696, %v1404
        %1447 = vst.msk [vmem:[#allocation3 + $0x98] sm:$0xff] %vm696, %v1406
        %1448 = vst.msk [vmem:[#allocation3 + $0xa0] sm:$0xff] %vm696, %v1409
        %1449 = vst.msk [vmem:[#allocation3 + $0xa8] sm:$0xff] %vm696, %v1411
        %1450 = vst.msk [vmem:[#allocation3 + $0xb0] sm:$0xff] %vm696, %v1414
        %1451 = vst.msk [vmem:[#allocation3 + $0xb8] sm:$0xff] %vm696, %v1416
        %1452 = vst.msk [vmem:[#allocation3 + $0xc0] sm:$0xff] %vm696, %v1419
        %1453 = vst.msk [vmem:[#allocation3 + $0xc8] sm:$0xff] %vm696, %v1421
        %1454 = vst.msk [vmem:[#allocation3 + $0xd0] sm:$0xff] %vm696, %v1424
        %1455 = vst.msk [vmem:[#allocation3 + $0xd8] sm:$0xff] %vm696, %v1426
        %v1456 = vld [vmem:[%s605 + $0x1] sm:$0xff]
        %v1457 = vld [vmem:[%s605 + $0x9] sm:$0xff]
        %v1458 = vld [vmem:[%s605 + $0x11] sm:$0xff]
        %v1459 = vld [vmem:[%s605 + $0x19] sm:$0xff]
        %v1460 = vld [vmem:[%s605 + $0x21] sm:$0xff]
        %v1461 = vld [vmem:[%s605 + $0x29] sm:$0xff]
        %v1462 = vld [vmem:[%s605 + $0x31] sm:$0xff]
        %v1463 = vld [vmem:[%s605 + $0x39] sm:$0xff]
        %v1464 = vld [vmem:[%s605 + $0x41] sm:$0xff]
        %v1465 = vld [vmem:[%s605 + $0x49] sm:$0xff]
        %v1466 = vld [vmem:[%s605 + $0x51] sm:$0xff]
        %v1467 = vld [vmem:[%s605 + $0x59] sm:$0xff]
        %v1468 = vld [vmem:[%s605 + $0x61] sm:$0xff]
        %v1469 = vld [vmem:[%s605 + $0x69] sm:$0xff]
        %v1470 = vld [vmem:[%s605 + $0x71] sm:$0xff]
        %v1471 = vld [vmem:[%s605 + $0x79] sm:$0xff]
        %v1472 = vld [vmem:[%s605 + $0x81] sm:$0xff]
        %v1473 = vld [vmem:[%s605 + $0x89] sm:$0xff]
        %v1474 = vld [vmem:[%s605 + $0x91] sm:$0xff]
        %v1475 = vld [vmem:[%s605 + $0x99] sm:$0xff]
        %v1476 = vld [vmem:[%s605 + $0xa1] sm:$0xff]
        %v1477 = vld [vmem:[%s605 + $0xa9] sm:$0xff]
        %v1478 = vld [vmem:[%s605 + $0xb1] sm:$0xff]
        %v1479 = vld [vmem:[%s605 + $0xb9] sm:$0xff]
        %v1480 = vld [vmem:[%s605 + $0xc1] sm:$0xff]
        %v1481 = vld [vmem:[%s605 + $0xc9] sm:$0xff]
        %v1482 = vld [vmem:[%s605 + $0xd1] sm:$0xff]
        %v1483 = vld [vmem:[%s605 + $0xd9] sm:$0xff]
        %v1484 = vpack.c.bf16 %v1457, %v1456
        %v1485 = vpack.c.bf16 %v1459, %v1458
        %v1486 = vpack.c.bf16 %v1461, %v1460
        %v1487 = vpack.c.bf16 %v1463, %v1462
        %v1488 = vpack.c.bf16 %v1465, %v1464
        %v1489 = vpack.c.bf16 %v1467, %v1466
        %v1490 = vpack.c.bf16 %v1469, %v1468
        %v1491 = vpack.c.bf16 %v1471, %v1470
        %v1492 = vpack.c.bf16 %v1473, %v1472
        %v1493 = vpack.c.bf16 %v1475, %v1474
        %v1494 = vpack.c.bf16 %v1477, %v1476
        %v1495 = vpack.c.bf16 %v1479, %v1478
        %v1496 = vpack.c.bf16 %v1481, %v1480
        %v1497 = vpack.c.bf16 %v1483, %v1482
        %s1498 = scalar_lea.vmem %s621, 4
        %v1499 = vld [vmem:[%s1498] sm:$0xf]
        %v1501 = vsel %vm658, %v1484, 0
        %v1504 = vsel %vm658, %v1485, 0
        %v1507 = vsel %vm658, %v1486, 0
        %v1510 = vsel %vm658, %v1487, 0
        %v1513 = vsel %vm658, %v1488, 0
        %v1516 = vsel %vm658, %v1489, 0
        %v1519 = vsel %vm658, %v1490, 0
        %v1522 = vsel %vm658, %v1491, 0
        %v1525 = vsel %vm658, %v1492, 0
        %v1528 = vsel %vm658, %v1493, 0
        %v1531 = vsel %vm658, %v1494, 0
        %v1534 = vsel %vm658, %v1495, 0
        %v1537 = vsel %vm658, %v1496, 0
        %v1540 = vsel %vm658, %v1497, 0
        %v1543 = vsel %vm668, %v1499, 0
        %1545 = vmatpush.bf16.msra.mxu0 0
        %1546 = vmatpush.bf16.msra.mxu0 0
        %1547 = vmatpush.bf16.msra.mxu0 0
        %1548 = vmatpush.bf16.msra.mxu0 0
        %1549 = vmatpush.bf16.msra.mxu0 0
        %1550 = vmatpush.bf16.msra.mxu0 0
        %1551 = vmatpush.bf16.msra.mxu0 0
        %1552 = vmatpush.bf16.msra.mxu0 %v1543
        %1553 = vmatmul.bf16.gmra.mxu0 %v1501
        %v1554 = vpop.f32.mrf.mxu0
        %v1555 = vadd.f32 0.0, %v1554
        %v1556 = vpop.f32.mrf.mxu0
        %v1557 = vadd.f32 0.0, %v1556
        %1558 = vmatmul.bf16.gmra.mxu0 %v1504
        %v1559 = vpop.f32.mrf.mxu0
        %v1560 = vadd.f32 0.0, %v1559
        %v1561 = vpop.f32.mrf.mxu0
        %v1562 = vadd.f32 0.0, %v1561
        %1563 = vmatmul.bf16.gmra.mxu0 %v1507
        %v1564 = vpop.f32.mrf.mxu0
        %v1565 = vadd.f32 0.0, %v1564
        %v1566 = vpop.f32.mrf.mxu0
        %v1567 = vadd.f32 0.0, %v1566
        %1568 = vmatmul.bf16.gmra.mxu0 %v1510
        %v1569 = vpop.f32.mrf.mxu0
        %v1570 = vadd.f32 0.0, %v1569
        %v1571 = vpop.f32.mrf.mxu0
        %v1572 = vadd.f32 0.0, %v1571
        %1573 = vmatmul.bf16.gmra.mxu0 %v1513
        %v1574 = vpop.f32.mrf.mxu0
        %v1575 = vadd.f32 0.0, %v1574
        %v1576 = vpop.f32.mrf.mxu0
        %v1577 = vadd.f32 0.0, %v1576
        %1578 = vmatmul.bf16.gmra.mxu0 %v1516
        %v1579 = vpop.f32.mrf.mxu0
        %v1580 = vadd.f32 0.0, %v1579
        %v1581 = vpop.f32.mrf.mxu0
        %v1582 = vadd.f32 0.0, %v1581
        %1583 = vmatmul.bf16.gmra.mxu0 %v1519
        %v1584 = vpop.f32.mrf.mxu0
        %v1585 = vadd.f32 0.0, %v1584
        %v1586 = vpop.f32.mrf.mxu0
        %v1587 = vadd.f32 0.0, %v1586
        %1588 = vmatmul.bf16.gmra.mxu0 %v1522
        %v1589 = vpop.f32.mrf.mxu0
        %v1590 = vadd.f32 0.0, %v1589
        %v1591 = vpop.f32.mrf.mxu0
        %v1592 = vadd.f32 0.0, %v1591
        %1593 = vmatmul.bf16.gmra.mxu0 %v1525
        %v1594 = vpop.f32.mrf.mxu0
        %v1595 = vadd.f32 0.0, %v1594
        %v1596 = vpop.f32.mrf.mxu0
        %v1597 = vadd.f32 0.0, %v1596
        %1598 = vmatmul.bf16.gmra.mxu0 %v1528
        %v1599 = vpop.f32.mrf.mxu0
        %v1600 = vadd.f32 0.0, %v1599
        %v1601 = vpop.f32.mrf.mxu0
        %v1602 = vadd.f32 0.0, %v1601
        %1603 = vmatmul.bf16.gmra.mxu0 %v1531
        %v1604 = vpop.f32.mrf.mxu0
        %v1605 = vadd.f32 0.0, %v1604
        %v1606 = vpop.f32.mrf.mxu0
        %v1607 = vadd.f32 0.0, %v1606
        %1608 = vmatmul.bf16.gmra.mxu0 %v1534
        %v1609 = vpop.f32.mrf.mxu0
        %v1610 = vadd.f32 0.0, %v1609
        %v1611 = vpop.f32.mrf.mxu0
        %v1612 = vadd.f32 0.0, %v1611
        %1613 = vmatmul.bf16.gmra.mxu0 %v1537
        %v1614 = vpop.f32.mrf.mxu0
        %v1615 = vadd.f32 0.0, %v1614
        %v1616 = vpop.f32.mrf.mxu0
        %v1617 = vadd.f32 0.0, %v1616
        %1618 = vmatmul.bf16.gmra.mxu0 %v1540
        %v1619 = vpop.f32.mrf.mxu0
        %v1620 = vadd.f32 0.0, %v1619
        %v1621 = vpop.f32.mrf.mxu0
        %v1622 = vadd.f32 0.0, %v1621
        %1623 = vdwg.mxu0
        %v1624 = vld [vmem:[#allocation3] sm:$0xff]
        %v1625 = vld [vmem:[#allocation3 + $0x8] sm:$0xff]
        %v1626 = vld [vmem:[#allocation3 + $0x10] sm:$0xff]
        %v1627 = vld [vmem:[#allocation3 + $0x18] sm:$0xff]
        %v1628 = vld [vmem:[#allocation3 + $0x20] sm:$0xff]
        %v1629 = vld [vmem:[#allocation3 + $0x28] sm:$0xff]
        %v1630 = vld [vmem:[#allocation3 + $0x30] sm:$0xff]
        %v1631 = vld [vmem:[#allocation3 + $0x38] sm:$0xff]
        %v1632 = vld [vmem:[#allocation3 + $0x40] sm:$0xff]
        %v1633 = vld [vmem:[#allocation3 + $0x48] sm:$0xff]
        %v1634 = vld [vmem:[#allocation3 + $0x50] sm:$0xff]
        %v1635 = vld [vmem:[#allocation3 + $0x58] sm:$0xff]
        %v1636 = vld [vmem:[#allocation3 + $0x60] sm:$0xff]
        %v1637 = vld [vmem:[#allocation3 + $0x68] sm:$0xff]
        %v1638 = vld [vmem:[#allocation3 + $0x70] sm:$0xff]
        %v1639 = vld [vmem:[#allocation3 + $0x78] sm:$0xff]
        %v1640 = vld [vmem:[#allocation3 + $0x80] sm:$0xff]
        %v1641 = vld [vmem:[#allocation3 + $0x88] sm:$0xff]
        %v1642 = vld [vmem:[#allocation3 + $0x90] sm:$0xff]
        %v1643 = vld [vmem:[#allocation3 + $0x98] sm:$0xff]
        %v1644 = vld [vmem:[#allocation3 + $0xa0] sm:$0xff]
        %v1645 = vld [vmem:[#allocation3 + $0xa8] sm:$0xff]
        %v1646 = vld [vmem:[#allocation3 + $0xb0] sm:$0xff]
        %v1647 = vld [vmem:[#allocation3 + $0xb8] sm:$0xff]
        %v1648 = vld [vmem:[#allocation3 + $0xc0] sm:$0xff]
        %v1649 = vld [vmem:[#allocation3 + $0xc8] sm:$0xff]
        %v1650 = vld [vmem:[#allocation3 + $0xd0] sm:$0xff]
        %v1651 = vld [vmem:[#allocation3 + $0xd8] sm:$0xff]
        %v1652 = vadd.f32 %v1624, %v1555
        %v1653 = vadd.f32 %v1625, %v1557
        %v1654 = vadd.f32 %v1626, %v1560
        %v1655 = vadd.f32 %v1627, %v1562
        %v1656 = vadd.f32 %v1628, %v1565
        %v1657 = vadd.f32 %v1629, %v1567
        %v1658 = vadd.f32 %v1630, %v1570
        %v1659 = vadd.f32 %v1631, %v1572
        %v1660 = vadd.f32 %v1632, %v1575
        %v1661 = vadd.f32 %v1633, %v1577
        %v1662 = vadd.f32 %v1634, %v1580
        %v1663 = vadd.f32 %v1635, %v1582
        %v1664 = vadd.f32 %v1636, %v1585
        %v1665 = vadd.f32 %v1637, %v1587
        %v1666 = vadd.f32 %v1638, %v1590
        %v1667 = vadd.f32 %v1639, %v1592
        %v1668 = vadd.f32 %v1640, %v1595
        %v1669 = vadd.f32 %v1641, %v1597
        %v1670 = vadd.f32 %v1642, %v1600
        %v1671 = vadd.f32 %v1643, %v1602
        %v1672 = vadd.f32 %v1644, %v1605
        %v1673 = vadd.f32 %v1645, %v1607
        %v1674 = vadd.f32 %v1646, %v1610
        %v1675 = vadd.f32 %v1647, %v1612
        %v1676 = vadd.f32 %v1648, %v1615
        %v1677 = vadd.f32 %v1649, %v1617
        %v1678 = vadd.f32 %v1650, %v1620
        %v1679 = vadd.f32 %v1651, %v1622
        %1680 = vst.msk [vmem:[#allocation3] sm:$0xff] %vm696, %v1652
        %1681 = vst.msk [vmem:[#allocation3 + $0x8] sm:$0xff] %vm696, %v1653
        %1682 = vst.msk [vmem:[#allocation3 + $0x10] sm:$0xff] %vm696, %v1654
        %1683 = vst.msk [vmem:[#allocation3 + $0x18] sm:$0xff] %vm696, %v1655
        %1684 = vst.msk [vmem:[#allocation3 + $0x20] sm:$0xff] %vm696, %v1656
        %1685 = vst.msk [vmem:[#allocation3 + $0x28] sm:$0xff] %vm696, %v1657
        %1686 = vst.msk [vmem:[#allocation3 + $0x30] sm:$0xff] %vm696, %v1658
        %1687 = vst.msk [vmem:[#allocation3 + $0x38] sm:$0xff] %vm696, %v1659
        %1688 = vst.msk [vmem:[#allocation3 + $0x40] sm:$0xff] %vm696, %v1660
        %1689 = vst.msk [vmem:[#allocation3 + $0x48] sm:$0xff] %vm696, %v1661
        %1690 = vst.msk [vmem:[#allocation3 + $0x50] sm:$0xff] %vm696, %v1662
        %1691 = vst.msk [vmem:[#allocation3 + $0x58] sm:$0xff] %vm696, %v1663
        %1692 = vst.msk [vmem:[#allocation3 + $0x60] sm:$0xff] %vm696, %v1664
        %1693 = vst.msk [vmem:[#allocation3 + $0x68] sm:$0xff] %vm696, %v1665
        %1694 = vst.msk [vmem:[#allocation3 + $0x70] sm:$0xff] %vm696, %v1666
        %1695 = vst.msk [vmem:[#allocation3 + $0x78] sm:$0xff] %vm696, %v1667
        %1696 = vst.msk [vmem:[#allocation3 + $0x80] sm:$0xff] %vm696, %v1668
        %1697 = vst.msk [vmem:[#allocation3 + $0x88] sm:$0xff] %vm696, %v1669
        %1698 = vst.msk [vmem:[#allocation3 + $0x90] sm:$0xff] %vm696, %v1670
        %1699 = vst.msk [vmem:[#allocation3 + $0x98] sm:$0xff] %vm696, %v1671
        %1700 = vst.msk [vmem:[#allocation3 + $0xa0] sm:$0xff] %vm696, %v1672
        %1701 = vst.msk [vmem:[#allocation3 + $0xa8] sm:$0xff] %vm696, %v1673
        %1702 = vst.msk [vmem:[#allocation3 + $0xb0] sm:$0xff] %vm696, %v1674
        %1703 = vst.msk [vmem:[#allocation3 + $0xb8] sm:$0xff] %vm696, %v1675
        %1704 = vst.msk [vmem:[#allocation3 + $0xc0] sm:$0xff] %vm696, %v1676
        %1705 = vst.msk [vmem:[#allocation3 + $0xc8] sm:$0xff] %vm696, %v1677
        %1706 = vst.msk [vmem:[#allocation3 + $0xd0] sm:$0xff] %vm696, %v1678
        %1707 = vst.msk [vmem:[#allocation3 + $0xd8] sm:$0xff] %vm696, %v1679
        %v1708 = vld [vmem:[%s605 + $0x2] sm:$0xff]
        %v1709 = vld [vmem:[%s605 + $0xa] sm:$0xff]
        %v1710 = vld [vmem:[%s605 + $0x12] sm:$0xff]
        %v1711 = vld [vmem:[%s605 + $0x1a] sm:$0xff]
        %v1712 = vld [vmem:[%s605 + $0x22] sm:$0xff]
        %v1713 = vld [vmem:[%s605 + $0x2a] sm:$0xff]
        %v1714 = vld [vmem:[%s605 + $0x32] sm:$0xff]
        %v1715 = vld [vmem:[%s605 + $0x3a] sm:$0xff]
        %v1716 = vld [vmem:[%s605 + $0x42] sm:$0xff]
        %v1717 = vld [vmem:[%s605 + $0x4a] sm:$0xff]
        %v1718 = vld [vmem:[%s605 + $0x52] sm:$0xff]
        %v1719 = vld [vmem:[%s605 + $0x5a] sm:$0xff]
        %v1720 = vld [vmem:[%s605 + $0x62] sm:$0xff]
        %v1721 = vld [vmem:[%s605 + $0x6a] sm:$0xff]
        %v1722 = vld [vmem:[%s605 + $0x72] sm:$0xff]
        %v1723 = vld [vmem:[%s605 + $0x7a] sm:$0xff]
        %v1724 = vld [vmem:[%s605 + $0x82] sm:$0xff]
        %v1725 = vld [vmem:[%s605 + $0x8a] sm:$0xff]
        %v1726 = vld [vmem:[%s605 + $0x92] sm:$0xff]
        %v1727 = vld [vmem:[%s605 + $0x9a] sm:$0xff]
        %v1728 = vld [vmem:[%s605 + $0xa2] sm:$0xff]
        %v1729 = vld [vmem:[%s605 + $0xaa] sm:$0xff]
        %v1730 = vld [vmem:[%s605 + $0xb2] sm:$0xff]
        %v1731 = vld [vmem:[%s605 + $0xba] sm:$0xff]
        %v1732 = vld [vmem:[%s605 + $0xc2] sm:$0xff]
        %v1733 = vld [vmem:[%s605 + $0xca] sm:$0xff]
        %v1734 = vld [vmem:[%s605 + $0xd2] sm:$0xff]
        %v1735 = vld [vmem:[%s605 + $0xda] sm:$0xff]
        %v1736 = vpack.c.bf16 %v1709, %v1708
        %v1737 = vpack.c.bf16 %v1711, %v1710
        %v1738 = vpack.c.bf16 %v1713, %v1712
        %v1739 = vpack.c.bf16 %v1715, %v1714
        %v1740 = vpack.c.bf16 %v1717, %v1716
        %v1741 = vpack.c.bf16 %v1719, %v1718
        %v1742 = vpack.c.bf16 %v1721, %v1720
        %v1743 = vpack.c.bf16 %v1723, %v1722
        %v1744 = vpack.c.bf16 %v1725, %v1724
        %v1745 = vpack.c.bf16 %v1727, %v1726
        %v1746 = vpack.c.bf16 %v1729, %v1728
        %v1747 = vpack.c.bf16 %v1731, %v1730
        %v1748 = vpack.c.bf16 %v1733, %v1732
        %v1749 = vpack.c.bf16 %v1735, %v1734
        %s1750 = scalar_lea.vmem %s621, 8
        %v1751 = vld [vmem:[%s1750] sm:$0xf]
        %v1753 = vsel %vm658, %v1736, 0
        %v1756 = vsel %vm658, %v1737, 0
        %v1759 = vsel %vm658, %v1738, 0
        %v1762 = vsel %vm658, %v1739, 0
        %v1765 = vsel %vm658, %v1740, 0
        %v1768 = vsel %vm658, %v1741, 0
        %v1771 = vsel %vm658, %v1742, 0
        %v1774 = vsel %vm658, %v1743, 0
        %v1777 = vsel %vm658, %v1744, 0
        %v1780 = vsel %vm658, %v1745, 0
        %v1783 = vsel %vm658, %v1746, 0
        %v1786 = vsel %vm658, %v1747, 0
        %v1789 = vsel %vm658, %v1748, 0
        %v1792 = vsel %vm658, %v1749, 0
        %v1795 = vsel %vm668, %v1751, 0
        %1797 = vmatpush.bf16.msra.mxu0 0
        %1798 = vmatpush.bf16.msra.mxu0 0
        %1799 = vmatpush.bf16.msra.mxu0 0
        %1800 = vmatpush.bf16.msra.mxu0 0
        %1801 = vmatpush.bf16.msra.mxu0 0
        %1802 = vmatpush.bf16.msra.mxu0 0
        %1803 = vmatpush.bf16.msra.mxu0 0
        %1804 = vmatpush.bf16.msra.mxu0 %v1795
        %1805 = vmatmul.bf16.gmra.mxu0 %v1753
        %v1806 = vpop.f32.mrf.mxu0
        %v1807 = vadd.f32 0.0, %v1806
        %v1808 = vpop.f32.mrf.mxu0
        %v1809 = vadd.f32 0.0, %v1808
        %1810 = vmatmul.bf16.gmra.mxu0 %v1756
        %v1811 = vpop.f32.mrf.mxu0
        %v1812 = vadd.f32 0.0, %v1811
        %v1813 = vpop.f32.mrf.mxu0
        %v1814 = vadd.f32 0.0, %v1813
        %1815 = vmatmul.bf16.gmra.mxu0 %v1759
        %v1816 = vpop.f32.mrf.mxu0
        %v1817 = vadd.f32 0.0, %v1816
        %v1818 = vpop.f32.mrf.mxu0
        %v1819 = vadd.f32 0.0, %v1818
        %1820 = vmatmul.bf16.gmra.mxu0 %v1762
        %v1821 = vpop.f32.mrf.mxu0
        %v1822 = vadd.f32 0.0, %v1821
        %v1823 = vpop.f32.mrf.mxu0
        %v1824 = vadd.f32 0.0, %v1823
        %1825 = vmatmul.bf16.gmra.mxu0 %v1765
        %v1826 = vpop.f32.mrf.mxu0
        %v1827 = vadd.f32 0.0, %v1826
        %v1828 = vpop.f32.mrf.mxu0
        %v1829 = vadd.f32 0.0, %v1828
        %1830 = vmatmul.bf16.gmra.mxu0 %v1768
        %v1831 = vpop.f32.mrf.mxu0
        %v1832 = vadd.f32 0.0, %v1831
        %v1833 = vpop.f32.mrf.mxu0
        %v1834 = vadd.f32 0.0, %v1833
        %1835 = vmatmul.bf16.gmra.mxu0 %v1771
        %v1836 = vpop.f32.mrf.mxu0
        %v1837 = vadd.f32 0.0, %v1836
        %v1838 = vpop.f32.mrf.mxu0
        %v1839 = vadd.f32 0.0, %v1838
        %1840 = vmatmul.bf16.gmra.mxu0 %v1774
        %v1841 = vpop.f32.mrf.mxu0
        %v1842 = vadd.f32 0.0, %v1841
        %v1843 = vpop.f32.mrf.mxu0
        %v1844 = vadd.f32 0.0, %v1843
        %1845 = vmatmul.bf16.gmra.mxu0 %v1777
        %v1846 = vpop.f32.mrf.mxu0
        %v1847 = vadd.f32 0.0, %v1846
        %v1848 = vpop.f32.mrf.mxu0
        %v1849 = vadd.f32 0.0, %v1848
        %1850 = vmatmul.bf16.gmra.mxu0 %v1780
        %v1851 = vpop.f32.mrf.mxu0
        %v1852 = vadd.f32 0.0, %v1851
        %v1853 = vpop.f32.mrf.mxu0
        %v1854 = vadd.f32 0.0, %v1853
        %1855 = vmatmul.bf16.gmra.mxu0 %v1783
        %v1856 = vpop.f32.mrf.mxu0
        %v1857 = vadd.f32 0.0, %v1856
        %v1858 = vpop.f32.mrf.mxu0
        %v1859 = vadd.f32 0.0, %v1858
        %1860 = vmatmul.bf16.gmra.mxu0 %v1786
        %v1861 = vpop.f32.mrf.mxu0
        %v1862 = vadd.f32 0.0, %v1861
        %v1863 = vpop.f32.mrf.mxu0
        %v1864 = vadd.f32 0.0, %v1863
        %1865 = vmatmul.bf16.gmra.mxu0 %v1789
        %v1866 = vpop.f32.mrf.mxu0
        %v1867 = vadd.f32 0.0, %v1866
        %v1868 = vpop.f32.mrf.mxu0
        %v1869 = vadd.f32 0.0, %v1868
        %1870 = vmatmul.bf16.gmra.mxu0 %v1792
        %v1871 = vpop.f32.mrf.mxu0
        %v1872 = vadd.f32 0.0, %v1871
        %v1873 = vpop.f32.mrf.mxu0
        %v1874 = vadd.f32 0.0, %v1873
        %1875 = vdwg.mxu0
        %v1876 = vld [vmem:[#allocation3] sm:$0xff]
        %v1877 = vld [vmem:[#allocation3 + $0x8] sm:$0xff]
        %v1878 = vld [vmem:[#allocation3 + $0x10] sm:$0xff]
        %v1879 = vld [vmem:[#allocation3 + $0x18] sm:$0xff]
        %v1880 = vld [vmem:[#allocation3 + $0x20] sm:$0xff]
        %v1881 = vld [vmem:[#allocation3 + $0x28] sm:$0xff]
        %v1882 = vld [vmem:[#allocation3 + $0x30] sm:$0xff]
        %v1883 = vld [vmem:[#allocation3 + $0x38] sm:$0xff]
        %v1884 = vld [vmem:[#allocation3 + $0x40] sm:$0xff]
        %v1885 = vld [vmem:[#allocation3 + $0x48] sm:$0xff]
        %v1886 = vld [vmem:[#allocation3 + $0x50] sm:$0xff]
        %v1887 = vld [vmem:[#allocation3 + $0x58] sm:$0xff]
        %v1888 = vld [vmem:[#allocation3 + $0x60] sm:$0xff]
        %v1889 = vld [vmem:[#allocation3 + $0x68] sm:$0xff]
        %v1890 = vld [vmem:[#allocation3 + $0x70] sm:$0xff]
        %v1891 = vld [vmem:[#allocation3 + $0x78] sm:$0xff]
        %v1892 = vld [vmem:[#allocation3 + $0x80] sm:$0xff]
        %v1893 = vld [vmem:[#allocation3 + $0x88] sm:$0xff]
        %v1894 = vld [vmem:[#allocation3 + $0x90] sm:$0xff]
        %v1895 = vld [vmem:[#allocation3 + $0x98] sm:$0xff]
        %v1896 = vld [vmem:[#allocation3 + $0xa0] sm:$0xff]
        %v1897 = vld [vmem:[#allocation3 + $0xa8] sm:$0xff]
        %v1898 = vld [vmem:[#allocation3 + $0xb0] sm:$0xff]
        %v1899 = vld [vmem:[#allocation3 + $0xb8] sm:$0xff]
        %v1900 = vld [vmem:[#allocation3 + $0xc0] sm:$0xff]
        %v1901 = vld [vmem:[#allocation3 + $0xc8] sm:$0xff]
        %v1902 = vld [vmem:[#allocation3 + $0xd0] sm:$0xff]
        %v1903 = vld [vmem:[#allocation3 + $0xd8] sm:$0xff]
        %v1904 = vadd.f32 %v1876, %v1807
        %v1905 = vadd.f32 %v1877, %v1809
        %v1906 = vadd.f32 %v1878, %v1812
        %v1907 = vadd.f32 %v1879, %v1814
        %v1908 = vadd.f32 %v1880, %v1817
        %v1909 = vadd.f32 %v1881, %v1819
        %v1910 = vadd.f32 %v1882, %v1822
        %v1911 = vadd.f32 %v1883, %v1824
        %v1912 = vadd.f32 %v1884, %v1827
        %v1913 = vadd.f32 %v1885, %v1829
        %v1914 = vadd.f32 %v1886, %v1832
        %v1915 = vadd.f32 %v1887, %v1834
        %v1916 = vadd.f32 %v1888, %v1837
        %v1917 = vadd.f32 %v1889, %v1839
        %v1918 = vadd.f32 %v1890, %v1842
        %v1919 = vadd.f32 %v1891, %v1844
        %v1920 = vadd.f32 %v1892, %v1847
        %v1921 = vadd.f32 %v1893, %v1849
        %v1922 = vadd.f32 %v1894, %v1852
        %v1923 = vadd.f32 %v1895, %v1854
        %v1924 = vadd.f32 %v1896, %v1857
        %v1925 = vadd.f32 %v1897, %v1859
        %v1926 = vadd.f32 %v1898, %v1862
        %v1927 = vadd.f32 %v1899, %v1864
        %v1928 = vadd.f32 %v1900, %v1867
        %v1929 = vadd.f32 %v1901, %v1869
        %v1930 = vadd.f32 %v1902, %v1872
        %v1931 = vadd.f32 %v1903, %v1874
        %1932 = vst.msk [vmem:[#allocation3] sm:$0xff] %vm696, %v1904
        %1933 = vst.msk [vmem:[#allocation3 + $0x8] sm:$0xff] %vm696, %v1905
        %1934 = vst.msk [vmem:[#allocation3 + $0x10] sm:$0xff] %vm696, %v1906
        %1935 = vst.msk [vmem:[#allocation3 + $0x18] sm:$0xff] %vm696, %v1907
        %1936 = vst.msk [vmem:[#allocation3 + $0x20] sm:$0xff] %vm696, %v1908
        %1937 = vst.msk [vmem:[#allocation3 + $0x28] sm:$0xff] %vm696, %v1909
        %1938 = vst.msk [vmem:[#allocation3 + $0x30] sm:$0xff] %vm696, %v1910
        %1939 = vst.msk [vmem:[#allocation3 + $0x38] sm:$0xff] %vm696, %v1911
        %1940 = vst.msk [vmem:[#allocation3 + $0x40] sm:$0xff] %vm696, %v1912
        %1941 = vst.msk [vmem:[#allocation3 + $0x48] sm:$0xff] %vm696, %v1913
        %1942 = vst.msk [vmem:[#allocation3 + $0x50] sm:$0xff] %vm696, %v1914
        %1943 = vst.msk [vmem:[#allocation3 + $0x58] sm:$0xff] %vm696, %v1915
        %1944 = vst.msk [vmem:[#allocation3 + $0x60] sm:$0xff] %vm696, %v1916
        %1945 = vst.msk [vmem:[#allocation3 + $0x68] sm:$0xff] %vm696, %v1917
        %1946 = vst.msk [vmem:[#allocation3 + $0x70] sm:$0xff] %vm696, %v1918
        %1947 = vst.msk [vmem:[#allocation3 + $0x78] sm:$0xff] %vm696, %v1919
        %1948 = vst.msk [vmem:[#allocation3 + $0x80] sm:$0xff] %vm696, %v1920
        %1949 = vst.msk [vmem:[#allocation3 + $0x88] sm:$0xff] %vm696, %v1921
        %1950 = vst.msk [vmem:[#allocation3 + $0x90] sm:$0xff] %vm696, %v1922
        %1951 = vst.msk [vmem:[#allocation3 + $0x98] sm:$0xff] %vm696, %v1923
        %1952 = vst.msk [vmem:[#allocation3 + $0xa0] sm:$0xff] %vm696, %v1924
        %1953 = vst.msk [vmem:[#allocation3 + $0xa8] sm:$0xff] %vm696, %v1925
        %1954 = vst.msk [vmem:[#allocation3 + $0xb0] sm:$0xff] %vm696, %v1926
        %1955 = vst.msk [vmem:[#allocation3 + $0xb8] sm:$0xff] %vm696, %v1927
        %1956 = vst.msk [vmem:[#allocation3 + $0xc0] sm:$0xff] %vm696, %v1928
        %1957 = vst.msk [vmem:[#allocation3 + $0xc8] sm:$0xff] %vm696, %v1929
        %1958 = vst.msk [vmem:[#allocation3 + $0xd0] sm:$0xff] %vm696, %v1930
        %1959 = vst.msk [vmem:[#allocation3 + $0xd8] sm:$0xff] %vm696, %v1931
        %v1960 = vld [vmem:[%s605 + $0x10] sm:$0xff]
        %v1961 = vld [vmem:[%s605 + $0x18] sm:$0xff]
        %v1962 = vld [vmem:[%s605 + $0x20] sm:$0xff]
        %v1963 = vld [vmem:[%s605 + $0x28] sm:$0xff]
        %v1964 = vld [vmem:[%s605 + $0x30] sm:$0xff]
        %v1965 = vld [vmem:[%s605 + $0x38] sm:$0xff]
        %v1966 = vld [vmem:[%s605 + $0x40] sm:$0xff]
        %v1967 = vld [vmem:[%s605 + $0x48] sm:$0xff]
        %v1968 = vld [vmem:[%s605 + $0x50] sm:$0xff]
        %v1969 = vld [vmem:[%s605 + $0x58] sm:$0xff]
        %v1970 = vld [vmem:[%s605 + $0x60] sm:$0xff]
        %v1971 = vld [vmem:[%s605 + $0x68] sm:$0xff]
        %v1972 = vld [vmem:[%s605 + $0x70] sm:$0xff]
        %v1973 = vld [vmem:[%s605 + $0x78] sm:$0xff]
        %v1974 = vld [vmem:[%s605 + $0x80] sm:$0xff]
        %v1975 = vld [vmem:[%s605 + $0x88] sm:$0xff]
        %v1976 = vld [vmem:[%s605 + $0x90] sm:$0xff]
        %v1977 = vld [vmem:[%s605 + $0x98] sm:$0xff]
        %v1978 = vld [vmem:[%s605 + $0xa0] sm:$0xff]
        %v1979 = vld [vmem:[%s605 + $0xa8] sm:$0xff]
        %v1980 = vld [vmem:[%s605 + $0xb0] sm:$0xff]
        %v1981 = vld [vmem:[%s605 + $0xb8] sm:$0xff]
        %v1982 = vld [vmem:[%s605 + $0xc0] sm:$0xff]
        %v1983 = vld [vmem:[%s605 + $0xc8] sm:$0xff]
        %v1984 = vld [vmem:[%s605 + $0xd0] sm:$0xff]
        %v1985 = vld [vmem:[%s605 + $0xd8] sm:$0xff]
        %v1986 = vld [vmem:[%s605 + $0xe0] sm:$0xff]
        %v1987 = vld [vmem:[%s605 + $0xe8] sm:$0xff]
        %v1988 = vpack.c.bf16 %v1961, %v1960
        %v1989 = vpack.c.bf16 %v1963, %v1962
        %v1990 = vpack.c.bf16 %v1965, %v1964
        %v1991 = vpack.c.bf16 %v1967, %v1966
        %v1992 = vpack.c.bf16 %v1969, %v1968
        %v1993 = vpack.c.bf16 %v1971, %v1970
        %v1994 = vpack.c.bf16 %v1973, %v1972
        %v1995 = vpack.c.bf16 %v1975, %v1974
        %v1996 = vpack.c.bf16 %v1977, %v1976
        %v1997 = vpack.c.bf16 %v1979, %v1978
        %v1998 = vpack.c.bf16 %v1981, %v1980
        %v1999 = vpack.c.bf16 %v1983, %v1982
        %v2000 = vpack.c.bf16 %v1985, %v1984
        %v2001 = vpack.c.bf16 %v1987, %v1986
        %s2002 = scalar_lea.vmem %s621, 12
        %v2003 = vld [vmem:[%s2002] sm:$0xf]
        %v2005 = vsel %vm658, %v1988, 0
        %v2008 = vsel %vm658, %v1989, 0
        %v2011 = vsel %vm658, %v1990, 0
        %v2014 = vsel %vm658, %v1991, 0
        %v2017 = vsel %vm658, %v1992, 0
        %v2020 = vsel %vm658, %v1993, 0
        %v2023 = vsel %vm658, %v1994, 0
        %v2026 = vsel %vm658, %v1995, 0
        %v2029 = vsel %vm658, %v1996, 0
        %v2032 = vsel %vm658, %v1997, 0
        %v2035 = vsel %vm658, %v1998, 0
        %v2038 = vsel %vm658, %v1999, 0
        %v2041 = vsel %vm658, %v2000, 0
        %v2044 = vsel %vm658, %v2001, 0
        %v2047 = vsel %vm668, %v2003, 0
        %2049 = vmatpush.bf16.msra.mxu0 0
        %2050 = vmatpush.bf16.msra.mxu0 0
        %2051 = vmatpush.bf16.msra.mxu0 0
        %2052 = vmatpush.bf16.msra.mxu0 0
        %2053 = vmatpush.bf16.msra.mxu0 0
        %2054 = vmatpush.bf16.msra.mxu0 0
        %2055 = vmatpush.bf16.msra.mxu0 0
        %2056 = vmatpush.bf16.msra.mxu0 %v2047
        %2057 = vmatmul.bf16.gmra.mxu0 %v2005
        %v2058 = vpop.f32.mrf.mxu0
        %v2059 = vadd.f32 0.0, %v2058
        %v2060 = vpop.f32.mrf.mxu0
        %v2061 = vadd.f32 0.0, %v2060
        %2062 = vmatmul.bf16.gmra.mxu0 %v2008
        %v2063 = vpop.f32.mrf.mxu0
        %v2064 = vadd.f32 0.0, %v2063
        %v2065 = vpop.f32.mrf.mxu0
        %v2066 = vadd.f32 0.0, %v2065
        %2067 = vmatmul.bf16.gmra.mxu0 %v2011
        %v2068 = vpop.f32.mrf.mxu0
        %v2069 = vadd.f32 0.0, %v2068
        %v2070 = vpop.f32.mrf.mxu0
        %v2071 = vadd.f32 0.0, %v2070
        %2072 = vmatmul.bf16.gmra.mxu0 %v2014
        %v2073 = vpop.f32.mrf.mxu0
        %v2074 = vadd.f32 0.0, %v2073
        %v2075 = vpop.f32.mrf.mxu0
        %v2076 = vadd.f32 0.0, %v2075
        %2077 = vmatmul.bf16.gmra.mxu0 %v2017
        %v2078 = vpop.f32.mrf.mxu0
        %v2079 = vadd.f32 0.0, %v2078
        %v2080 = vpop.f32.mrf.mxu0
        %v2081 = vadd.f32 0.0, %v2080
        %2082 = vmatmul.bf16.gmra.mxu0 %v2020
        %v2083 = vpop.f32.mrf.mxu0
        %v2084 = vadd.f32 0.0, %v2083
        %v2085 = vpop.f32.mrf.mxu0
        %v2086 = vadd.f32 0.0, %v2085
        %2087 = vmatmul.bf16.gmra.mxu0 %v2023
        %v2088 = vpop.f32.mrf.mxu0
        %v2089 = vadd.f32 0.0, %v2088
        %v2090 = vpop.f32.mrf.mxu0
        %v2091 = vadd.f32 0.0, %v2090
        %2092 = vmatmul.bf16.gmra.mxu0 %v2026
        %v2093 = vpop.f32.mrf.mxu0
        %v2094 = vadd.f32 0.0, %v2093
        %v2095 = vpop.f32.mrf.mxu0
        %v2096 = vadd.f32 0.0, %v2095
        %2097 = vmatmul.bf16.gmra.mxu0 %v2029
        %v2098 = vpop.f32.mrf.mxu0
        %v2099 = vadd.f32 0.0, %v2098
        %v2100 = vpop.f32.mrf.mxu0
        %v2101 = vadd.f32 0.0, %v2100
        %2102 = vmatmul.bf16.gmra.mxu0 %v2032
        %v2103 = vpop.f32.mrf.mxu0
        %v2104 = vadd.f32 0.0, %v2103
        %v2105 = vpop.f32.mrf.mxu0
        %v2106 = vadd.f32 0.0, %v2105
        %2107 = vmatmul.bf16.gmra.mxu0 %v2035
        %v2108 = vpop.f32.mrf.mxu0
        %v2109 = vadd.f32 0.0, %v2108
        %v2110 = vpop.f32.mrf.mxu0
        %v2111 = vadd.f32 0.0, %v2110
        %2112 = vmatmul.bf16.gmra.mxu0 %v2038
        %v2113 = vpop.f32.mrf.mxu0
        %v2114 = vadd.f32 0.0, %v2113
        %v2115 = vpop.f32.mrf.mxu0
        %v2116 = vadd.f32 0.0, %v2115
        %2117 = vmatmul.bf16.gmra.mxu0 %v2041
        %v2118 = vpop.f32.mrf.mxu0
        %v2119 = vadd.f32 0.0, %v2118
        %v2120 = vpop.f32.mrf.mxu0
        %v2121 = vadd.f32 0.0, %v2120
        %2122 = vmatmul.bf16.gmra.mxu0 %v2044
        %v2123 = vpop.f32.mrf.mxu0
        %v2124 = vadd.f32 0.0, %v2123
        %v2125 = vpop.f32.mrf.mxu0
        %v2126 = vadd.f32 0.0, %v2125
        %2127 = vdwg.mxu0
        %v2128 = vld [vmem:[#allocation3] sm:$0xff]
        %v2129 = vld [vmem:[#allocation3 + $0x8] sm:$0xff]
        %v2130 = vld [vmem:[#allocation3 + $0x10] sm:$0xff]
        %v2131 = vld [vmem:[#allocation3 + $0x18] sm:$0xff]
        %v2132 = vld [vmem:[#allocation3 + $0x20] sm:$0xff]
        %v2133 = vld [vmem:[#allocation3 + $0x28] sm:$0xff]
        %v2134 = vld [vmem:[#allocation3 + $0x30] sm:$0xff]
        %v2135 = vld [vmem:[#allocation3 + $0x38] sm:$0xff]
        %v2136 = vld [vmem:[#allocation3 + $0x40] sm:$0xff]
        %v2137 = vld [vmem:[#allocation3 + $0x48] sm:$0xff]
        %v2138 = vld [vmem:[#allocation3 + $0x50] sm:$0xff]
        %v2139 = vld [vmem:[#allocation3 + $0x58] sm:$0xff]
        %v2140 = vld [vmem:[#allocation3 + $0x60] sm:$0xff]
        %v2141 = vld [vmem:[#allocation3 + $0x68] sm:$0xff]
        %v2142 = vld [vmem:[#allocation3 + $0x70] sm:$0xff]
        %v2143 = vld [vmem:[#allocation3 + $0x78] sm:$0xff]
        %v2144 = vld [vmem:[#allocation3 + $0x80] sm:$0xff]
        %v2145 = vld [vmem:[#allocation3 + $0x88] sm:$0xff]
        %v2146 = vld [vmem:[#allocation3 + $0x90] sm:$0xff]
        %v2147 = vld [vmem:[#allocation3 + $0x98] sm:$0xff]
        %v2148 = vld [vmem:[#allocation3 + $0xa0] sm:$0xff]
        %v2149 = vld [vmem:[#allocation3 + $0xa8] sm:$0xff]
        %v2150 = vld [vmem:[#allocation3 + $0xb0] sm:$0xff]
        %v2151 = vld [vmem:[#allocation3 + $0xb8] sm:$0xff]
        %v2152 = vld [vmem:[#allocation3 + $0xc0] sm:$0xff]
        %v2153 = vld [vmem:[#allocation3 + $0xc8] sm:$0xff]
        %v2154 = vld [vmem:[#allocation3 + $0xd0] sm:$0xff]
        %v2155 = vld [vmem:[#allocation3 + $0xd8] sm:$0xff]
        %v2156 = vadd.f32 %v2128, %v2059
        %v2157 = vadd.f32 %v2129, %v2061
        %v2158 = vadd.f32 %v2130, %v2064
        %v2159 = vadd.f32 %v2131, %v2066
        %v2160 = vadd.f32 %v2132, %v2069
        %v2161 = vadd.f32 %v2133, %v2071
        %v2162 = vadd.f32 %v2134, %v2074
        %v2163 = vadd.f32 %v2135, %v2076
        %v2164 = vadd.f32 %v2136, %v2079
        %v2165 = vadd.f32 %v2137, %v2081
        %v2166 = vadd.f32 %v2138, %v2084
        %v2167 = vadd.f32 %v2139, %v2086
        %v2168 = vadd.f32 %v2140, %v2089
        %v2169 = vadd.f32 %v2141, %v2091
        %v2170 = vadd.f32 %v2142, %v2094
        %v2171 = vadd.f32 %v2143, %v2096
        %v2172 = vadd.f32 %v2144, %v2099
        %v2173 = vadd.f32 %v2145, %v2101
        %v2174 = vadd.f32 %v2146, %v2104
        %v2175 = vadd.f32 %v2147, %v2106
        %v2176 = vadd.f32 %v2148, %v2109
        %v2177 = vadd.f32 %v2149, %v2111
        %v2178 = vadd.f32 %v2150, %v2114
        %v2179 = vadd.f32 %v2151, %v2116
        %v2180 = vadd.f32 %v2152, %v2119
        %v2181 = vadd.f32 %v2153, %v2121
        %v2182 = vadd.f32 %v2154, %v2124
        %v2183 = vadd.f32 %v2155, %v2126
        %2184 = vst.msk [vmem:[#allocation3] sm:$0xff] %vm696, %v2156
        %2185 = vst.msk [vmem:[#allocation3 + $0x8] sm:$0xff] %vm696, %v2157
        %2186 = vst.msk [vmem:[#allocation3 + $0x10] sm:$0xff] %vm696, %v2158
        %2187 = vst.msk [vmem:[#allocation3 + $0x18] sm:$0xff] %vm696, %v2159
        %2188 = vst.msk [vmem:[#allocation3 + $0x20] sm:$0xff] %vm696, %v2160
        %2189 = vst.msk [vmem:[#allocation3 + $0x28] sm:$0xff] %vm696, %v2161
        %2190 = vst.msk [vmem:[#allocation3 + $0x30] sm:$0xff] %vm696, %v2162
        %2191 = vst.msk [vmem:[#allocation3 + $0x38] sm:$0xff] %vm696, %v2163
        %2192 = vst.msk [vmem:[#allocation3 + $0x40] sm:$0xff] %vm696, %v2164
        %2193 = vst.msk [vmem:[#allocation3 + $0x48] sm:$0xff] %vm696, %v2165
        %2194 = vst.msk [vmem:[#allocation3 + $0x50] sm:$0xff] %vm696, %v2166
        %2195 = vst.msk [vmem:[#allocation3 + $0x58] sm:$0xff] %vm696, %v2167
        %2196 = vst.msk [vmem:[#allocation3 + $0x60] sm:$0xff] %vm696, %v2168
        %2197 = vst.msk [vmem:[#allocation3 + $0x68] sm:$0xff] %vm696, %v2169
        %2198 = vst.msk [vmem:[#allocation3 + $0x70] sm:$0xff] %vm696, %v2170
        %2199 = vst.msk [vmem:[#allocation3 + $0x78] sm:$0xff] %vm696, %v2171
        %2200 = vst.msk [vmem:[#allocation3 + $0x80] sm:$0xff] %vm696, %v2172
        %2201 = vst.msk [vmem:[#allocation3 + $0x88] sm:$0xff] %vm696, %v2173
        %2202 = vst.msk [vmem:[#allocation3 + $0x90] sm:$0xff] %vm696, %v2174
        %2203 = vst.msk [vmem:[#allocation3 + $0x98] sm:$0xff] %vm696, %v2175
        %2204 = vst.msk [vmem:[#allocation3 + $0xa0] sm:$0xff] %vm696, %v2176
        %2205 = vst.msk [vmem:[#allocation3 + $0xa8] sm:$0xff] %vm696, %v2177
        %2206 = vst.msk [vmem:[#allocation3 + $0xb0] sm:$0xff] %vm696, %v2178
        %2207 = vst.msk [vmem:[#allocation3 + $0xb8] sm:$0xff] %vm696, %v2179
        %2208 = vst.msk [vmem:[#allocation3 + $0xc0] sm:$0xff] %vm696, %v2180
        %2209 = vst.msk [vmem:[#allocation3 + $0xc8] sm:$0xff] %vm696, %v2181
        %2210 = vst.msk [vmem:[#allocation3 + $0xd0] sm:$0xff] %vm696, %v2182
        %2211 = vst.msk [vmem:[#allocation3 + $0xd8] sm:$0xff] %vm696, %v2183
        %v2212 = vld [vmem:[%s605 + $0x11] sm:$0xff]
        %v2213 = vld [vmem:[%s605 + $0x19] sm:$0xff]
        %v2214 = vld [vmem:[%s605 + $0x21] sm:$0xff]
        %v2215 = vld [vmem:[%s605 + $0x29] sm:$0xff]
        %v2216 = vld [vmem:[%s605 + $0x31] sm:$0xff]
        %v2217 = vld [vmem:[%s605 + $0x39] sm:$0xff]
        %v2218 = vld [vmem:[%s605 + $0x41] sm:$0xff]
        %v2219 = vld [vmem:[%s605 + $0x49] sm:$0xff]
        %v2220 = vld [vmem:[%s605 + $0x51] sm:$0xff]
        %v2221 = vld [vmem:[%s605 + $0x59] sm:$0xff]
        %v2222 = vld [vmem:[%s605 + $0x61] sm:$0xff]
        %v2223 = vld [vmem:[%s605 + $0x69] sm:$0xff]
        %v2224 = vld [vmem:[%s605 + $0x71] sm:$0xff]
        %v2225 = vld [vmem:[%s605 + $0x79] sm:$0xff]
        %v2226 = vld [vmem:[%s605 + $0x81] sm:$0xff]
        %v2227 = vld [vmem:[%s605 + $0x89] sm:$0xff]
        %v2228 = vld [vmem:[%s605 + $0x91] sm:$0xff]
        %v2229 = vld [vmem:[%s605 + $0x99] sm:$0xff]
        %v2230 = vld [vmem:[%s605 + $0xa1] sm:$0xff]
        %v2231 = vld [vmem:[%s605 + $0xa9] sm:$0xff]
        %v2232 = vld [vmem:[%s605 + $0xb1] sm:$0xff]
        %v2233 = vld [vmem:[%s605 + $0xb9] sm:$0xff]
        %v2234 = vld [vmem:[%s605 + $0xc1] sm:$0xff]
        %v2235 = vld [vmem:[%s605 + $0xc9] sm:$0xff]
        %v2236 = vld [vmem:[%s605 + $0xd1] sm:$0xff]
        %v2237 = vld [vmem:[%s605 + $0xd9] sm:$0xff]
        %v2238 = vld [vmem:[%s605 + $0xe1] sm:$0xff]
        %v2239 = vld [vmem:[%s605 + $0xe9] sm:$0xff]
        %v2240 = vpack.c.bf16 %v2213, %v2212
        %v2241 = vpack.c.bf16 %v2215, %v2214
        %v2242 = vpack.c.bf16 %v2217, %v2216
        %v2243 = vpack.c.bf16 %v2219, %v2218
        %v2244 = vpack.c.bf16 %v2221, %v2220
        %v2245 = vpack.c.bf16 %v2223, %v2222
        %v2246 = vpack.c.bf16 %v2225, %v2224
        %v2247 = vpack.c.bf16 %v2227, %v2226
        %v2248 = vpack.c.bf16 %v2229, %v2228
        %v2249 = vpack.c.bf16 %v2231, %v2230
        %v2250 = vpack.c.bf16 %v2233, %v2232
        %v2251 = vpack.c.bf16 %v2235, %v2234
        %v2252 = vpack.c.bf16 %v2237, %v2236
        %v2253 = vpack.c.bf16 %v2239, %v2238
        %s2254 = scalar_lea.vmem %s621, 16
        %v2255 = vld [vmem:[%s2254] sm:$0xf]
        %v2257 = vsel %vm658, %v2240, 0
        %v2260 = vsel %vm658, %v2241, 0
        %v2263 = vsel %vm658, %v2242, 0
        %v2266 = vsel %vm658, %v2243, 0
        %v2269 = vsel %vm658, %v2244, 0
        %v2272 = vsel %vm658, %v2245, 0
        %v2275 = vsel %vm658, %v2246, 0
        %v2278 = vsel %vm658, %v2247, 0
        %v2281 = vsel %vm658, %v2248, 0
        %v2284 = vsel %vm658, %v2249, 0
        %v2287 = vsel %vm658, %v2250, 0
        %v2290 = vsel %vm658, %v2251, 0
        %v2293 = vsel %vm658, %v2252, 0
        %v2296 = vsel %vm658, %v2253, 0
        %v2299 = vsel %vm668, %v2255, 0
        %2301 = vmatpush.bf16.msra.mxu0 0
        %2302 = vmatpush.bf16.msra.mxu0 0
        %2303 = vmatpush.bf16.msra.mxu0 0
        %2304 = vmatpush.bf16.msra.mxu0 0
        %2305 = vmatpush.bf16.msra.mxu0 0
        %2306 = vmatpush.bf16.msra.mxu0 0
        %2307 = vmatpush.bf16.msra.mxu0 0
        %2308 = vmatpush.bf16.msra.mxu0 %v2299
        %2309 = vmatmul.bf16.gmra.mxu0 %v2257
        %v2310 = vpop.f32.mrf.mxu0
        %v2311 = vadd.f32 0.0, %v2310
        %v2312 = vpop.f32.mrf.mxu0
        %v2313 = vadd.f32 0.0, %v2312
        %2314 = vmatmul.bf16.gmra.mxu0 %v2260
        %v2315 = vpop.f32.mrf.mxu0
        %v2316 = vadd.f32 0.0, %v2315
        %v2317 = vpop.f32.mrf.mxu0
        %v2318 = vadd.f32 0.0, %v2317
        %2319 = vmatmul.bf16.gmra.mxu0 %v2263
        %v2320 = vpop.f32.mrf.mxu0
        %v2321 = vadd.f32 0.0, %v2320
        %v2322 = vpop.f32.mrf.mxu0
        %v2323 = vadd.f32 0.0, %v2322
        %2324 = vmatmul.bf16.gmra.mxu0 %v2266
        %v2325 = vpop.f32.mrf.mxu0
        %v2326 = vadd.f32 0.0, %v2325
        %v2327 = vpop.f32.mrf.mxu0
        %v2328 = vadd.f32 0.0, %v2327
        %2329 = vmatmul.bf16.gmra.mxu0 %v2269
        %v2330 = vpop.f32.mrf.mxu0
        %v2331 = vadd.f32 0.0, %v2330
        %v2332 = vpop.f32.mrf.mxu0
        %v2333 = vadd.f32 0.0, %v2332
        %2334 = vmatmul.bf16.gmra.mxu0 %v2272
        %v2335 = vpop.f32.mrf.mxu0
        %v2336 = vadd.f32 0.0, %v2335
        %v2337 = vpop.f32.mrf.mxu0
        %v2338 = vadd.f32 0.0, %v2337
        %2339 = vmatmul.bf16.gmra.mxu0 %v2275
        %v2340 = vpop.f32.mrf.mxu0
        %v2341 = vadd.f32 0.0, %v2340
        %v2342 = vpop.f32.mrf.mxu0
        %v2343 = vadd.f32 0.0, %v2342
        %2344 = vmatmul.bf16.gmra.mxu0 %v2278
        %v2345 = vpop.f32.mrf.mxu0
        %v2346 = vadd.f32 0.0, %v2345
        %v2347 = vpop.f32.mrf.mxu0
        %v2348 = vadd.f32 0.0, %v2347
        %2349 = vmatmul.bf16.gmra.mxu0 %v2281
        %v2350 = vpop.f32.mrf.mxu0
        %v2351 = vadd.f32 0.0, %v2350
        %v2352 = vpop.f32.mrf.mxu0
        %v2353 = vadd.f32 0.0, %v2352
        %2354 = vmatmul.bf16.gmra.mxu0 %v2284
        %v2355 = vpop.f32.mrf.mxu0
        %v2356 = vadd.f32 0.0, %v2355
        %v2357 = vpop.f32.mrf.mxu0
        %v2358 = vadd.f32 0.0, %v2357
        %2359 = vmatmul.bf16.gmra.mxu0 %v2287
        %v2360 = vpop.f32.mrf.mxu0
        %v2361 = vadd.f32 0.0, %v2360
        %v2362 = vpop.f32.mrf.mxu0
        %v2363 = vadd.f32 0.0, %v2362
        %2364 = vmatmul.bf16.gmra.mxu0 %v2290
        %v2365 = vpop.f32.mrf.mxu0
        %v2366 = vadd.f32 0.0, %v2365
        %v2367 = vpop.f32.mrf.mxu0
        %v2368 = vadd.f32 0.0, %v2367
        %2369 = vmatmul.bf16.gmra.mxu0 %v2293
        %v2370 = vpop.f32.mrf.mxu0
        %v2371 = vadd.f32 0.0, %v2370
        %v2372 = vpop.f32.mrf.mxu0
        %v2373 = vadd.f32 0.0, %v2372
        %2374 = vmatmul.bf16.gmra.mxu0 %v2296
        %v2375 = vpop.f32.mrf.mxu0
        %v2376 = vadd.f32 0.0, %v2375
        %v2377 = vpop.f32.mrf.mxu0
        %v2378 = vadd.f32 0.0, %v2377
        %2379 = vdwg.mxu0
        %v2380 = vld [vmem:[#allocation3] sm:$0xff]
        %v2381 = vld [vmem:[#allocation3 + $0x8] sm:$0xff]
        %v2382 = vld [vmem:[#allocation3 + $0x10] sm:$0xff]
        %v2383 = vld [vmem:[#allocation3 + $0x18] sm:$0xff]
        %v2384 = vld [vmem:[#allocation3 + $0x20] sm:$0xff]
        %v2385 = vld [vmem:[#allocation3 + $0x28] sm:$0xff]
        %v2386 = vld [vmem:[#allocation3 + $0x30] sm:$0xff]
        %v2387 = vld [vmem:[#allocation3 + $0x38] sm:$0xff]
        %v2388 = vld [vmem:[#allocation3 + $0x40] sm:$0xff]
        %v2389 = vld [vmem:[#allocation3 + $0x48] sm:$0xff]
        %v2390 = vld [vmem:[#allocation3 + $0x50] sm:$0xff]
        %v2391 = vld [vmem:[#allocation3 + $0x58] sm:$0xff]
        %v2392 = vld [vmem:[#allocation3 + $0x60] sm:$0xff]
        %v2393 = vld [vmem:[#allocation3 + $0x68] sm:$0xff]
        %v2394 = vld [vmem:[#allocation3 + $0x70] sm:$0xff]
        %v2395 = vld [vmem:[#allocation3 + $0x78] sm:$0xff]
        %v2396 = vld [vmem:[#allocation3 + $0x80] sm:$0xff]
        %v2397 = vld [vmem:[#allocation3 + $0x88] sm:$0xff]
        %v2398 = vld [vmem:[#allocation3 + $0x90] sm:$0xff]
        %v2399 = vld [vmem:[#allocation3 + $0x98] sm:$0xff]
        %v2400 = vld [vmem:[#allocation3 + $0xa0] sm:$0xff]
        %v2401 = vld [vmem:[#allocation3 + $0xa8] sm:$0xff]
        %v2402 = vld [vmem:[#allocation3 + $0xb0] sm:$0xff]
        %v2403 = vld [vmem:[#allocation3 + $0xb8] sm:$0xff]
        %v2404 = vld [vmem:[#allocation3 + $0xc0] sm:$0xff]
        %v2405 = vld [vmem:[#allocation3 + $0xc8] sm:$0xff]
        %v2406 = vld [vmem:[#allocation3 + $0xd0] sm:$0xff]
        %v2407 = vld [vmem:[#allocation3 + $0xd8] sm:$0xff]
        %v2408 = vadd.f32 %v2380, %v2311
        %v2409 = vadd.f32 %v2381, %v2313
        %v2410 = vadd.f32 %v2382, %v2316
        %v2411 = vadd.f32 %v2383, %v2318
        %v2412 = vadd.f32 %v2384, %v2321
        %v2413 = vadd.f32 %v2385, %v2323
        %v2414 = vadd.f32 %v2386, %v2326
        %v2415 = vadd.f32 %v2387, %v2328
        %v2416 = vadd.f32 %v2388, %v2331
        %v2417 = vadd.f32 %v2389, %v2333
        %v2418 = vadd.f32 %v2390, %v2336
        %v2419 = vadd.f32 %v2391, %v2338
        %v2420 = vadd.f32 %v2392, %v2341
        %v2421 = vadd.f32 %v2393, %v2343
        %v2422 = vadd.f32 %v2394, %v2346
        %v2423 = vadd.f32 %v2395, %v2348
        %v2424 = vadd.f32 %v2396, %v2351
        %v2425 = vadd.f32 %v2397, %v2353
        %v2426 = vadd.f32 %v2398, %v2356
        %v2427 = vadd.f32 %v2399, %v2358
        %v2428 = vadd.f32 %v2400, %v2361
        %v2429 = vadd.f32 %v2401, %v2363
        %v2430 = vadd.f32 %v2402, %v2366
        %v2431 = vadd.f32 %v2403, %v2368
        %v2432 = vadd.f32 %v2404, %v2371
        %v2433 = vadd.f32 %v2405, %v2373
        %v2434 = vadd.f32 %v2406, %v2376
        %v2435 = vadd.f32 %v2407, %v2378
        %2436 = vst.msk [vmem:[#allocation3] sm:$0xff] %vm696, %v2408
        %2437 = vst.msk [vmem:[#allocation3 + $0x8] sm:$0xff] %vm696, %v2409
        %2438 = vst.msk [vmem:[#allocation3 + $0x10] sm:$0xff] %vm696, %v2410
        %2439 = vst.msk [vmem:[#allocation3 + $0x18] sm:$0xff] %vm696, %v2411
        %2440 = vst.msk [vmem:[#allocation3 + $0x20] sm:$0xff] %vm696, %v2412
        %2441 = vst.msk [vmem:[#allocation3 + $0x28] sm:$0xff] %vm696, %v2413
        %2442 = vst.msk [vmem:[#allocation3 + $0x30] sm:$0xff] %vm696, %v2414
        %2443 = vst.msk [vmem:[#allocation3 + $0x38] sm:$0xff] %vm696, %v2415
        %2444 = vst.msk [vmem:[#allocation3 + $0x40] sm:$0xff] %vm696, %v2416
        %2445 = vst.msk [vmem:[#allocation3 + $0x48] sm:$0xff] %vm696, %v2417
        %2446 = vst.msk [vmem:[#allocation3 + $0x50] sm:$0xff] %vm696, %v2418
        %2447 = vst.msk [vmem:[#allocation3 + $0x58] sm:$0xff] %vm696, %v2419
        %2448 = vst.msk [vmem:[#allocation3 + $0x60] sm:$0xff] %vm696, %v2420
        %2449 = vst.msk [vmem:[#allocation3 + $0x68] sm:$0xff] %vm696, %v2421
        %2450 = vst.msk [vmem:[#allocation3 + $0x70] sm:$0xff] %vm696, %v2422
        %2451 = vst.msk [vmem:[#allocation3 + $0x78] sm:$0xff] %vm696, %v2423
        %2452 = vst.msk [vmem:[#allocation3 + $0x80] sm:$0xff] %vm696, %v2424
        %2453 = vst.msk [vmem:[#allocation3 + $0x88] sm:$0xff] %vm696, %v2425
        %2454 = vst.msk [vmem:[#allocation3 + $0x90] sm:$0xff] %vm696, %v2426
        %2455 = vst.msk [vmem:[#allocation3 + $0x98] sm:$0xff] %vm696, %v2427
        %2456 = vst.msk [vmem:[#allocation3 + $0xa0] sm:$0xff] %vm696, %v2428
        %2457 = vst.msk [vmem:[#allocation3 + $0xa8] sm:$0xff] %vm696, %v2429
        %2458 = vst.msk [vmem:[#allocation3 + $0xb0] sm:$0xff] %vm696, %v2430
        %2459 = vst.msk [vmem:[#allocation3 + $0xb8] sm:$0xff] %vm696, %v2431
        %2460 = vst.msk [vmem:[#allocation3 + $0xc0] sm:$0xff] %vm696, %v2432
        %2461 = vst.msk [vmem:[#allocation3 + $0xc8] sm:$0xff] %vm696, %v2433
        %2462 = vst.msk [vmem:[#allocation3 + $0xd0] sm:$0xff] %vm696, %v2434
        %2463 = vst.msk [vmem:[#allocation3 + $0xd8] sm:$0xff] %vm696, %v2435
        %v2464 = vld [vmem:[%s605 + $0x12] sm:$0xff]
        %v2465 = vld [vmem:[%s605 + $0x1a] sm:$0xff]
        %v2466 = vld [vmem:[%s605 + $0x22] sm:$0xff]
        %v2467 = vld [vmem:[%s605 + $0x2a] sm:$0xff]
        %v2468 = vld [vmem:[%s605 + $0x32] sm:$0xff]
        %v2469 = vld [vmem:[%s605 + $0x3a] sm:$0xff]
        %v2470 = vld [vmem:[%s605 + $0x42] sm:$0xff]
        %v2471 = vld [vmem:[%s605 + $0x4a] sm:$0xff]
        %v2472 = vld [vmem:[%s605 + $0x52] sm:$0xff]
        %v2473 = vld [vmem:[%s605 + $0x5a] sm:$0xff]
        %v2474 = vld [vmem:[%s605 + $0x62] sm:$0xff]
        %v2475 = vld [vmem:[%s605 + $0x6a] sm:$0xff]
        %v2476 = vld [vmem:[%s605 + $0x72] sm:$0xff]
        %v2477 = vld [vmem:[%s605 + $0x7a] sm:$0xff]
        %v2478 = vld [vmem:[%s605 + $0x82] sm:$0xff]
        %v2479 = vld [vmem:[%s605 + $0x8a] sm:$0xff]
        %v2480 = vld [vmem:[%s605 + $0x92] sm:$0xff]
        %v2481 = vld [vmem:[%s605 + $0x9a] sm:$0xff]
        %v2482 = vld [vmem:[%s605 + $0xa2] sm:$0xff]
        %v2483 = vld [vmem:[%s605 + $0xaa] sm:$0xff]
        %v2484 = vld [vmem:[%s605 + $0xb2] sm:$0xff]
        %v2485 = vld [vmem:[%s605 + $0xba] sm:$0xff]
        %v2486 = vld [vmem:[%s605 + $0xc2] sm:$0xff]
        %v2487 = vld [vmem:[%s605 + $0xca] sm:$0xff]
        %v2488 = vld [vmem:[%s605 + $0xd2] sm:$0xff]
        %v2489 = vld [vmem:[%s605 + $0xda] sm:$0xff]
        %v2490 = vld [vmem:[%s605 + $0xe2] sm:$0xff]
        %v2491 = vld [vmem:[%s605 + $0xea] sm:$0xff]
        %v2492 = vpack.c.bf16 %v2465, %v2464
        %v2493 = vpack.c.bf16 %v2467, %v2466
        %v2494 = vpack.c.bf16 %v2469, %v2468
        %v2495 = vpack.c.bf16 %v2471, %v2470
        %v2496 = vpack.c.bf16 %v2473, %v2472
        %v2497 = vpack.c.bf16 %v2475, %v2474
        %v2498 = vpack.c.bf16 %v2477, %v2476
        %v2499 = vpack.c.bf16 %v2479, %v2478
        %v2500 = vpack.c.bf16 %v2481, %v2480
        %v2501 = vpack.c.bf16 %v2483, %v2482
        %v2502 = vpack.c.bf16 %v2485, %v2484
        %v2503 = vpack.c.bf16 %v2487, %v2486
        %v2504 = vpack.c.bf16 %v2489, %v2488
        %v2505 = vpack.c.bf16 %v2491, %v2490
        %s2506 = scalar_lea.vmem %s621, 20
        %v2507 = vld [vmem:[%s2506] sm:$0xf]
        %v2509 = vsel %vm658, %v2492, 0
        %v2512 = vsel %vm658, %v2493, 0
        %v2515 = vsel %vm658, %v2494, 0
        %v2518 = vsel %vm658, %v2495, 0
        %v2521 = vsel %vm658, %v2496, 0
        %v2524 = vsel %vm658, %v2497, 0
        %v2527 = vsel %vm658, %v2498, 0
        %v2530 = vsel %vm658, %v2499, 0
        %v2533 = vsel %vm658, %v2500, 0
        %v2536 = vsel %vm658, %v2501, 0
        %v2539 = vsel %vm658, %v2502, 0
        %v2542 = vsel %vm658, %v2503, 0
        %v2545 = vsel %vm658, %v2504, 0
        %v2548 = vsel %vm658, %v2505, 0
        %v2551 = vsel %vm668, %v2507, 0
        %2553 = vmatpush.bf16.msra.mxu0 0
        %2554 = vmatpush.bf16.msra.mxu0 0
        %2555 = vmatpush.bf16.msra.mxu0 0
        %2556 = vmatpush.bf16.msra.mxu0 0
        %2557 = vmatpush.bf16.msra.mxu0 0
        %2558 = vmatpush.bf16.msra.mxu0 0
        %2559 = vmatpush.bf16.msra.mxu0 0
        %2560 = vmatpush.bf16.msra.mxu0 %v2551
        %2561 = vmatmul.bf16.gmra.mxu0 %v2509
        %v2562 = vpop.f32.mrf.mxu0
        %v2563 = vadd.f32 0.0, %v2562
        %v2564 = vpop.f32.mrf.mxu0
        %v2565 = vadd.f32 0.0, %v2564
        %2566 = vmatmul.bf16.gmra.mxu0 %v2512
        %v2567 = vpop.f32.mrf.mxu0
        %v2568 = vadd.f32 0.0, %v2567
        %v2569 = vpop.f32.mrf.mxu0
        %v2570 = vadd.f32 0.0, %v2569
        %2571 = vmatmul.bf16.gmra.mxu0 %v2515
        %v2572 = vpop.f32.mrf.mxu0
        %v2573 = vadd.f32 0.0, %v2572
        %v2574 = vpop.f32.mrf.mxu0
        %v2575 = vadd.f32 0.0, %v2574
        %2576 = vmatmul.bf16.gmra.mxu0 %v2518
        %v2577 = vpop.f32.mrf.mxu0
        %v2578 = vadd.f32 0.0, %v2577
        %v2579 = vpop.f32.mrf.mxu0
        %v2580 = vadd.f32 0.0, %v2579
        %2581 = vmatmul.bf16.gmra.mxu0 %v2521
        %v2582 = vpop.f32.mrf.mxu0
        %v2583 = vadd.f32 0.0, %v2582
        %v2584 = vpop.f32.mrf.mxu0
        %v2585 = vadd.f32 0.0, %v2584
        %2586 = vmatmul.bf16.gmra.mxu0 %v2524
        %v2587 = vpop.f32.mrf.mxu0
        %v2588 = vadd.f32 0.0, %v2587
        %v2589 = vpop.f32.mrf.mxu0
        %v2590 = vadd.f32 0.0, %v2589
        %2591 = vmatmul.bf16.gmra.mxu0 %v2527
        %v2592 = vpop.f32.mrf.mxu0
        %v2593 = vadd.f32 0.0, %v2592
        %v2594 = vpop.f32.mrf.mxu0
        %v2595 = vadd.f32 0.0, %v2594
        %2596 = vmatmul.bf16.gmra.mxu0 %v2530
        %v2597 = vpop.f32.mrf.mxu0
        %v2598 = vadd.f32 0.0, %v2597
        %v2599 = vpop.f32.mrf.mxu0
        %v2600 = vadd.f32 0.0, %v2599
        %2601 = vmatmul.bf16.gmra.mxu0 %v2533
        %v2602 = vpop.f32.mrf.mxu0
        %v2603 = vadd.f32 0.0, %v2602
        %v2604 = vpop.f32.mrf.mxu0
        %v2605 = vadd.f32 0.0, %v2604
        %2606 = vmatmul.bf16.gmra.mxu0 %v2536
        %v2607 = vpop.f32.mrf.mxu0
        %v2608 = vadd.f32 0.0, %v2607
        %v2609 = vpop.f32.mrf.mxu0
        %v2610 = vadd.f32 0.0, %v2609
        %2611 = vmatmul.bf16.gmra.mxu0 %v2539
        %v2612 = vpop.f32.mrf.mxu0
        %v2613 = vadd.f32 0.0, %v2612
        %v2614 = vpop.f32.mrf.mxu0
        %v2615 = vadd.f32 0.0, %v2614
        %2616 = vmatmul.bf16.gmra.mxu0 %v2542
        %v2617 = vpop.f32.mrf.mxu0
        %v2618 = vadd.f32 0.0, %v2617
        %v2619 = vpop.f32.mrf.mxu0
        %v2620 = vadd.f32 0.0, %v2619
        %2621 = vmatmul.bf16.gmra.mxu0 %v2545
        %v2622 = vpop.f32.mrf.mxu0
        %v2623 = vadd.f32 0.0, %v2622
        %v2624 = vpop.f32.mrf.mxu0
        %v2625 = vadd.f32 0.0, %v2624
        %2626 = vmatmul.bf16.gmra.mxu0 %v2548
        %v2627 = vpop.f32.mrf.mxu0
        %v2628 = vadd.f32 0.0, %v2627
        %v2629 = vpop.f32.mrf.mxu0
        %v2630 = vadd.f32 0.0, %v2629
        %2631 = vdwg.mxu0
        %v2632 = vld [vmem:[#allocation3] sm:$0xff]
        %v2633 = vld [vmem:[#allocation3 + $0x8] sm:$0xff]
        %v2634 = vld [vmem:[#allocation3 + $0x10] sm:$0xff]
        %v2635 = vld [vmem:[#allocation3 + $0x18] sm:$0xff]
        %v2636 = vld [vmem:[#allocation3 + $0x20] sm:$0xff]
        %v2637 = vld [vmem:[#allocation3 + $0x28] sm:$0xff]
        %v2638 = vld [vmem:[#allocation3 + $0x30] sm:$0xff]
        %v2639 = vld [vmem:[#allocation3 + $0x38] sm:$0xff]
        %v2640 = vld [vmem:[#allocation3 + $0x40] sm:$0xff]
        %v2641 = vld [vmem:[#allocation3 + $0x48] sm:$0xff]
        %v2642 = vld [vmem:[#allocation3 + $0x50] sm:$0xff]
        %v2643 = vld [vmem:[#allocation3 + $0x58] sm:$0xff]
        %v2644 = vld [vmem:[#allocation3 + $0x60] sm:$0xff]
        %v2645 = vld [vmem:[#allocation3 + $0x68] sm:$0xff]
        %v2646 = vld [vmem:[#allocation3 + $0x70] sm:$0xff]
        %v2647 = vld [vmem:[#allocation3 + $0x78] sm:$0xff]
        %v2648 = vld [vmem:[#allocation3 + $0x80] sm:$0xff]
        %v2649 = vld [vmem:[#allocation3 + $0x88] sm:$0xff]
        %v2650 = vld [vmem:[#allocation3 + $0x90] sm:$0xff]
        %v2651 = vld [vmem:[#allocation3 + $0x98] sm:$0xff]
        %v2652 = vld [vmem:[#allocation3 + $0xa0] sm:$0xff]
        %v2653 = vld [vmem:[#allocation3 + $0xa8] sm:$0xff]
        %v2654 = vld [vmem:[#allocation3 + $0xb0] sm:$0xff]
        %v2655 = vld [vmem:[#allocation3 + $0xb8] sm:$0xff]
        %v2656 = vld [vmem:[#allocation3 + $0xc0] sm:$0xff]
        %v2657 = vld [vmem:[#allocation3 + $0xc8] sm:$0xff]
        %v2658 = vld [vmem:[#allocation3 + $0xd0] sm:$0xff]
        %v2659 = vld [vmem:[#allocation3 + $0xd8] sm:$0xff]
        %v2660 = vadd.f32 %v2632, %v2563
        %v2661 = vadd.f32 %v2633, %v2565
        %v2662 = vadd.f32 %v2634, %v2568
        %v2663 = vadd.f32 %v2635, %v2570
        %v2664 = vadd.f32 %v2636, %v2573
        %v2665 = vadd.f32 %v2637, %v2575
        %v2666 = vadd.f32 %v2638, %v2578
        %v2667 = vadd.f32 %v2639, %v2580
        %v2668 = vadd.f32 %v2640, %v2583
        %v2669 = vadd.f32 %v2641, %v2585
        %v2670 = vadd.f32 %v2642, %v2588
        %v2671 = vadd.f32 %v2643, %v2590
        %v2672 = vadd.f32 %v2644, %v2593
        %v2673 = vadd.f32 %v2645, %v2595
        %v2674 = vadd.f32 %v2646, %v2598
        %v2675 = vadd.f32 %v2647, %v2600
        %v2676 = vadd.f32 %v2648, %v2603
        %v2677 = vadd.f32 %v2649, %v2605
        %v2678 = vadd.f32 %v2650, %v2608
        %v2679 = vadd.f32 %v2651, %v2610
        %v2680 = vadd.f32 %v2652, %v2613
        %v2681 = vadd.f32 %v2653, %v2615
        %v2682 = vadd.f32 %v2654, %v2618
        %v2683 = vadd.f32 %v2655, %v2620
        %v2684 = vadd.f32 %v2656, %v2623
        %v2685 = vadd.f32 %v2657, %v2625
        %v2686 = vadd.f32 %v2658, %v2628
        %v2687 = vadd.f32 %v2659, %v2630
        %2688 = vst.msk [vmem:[#allocation3] sm:$0xff] %vm696, %v2660
        %2689 = vst.msk [vmem:[#allocation3 + $0x8] sm:$0xff] %vm696, %v2661
        %2690 = vst.msk [vmem:[#allocation3 + $0x10] sm:$0xff] %vm696, %v2662
        %2691 = vst.msk [vmem:[#allocation3 + $0x18] sm:$0xff] %vm696, %v2663
        %2692 = vst.msk [vmem:[#allocation3 + $0x20] sm:$0xff] %vm696, %v2664
        %2693 = vst.msk [vmem:[#allocation3 + $0x28] sm:$0xff] %vm696, %v2665
        %2694 = vst.msk [vmem:[#allocation3 + $0x30] sm:$0xff] %vm696, %v2666
        %2695 = vst.msk [vmem:[#allocation3 + $0x38] sm:$0xff] %vm696, %v2667
        %2696 = vst.msk [vmem:[#allocation3 + $0x40] sm:$0xff] %vm696, %v2668
        %2697 = vst.msk [vmem:[#allocation3 + $0x48] sm:$0xff] %vm696, %v2669
        %2698 = vst.msk [vmem:[#allocation3 + $0x50] sm:$0xff] %vm696, %v2670
        %2699 = vst.msk [vmem:[#allocation3 + $0x58] sm:$0xff] %vm696, %v2671
        %2700 = vst.msk [vmem:[#allocation3 + $0x60] sm:$0xff] %vm696, %v2672
        %2701 = vst.msk [vmem:[#allocation3 + $0x68] sm:$0xff] %vm696, %v2673
        %2702 = vst.msk [vmem:[#allocation3 + $0x70] sm:$0xff] %vm696, %v2674
        %2703 = vst.msk [vmem:[#allocation3 + $0x78] sm:$0xff] %vm696, %v2675
        %2704 = vst.msk [vmem:[#allocation3 + $0x80] sm:$0xff] %vm696, %v2676
        %2705 = vst.msk [vmem:[#allocation3 + $0x88] sm:$0xff] %vm696, %v2677
        %2706 = vst.msk [vmem:[#allocation3 + $0x90] sm:$0xff] %vm696, %v2678
        %2707 = vst.msk [vmem:[#allocation3 + $0x98] sm:$0xff] %vm696, %v2679
        %2708 = vst.msk [vmem:[#allocation3 + $0xa0] sm:$0xff] %vm696, %v2680
        %2709 = vst.msk [vmem:[#allocation3 + $0xa8] sm:$0xff] %vm696, %v2681
        %2710 = vst.msk [vmem:[#allocation3 + $0xb0] sm:$0xff] %vm696, %v2682
        %2711 = vst.msk [vmem:[#allocation3 + $0xb8] sm:$0xff] %vm696, %v2683
        %2712 = vst.msk [vmem:[#allocation3 + $0xc0] sm:$0xff] %vm696, %v2684
        %2713 = vst.msk [vmem:[#allocation3 + $0xc8] sm:$0xff] %vm696, %v2685
        %2714 = vst.msk [vmem:[#allocation3 + $0xd0] sm:$0xff] %vm696, %v2686
        %2715 = vst.msk [vmem:[#allocation3 + $0xd8] sm:$0xff] %vm696, %v2687
        %v2716 = vld [vmem:[%s605 + $0x20] sm:$0xff]
        %v2717 = vld [vmem:[%s605 + $0x28] sm:$0xff]
        %v2718 = vld [vmem:[%s605 + $0x30] sm:$0xff]
        %v2719 = vld [vmem:[%s605 + $0x38] sm:$0xff]
        %v2720 = vld [vmem:[%s605 + $0x40] sm:$0xff]
        %v2721 = vld [vmem:[%s605 + $0x48] sm:$0xff]
        %v2722 = vld [vmem:[%s605 + $0x50] sm:$0xff]
        %v2723 = vld [vmem:[%s605 + $0x58] sm:$0xff]
        %v2724 = vld [vmem:[%s605 + $0x60] sm:$0xff]
        %v2725 = vld [vmem:[%s605 + $0x68] sm:$0xff]
        %v2726 = vld [vmem:[%s605 + $0x70] sm:$0xff]
        %v2727 = vld [vmem:[%s605 + $0x78] sm:$0xff]
        %v2728 = vld [vmem:[%s605 + $0x80] sm:$0xff]
        %v2729 = vld [vmem:[%s605 + $0x88] sm:$0xff]
        %v2730 = vld [vmem:[%s605 + $0x90] sm:$0xff]
        %v2731 = vld [vmem:[%s605 + $0x98] sm:$0xff]
        %v2732 = vld [vmem:[%s605 + $0xa0] sm:$0xff]
        %v2733 = vld [vmem:[%s605 + $0xa8] sm:$0xff]
        %v2734 = vld [vmem:[%s605 + $0xb0] sm:$0xff]
        %v2735 = vld [vmem:[%s605 + $0xb8] sm:$0xff]
        %v2736 = vld [vmem:[%s605 + $0xc0] sm:$0xff]
        %v2737 = vld [vmem:[%s605 + $0xc8] sm:$0xff]
        %v2738 = vld [vmem:[%s605 + $0xd0] sm:$0xff]
        %v2739 = vld [vmem:[%s605 + $0xd8] sm:$0xff]
        %v2740 = vld [vmem:[%s605 + $0xe0] sm:$0xff]
        %v2741 = vld [vmem:[%s605 + $0xe8] sm:$0xff]
        %v2742 = vld [vmem:[%s605 + $0xf0] sm:$0xff]
        %v2743 = vld [vmem:[%s605 + $0xf8] sm:$0xff]
        %v2744 = vpack.c.bf16 %v2717, %v2716
        %v2745 = vpack.c.bf16 %v2719, %v2718
        %v2746 = vpack.c.bf16 %v2721, %v2720
        %v2747 = vpack.c.bf16 %v2723, %v2722
        %v2748 = vpack.c.bf16 %v2725, %v2724
        %v2749 = vpack.c.bf16 %v2727, %v2726
        %v2750 = vpack.c.bf16 %v2729, %v2728
        %v2751 = vpack.c.bf16 %v2731, %v2730
        %v2752 = vpack.c.bf16 %v2733, %v2732
        %v2753 = vpack.c.bf16 %v2735, %v2734
        %v2754 = vpack.c.bf16 %v2737, %v2736
        %v2755 = vpack.c.bf16 %v2739, %v2738
        %v2756 = vpack.c.bf16 %v2741, %v2740
        %v2757 = vpack.c.bf16 %v2743, %v2742
        %s2758 = scalar_lea.vmem %s621, 24
        %v2759 = vld [vmem:[%s2758] sm:$0xf]
        %v2761 = vsel %vm658, %v2744, 0
        %v2764 = vsel %vm658, %v2745, 0
        %v2767 = vsel %vm658, %v2746, 0
        %v2770 = vsel %vm658, %v2747, 0
        %v2773 = vsel %vm658, %v2748, 0
        %v2776 = vsel %vm658, %v2749, 0
        %v2779 = vsel %vm658, %v2750, 0
        %v2782 = vsel %vm658, %v2751, 0
        %v2785 = vsel %vm658, %v2752, 0
        %v2788 = vsel %vm658, %v2753, 0
        %v2791 = vsel %vm658, %v2754, 0
        %v2794 = vsel %vm658, %v2755, 0
        %v2797 = vsel %vm658, %v2756, 0
        %v2800 = vsel %vm658, %v2757, 0
        %v2803 = vsel %vm668, %v2759, 0
        %2805 = vmatpush.bf16.msra.mxu0 0
        %2806 = vmatpush.bf16.msra.mxu0 0
        %2807 = vmatpush.bf16.msra.mxu0 0
        %2808 = vmatpush.bf16.msra.mxu0 0
        %2809 = vmatpush.bf16.msra.mxu0 0
        %2810 = vmatpush.bf16.msra.mxu0 0
        %2811 = vmatpush.bf16.msra.mxu0 0
        %2812 = vmatpush.bf16.msra.mxu0 %v2803
        %2813 = vmatmul.bf16.gmra.mxu0 %v2761
        %v2814 = vpop.f32.mrf.mxu0
        %v2815 = vadd.f32 0.0, %v2814
        %v2816 = vpop.f32.mrf.mxu0
        %v2817 = vadd.f32 0.0, %v2816
        %2818 = vmatmul.bf16.gmra.mxu0 %v2764
        %v2819 = vpop.f32.mrf.mxu0
        %v2820 = vadd.f32 0.0, %v2819
        %v2821 = vpop.f32.mrf.mxu0
        %v2822 = vadd.f32 0.0, %v2821
        %2823 = vmatmul.bf16.gmra.mxu0 %v2767
        %v2824 = vpop.f32.mrf.mxu0
        %v2825 = vadd.f32 0.0, %v2824
        %v2826 = vpop.f32.mrf.mxu0
        %v2827 = vadd.f32 0.0, %v2826
        %2828 = vmatmul.bf16.gmra.mxu0 %v2770
        %v2829 = vpop.f32.mrf.mxu0
        %v2830 = vadd.f32 0.0, %v2829
        %v2831 = vpop.f32.mrf.mxu0
        %v2832 = vadd.f32 0.0, %v2831
        %2833 = vmatmul.bf16.gmra.mxu0 %v2773
        %v2834 = vpop.f32.mrf.mxu0
        %v2835 = vadd.f32 0.0, %v2834
        %v2836 = vpop.f32.mrf.mxu0
        %v2837 = vadd.f32 0.0, %v2836
        %2838 = vmatmul.bf16.gmra.mxu0 %v2776
        %v2839 = vpop.f32.mrf.mxu0
        %v2840 = vadd.f32 0.0, %v2839
        %v2841 = vpop.f32.mrf.mxu0
        %v2842 = vadd.f32 0.0, %v2841
        %2843 = vmatmul.bf16.gmra.mxu0 %v2779
        %v2844 = vpop.f32.mrf.mxu0
        %v2845 = vadd.f32 0.0, %v2844
        %v2846 = vpop.f32.mrf.mxu0
        %v2847 = vadd.f32 0.0, %v2846
        %2848 = vmatmul.bf16.gmra.mxu0 %v2782
        %v2849 = vpop.f32.mrf.mxu0
        %v2850 = vadd.f32 0.0, %v2849
        %v2851 = vpop.f32.mrf.mxu0
        %v2852 = vadd.f32 0.0, %v2851
        %2853 = vmatmul.bf16.gmra.mxu0 %v2785
        %v2854 = vpop.f32.mrf.mxu0
        %v2855 = vadd.f32 0.0, %v2854
        %v2856 = vpop.f32.mrf.mxu0
        %v2857 = vadd.f32 0.0, %v2856
        %2858 = vmatmul.bf16.gmra.mxu0 %v2788
        %v2859 = vpop.f32.mrf.mxu0
        %v2860 = vadd.f32 0.0, %v2859
        %v2861 = vpop.f32.mrf.mxu0
        %v2862 = vadd.f32 0.0, %v2861
        %2863 = vmatmul.bf16.gmra.mxu0 %v2791
        %v2864 = vpop.f32.mrf.mxu0
        %v2865 = vadd.f32 0.0, %v2864
        %v2866 = vpop.f32.mrf.mxu0
        %v2867 = vadd.f32 0.0, %v2866
        %2868 = vmatmul.bf16.gmra.mxu0 %v2794
        %v2869 = vpop.f32.mrf.mxu0
        %v2870 = vadd.f32 0.0, %v2869
        %v2871 = vpop.f32.mrf.mxu0
        %v2872 = vadd.f32 0.0, %v2871
        %2873 = vmatmul.bf16.gmra.mxu0 %v2797
        %v2874 = vpop.f32.mrf.mxu0
        %v2875 = vadd.f32 0.0, %v2874
        %v2876 = vpop.f32.mrf.mxu0
        %v2877 = vadd.f32 0.0, %v2876
        %2878 = vmatmul.bf16.gmra.mxu0 %v2800
        %v2879 = vpop.f32.mrf.mxu0
        %v2880 = vadd.f32 0.0, %v2879
        %v2881 = vpop.f32.mrf.mxu0
        %v2882 = vadd.f32 0.0, %v2881
        %2883 = vdwg.mxu0
        %v2884 = vld [vmem:[#allocation3] sm:$0xff]
        %v2885 = vld [vmem:[#allocation3 + $0x8] sm:$0xff]
        %v2886 = vld [vmem:[#allocation3 + $0x10] sm:$0xff]
        %v2887 = vld [vmem:[#allocation3 + $0x18] sm:$0xff]
        %v2888 = vld [vmem:[#allocation3 + $0x20] sm:$0xff]
        %v2889 = vld [vmem:[#allocation3 + $0x28] sm:$0xff]
        %v2890 = vld [vmem:[#allocation3 + $0x30] sm:$0xff]
        %v2891 = vld [vmem:[#allocation3 + $0x38] sm:$0xff]
        %v2892 = vld [vmem:[#allocation3 + $0x40] sm:$0xff]
        %v2893 = vld [vmem:[#allocation3 + $0x48] sm:$0xff]
        %v2894 = vld [vmem:[#allocation3 + $0x50] sm:$0xff]
        %v2895 = vld [vmem:[#allocation3 + $0x58] sm:$0xff]
        %v2896 = vld [vmem:[#allocation3 + $0x60] sm:$0xff]
        %v2897 = vld [vmem:[#allocation3 + $0x68] sm:$0xff]
        %v2898 = vld [vmem:[#allocation3 + $0x70] sm:$0xff]
        %v2899 = vld [vmem:[#allocation3 + $0x78] sm:$0xff]
        %v2900 = vld [vmem:[#allocation3 + $0x80] sm:$0xff]
        %v2901 = vld [vmem:[#allocation3 + $0x88] sm:$0xff]
        %v2902 = vld [vmem:[#allocation3 + $0x90] sm:$0xff]
        %v2903 = vld [vmem:[#allocation3 + $0x98] sm:$0xff]
        %v2904 = vld [vmem:[#allocation3 + $0xa0] sm:$0xff]
        %v2905 = vld [vmem:[#allocation3 + $0xa8] sm:$0xff]
        %v2906 = vld [vmem:[#allocation3 + $0xb0] sm:$0xff]
        %v2907 = vld [vmem:[#allocation3 + $0xb8] sm:$0xff]
        %v2908 = vld [vmem:[#allocation3 + $0xc0] sm:$0xff]
        %v2909 = vld [vmem:[#allocation3 + $0xc8] sm:$0xff]
        %v2910 = vld [vmem:[#allocation3 + $0xd0] sm:$0xff]
        %v2911 = vld [vmem:[#allocation3 + $0xd8] sm:$0xff]
        %v2912 = vadd.f32 %v2884, %v2815
        %v2913 = vadd.f32 %v2885, %v2817
        %v2914 = vadd.f32 %v2886, %v2820
        %v2915 = vadd.f32 %v2887, %v2822
        %v2916 = vadd.f32 %v2888, %v2825
        %v2917 = vadd.f32 %v2889, %v2827
        %v2918 = vadd.f32 %v2890, %v2830
        %v2919 = vadd.f32 %v2891, %v2832
        %v2920 = vadd.f32 %v2892, %v2835
        %v2921 = vadd.f32 %v2893, %v2837
        %v2922 = vadd.f32 %v2894, %v2840
        %v2923 = vadd.f32 %v2895, %v2842
        %v2924 = vadd.f32 %v2896, %v2845
        %v2925 = vadd.f32 %v2897, %v2847
        %v2926 = vadd.f32 %v2898, %v2850
        %v2927 = vadd.f32 %v2899, %v2852
        %v2928 = vadd.f32 %v2900, %v2855
        %v2929 = vadd.f32 %v2901, %v2857
        %v2930 = vadd.f32 %v2902, %v2860
        %v2931 = vadd.f32 %v2903, %v2862
        %v2932 = vadd.f32 %v2904, %v2865
        %v2933 = vadd.f32 %v2905, %v2867
        %v2934 = vadd.f32 %v2906, %v2870
        %v2935 = vadd.f32 %v2907, %v2872
        %v2936 = vadd.f32 %v2908, %v2875
        %v2937 = vadd.f32 %v2909, %v2877
        %v2938 = vadd.f32 %v2910, %v2880
        %v2939 = vadd.f32 %v2911, %v2882
        %2940 = vst.msk [vmem:[#allocation3] sm:$0xff] %vm696, %v2912
        %2941 = vst.msk [vmem:[#allocation3 + $0x8] sm:$0xff] %vm696, %v2913
        %2942 = vst.msk [vmem:[#allocation3 + $0x10] sm:$0xff] %vm696, %v2914
        %2943 = vst.msk [vmem:[#allocation3 + $0x18] sm:$0xff] %vm696, %v2915
        %2944 = vst.msk [vmem:[#allocation3 + $0x20] sm:$0xff] %vm696, %v2916
        %2945 = vst.msk [vmem:[#allocation3 + $0x28] sm:$0xff] %vm696, %v2917
        %2946 = vst.msk [vmem:[#allocation3 + $0x30] sm:$0xff] %vm696, %v2918
        %2947 = vst.msk [vmem:[#allocation3 + $0x38] sm:$0xff] %vm696, %v2919
        %2948 = vst.msk [vmem:[#allocation3 + $0x40] sm:$0xff] %vm696, %v2920
        %2949 = vst.msk [vmem:[#allocation3 + $0x48] sm:$0xff] %vm696, %v2921
        %2950 = vst.msk [vmem:[#allocation3 + $0x50] sm:$0xff] %vm696, %v2922
        %2951 = vst.msk [vmem:[#allocation3 + $0x58] sm:$0xff] %vm696, %v2923
        %2952 = vst.msk [vmem:[#allocation3 + $0x60] sm:$0xff] %vm696, %v2924
        %2953 = vst.msk [vmem:[#allocation3 + $0x68] sm:$0xff] %vm696, %v2925
        %2954 = vst.msk [vmem:[#allocation3 + $0x70] sm:$0xff] %vm696, %v2926
        %2955 = vst.msk [vmem:[#allocation3 + $0x78] sm:$0xff] %vm696, %v2927
        %2956 = vst.msk [vmem:[#allocation3 + $0x80] sm:$0xff] %vm696, %v2928
        %2957 = vst.msk [vmem:[#allocation3 + $0x88] sm:$0xff] %vm696, %v2929
        %2958 = vst.msk [vmem:[#allocation3 + $0x90] sm:$0xff] %vm696, %v2930
        %2959 = vst.msk [vmem:[#allocation3 + $0x98] sm:$0xff] %vm696, %v2931
        %2960 = vst.msk [vmem:[#allocation3 + $0xa0] sm:$0xff] %vm696, %v2932
        %2961 = vst.msk [vmem:[#allocation3 + $0xa8] sm:$0xff] %vm696, %v2933
        %2962 = vst.msk [vmem:[#allocation3 + $0xb0] sm:$0xff] %vm696, %v2934
        %2963 = vst.msk [vmem:[#allocation3 + $0xb8] sm:$0xff] %vm696, %v2935
        %2964 = vst.msk [vmem:[#allocation3 + $0xc0] sm:$0xff] %vm696, %v2936
        %2965 = vst.msk [vmem:[#allocation3 + $0xc8] sm:$0xff] %vm696, %v2937
        %2966 = vst.msk [vmem:[#allocation3 + $0xd0] sm:$0xff] %vm696, %v2938
        %2967 = vst.msk [vmem:[#allocation3 + $0xd8] sm:$0xff] %vm696, %v2939
        %v2968 = vld [vmem:[%s605 + $0x21] sm:$0xff]
        %v2969 = vld [vmem:[%s605 + $0x29] sm:$0xff]
        %v2970 = vld [vmem:[%s605 + $0x31] sm:$0xff]
        %v2971 = vld [vmem:[%s605 + $0x39] sm:$0xff]
        %v2972 = vld [vmem:[%s605 + $0x41] sm:$0xff]
        %v2973 = vld [vmem:[%s605 + $0x49] sm:$0xff]
        %v2974 = vld [vmem:[%s605 + $0x51] sm:$0xff]
        %v2975 = vld [vmem:[%s605 + $0x59] sm:$0xff]
        %v2976 = vld [vmem:[%s605 + $0x61] sm:$0xff]
        %v2977 = vld [vmem:[%s605 + $0x69] sm:$0xff]
        %v2978 = vld [vmem:[%s605 + $0x71] sm:$0xff]
        %v2979 = vld [vmem:[%s605 + $0x79] sm:$0xff]
        %v2980 = vld [vmem:[%s605 + $0x81] sm:$0xff]
        %v2981 = vld [vmem:[%s605 + $0x89] sm:$0xff]
        %v2982 = vld [vmem:[%s605 + $0x91] sm:$0xff]
        %v2983 = vld [vmem:[%s605 + $0x99] sm:$0xff]
        %v2984 = vld [vmem:[%s605 + $0xa1] sm:$0xff]
        %v2985 = vld [vmem:[%s605 + $0xa9] sm:$0xff]
        %v2986 = vld [vmem:[%s605 + $0xb1] sm:$0xff]
        %v2987 = vld [vmem:[%s605 + $0xb9] sm:$0xff]
        %v2988 = vld [vmem:[%s605 + $0xc1] sm:$0xff]
        %v2989 = vld [vmem:[%s605 + $0xc9] sm:$0xff]
        %v2990 = vld [vmem:[%s605 + $0xd1] sm:$0xff]
        %v2991 = vld [vmem:[%s605 + $0xd9] sm:$0xff]
        %v2992 = vld [vmem:[%s605 + $0xe1] sm:$0xff]
        %v2993 = vld [vmem:[%s605 + $0xe9] sm:$0xff]
        %v2994 = vld [vmem:[%s605 + $0xf1] sm:$0xff]
        %v2995 = vld [vmem:[%s605 + $0xf9] sm:$0xff]
        %v2996 = vpack.c.bf16 %v2969, %v2968
        %v2997 = vpack.c.bf16 %v2971, %v2970
        %v2998 = vpack.c.bf16 %v2973, %v2972
        %v2999 = vpack.c.bf16 %v2975, %v2974
        %v3000 = vpack.c.bf16 %v2977, %v2976
        %v3001 = vpack.c.bf16 %v2979, %v2978
        %v3002 = vpack.c.bf16 %v2981, %v2980
        %v3003 = vpack.c.bf16 %v2983, %v2982
        %v3004 = vpack.c.bf16 %v2985, %v2984
        %v3005 = vpack.c.bf16 %v2987, %v2986
        %v3006 = vpack.c.bf16 %v2989, %v2988
        %v3007 = vpack.c.bf16 %v2991, %v2990
        %v3008 = vpack.c.bf16 %v2993, %v2992
        %v3009 = vpack.c.bf16 %v2995, %v2994
        %s3010 = scalar_lea.vmem %s621, 28
        %v3011 = vld [vmem:[%s3010] sm:$0xf]
        %v3013 = vsel %vm658, %v2996, 0
        %v3016 = vsel %vm658, %v2997, 0
        %v3019 = vsel %vm658, %v2998, 0
        %v3022 = vsel %vm658, %v2999, 0
        %v3025 = vsel %vm658, %v3000, 0
        %v3028 = vsel %vm658, %v3001, 0
        %v3031 = vsel %vm658, %v3002, 0
        %v3034 = vsel %vm658, %v3003, 0
        %v3037 = vsel %vm658, %v3004, 0
        %v3040 = vsel %vm658, %v3005, 0
        %v3043 = vsel %vm658, %v3006, 0
        %v3046 = vsel %vm658, %v3007, 0
        %v3049 = vsel %vm658, %v3008, 0
        %v3052 = vsel %vm658, %v3009, 0
        %v3055 = vsel %vm668, %v3011, 0
        %3057 = vmatpush.bf16.msra.mxu0 0
        %3058 = vmatpush.bf16.msra.mxu0 0
        %3059 = vmatpush.bf16.msra.mxu0 0
        %3060 = vmatpush.bf16.msra.mxu0 0
        %3061 = vmatpush.bf16.msra.mxu0 0
        %3062 = vmatpush.bf16.msra.mxu0 0
        %3063 = vmatpush.bf16.msra.mxu0 0
        %3064 = vmatpush.bf16.msra.mxu0 %v3055
        %3065 = vmatmul.bf16.gmra.mxu0 %v3013
        %v3066 = vpop.f32.mrf.mxu0
        %v3067 = vadd.f32 0.0, %v3066
        %v3068 = vpop.f32.mrf.mxu0
        %v3069 = vadd.f32 0.0, %v3068
        %3070 = vmatmul.bf16.gmra.mxu0 %v3016
        %v3071 = vpop.f32.mrf.mxu0
        %v3072 = vadd.f32 0.0, %v3071
        %v3073 = vpop.f32.mrf.mxu0
        %v3074 = vadd.f32 0.0, %v3073
        %3075 = vmatmul.bf16.gmra.mxu0 %v3019
        %v3076 = vpop.f32.mrf.mxu0
        %v3077 = vadd.f32 0.0, %v3076
        %v3078 = vpop.f32.mrf.mxu0
        %v3079 = vadd.f32 0.0, %v3078
        %3080 = vmatmul.bf16.gmra.mxu0 %v3022
        %v3081 = vpop.f32.mrf.mxu0
        %v3082 = vadd.f32 0.0, %v3081
        %v3083 = vpop.f32.mrf.mxu0
        %v3084 = vadd.f32 0.0, %v3083
        %3085 = vmatmul.bf16.gmra.mxu0 %v3025
        %v3086 = vpop.f32.mrf.mxu0
        %v3087 = vadd.f32 0.0, %v3086
        %v3088 = vpop.f32.mrf.mxu0
        %v3089 = vadd.f32 0.0, %v3088
        %3090 = vmatmul.bf16.gmra.mxu0 %v3028
        %v3091 = vpop.f32.mrf.mxu0
        %v3092 = vadd.f32 0.0, %v3091
        %v3093 = vpop.f32.mrf.mxu0
        %v3094 = vadd.f32 0.0, %v3093
        %3095 = vmatmul.bf16.gmra.mxu0 %v3031
        %v3096 = vpop.f32.mrf.mxu0
        %v3097 = vadd.f32 0.0, %v3096
        %v3098 = vpop.f32.mrf.mxu0
        %v3099 = vadd.f32 0.0, %v3098
        %3100 = vmatmul.bf16.gmra.mxu0 %v3034
        %v3101 = vpop.f32.mrf.mxu0
        %v3102 = vadd.f32 0.0, %v3101
        %v3103 = vpop.f32.mrf.mxu0
        %v3104 = vadd.f32 0.0, %v3103
        %3105 = vmatmul.bf16.gmra.mxu0 %v3037
        %v3106 = vpop.f32.mrf.mxu0
        %v3107 = vadd.f32 0.0, %v3106
        %v3108 = vpop.f32.mrf.mxu0
        %v3109 = vadd.f32 0.0, %v3108
        %3110 = vmatmul.bf16.gmra.mxu0 %v3040
        %v3111 = vpop.f32.mrf.mxu0
        %v3112 = vadd.f32 0.0, %v3111
        %v3113 = vpop.f32.mrf.mxu0
        %v3114 = vadd.f32 0.0, %v3113
        %3115 = vmatmul.bf16.gmra.mxu0 %v3043
        %v3116 = vpop.f32.mrf.mxu0
        %v3117 = vadd.f32 0.0, %v3116
        %v3118 = vpop.f32.mrf.mxu0
        %v3119 = vadd.f32 0.0, %v3118
        %3120 = vmatmul.bf16.gmra.mxu0 %v3046
        %v3121 = vpop.f32.mrf.mxu0
        %v3122 = vadd.f32 0.0, %v3121
        %v3123 = vpop.f32.mrf.mxu0
        %v3124 = vadd.f32 0.0, %v3123
        %3125 = vmatmul.bf16.gmra.mxu0 %v3049
        %v3126 = vpop.f32.mrf.mxu0
        %v3127 = vadd.f32 0.0, %v3126
        %v3128 = vpop.f32.mrf.mxu0
        %v3129 = vadd.f32 0.0, %v3128
        %3130 = vmatmul.bf16.gmra.mxu0 %v3052
        %v3131 = vpop.f32.mrf.mxu0
        %v3132 = vadd.f32 0.0, %v3131
        %v3133 = vpop.f32.mrf.mxu0
        %v3134 = vadd.f32 0.0, %v3133
        %3135 = vdwg.mxu0
        %v3136 = vld [vmem:[#allocation3] sm:$0xff]
        %v3137 = vld [vmem:[#allocation3 + $0x8] sm:$0xff]
        %v3138 = vld [vmem:[#allocation3 + $0x10] sm:$0xff]
        %v3139 = vld [vmem:[#allocation3 + $0x18] sm:$0xff]
        %v3140 = vld [vmem:[#allocation3 + $0x20] sm:$0xff]
        %v3141 = vld [vmem:[#allocation3 + $0x28] sm:$0xff]
        %v3142 = vld [vmem:[#allocation3 + $0x30] sm:$0xff]
        %v3143 = vld [vmem:[#allocation3 + $0x38] sm:$0xff]
        %v3144 = vld [vmem:[#allocation3 + $0x40] sm:$0xff]
        %v3145 = vld [vmem:[#allocation3 + $0x48] sm:$0xff]
        %v3146 = vld [vmem:[#allocation3 + $0x50] sm:$0xff]
        %v3147 = vld [vmem:[#allocation3 + $0x58] sm:$0xff]
        %v3148 = vld [vmem:[#allocation3 + $0x60] sm:$0xff]
        %v3149 = vld [vmem:[#allocation3 + $0x68] sm:$0xff]
        %v3150 = vld [vmem:[#allocation3 + $0x70] sm:$0xff]
        %v3151 = vld [vmem:[#allocation3 + $0x78] sm:$0xff]
        %v3152 = vld [vmem:[#allocation3 + $0x80] sm:$0xff]
        %v3153 = vld [vmem:[#allocation3 + $0x88] sm:$0xff]
        %v3154 = vld [vmem:[#allocation3 + $0x90] sm:$0xff]
        %v3155 = vld [vmem:[#allocation3 + $0x98] sm:$0xff]
        %v3156 = vld [vmem:[#allocation3 + $0xa0] sm:$0xff]
        %v3157 = vld [vmem:[#allocation3 + $0xa8] sm:$0xff]
        %v3158 = vld [vmem:[#allocation3 + $0xb0] sm:$0xff]
        %v3159 = vld [vmem:[#allocation3 + $0xb8] sm:$0xff]
        %v3160 = vld [vmem:[#allocation3 + $0xc0] sm:$0xff]
        %v3161 = vld [vmem:[#allocation3 + $0xc8] sm:$0xff]
        %v3162 = vld [vmem:[#allocation3 + $0xd0] sm:$0xff]
        %v3163 = vld [vmem:[#allocation3 + $0xd8] sm:$0xff]
        %v3164 = vadd.f32 %v3136, %v3067
        %v3165 = vadd.f32 %v3137, %v3069
        %v3166 = vadd.f32 %v3138, %v3072
        %v3167 = vadd.f32 %v3139, %v3074
        %v3168 = vadd.f32 %v3140, %v3077
        %v3169 = vadd.f32 %v3141, %v3079
        %v3170 = vadd.f32 %v3142, %v3082
        %v3171 = vadd.f32 %v3143, %v3084
        %v3172 = vadd.f32 %v3144, %v3087
        %v3173 = vadd.f32 %v3145, %v3089
        %v3174 = vadd.f32 %v3146, %v3092
        %v3175 = vadd.f32 %v3147, %v3094
        %v3176 = vadd.f32 %v3148, %v3097
        %v3177 = vadd.f32 %v3149, %v3099
        %v3178 = vadd.f32 %v3150, %v3102
        %v3179 = vadd.f32 %v3151, %v3104
        %v3180 = vadd.f32 %v3152, %v3107
        %v3181 = vadd.f32 %v3153, %v3109
        %v3182 = vadd.f32 %v3154, %v3112
        %v3183 = vadd.f32 %v3155, %v3114
        %v3184 = vadd.f32 %v3156, %v3117
        %v3185 = vadd.f32 %v3157, %v3119
        %v3186 = vadd.f32 %v3158, %v3122
        %v3187 = vadd.f32 %v3159, %v3124
        %v3188 = vadd.f32 %v3160, %v3127
        %v3189 = vadd.f32 %v3161, %v3129
        %v3190 = vadd.f32 %v3162, %v3132
        %v3191 = vadd.f32 %v3163, %v3134
        %3192 = vst.msk [vmem:[#allocation3] sm:$0xff] %vm696, %v3164
        %3193 = vst.msk [vmem:[#allocation3 + $0x8] sm:$0xff] %vm696, %v3165
        %3194 = vst.msk [vmem:[#allocation3 + $0x10] sm:$0xff] %vm696, %v3166
        %3195 = vst.msk [vmem:[#allocation3 + $0x18] sm:$0xff] %vm696, %v3167
        %3196 = vst.msk [vmem:[#allocation3 + $0x20] sm:$0xff] %vm696, %v3168
        %3197 = vst.msk [vmem:[#allocation3 + $0x28] sm:$0xff] %vm696, %v3169
        %3198 = vst.msk [vmem:[#allocation3 + $0x30] sm:$0xff] %vm696, %v3170
        %3199 = vst.msk [vmem:[#allocation3 + $0x38] sm:$0xff] %vm696, %v3171
        %3200 = vst.msk [vmem:[#allocation3 + $0x40] sm:$0xff] %vm696, %v3172
        %3201 = vst.msk [vmem:[#allocation3 + $0x48] sm:$0xff] %vm696, %v3173
        %3202 = vst.msk [vmem:[#allocation3 + $0x50] sm:$0xff] %vm696, %v3174
        %3203 = vst.msk [vmem:[#allocation3 + $0x58] sm:$0xff] %vm696, %v3175
        %3204 = vst.msk [vmem:[#allocation3 + $0x60] sm:$0xff] %vm696, %v3176
        %3205 = vst.msk [vmem:[#allocation3 + $0x68] sm:$0xff] %vm696, %v3177
        %3206 = vst.msk [vmem:[#allocation3 + $0x70] sm:$0xff] %vm696, %v3178
        %3207 = vst.msk [vmem:[#allocation3 + $0x78] sm:$0xff] %vm696, %v3179
        %3208 = vst.msk [vmem:[#allocation3 + $0x80] sm:$0xff] %vm696, %v3180
        %3209 = vst.msk [vmem:[#allocation3 + $0x88] sm:$0xff] %vm696, %v3181
        %3210 = vst.msk [vmem:[#allocation3 + $0x90] sm:$0xff] %vm696, %v3182
        %3211 = vst.msk [vmem:[#allocation3 + $0x98] sm:$0xff] %vm696, %v3183
        %3212 = vst.msk [vmem:[#allocation3 + $0xa0] sm:$0xff] %vm696, %v3184
        %3213 = vst.msk [vmem:[#allocation3 + $0xa8] sm:$0xff] %vm696, %v3185
        %3214 = vst.msk [vmem:[#allocation3 + $0xb0] sm:$0xff] %vm696, %v3186
        %3215 = vst.msk [vmem:[#allocation3 + $0xb8] sm:$0xff] %vm696, %v3187
        %3216 = vst.msk [vmem:[#allocation3 + $0xc0] sm:$0xff] %vm696, %v3188
        %3217 = vst.msk [vmem:[#allocation3 + $0xc8] sm:$0xff] %vm696, %v3189
        %3218 = vst.msk [vmem:[#allocation3 + $0xd0] sm:$0xff] %vm696, %v3190
        %3219 = vst.msk [vmem:[#allocation3 + $0xd8] sm:$0xff] %vm696, %v3191
        %v3220 = vld [vmem:[%s605 + $0x22] sm:$0xff]
        %v3221 = vld [vmem:[%s605 + $0x2a] sm:$0xff]
        %v3222 = vld [vmem:[%s605 + $0x32] sm:$0xff]
        %v3223 = vld [vmem:[%s605 + $0x3a] sm:$0xff]
        %v3224 = vld [vmem:[%s605 + $0x42] sm:$0xff]
        %v3225 = vld [vmem:[%s605 + $0x4a] sm:$0xff]
        %v3226 = vld [vmem:[%s605 + $0x52] sm:$0xff]
        %v3227 = vld [vmem:[%s605 + $0x5a] sm:$0xff]
        %v3228 = vld [vmem:[%s605 + $0x62] sm:$0xff]
        %v3229 = vld [vmem:[%s605 + $0x6a] sm:$0xff]
        %v3230 = vld [vmem:[%s605 + $0x72] sm:$0xff]
        %v3231 = vld [vmem:[%s605 + $0x7a] sm:$0xff]
        %v3232 = vld [vmem:[%s605 + $0x82] sm:$0xff]
        %v3233 = vld [vmem:[%s605 + $0x8a] sm:$0xff]
        %v3234 = vld [vmem:[%s605 + $0x92] sm:$0xff]
        %v3235 = vld [vmem:[%s605 + $0x9a] sm:$0xff]
        %v3236 = vld [vmem:[%s605 + $0xa2] sm:$0xff]
        %v3237 = vld [vmem:[%s605 + $0xaa] sm:$0xff]
        %v3238 = vld [vmem:[%s605 + $0xb2] sm:$0xff]
        %v3239 = vld [vmem:[%s605 + $0xba] sm:$0xff]
        %v3240 = vld [vmem:[%s605 + $0xc2] sm:$0xff]
        %v3241 = vld [vmem:[%s605 + $0xca] sm:$0xff]
        %v3242 = vld [vmem:[%s605 + $0xd2] sm:$0xff]
        %v3243 = vld [vmem:[%s605 + $0xda] sm:$0xff]
        %v3244 = vld [vmem:[%s605 + $0xe2] sm:$0xff]
        %v3245 = vld [vmem:[%s605 + $0xea] sm:$0xff]
        %v3246 = vld [vmem:[%s605 + $0xf2] sm:$0xff]
        %v3247 = vld [vmem:[%s605 + $0xfa] sm:$0xff]
        %v3248 = vpack.c.bf16 %v3221, %v3220
        %v3249 = vpack.c.bf16 %v3223, %v3222
        %v3250 = vpack.c.bf16 %v3225, %v3224
        %v3251 = vpack.c.bf16 %v3227, %v3226
        %v3252 = vpack.c.bf16 %v3229, %v3228
        %v3253 = vpack.c.bf16 %v3231, %v3230
        %v3254 = vpack.c.bf16 %v3233, %v3232
        %v3255 = vpack.c.bf16 %v3235, %v3234
        %v3256 = vpack.c.bf16 %v3237, %v3236
        %v3257 = vpack.c.bf16 %v3239, %v3238
        %v3258 = vpack.c.bf16 %v3241, %v3240
        %v3259 = vpack.c.bf16 %v3243, %v3242
        %v3260 = vpack.c.bf16 %v3245, %v3244
        %v3261 = vpack.c.bf16 %v3247, %v3246
        %s3262 = scalar_lea.vmem %s621, 32
        %v3263 = vld [vmem:[%s3262] sm:$0xf]
        %v3265 = vsel %vm658, %v3248, 0
        %v3268 = vsel %vm658, %v3249, 0
        %v3271 = vsel %vm658, %v3250, 0
        %v3274 = vsel %vm658, %v3251, 0
        %v3277 = vsel %vm658, %v3252, 0
        %v3280 = vsel %vm658, %v3253, 0
        %v3283 = vsel %vm658, %v3254, 0
        %v3286 = vsel %vm658, %v3255, 0
        %v3289 = vsel %vm658, %v3256, 0
        %v3292 = vsel %vm658, %v3257, 0
        %v3295 = vsel %vm658, %v3258, 0
        %v3298 = vsel %vm658, %v3259, 0
        %v3301 = vsel %vm658, %v3260, 0
        %v3304 = vsel %vm658, %v3261, 0
        %v3307 = vsel %vm668, %v3263, 0
        %3309 = vmatpush.bf16.msra.mxu0 0
        %3310 = vmatpush.bf16.msra.mxu0 0
        %3311 = vmatpush.bf16.msra.mxu0 0
        %3312 = vmatpush.bf16.msra.mxu0 0
        %3313 = vmatpush.bf16.msra.mxu0 0
        %3314 = vmatpush.bf16.msra.mxu0 0
        %3315 = vmatpush.bf16.msra.mxu0 0
        %3316 = vmatpush.bf16.msra.mxu0 %v3307
        %3317 = vmatmul.bf16.gmra.mxu0 %v3265
        %v3318 = vpop.f32.mrf.mxu0
        %v3319 = vadd.f32 0.0, %v3318
        %v3320 = vpop.f32.mrf.mxu0
        %v3321 = vadd.f32 0.0, %v3320
        %3322 = vmatmul.bf16.gmra.mxu0 %v3268
        %v3323 = vpop.f32.mrf.mxu0
        %v3324 = vadd.f32 0.0, %v3323
        %v3325 = vpop.f32.mrf.mxu0
        %v3326 = vadd.f32 0.0, %v3325
        %3327 = vmatmul.bf16.gmra.mxu0 %v3271
        %v3328 = vpop.f32.mrf.mxu0
        %v3329 = vadd.f32 0.0, %v3328
        %v3330 = vpop.f32.mrf.mxu0
        %v3331 = vadd.f32 0.0, %v3330
        %3332 = vmatmul.bf16.gmra.mxu0 %v3274
        %v3333 = vpop.f32.mrf.mxu0
        %v3334 = vadd.f32 0.0, %v3333
        %v3335 = vpop.f32.mrf.mxu0
        %v3336 = vadd.f32 0.0, %v3335
        %3337 = vmatmul.bf16.gmra.mxu0 %v3277
        %v3338 = vpop.f32.mrf.mxu0
        %v3339 = vadd.f32 0.0, %v3338
        %v3340 = vpop.f32.mrf.mxu0
        %v3341 = vadd.f32 0.0, %v3340
        %3342 = vmatmul.bf16.gmra.mxu0 %v3280
        %v3343 = vpop.f32.mrf.mxu0
        %v3344 = vadd.f32 0.0, %v3343
        %v3345 = vpop.f32.mrf.mxu0
        %v3346 = vadd.f32 0.0, %v3345
        %3347 = vmatmul.bf16.gmra.mxu0 %v3283
        %v3348 = vpop.f32.mrf.mxu0
        %v3349 = vadd.f32 0.0, %v3348
        %v3350 = vpop.f32.mrf.mxu0
        %v3351 = vadd.f32 0.0, %v3350
        %3352 = vmatmul.bf16.gmra.mxu0 %v3286
        %v3353 = vpop.f32.mrf.mxu0
        %v3354 = vadd.f32 0.0, %v3353
        %v3355 = vpop.f32.mrf.mxu0
        %v3356 = vadd.f32 0.0, %v3355
        %3357 = vmatmul.bf16.gmra.mxu0 %v3289
        %v3358 = vpop.f32.mrf.mxu0
        %v3359 = vadd.f32 0.0, %v3358
        %v3360 = vpop.f32.mrf.mxu0
        %v3361 = vadd.f32 0.0, %v3360
        %3362 = vmatmul.bf16.gmra.mxu0 %v3292
        %v3363 = vpop.f32.mrf.mxu0
        %v3364 = vadd.f32 0.0, %v3363
        %v3365 = vpop.f32.mrf.mxu0
        %v3366 = vadd.f32 0.0, %v3365
        %3367 = vmatmul.bf16.gmra.mxu0 %v3295
        %v3368 = vpop.f32.mrf.mxu0
        %v3369 = vadd.f32 0.0, %v3368
        %v3370 = vpop.f32.mrf.mxu0
        %v3371 = vadd.f32 0.0, %v3370
        %3372 = vmatmul.bf16.gmra.mxu0 %v3298
        %v3373 = vpop.f32.mrf.mxu0
        %v3374 = vadd.f32 0.0, %v3373
        %v3375 = vpop.f32.mrf.mxu0
        %v3376 = vadd.f32 0.0, %v3375
        %3377 = vmatmul.bf16.gmra.mxu0 %v3301
        %v3378 = vpop.f32.mrf.mxu0
        %v3379 = vadd.f32 0.0, %v3378
        %v3380 = vpop.f32.mrf.mxu0
        %v3381 = vadd.f32 0.0, %v3380
        %3382 = vmatmul.bf16.gmra.mxu0 %v3304
        %v3383 = vpop.f32.mrf.mxu0
        %v3384 = vadd.f32 0.0, %v3383
        %v3385 = vpop.f32.mrf.mxu0
        %v3386 = vadd.f32 0.0, %v3385
        %3387 = vdwg.mxu0
        %v3388 = vld [vmem:[#allocation3] sm:$0xff]
        %v3389 = vld [vmem:[#allocation3 + $0x8] sm:$0xff]
        %v3390 = vld [vmem:[#allocation3 + $0x10] sm:$0xff]
        %v3391 = vld [vmem:[#allocation3 + $0x18] sm:$0xff]
        %v3392 = vld [vmem:[#allocation3 + $0x20] sm:$0xff]
        %v3393 = vld [vmem:[#allocation3 + $0x28] sm:$0xff]
        %v3394 = vld [vmem:[#allocation3 + $0x30] sm:$0xff]
        %v3395 = vld [vmem:[#allocation3 + $0x38] sm:$0xff]
        %v3396 = vld [vmem:[#allocation3 + $0x40] sm:$0xff]
        %v3397 = vld [vmem:[#allocation3 + $0x48] sm:$0xff]
        %v3398 = vld [vmem:[#allocation3 + $0x50] sm:$0xff]
        %v3399 = vld [vmem:[#allocation3 + $0x58] sm:$0xff]
        %v3400 = vld [vmem:[#allocation3 + $0x60] sm:$0xff]
        %v3401 = vld [vmem:[#allocation3 + $0x68] sm:$0xff]
        %v3402 = vld [vmem:[#allocation3 + $0x70] sm:$0xff]
        %v3403 = vld [vmem:[#allocation3 + $0x78] sm:$0xff]
        %v3404 = vld [vmem:[#allocation3 + $0x80] sm:$0xff]
        %v3405 = vld [vmem:[#allocation3 + $0x88] sm:$0xff]
        %v3406 = vld [vmem:[#allocation3 + $0x90] sm:$0xff]
        %v3407 = vld [vmem:[#allocation3 + $0x98] sm:$0xff]
        %v3408 = vld [vmem:[#allocation3 + $0xa0] sm:$0xff]
        %v3409 = vld [vmem:[#allocation3 + $0xa8] sm:$0xff]
        %v3410 = vld [vmem:[#allocation3 + $0xb0] sm:$0xff]
        %v3411 = vld [vmem:[#allocation3 + $0xb8] sm:$0xff]
        %v3412 = vld [vmem:[#allocation3 + $0xc0] sm:$0xff]
        %v3413 = vld [vmem:[#allocation3 + $0xc8] sm:$0xff]
        %v3414 = vld [vmem:[#allocation3 + $0xd0] sm:$0xff]
        %v3415 = vld [vmem:[#allocation3 + $0xd8] sm:$0xff]
        %v3416 = vadd.f32 %v3388, %v3319
        %v3417 = vadd.f32 %v3389, %v3321
        %v3418 = vadd.f32 %v3390, %v3324
        %v3419 = vadd.f32 %v3391, %v3326
        %v3420 = vadd.f32 %v3392, %v3329
        %v3421 = vadd.f32 %v3393, %v3331
        %v3422 = vadd.f32 %v3394, %v3334
        %v3423 = vadd.f32 %v3395, %v3336
        %v3424 = vadd.f32 %v3396, %v3339
        %v3425 = vadd.f32 %v3397, %v3341
        %v3426 = vadd.f32 %v3398, %v3344
        %v3427 = vadd.f32 %v3399, %v3346
        %v3428 = vadd.f32 %v3400, %v3349
        %v3429 = vadd.f32 %v3401, %v3351
        %v3430 = vadd.f32 %v3402, %v3354
        %v3431 = vadd.f32 %v3403, %v3356
        %v3432 = vadd.f32 %v3404, %v3359
        %v3433 = vadd.f32 %v3405, %v3361
        %v3434 = vadd.f32 %v3406, %v3364
        %v3435 = vadd.f32 %v3407, %v3366
        %v3436 = vadd.f32 %v3408, %v3369
        %v3437 = vadd.f32 %v3409, %v3371
        %v3438 = vadd.f32 %v3410, %v3374
        %v3439 = vadd.f32 %v3411, %v3376
        %v3440 = vadd.f32 %v3412, %v3379
        %v3441 = vadd.f32 %v3413, %v3381
        %v3442 = vadd.f32 %v3414, %v3384
        %v3443 = vadd.f32 %v3415, %v3386
        %3444 = vst.msk [vmem:[#allocation3] sm:$0xff] %vm696, %v3416
        %3445 = vst.msk [vmem:[#allocation3 + $0x8] sm:$0xff] %vm696, %v3417
        %3446 = vst.msk [vmem:[#allocation3 + $0x10] sm:$0xff] %vm696, %v3418
        %3447 = vst.msk [vmem:[#allocation3 + $0x18] sm:$0xff] %vm696, %v3419
        %3448 = vst.msk [vmem:[#allocation3 + $0x20] sm:$0xff] %vm696, %v3420
        %3449 = vst.msk [vmem:[#allocation3 + $0x28] sm:$0xff] %vm696, %v3421
        %3450 = vst.msk [vmem:[#allocation3 + $0x30] sm:$0xff] %vm696, %v3422
        %3451 = vst.msk [vmem:[#allocation3 + $0x38] sm:$0xff] %vm696, %v3423
        %3452 = vst.msk [vmem:[#allocation3 + $0x40] sm:$0xff] %vm696, %v3424
        %3453 = vst.msk [vmem:[#allocation3 + $0x48] sm:$0xff] %vm696, %v3425
        %3454 = vst.msk [vmem:[#allocation3 + $0x50] sm:$0xff] %vm696, %v3426
        %3455 = vst.msk [vmem:[#allocation3 + $0x58] sm:$0xff] %vm696, %v3427
        %3456 = vst.msk [vmem:[#allocation3 + $0x60] sm:$0xff] %vm696, %v3428
        %3457 = vst.msk [vmem:[#allocation3 + $0x68] sm:$0xff] %vm696, %v3429
        %3458 = vst.msk [vmem:[#allocation3 + $0x70] sm:$0xff] %vm696, %v3430
        %3459 = vst.msk [vmem:[#allocation3 + $0x78] sm:$0xff] %vm696, %v3431
        %3460 = vst.msk [vmem:[#allocation3 + $0x80] sm:$0xff] %vm696, %v3432
        %3461 = vst.msk [vmem:[#allocation3 + $0x88] sm:$0xff] %vm696, %v3433
        %3462 = vst.msk [vmem:[#allocation3 + $0x90] sm:$0xff] %vm696, %v3434
        %3463 = vst.msk [vmem:[#allocation3 + $0x98] sm:$0xff] %vm696, %v3435
        %3464 = vst.msk [vmem:[#allocation3 + $0xa0] sm:$0xff] %vm696, %v3436
        %3465 = vst.msk [vmem:[#allocation3 + $0xa8] sm:$0xff] %vm696, %v3437
        %3466 = vst.msk [vmem:[#allocation3 + $0xb0] sm:$0xff] %vm696, %v3438
        %3467 = vst.msk [vmem:[#allocation3 + $0xb8] sm:$0xff] %vm696, %v3439
        %3468 = vst.msk [vmem:[#allocation3 + $0xc0] sm:$0xff] %vm696, %v3440
        %3469 = vst.msk [vmem:[#allocation3 + $0xc8] sm:$0xff] %vm696, %v3441
        %3470 = vst.msk [vmem:[#allocation3 + $0xd0] sm:$0xff] %vm696, %v3442
        %3471 = vst.msk [vmem:[#allocation3 + $0xd8] sm:$0xff] %vm696, %v3443
        %v3472 = vld [vmem:[#allocation3] sm:$0xff]
        %v3473 = vld [vmem:[#allocation3 + $0x8] sm:$0xff]
        %v3474 = vld [vmem:[#allocation3 + $0x10] sm:$0xff]
        %v3475 = vld [vmem:[#allocation3 + $0x18] sm:$0xff]
        %v3476 = vld [vmem:[#allocation3 + $0x20] sm:$0xff]
        %v3477 = vld [vmem:[#allocation3 + $0x28] sm:$0xff]
        %v3478 = vld [vmem:[#allocation3 + $0x30] sm:$0xff]
        %v3479 = vld [vmem:[#allocation3 + $0x38] sm:$0xff]
        %v3480 = vld [vmem:[#allocation3 + $0x40] sm:$0xff]
        %v3481 = vld [vmem:[#allocation3 + $0x48] sm:$0xff]
        %v3482 = vld [vmem:[#allocation3 + $0x50] sm:$0xff]
        %v3483 = vld [vmem:[#allocation3 + $0x58] sm:$0xff]
        %v3484 = vld [vmem:[#allocation3 + $0x60] sm:$0xff]
        %v3485 = vld [vmem:[#allocation3 + $0x68] sm:$0xff]
        %v3486 = vld [vmem:[#allocation3 + $0x70] sm:$0xff]
        %v3487 = vld [vmem:[#allocation3 + $0x78] sm:$0xff]
        %v3488 = vld [vmem:[#allocation3 + $0x80] sm:$0xff]
        %v3489 = vld [vmem:[#allocation3 + $0x88] sm:$0xff]
        %v3490 = vld [vmem:[#allocation3 + $0x90] sm:$0xff]
        %v3491 = vld [vmem:[#allocation3 + $0x98] sm:$0xff]
        %v3492 = vld [vmem:[#allocation3 + $0xa0] sm:$0xff]
        %v3493 = vld [vmem:[#allocation3 + $0xa8] sm:$0xff]
        %v3494 = vld [vmem:[#allocation3 + $0xb0] sm:$0xff]
        %v3495 = vld [vmem:[#allocation3 + $0xb8] sm:$0xff]
        %v3496 = vld [vmem:[#allocation3 + $0xc0] sm:$0xff]
        %v3497 = vld [vmem:[#allocation3 + $0xc8] sm:$0xff]
        %v3498 = vld [vmem:[#allocation3 + $0xd0] sm:$0xff]
        %v3499 = vld [vmem:[#allocation3 + $0xd8] sm:$0xff]
        %v3500 = vld [vmem:[%s624] sm:$0x1]
        %v3502 = vperm.slane %v3500, 0
        %v3504 = vmul.f32 %v3472, %v3502
        %v3505 = vmul.f32 %v3473, %v3502
        %v3506 = vmul.f32 %v3474, %v3502
        %v3507 = vmul.f32 %v3475, %v3502
        %v3508 = vmul.f32 %v3476, %v3502
        %v3509 = vmul.f32 %v3477, %v3502
        %v3510 = vmul.f32 %v3478, %v3502
        %v3511 = vmul.f32 %v3479, %v3502
        %v3512 = vmul.f32 %v3480, %v3502
        %v3513 = vmul.f32 %v3481, %v3502
        %v3514 = vmul.f32 %v3482, %v3502
        %v3515 = vmul.f32 %v3483, %v3502
        %v3516 = vmul.f32 %v3484, %v3502
        %v3517 = vmul.f32 %v3485, %v3502
        %v3518 = vmul.f32 %v3486, %v3502
        %v3519 = vmul.f32 %v3487, %v3502
        %v3520 = vmul.f32 %v3488, %v3502
        %v3521 = vmul.f32 %v3489, %v3502
        %v3522 = vmul.f32 %v3490, %v3502
        %v3523 = vmul.f32 %v3491, %v3502
        %v3524 = vmul.f32 %v3492, %v3502
        %v3525 = vmul.f32 %v3493, %v3502
        %v3526 = vmul.f32 %v3494, %v3502
        %v3527 = vmul.f32 %v3495, %v3502
        %v3528 = vmul.f32 %v3496, %v3502
        %v3529 = vmul.f32 %v3497, %v3502
        %v3530 = vmul.f32 %v3498, %v3502
        %v3531 = vmul.f32 %v3499, %v3502
        %v3532 = vld [vmem:[%s627] sm:$0x1]
        %v3534 = vperm.slane %v3532, 0
        %v3536 = vadd.f32 %v3504, %v3534
        %v3537 = vadd.f32 %v3505, %v3534
        %v3538 = vadd.f32 %v3506, %v3534
        %v3539 = vadd.f32 %v3507, %v3534
        %v3540 = vadd.f32 %v3508, %v3534
        %v3541 = vadd.f32 %v3509, %v3534
        %v3542 = vadd.f32 %v3510, %v3534
        %v3543 = vadd.f32 %v3511, %v3534
        %v3544 = vadd.f32 %v3512, %v3534
        %v3545 = vadd.f32 %v3513, %v3534
        %v3546 = vadd.f32 %v3514, %v3534
        %v3547 = vadd.f32 %v3515, %v3534
        %v3548 = vadd.f32 %v3516, %v3534
        %v3549 = vadd.f32 %v3517, %v3534
        %v3550 = vadd.f32 %v3518, %v3534
        %v3551 = vadd.f32 %v3519, %v3534
        %v3552 = vadd.f32 %v3520, %v3534
        %v3553 = vadd.f32 %v3521, %v3534
        %v3554 = vadd.f32 %v3522, %v3534
        %v3555 = vadd.f32 %v3523, %v3534
        %v3556 = vadd.f32 %v3524, %v3534
        %v3557 = vadd.f32 %v3525, %v3534
        %v3558 = vadd.f32 %v3526, %v3534
        %v3559 = vadd.f32 %v3527, %v3534
        %v3560 = vadd.f32 %v3528, %v3534
        %v3561 = vadd.f32 %v3529, %v3534
        %v3562 = vadd.f32 %v3530, %v3534
        %v3563 = vadd.f32 %v3531, %v3534
        %v3564 = vmax.f32 %v3536, 0.0
        %v3565 = vmax.f32 %v3537, 0.0
        %v3566 = vmax.f32 %v3538, 0.0
        %v3567 = vmax.f32 %v3539, 0.0
        %v3568 = vmax.f32 %v3540, 0.0
        %v3569 = vmax.f32 %v3541, 0.0
        %v3570 = vmax.f32 %v3542, 0.0
        %v3571 = vmax.f32 %v3543, 0.0
        %v3572 = vmax.f32 %v3544, 0.0
        %v3573 = vmax.f32 %v3545, 0.0
        %v3574 = vmax.f32 %v3546, 0.0
        %v3575 = vmax.f32 %v3547, 0.0
        %v3576 = vmax.f32 %v3548, 0.0
        %v3577 = vmax.f32 %v3549, 0.0
        %v3578 = vmax.f32 %v3550, 0.0
        %v3579 = vmax.f32 %v3551, 0.0
        %v3580 = vmax.f32 %v3552, 0.0
        %v3581 = vmax.f32 %v3553, 0.0
        %v3582 = vmax.f32 %v3554, 0.0
        %v3583 = vmax.f32 %v3555, 0.0
        %v3584 = vmax.f32 %v3556, 0.0
        %v3585 = vmax.f32 %v3557, 0.0
        %v3586 = vmax.f32 %v3558, 0.0
        %v3587 = vmax.f32 %v3559, 0.0
        %v3588 = vmax.f32 %v3560, 0.0
        %v3589 = vmax.f32 %v3561, 0.0
        %v3590 = vmax.f32 %v3562, 0.0
        %v3591 = vmax.f32 %v3563, 0.0
        %3592 = vst.msk [vmem:[#allocation3] sm:$0xff] %vm696, %v3564
        %3593 = vst.msk [vmem:[#allocation3 + $0x8] sm:$0xff] %vm696, %v3565
        %3594 = vst.msk [vmem:[#allocation3 + $0x10] sm:$0xff] %vm696, %v3566
        %3595 = vst.msk [vmem:[#allocation3 + $0x18] sm:$0xff] %vm696, %v3567
        %3596 = vst.msk [vmem:[#allocation3 + $0x20] sm:$0xff] %vm696, %v3568
        %3597 = vst.msk [vmem:[#allocation3 + $0x28] sm:$0xff] %vm696, %v3569
        %3598 = vst.msk [vmem:[#allocation3 + $0x30] sm:$0xff] %vm696, %v3570
        %3599 = vst.msk [vmem:[#allocation3 + $0x38] sm:$0xff] %vm696, %v3571
        %3600 = vst.msk [vmem:[#allocation3 + $0x40] sm:$0xff] %vm696, %v3572
        %3601 = vst.msk [vmem:[#allocation3 + $0x48] sm:$0xff] %vm696, %v3573
        %3602 = vst.msk [vmem:[#allocation3 + $0x50] sm:$0xff] %vm696, %v3574
        %3603 = vst.msk [vmem:[#allocation3 + $0x58] sm:$0xff] %vm696, %v3575
        %3604 = vst.msk [vmem:[#allocation3 + $0x60] sm:$0xff] %vm696, %v3576
        %3605 = vst.msk [vmem:[#allocation3 + $0x68] sm:$0xff] %vm696, %v3577
        %3606 = vst.msk [vmem:[#allocation3 + $0x70] sm:$0xff] %vm696, %v3578
        %3607 = vst.msk [vmem:[#allocation3 + $0x78] sm:$0xff] %vm696, %v3579
        %3608 = vst.msk [vmem:[#allocation3 + $0x80] sm:$0xff] %vm696, %v3580
        %3609 = vst.msk [vmem:[#allocation3 + $0x88] sm:$0xff] %vm696, %v3581
        %3610 = vst.msk [vmem:[#allocation3 + $0x90] sm:$0xff] %vm696, %v3582
        %3611 = vst.msk [vmem:[#allocation3 + $0x98] sm:$0xff] %vm696, %v3583
        %3612 = vst.msk [vmem:[#allocation3 + $0xa0] sm:$0xff] %vm696, %v3584
        %3613 = vst.msk [vmem:[#allocation3 + $0xa8] sm:$0xff] %vm696, %v3585
        %3614 = vst.msk [vmem:[#allocation3 + $0xb0] sm:$0xff] %vm696, %v3586
        %3615 = vst.msk [vmem:[#allocation3 + $0xb8] sm:$0xff] %vm696, %v3587
        %3616 = vst.msk [vmem:[#allocation3 + $0xc0] sm:$0xff] %vm696, %v3588
        %3617 = vst.msk [vmem:[#allocation3 + $0xc8] sm:$0xff] %vm696, %v3589
        %3618 = vst.msk [vmem:[#allocation3 + $0xd0] sm:$0xff] %vm696, %v3590
        %3619 = vst.msk [vmem:[#allocation3 + $0xd8] sm:$0xff] %vm696, %v3591
        %vm3620 = vcmask 126976
        %3621 = vst.msk [vmem:[#allocation3 + $0xe0] sm:$0x1f] %vm3620, 0.0
        %v3622 = vld [vmem:[#allocation3] sm:$0xff]
        %v3623 = vld [vmem:[#allocation3 + $0x8] sm:$0xff]
        %v3624 = vld [vmem:[#allocation3 + $0x10] sm:$0xff]
        %v3625 = vld [vmem:[#allocation3 + $0x18] sm:$0xff]
        %v3626 = vld [vmem:[#allocation3 + $0x20] sm:$0xff]
        %v3627 = vld [vmem:[#allocation3 + $0x28] sm:$0xff]
        %v3628 = vld [vmem:[#allocation3 + $0x30] sm:$0xff]
        %v3629 = vld [vmem:[#allocation3 + $0x38] sm:$0xff]
        %v3630 = vld [vmem:[#allocation3 + $0x40] sm:$0xff]
        %v3631 = vld [vmem:[#allocation3 + $0x48] sm:$0xff]
        %v3632 = vld [vmem:[#allocation3 + $0x50] sm:$0xff]
        %v3633 = vld [vmem:[#allocation3 + $0x58] sm:$0xff]
        %v3634 = vld [vmem:[#allocation3 + $0x60] sm:$0xff]
        %v3635 = vld [vmem:[#allocation3 + $0x68] sm:$0xff]
        %v3636 = vld [vmem:[#allocation3 + $0x70] sm:$0xff]
        %v3637 = vld [vmem:[#allocation3 + $0x78] sm:$0xff]
        %v3638 = vld [vmem:[#allocation3 + $0x80] sm:$0xff]
        %v3639 = vld [vmem:[#allocation3 + $0x88] sm:$0xff]
        %v3640 = vld [vmem:[#allocation2] sm:$0x1]
        %v3641 = vperm.slane %v3640, 0
        %v3642 = vmul.f32 %v3622, %v3641
        %v3643 = vmul.f32 %v3623, %v3641
        %v3644 = vmul.f32 %v3624, %v3641
        %v3645 = vmul.f32 %v3625, %v3641
        %v3646 = vmul.f32 %v3626, %v3641
        %v3647 = vmul.f32 %v3627, %v3641
        %v3648 = vmul.f32 %v3628, %v3641
        %v3649 = vmul.f32 %v3629, %v3641
        %v3650 = vmul.f32 %v3630, %v3641
        %v3651 = vmul.f32 %v3631, %v3641
        %v3652 = vmul.f32 %v3632, %v3641
        %v3653 = vmul.f32 %v3633, %v3641
        %v3654 = vmul.f32 %v3634, %v3641
        %v3655 = vmul.f32 %v3635, %v3641
        %v3656 = vmul.f32 %v3636, %v3641
        %v3657 = vmul.f32 %v3637, %v3641
        %v3658 = vmul.f32 %v3638, %v3641
        %v3659 = vmul.f32 %v3639, %v3641
        %3660 = vst.msk [vmem:[#allocation4] sm:$0xff] %vm696, %v3642
        %3661 = vst.msk [vmem:[#allocation4 + $0x8] sm:$0xff] %vm696, %v3643
        %3662 = vst.msk [vmem:[#allocation4 + $0x10] sm:$0xff] %vm696, %v3644
        %3663 = vst.msk [vmem:[#allocation4 + $0x18] sm:$0xff] %vm696, %v3645
        %3664 = vst.msk [vmem:[#allocation4 + $0x20] sm:$0xff] %vm696, %v3646
        %3665 = vst.msk [vmem:[#allocation4 + $0x28] sm:$0xff] %vm696, %v3647
        %3666 = vst.msk [vmem:[#allocation4 + $0x30] sm:$0xff] %vm696, %v3648
        %3667 = vst.msk [vmem:[#allocation4 + $0x38] sm:$0xff] %vm696, %v3649
        %3668 = vst.msk [vmem:[#allocation4 + $0x40] sm:$0xff] %vm696, %v3650
        %3669 = vst.msk [vmem:[#allocation4 + $0x48] sm:$0xff] %vm696, %v3651
        %3670 = vst.msk [vmem:[#allocation4 + $0x50] sm:$0xff] %vm696, %v3652
        %3671 = vst.msk [vmem:[#allocation4 + $0x58] sm:$0xff] %vm696, %v3653
        %3672 = vst.msk [vmem:[#allocation4 + $0x60] sm:$0xff] %vm696, %v3654
        %3673 = vst.msk [vmem:[#allocation4 + $0x68] sm:$0xff] %vm696, %v3655
        %3674 = vst.msk [vmem:[#allocation4 + $0x70] sm:$0xff] %vm696, %v3656
        %3675 = vst.msk [vmem:[#allocation4 + $0x78] sm:$0xff] %vm696, %v3657
        %3676 = vst.msk [vmem:[#allocation4 + $0x80] sm:$0xff] %vm696, %v3658
        %3677 = vst.msk [vmem:[#allocation4 + $0x88] sm:$0xff] %vm696, %v3659
        %v3678 = vld [vmem:[#allocation3 + $0x1] sm:$0xff]
        %v3679 = vld [vmem:[#allocation3 + $0x9] sm:$0xff]
        %v3680 = vld [vmem:[#allocation3 + $0x11] sm:$0xff]
        %v3681 = vld [vmem:[#allocation3 + $0x19] sm:$0xff]
        %v3682 = vld [vmem:[#allocation3 + $0x21] sm:$0xff]
        %v3683 = vld [vmem:[#allocation3 + $0x29] sm:$0xff]
        %v3684 = vld [vmem:[#allocation3 + $0x31] sm:$0xff]
        %v3685 = vld [vmem:[#allocation3 + $0x39] sm:$0xff]
        %v3686 = vld [vmem:[#allocation3 + $0x41] sm:$0xff]
        %v3687 = vld [vmem:[#allocation3 + $0x49] sm:$0xff]
        %v3688 = vld [vmem:[#allocation3 + $0x51] sm:$0xff]
        %v3689 = vld [vmem:[#allocation3 + $0x59] sm:$0xff]
        %v3690 = vld [vmem:[#allocation3 + $0x61] sm:$0xff]
        %v3691 = vld [vmem:[#allocation3 + $0x69] sm:$0xff]
        %v3692 = vld [vmem:[#allocation3 + $0x71] sm:$0xff]
        %v3693 = vld [vmem:[#allocation3 + $0x79] sm:$0xff]
        %v3694 = vld [vmem:[#allocation3 + $0x81] sm:$0xff]
        %v3695 = vld [vmem:[#allocation3 + $0x89] sm:$0xff]
        %v3696 = vld [vmem:[#allocation2 + $0x1] sm:$0x1]
        %v3697 = vperm.slane %v3696, 0
        %v3698 = vmul.f32 %v3678, %v3697
        %v3699 = vmul.f32 %v3679, %v3697
        %v3700 = vmul.f32 %v3680, %v3697
        %v3701 = vmul.f32 %v3681, %v3697
        %v3702 = vmul.f32 %v3682, %v3697
        %v3703 = vmul.f32 %v3683, %v3697
        %v3704 = vmul.f32 %v3684, %v3697
        %v3705 = vmul.f32 %v3685, %v3697
        %v3706 = vmul.f32 %v3686, %v3697
        %v3707 = vmul.f32 %v3687, %v3697
        %v3708 = vmul.f32 %v3688, %v3697
        %v3709 = vmul.f32 %v3689, %v3697
        %v3710 = vmul.f32 %v3690, %v3697
        %v3711 = vmul.f32 %v3691, %v3697
        %v3712 = vmul.f32 %v3692, %v3697
        %v3713 = vmul.f32 %v3693, %v3697
        %v3714 = vmul.f32 %v3694, %v3697
        %v3715 = vmul.f32 %v3695, %v3697
        %v3716 = vld [vmem:[#allocation4] sm:$0xff]
        %v3717 = vld [vmem:[#allocation4 + $0x8] sm:$0xff]
        %v3718 = vld [vmem:[#allocation4 + $0x10] sm:$0xff]
        %v3719 = vld [vmem:[#allocation4 + $0x18] sm:$0xff]
        %v3720 = vld [vmem:[#allocation4 + $0x20] sm:$0xff]
        %v3721 = vld [vmem:[#allocation4 + $0x28] sm:$0xff]
        %v3722 = vld [vmem:[#allocation4 + $0x30] sm:$0xff]
        %v3723 = vld [vmem:[#allocation4 + $0x38] sm:$0xff]
        %v3724 = vld [vmem:[#allocation4 + $0x40] sm:$0xff]
        %v3725 = vld [vmem:[#allocation4 + $0x48] sm:$0xff]
        %v3726 = vld [vmem:[#allocation4 + $0x50] sm:$0xff]
        %v3727 = vld [vmem:[#allocation4 + $0x58] sm:$0xff]
        %v3728 = vld [vmem:[#allocation4 + $0x60] sm:$0xff]
        %v3729 = vld [vmem:[#allocation4 + $0x68] sm:$0xff]
        %v3730 = vld [vmem:[#allocation4 + $0x70] sm:$0xff]
        %v3731 = vld [vmem:[#allocation4 + $0x78] sm:$0xff]
        %v3732 = vld [vmem:[#allocation4 + $0x80] sm:$0xff]
        %v3733 = vld [vmem:[#allocation4 + $0x88] sm:$0xff]
        %v3734 = vadd.f32 %v3716, %v3698
        %v3735 = vadd.f32 %v3717, %v3699
        %v3736 = vadd.f32 %v3718, %v3700
        %v3737 = vadd.f32 %v3719, %v3701
        %v3738 = vadd.f32 %v3720, %v3702
        %v3739 = vadd.f32 %v3721, %v3703
        %v3740 = vadd.f32 %v3722, %v3704
        %v3741 = vadd.f32 %v3723, %v3705
        %v3742 = vadd.f32 %v3724, %v3706
        %v3743 = vadd.f32 %v3725, %v3707
        %v3744 = vadd.f32 %v3726, %v3708
        %v3745 = vadd.f32 %v3727, %v3709
        %v3746 = vadd.f32 %v3728, %v3710
        %v3747 = vadd.f32 %v3729, %v3711
        %v3748 = vadd.f32 %v3730, %v3712
        %v3749 = vadd.f32 %v3731, %v3713
        %v3750 = vadd.f32 %v3732, %v3714
        %v3751 = vadd.f32 %v3733, %v3715
        %3752 = vst.msk [vmem:[#allocation4] sm:$0xff] %vm696, %v3734
        %3753 = vst.msk [vmem:[#allocation4 + $0x8] sm:$0xff] %vm696, %v3735
        %3754 = vst.msk [vmem:[#allocation4 + $0x10] sm:$0xff] %vm696, %v3736
        %3755 = vst.msk [vmem:[#allocation4 + $0x18] sm:$0xff] %vm696, %v3737
        %3756 = vst.msk [vmem:[#allocation4 + $0x20] sm:$0xff] %vm696, %v3738
        %3757 = vst.msk [vmem:[#allocation4 + $0x28] sm:$0xff] %vm696, %v3739
        %3758 = vst.msk [vmem:[#allocation4 + $0x30] sm:$0xff] %vm696, %v3740
        %3759 = vst.msk [vmem:[#allocation4 + $0x38] sm:$0xff] %vm696, %v3741
        %3760 = vst.msk [vmem:[#allocation4 + $0x40] sm:$0xff] %vm696, %v3742
        %3761 = vst.msk [vmem:[#allocation4 + $0x48] sm:$0xff] %vm696, %v3743
        %3762 = vst.msk [vmem:[#allocation4 + $0x50] sm:$0xff] %vm696, %v3744
        %3763 = vst.msk [vmem:[#allocation4 + $0x58] sm:$0xff] %vm696, %v3745
        %3764 = vst.msk [vmem:[#allocation4 + $0x60] sm:$0xff] %vm696, %v3746
        %3765 = vst.msk [vmem:[#allocation4 + $0x68] sm:$0xff] %vm696, %v3747
        %3766 = vst.msk [vmem:[#allocation4 + $0x70] sm:$0xff] %vm696, %v3748
        %3767 = vst.msk [vmem:[#allocation4 + $0x78] sm:$0xff] %vm696, %v3749
        %3768 = vst.msk [vmem:[#allocation4 + $0x80] sm:$0xff] %vm696, %v3750
        %3769 = vst.msk [vmem:[#allocation4 + $0x88] sm:$0xff] %vm696, %v3751
        %v3770 = vld [vmem:[#allocation3 + $0x2] sm:$0xff]
        %v3771 = vld [vmem:[#allocation3 + $0xa] sm:$0xff]
        %v3772 = vld [vmem:[#allocation3 + $0x12] sm:$0xff]
        %v3773 = vld [vmem:[#allocation3 + $0x1a] sm:$0xff]
        %v3774 = vld [vmem:[#allocation3 + $0x22] sm:$0xff]
        %v3775 = vld [vmem:[#allocation3 + $0x2a] sm:$0xff]
        %v3776 = vld [vmem:[#allocation3 + $0x32] sm:$0xff]
        %v3777 = vld [vmem:[#allocation3 + $0x3a] sm:$0xff]
        %v3778 = vld [vmem:[#allocation3 + $0x42] sm:$0xff]
        %v3779 = vld [vmem:[#allocation3 + $0x4a] sm:$0xff]
        %v3780 = vld [vmem:[#allocation3 + $0x52] sm:$0xff]
        %v3781 = vld [vmem:[#allocation3 + $0x5a] sm:$0xff]
        %v3782 = vld [vmem:[#allocation3 + $0x62] sm:$0xff]
        %v3783 = vld [vmem:[#allocation3 + $0x6a] sm:$0xff]
        %v3784 = vld [vmem:[#allocation3 + $0x72] sm:$0xff]
        %v3785 = vld [vmem:[#allocation3 + $0x7a] sm:$0xff]
        %v3786 = vld [vmem:[#allocation3 + $0x82] sm:$0xff]
        %v3787 = vld [vmem:[#allocation3 + $0x8a] sm:$0xff]
        %v3788 = vld [vmem:[#allocation2 + $0x2] sm:$0x1]
        %v3789 = vperm.slane %v3788, 0
        %v3790 = vmul.f32 %v3770, %v3789
        %v3791 = vmul.f32 %v3771, %v3789
        %v3792 = vmul.f32 %v3772, %v3789
        %v3793 = vmul.f32 %v3773, %v3789
        %v3794 = vmul.f32 %v3774, %v3789
        %v3795 = vmul.f32 %v3775, %v3789
        %v3796 = vmul.f32 %v3776, %v3789
        %v3797 = vmul.f32 %v3777, %v3789
        %v3798 = vmul.f32 %v3778, %v3789
        %v3799 = vmul.f32 %v3779, %v3789
        %v3800 = vmul.f32 %v3780, %v3789
        %v3801 = vmul.f32 %v3781, %v3789
        %v3802 = vmul.f32 %v3782, %v3789
        %v3803 = vmul.f32 %v3783, %v3789
        %v3804 = vmul.f32 %v3784, %v3789
        %v3805 = vmul.f32 %v3785, %v3789
        %v3806 = vmul.f32 %v3786, %v3789
        %v3807 = vmul.f32 %v3787, %v3789
        %v3808 = vld [vmem:[#allocation4] sm:$0xff]
        %v3809 = vld [vmem:[#allocation4 + $0x8] sm:$0xff]
        %v3810 = vld [vmem:[#allocation4 + $0x10] sm:$0xff]
        %v3811 = vld [vmem:[#allocation4 + $0x18] sm:$0xff]
        %v3812 = vld [vmem:[#allocation4 + $0x20] sm:$0xff]
        %v3813 = vld [vmem:[#allocation4 + $0x28] sm:$0xff]
        %v3814 = vld [vmem:[#allocation4 + $0x30] sm:$0xff]
        %v3815 = vld [vmem:[#allocation4 + $0x38] sm:$0xff]
        %v3816 = vld [vmem:[#allocation4 + $0x40] sm:$0xff]
        %v3817 = vld [vmem:[#allocation4 + $0x48] sm:$0xff]
        %v3818 = vld [vmem:[#allocation4 + $0x50] sm:$0xff]
        %v3819 = vld [vmem:[#allocation4 + $0x58] sm:$0xff]
        %v3820 = vld [vmem:[#allocation4 + $0x60] sm:$0xff]
        %v3821 = vld [vmem:[#allocation4 + $0x68] sm:$0xff]
        %v3822 = vld [vmem:[#allocation4 + $0x70] sm:$0xff]
        %v3823 = vld [vmem:[#allocation4 + $0x78] sm:$0xff]
        %v3824 = vld [vmem:[#allocation4 + $0x80] sm:$0xff]
        %v3825 = vld [vmem:[#allocation4 + $0x88] sm:$0xff]
        %v3826 = vadd.f32 %v3808, %v3790
        %v3827 = vadd.f32 %v3809, %v3791
        %v3828 = vadd.f32 %v3810, %v3792
        %v3829 = vadd.f32 %v3811, %v3793
        %v3830 = vadd.f32 %v3812, %v3794
        %v3831 = vadd.f32 %v3813, %v3795
        %v3832 = vadd.f32 %v3814, %v3796
        %v3833 = vadd.f32 %v3815, %v3797
        %v3834 = vadd.f32 %v3816, %v3798
        %v3835 = vadd.f32 %v3817, %v3799
        %v3836 = vadd.f32 %v3818, %v3800
        %v3837 = vadd.f32 %v3819, %v3801
        %v3838 = vadd.f32 %v3820, %v3802
        %v3839 = vadd.f32 %v3821, %v3803
        %v3840 = vadd.f32 %v3822, %v3804
        %v3841 = vadd.f32 %v3823, %v3805
        %v3842 = vadd.f32 %v3824, %v3806
        %v3843 = vadd.f32 %v3825, %v3807
        %3844 = vst.msk [vmem:[#allocation4] sm:$0xff] %vm696, %v3826
        %3845 = vst.msk [vmem:[#allocation4 + $0x8] sm:$0xff] %vm696, %v3827
        %3846 = vst.msk [vmem:[#allocation4 + $0x10] sm:$0xff] %vm696, %v3828
        %3847 = vst.msk [vmem:[#allocation4 + $0x18] sm:$0xff] %vm696, %v3829
        %3848 = vst.msk [vmem:[#allocation4 + $0x20] sm:$0xff] %vm696, %v3830
        %3849 = vst.msk [vmem:[#allocation4 + $0x28] sm:$0xff] %vm696, %v3831
        %3850 = vst.msk [vmem:[#allocation4 + $0x30] sm:$0xff] %vm696, %v3832
        %3851 = vst.msk [vmem:[#allocation4 + $0x38] sm:$0xff] %vm696, %v3833
        %3852 = vst.msk [vmem:[#allocation4 + $0x40] sm:$0xff] %vm696, %v3834
        %3853 = vst.msk [vmem:[#allocation4 + $0x48] sm:$0xff] %vm696, %v3835
        %3854 = vst.msk [vmem:[#allocation4 + $0x50] sm:$0xff] %vm696, %v3836
        %3855 = vst.msk [vmem:[#allocation4 + $0x58] sm:$0xff] %vm696, %v3837
        %3856 = vst.msk [vmem:[#allocation4 + $0x60] sm:$0xff] %vm696, %v3838
        %3857 = vst.msk [vmem:[#allocation4 + $0x68] sm:$0xff] %vm696, %v3839
        %3858 = vst.msk [vmem:[#allocation4 + $0x70] sm:$0xff] %vm696, %v3840
        %3859 = vst.msk [vmem:[#allocation4 + $0x78] sm:$0xff] %vm696, %v3841
        %3860 = vst.msk [vmem:[#allocation4 + $0x80] sm:$0xff] %vm696, %v3842
        %3861 = vst.msk [vmem:[#allocation4 + $0x88] sm:$0xff] %vm696, %v3843
        %v3862 = vld [vmem:[#allocation3 + $0x3] sm:$0xff]
        %v3863 = vld [vmem:[#allocation3 + $0xb] sm:$0xff]
        %v3864 = vld [vmem:[#allocation3 + $0x13] sm:$0xff]
        %v3865 = vld [vmem:[#allocation3 + $0x1b] sm:$0xff]
        %v3866 = vld [vmem:[#allocation3 + $0x23] sm:$0xff]
        %v3867 = vld [vmem:[#allocation3 + $0x2b] sm:$0xff]
        %v3868 = vld [vmem:[#allocation3 + $0x33] sm:$0xff]
        %v3869 = vld [vmem:[#allocation3 + $0x3b] sm:$0xff]
        %v3870 = vld [vmem:[#allocation3 + $0x43] sm:$0xff]
        %v3871 = vld [vmem:[#allocation3 + $0x4b] sm:$0xff]
        %v3872 = vld [vmem:[#allocation3 + $0x53] sm:$0xff]
        %v3873 = vld [vmem:[#allocation3 + $0x5b] sm:$0xff]
        %v3874 = vld [vmem:[#allocation3 + $0x63] sm:$0xff]
        %v3875 = vld [vmem:[#allocation3 + $0x6b] sm:$0xff]
        %v3876 = vld [vmem:[#allocation3 + $0x73] sm:$0xff]
        %v3877 = vld [vmem:[#allocation3 + $0x7b] sm:$0xff]
        %v3878 = vld [vmem:[#allocation3 + $0x83] sm:$0xff]
        %v3879 = vld [vmem:[#allocation3 + $0x8b] sm:$0xff]
        %v3880 = vld [vmem:[#allocation2 + $0x3] sm:$0x1]
        %v3881 = vperm.slane %v3880, 0
        %v3882 = vmul.f32 %v3862, %v3881
        %v3883 = vmul.f32 %v3863, %v3881
        %v3884 = vmul.f32 %v3864, %v3881
        %v3885 = vmul.f32 %v3865, %v3881
        %v3886 = vmul.f32 %v3866, %v3881
        %v3887 = vmul.f32 %v3867, %v3881
        %v3888 = vmul.f32 %v3868, %v3881
        %v3889 = vmul.f32 %v3869, %v3881
        %v3890 = vmul.f32 %v3870, %v3881
        %v3891 = vmul.f32 %v3871, %v3881
        %v3892 = vmul.f32 %v3872, %v3881
        %v3893 = vmul.f32 %v3873, %v3881
        %v3894 = vmul.f32 %v3874, %v3881
        %v3895 = vmul.f32 %v3875, %v3881
        %v3896 = vmul.f32 %v3876, %v3881
        %v3897 = vmul.f32 %v3877, %v3881
        %v3898 = vmul.f32 %v3878, %v3881
        %v3899 = vmul.f32 %v3879, %v3881
        %v3900 = vld [vmem:[#allocation4] sm:$0xff]
        %v3901 = vld [vmem:[#allocation4 + $0x8] sm:$0xff]
        %v3902 = vld [vmem:[#allocation4 + $0x10] sm:$0xff]
        %v3903 = vld [vmem:[#allocation4 + $0x18] sm:$0xff]
        %v3904 = vld [vmem:[#allocation4 + $0x20] sm:$0xff]
        %v3905 = vld [vmem:[#allocation4 + $0x28] sm:$0xff]
        %v3906 = vld [vmem:[#allocation4 + $0x30] sm:$0xff]
        %v3907 = vld [vmem:[#allocation4 + $0x38] sm:$0xff]
        %v3908 = vld [vmem:[#allocation4 + $0x40] sm:$0xff]
        %v3909 = vld [vmem:[#allocation4 + $0x48] sm:$0xff]
        %v3910 = vld [vmem:[#allocation4 + $0x50] sm:$0xff]
        %v3911 = vld [vmem:[#allocation4 + $0x58] sm:$0xff]
        %v3912 = vld [vmem:[#allocation4 + $0x60] sm:$0xff]
        %v3913 = vld [vmem:[#allocation4 + $0x68] sm:$0xff]
        %v3914 = vld [vmem:[#allocation4 + $0x70] sm:$0xff]
        %v3915 = vld [vmem:[#allocation4 + $0x78] sm:$0xff]
        %v3916 = vld [vmem:[#allocation4 + $0x80] sm:$0xff]
        %v3917 = vld [vmem:[#allocation4 + $0x88] sm:$0xff]
        %v3918 = vadd.f32 %v3900, %v3882
        %v3919 = vadd.f32 %v3901, %v3883
        %v3920 = vadd.f32 %v3902, %v3884
        %v3921 = vadd.f32 %v3903, %v3885
        %v3922 = vadd.f32 %v3904, %v3886
        %v3923 = vadd.f32 %v3905, %v3887
        %v3924 = vadd.f32 %v3906, %v3888
        %v3925 = vadd.f32 %v3907, %v3889
        %v3926 = vadd.f32 %v3908, %v3890
        %v3927 = vadd.f32 %v3909, %v3891
        %v3928 = vadd.f32 %v3910, %v3892
        %v3929 = vadd.f32 %v3911, %v3893
        %v3930 = vadd.f32 %v3912, %v3894
        %v3931 = vadd.f32 %v3913, %v3895
        %v3932 = vadd.f32 %v3914, %v3896
        %v3933 = vadd.f32 %v3915, %v3897
        %v3934 = vadd.f32 %v3916, %v3898
        %v3935 = vadd.f32 %v3917, %v3899
        %3936 = vst.msk [vmem:[#allocation4] sm:$0xff] %vm696, %v3918
        %3937 = vst.msk [vmem:[#allocation4 + $0x8] sm:$0xff] %vm696, %v3919
        %3938 = vst.msk [vmem:[#allocation4 + $0x10] sm:$0xff] %vm696, %v3920
        %3939 = vst.msk [vmem:[#allocation4 + $0x18] sm:$0xff] %vm696, %v3921
        %3940 = vst.msk [vmem:[#allocation4 + $0x20] sm:$0xff] %vm696, %v3922
        %3941 = vst.msk [vmem:[#allocation4 + $0x28] sm:$0xff] %vm696, %v3923
        %3942 = vst.msk [vmem:[#allocation4 + $0x30] sm:$0xff] %vm696, %v3924
        %3943 = vst.msk [vmem:[#allocation4 + $0x38] sm:$0xff] %vm696, %v3925
        %3944 = vst.msk [vmem:[#allocation4 + $0x40] sm:$0xff] %vm696, %v3926
        %3945 = vst.msk [vmem:[#allocation4 + $0x48] sm:$0xff] %vm696, %v3927
        %3946 = vst.msk [vmem:[#allocation4 + $0x50] sm:$0xff] %vm696, %v3928
        %3947 = vst.msk [vmem:[#allocation4 + $0x58] sm:$0xff] %vm696, %v3929
        %3948 = vst.msk [vmem:[#allocation4 + $0x60] sm:$0xff] %vm696, %v3930
        %3949 = vst.msk [vmem:[#allocation4 + $0x68] sm:$0xff] %vm696, %v3931
        %3950 = vst.msk [vmem:[#allocation4 + $0x70] sm:$0xff] %vm696, %v3932
        %3951 = vst.msk [vmem:[#allocation4 + $0x78] sm:$0xff] %vm696, %v3933
        %3952 = vst.msk [vmem:[#allocation4 + $0x80] sm:$0xff] %vm696, %v3934
        %3953 = vst.msk [vmem:[#allocation4 + $0x88] sm:$0xff] %vm696, %v3935
        %v3954 = vld [vmem:[#allocation3 + $0x4] sm:$0xff]
        %v3955 = vld [vmem:[#allocation3 + $0xc] sm:$0xff]
        %v3956 = vld [vmem:[#allocation3 + $0x14] sm:$0xff]
        %v3957 = vld [vmem:[#allocation3 + $0x1c] sm:$0xff]
        %v3958 = vld [vmem:[#allocation3 + $0x24] sm:$0xff]
        %v3959 = vld [vmem:[#allocation3 + $0x2c] sm:$0xff]
        %v3960 = vld [vmem:[#allocation3 + $0x34] sm:$0xff]
        %v3961 = vld [vmem:[#allocation3 + $0x3c] sm:$0xff]
        %v3962 = vld [vmem:[#allocation3 + $0x44] sm:$0xff]
        %v3963 = vld [vmem:[#allocation3 + $0x4c] sm:$0xff]
        %v3964 = vld [vmem:[#allocation3 + $0x54] sm:$0xff]
        %v3965 = vld [vmem:[#allocation3 + $0x5c] sm:$0xff]
        %v3966 = vld [vmem:[#allocation3 + $0x64] sm:$0xff]
        %v3967 = vld [vmem:[#allocation3 + $0x6c] sm:$0xff]
        %v3968 = vld [vmem:[#allocation3 + $0x74] sm:$0xff]
        %v3969 = vld [vmem:[#allocation3 + $0x7c] sm:$0xff]
        %v3970 = vld [vmem:[#allocation3 + $0x84] sm:$0xff]
        %v3971 = vld [vmem:[#allocation3 + $0x8c] sm:$0xff]
        %v3972 = vld [vmem:[#allocation2 + $0x4] sm:$0x1]
        %v3973 = vperm.slane %v3972, 0
        %v3974 = vmul.f32 %v3954, %v3973
        %v3975 = vmul.f32 %v3955, %v3973
        %v3976 = vmul.f32 %v3956, %v3973
        %v3977 = vmul.f32 %v3957, %v3973
        %v3978 = vmul.f32 %v3958, %v3973
        %v3979 = vmul.f32 %v3959, %v3973
        %v3980 = vmul.f32 %v3960, %v3973
        %v3981 = vmul.f32 %v3961, %v3973
        %v3982 = vmul.f32 %v3962, %v3973
        %v3983 = vmul.f32 %v3963, %v3973
        %v3984 = vmul.f32 %v3964, %v3973
        %v3985 = vmul.f32 %v3965, %v3973
        %v3986 = vmul.f32 %v3966, %v3973
        %v3987 = vmul.f32 %v3967, %v3973
        %v3988 = vmul.f32 %v3968, %v3973
        %v3989 = vmul.f32 %v3969, %v3973
        %v3990 = vmul.f32 %v3970, %v3973
        %v3991 = vmul.f32 %v3971, %v3973
        %v3992 = vld [vmem:[#allocation4] sm:$0xff]
        %v3993 = vld [vmem:[#allocation4 + $0x8] sm:$0xff]
        %v3994 = vld [vmem:[#allocation4 + $0x10] sm:$0xff]
        %v3995 = vld [vmem:[#allocation4 + $0x18] sm:$0xff]
        %v3996 = vld [vmem:[#allocation4 + $0x20] sm:$0xff]
        %v3997 = vld [vmem:[#allocation4 + $0x28] sm:$0xff]
        %v3998 = vld [vmem:[#allocation4 + $0x30] sm:$0xff]
        %v3999 = vld [vmem:[#allocation4 + $0x38] sm:$0xff]
        %v4000 = vld [vmem:[#allocation4 + $0x40] sm:$0xff]
        %v4001 = vld [vmem:[#allocation4 + $0x48] sm:$0xff]
        %v4002 = vld [vmem:[#allocation4 + $0x50] sm:$0xff]
        %v4003 = vld [vmem:[#allocation4 + $0x58] sm:$0xff]
        %v4004 = vld [vmem:[#allocation4 + $0x60] sm:$0xff]
        %v4005 = vld [vmem:[#allocation4 + $0x68] sm:$0xff]
        %v4006 = vld [vmem:[#allocation4 + $0x70] sm:$0xff]
        %v4007 = vld [vmem:[#allocation4 + $0x78] sm:$0xff]
        %v4008 = vld [vmem:[#allocation4 + $0x80] sm:$0xff]
        %v4009 = vld [vmem:[#allocation4 + $0x88] sm:$0xff]
        %v4010 = vadd.f32 %v3992, %v3974
        %v4011 = vadd.f32 %v3993, %v3975
        %v4012 = vadd.f32 %v3994, %v3976
        %v4013 = vadd.f32 %v3995, %v3977
        %v4014 = vadd.f32 %v3996, %v3978
        %v4015 = vadd.f32 %v3997, %v3979
        %v4016 = vadd.f32 %v3998, %v3980
        %v4017 = vadd.f32 %v3999, %v3981
        %v4018 = vadd.f32 %v4000, %v3982
        %v4019 = vadd.f32 %v4001, %v3983
        %v4020 = vadd.f32 %v4002, %v3984
        %v4021 = vadd.f32 %v4003, %v3985
        %v4022 = vadd.f32 %v4004, %v3986
        %v4023 = vadd.f32 %v4005, %v3987
        %v4024 = vadd.f32 %v4006, %v3988
        %v4025 = vadd.f32 %v4007, %v3989
        %v4026 = vadd.f32 %v4008, %v3990
        %v4027 = vadd.f32 %v4009, %v3991
        %4028 = vst.msk [vmem:[#allocation4] sm:$0xff] %vm696, %v4010
        %4029 = vst.msk [vmem:[#allocation4 + $0x8] sm:$0xff] %vm696, %v4011
        %4030 = vst.msk [vmem:[#allocation4 + $0x10] sm:$0xff] %vm696, %v4012
        %4031 = vst.msk [vmem:[#allocation4 + $0x18] sm:$0xff] %vm696, %v4013
        %4032 = vst.msk [vmem:[#allocation4 + $0x20] sm:$0xff] %vm696, %v4014
        %4033 = vst.msk [vmem:[#allocation4 + $0x28] sm:$0xff] %vm696, %v4015
        %4034 = vst.msk [vmem:[#allocation4 + $0x30] sm:$0xff] %vm696, %v4016
        %4035 = vst.msk [vmem:[#allocation4 + $0x38] sm:$0xff] %vm696, %v4017
        %4036 = vst.msk [vmem:[#allocation4 + $0x40] sm:$0xff] %vm696, %v4018
        %4037 = vst.msk [vmem:[#allocation4 + $0x48] sm:$0xff] %vm696, %v4019
        %4038 = vst.msk [vmem:[#allocation4 + $0x50] sm:$0xff] %vm696, %v4020
        %4039 = vst.msk [vmem:[#allocation4 + $0x58] sm:$0xff] %vm696, %v4021
        %4040 = vst.msk [vmem:[#allocation4 + $0x60] sm:$0xff] %vm696, %v4022
        %4041 = vst.msk [vmem:[#allocation4 + $0x68] sm:$0xff] %vm696, %v4023
        %4042 = vst.msk [vmem:[#allocation4 + $0x70] sm:$0xff] %vm696, %v4024
        %4043 = vst.msk [vmem:[#allocation4 + $0x78] sm:$0xff] %vm696, %v4025
        %4044 = vst.msk [vmem:[#allocation4 + $0x80] sm:$0xff] %vm696, %v4026
        %4045 = vst.msk [vmem:[#allocation4 + $0x88] sm:$0xff] %vm696, %v4027
        %v4046 = vld [vmem:[#allocation3 + $0x5] sm:$0xff]
        %v4047 = vld [vmem:[#allocation3 + $0xd] sm:$0xff]
        %v4048 = vld [vmem:[#allocation3 + $0x15] sm:$0xff]
        %v4049 = vld [vmem:[#allocation3 + $0x1d] sm:$0xff]
        %v4050 = vld [vmem:[#allocation3 + $0x25] sm:$0xff]
        %v4051 = vld [vmem:[#allocation3 + $0x2d] sm:$0xff]
        %v4052 = vld [vmem:[#allocation3 + $0x35] sm:$0xff]
        %v4053 = vld [vmem:[#allocation3 + $0x3d] sm:$0xff]
        %v4054 = vld [vmem:[#allocation3 + $0x45] sm:$0xff]
        %v4055 = vld [vmem:[#allocation3 + $0x4d] sm:$0xff]
        %v4056 = vld [vmem:[#allocation3 + $0x55] sm:$0xff]
        %v4057 = vld [vmem:[#allocation3 + $0x5d] sm:$0xff]
        %v4058 = vld [vmem:[#allocation3 + $0x65] sm:$0xff]
        %v4059 = vld [vmem:[#allocation3 + $0x6d] sm:$0xff]
        %v4060 = vld [vmem:[#allocation3 + $0x75] sm:$0xff]
        %v4061 = vld [vmem:[#allocation3 + $0x7d] sm:$0xff]
        %v4062 = vld [vmem:[#allocation3 + $0x85] sm:$0xff]
        %v4063 = vld [vmem:[#allocation3 + $0x8d] sm:$0xff]
        %v4064 = vld [vmem:[#allocation2 + $0x5] sm:$0x1]
        %v4065 = vperm.slane %v4064, 0
        %v4066 = vmul.f32 %v4046, %v4065
        %v4067 = vmul.f32 %v4047, %v4065
        %v4068 = vmul.f32 %v4048, %v4065
        %v4069 = vmul.f32 %v4049, %v4065
        %v4070 = vmul.f32 %v4050, %v4065
        %v4071 = vmul.f32 %v4051, %v4065
        %v4072 = vmul.f32 %v4052, %v4065
        %v4073 = vmul.f32 %v4053, %v4065
        %v4074 = vmul.f32 %v4054, %v4065
        %v4075 = vmul.f32 %v4055, %v4065
        %v4076 = vmul.f32 %v4056, %v4065
        %v4077 = vmul.f32 %v4057, %v4065
        %v4078 = vmul.f32 %v4058, %v4065
        %v4079 = vmul.f32 %v4059, %v4065
        %v4080 = vmul.f32 %v4060, %v4065
        %v4081 = vmul.f32 %v4061, %v4065
        %v4082 = vmul.f32 %v4062, %v4065
        %v4083 = vmul.f32 %v4063, %v4065
        %v4084 = vld [vmem:[#allocation4] sm:$0xff]
        %v4085 = vld [vmem:[#allocation4 + $0x8] sm:$0xff]
        %v4086 = vld [vmem:[#allocation4 + $0x10] sm:$0xff]
        %v4087 = vld [vmem:[#allocation4 + $0x18] sm:$0xff]
        %v4088 = vld [vmem:[#allocation4 + $0x20] sm:$0xff]
        %v4089 = vld [vmem:[#allocation4 + $0x28] sm:$0xff]
        %v4090 = vld [vmem:[#allocation4 + $0x30] sm:$0xff]
        %v4091 = vld [vmem:[#allocation4 + $0x38] sm:$0xff]
        %v4092 = vld [vmem:[#allocation4 + $0x40] sm:$0xff]
        %v4093 = vld [vmem:[#allocation4 + $0x48] sm:$0xff]
        %v4094 = vld [vmem:[#allocation4 + $0x50] sm:$0xff]
        %v4095 = vld [vmem:[#allocation4 + $0x58] sm:$0xff]
        %v4096 = vld [vmem:[#allocation4 + $0x60] sm:$0xff]
        %v4097 = vld [vmem:[#allocation4 + $0x68] sm:$0xff]
        %v4098 = vld [vmem:[#allocation4 + $0x70] sm:$0xff]
        %v4099 = vld [vmem:[#allocation4 + $0x78] sm:$0xff]
        %v4100 = vld [vmem:[#allocation4 + $0x80] sm:$0xff]
        %v4101 = vld [vmem:[#allocation4 + $0x88] sm:$0xff]
        %v4102 = vadd.f32 %v4084, %v4066
        %v4103 = vadd.f32 %v4085, %v4067
        %v4104 = vadd.f32 %v4086, %v4068
        %v4105 = vadd.f32 %v4087, %v4069
        %v4106 = vadd.f32 %v4088, %v4070
        %v4107 = vadd.f32 %v4089, %v4071
        %v4108 = vadd.f32 %v4090, %v4072
        %v4109 = vadd.f32 %v4091, %v4073
        %v4110 = vadd.f32 %v4092, %v4074
        %v4111 = vadd.f32 %v4093, %v4075
        %v4112 = vadd.f32 %v4094, %v4076
        %v4113 = vadd.f32 %v4095, %v4077
        %v4114 = vadd.f32 %v4096, %v4078
        %v4115 = vadd.f32 %v4097, %v4079
        %v4116 = vadd.f32 %v4098, %v4080
        %v4117 = vadd.f32 %v4099, %v4081
        %v4118 = vadd.f32 %v4100, %v4082
        %v4119 = vadd.f32 %v4101, %v4083
        %4120 = vst.msk [vmem:[#allocation4] sm:$0xff] %vm696, %v4102
        %4121 = vst.msk [vmem:[#allocation4 + $0x8] sm:$0xff] %vm696, %v4103
        %4122 = vst.msk [vmem:[#allocation4 + $0x10] sm:$0xff] %vm696, %v4104
        %4123 = vst.msk [vmem:[#allocation4 + $0x18] sm:$0xff] %vm696, %v4105
        %4124 = vst.msk [vmem:[#allocation4 + $0x20] sm:$0xff] %vm696, %v4106
        %4125 = vst.msk [vmem:[#allocation4 + $0x28] sm:$0xff] %vm696, %v4107
        %4126 = vst.msk [vmem:[#allocation4 + $0x30] sm:$0xff] %vm696, %v4108
        %4127 = vst.msk [vmem:[#allocation4 + $0x38] sm:$0xff] %vm696, %v4109
        %4128 = vst.msk [vmem:[#allocation4 + $0x40] sm:$0xff] %vm696, %v4110
        %4129 = vst.msk [vmem:[#allocation4 + $0x48] sm:$0xff] %vm696, %v4111
        %4130 = vst.msk [vmem:[#allocation4 + $0x50] sm:$0xff] %vm696, %v4112
        %4131 = vst.msk [vmem:[#allocation4 + $0x58] sm:$0xff] %vm696, %v4113
        %4132 = vst.msk [vmem:[#allocation4 + $0x60] sm:$0xff] %vm696, %v4114
        %4133 = vst.msk [vmem:[#allocation4 + $0x68] sm:$0xff] %vm696, %v4115
        %4134 = vst.msk [vmem:[#allocation4 + $0x70] sm:$0xff] %vm696, %v4116
        %4135 = vst.msk [vmem:[#allocation4 + $0x78] sm:$0xff] %vm696, %v4117
        %4136 = vst.msk [vmem:[#allocation4 + $0x80] sm:$0xff] %vm696, %v4118
        %4137 = vst.msk [vmem:[#allocation4 + $0x88] sm:$0xff] %vm696, %v4119
        %v4138 = vld [vmem:[#allocation3 + $0x10] sm:$0xff]
        %v4139 = vld [vmem:[#allocation3 + $0x18] sm:$0xff]
        %v4140 = vld [vmem:[#allocation3 + $0x20] sm:$0xff]
        %v4141 = vld [vmem:[#allocation3 + $0x28] sm:$0xff]
        %v4142 = vld [vmem:[#allocation3 + $0x30] sm:$0xff]
        %v4143 = vld [vmem:[#allocation3 + $0x38] sm:$0xff]
        %v4144 = vld [vmem:[#allocation3 + $0x40] sm:$0xff]
        %v4145 = vld [vmem:[#allocation3 + $0x48] sm:$0xff]
        %v4146 = vld [vmem:[#allocation3 + $0x50] sm:$0xff]
        %v4147 = vld [vmem:[#allocation3 + $0x58] sm:$0xff]
        %v4148 = vld [vmem:[#allocation3 + $0x60] sm:$0xff]
        %v4149 = vld [vmem:[#allocation3 + $0x68] sm:$0xff]
        %v4150 = vld [vmem:[#allocation3 + $0x70] sm:$0xff]
        %v4151 = vld [vmem:[#allocation3 + $0x78] sm:$0xff]
        %v4152 = vld [vmem:[#allocation3 + $0x80] sm:$0xff]
        %v4153 = vld [vmem:[#allocation3 + $0x88] sm:$0xff]
        %v4154 = vld [vmem:[#allocation3 + $0x90] sm:$0xff]
        %v4155 = vld [vmem:[#allocation3 + $0x98] sm:$0xff]
        %v4156 = vld [vmem:[#allocation2 + $0x8] sm:$0x1]
        %v4157 = vperm.slane %v4156, 0
        %v4158 = vmul.f32 %v4138, %v4157
        %v4159 = vmul.f32 %v4139, %v4157
        %v4160 = vmul.f32 %v4140, %v4157
        %v4161 = vmul.f32 %v4141, %v4157
        %v4162 = vmul.f32 %v4142, %v4157
        %v4163 = vmul.f32 %v4143, %v4157
        %v4164 = vmul.f32 %v4144, %v4157
        %v4165 = vmul.f32 %v4145, %v4157
        %v4166 = vmul.f32 %v4146, %v4157
        %v4167 = vmul.f32 %v4147, %v4157
        %v4168 = vmul.f32 %v4148, %v4157
        %v4169 = vmul.f32 %v4149, %v4157
        %v4170 = vmul.f32 %v4150, %v4157
        %v4171 = vmul.f32 %v4151, %v4157
        %v4172 = vmul.f32 %v4152, %v4157
        %v4173 = vmul.f32 %v4153, %v4157
        %v4174 = vmul.f32 %v4154, %v4157
        %v4175 = vmul.f32 %v4155, %v4157
        %v4176 = vld [vmem:[#allocation4] sm:$0xff]
        %v4177 = vld [vmem:[#allocation4 + $0x8] sm:$0xff]
        %v4178 = vld [vmem:[#allocation4 + $0x10] sm:$0xff]
        %v4179 = vld [vmem:[#allocation4 + $0x18] sm:$0xff]
        %v4180 = vld [vmem:[#allocation4 + $0x20] sm:$0xff]
        %v4181 = vld [vmem:[#allocation4 + $0x28] sm:$0xff]
        %v4182 = vld [vmem:[#allocation4 + $0x30] sm:$0xff]
        %v4183 = vld [vmem:[#allocation4 + $0x38] sm:$0xff]
        %v4184 = vld [vmem:[#allocation4 + $0x40] sm:$0xff]
        %v4185 = vld [vmem:[#allocation4 + $0x48] sm:$0xff]
        %v4186 = vld [vmem:[#allocation4 + $0x50] sm:$0xff]
        %v4187 = vld [vmem:[#allocation4 + $0x58] sm:$0xff]
        %v4188 = vld [vmem:[#allocation4 + $0x60] sm:$0xff]
        %v4189 = vld [vmem:[#allocation4 + $0x68] sm:$0xff]
        %v4190 = vld [vmem:[#allocation4 + $0x70] sm:$0xff]
        %v4191 = vld [vmem:[#allocation4 + $0x78] sm:$0xff]
        %v4192 = vld [vmem:[#allocation4 + $0x80] sm:$0xff]
        %v4193 = vld [vmem:[#allocation4 + $0x88] sm:$0xff]
        %v4194 = vadd.f32 %v4176, %v4158
        %v4195 = vadd.f32 %v4177, %v4159
        %v4196 = vadd.f32 %v4178, %v4160
        %v4197 = vadd.f32 %v4179, %v4161
        %v4198 = vadd.f32 %v4180, %v4162
        %v4199 = vadd.f32 %v4181, %v4163
        %v4200 = vadd.f32 %v4182, %v4164
        %v4201 = vadd.f32 %v4183, %v4165
        %v4202 = vadd.f32 %v4184, %v4166
        %v4203 = vadd.f32 %v4185, %v4167
        %v4204 = vadd.f32 %v4186, %v4168
        %v4205 = vadd.f32 %v4187, %v4169
        %v4206 = vadd.f32 %v4188, %v4170
        %v4207 = vadd.f32 %v4189, %v4171
        %v4208 = vadd.f32 %v4190, %v4172
        %v4209 = vadd.f32 %v4191, %v4173
        %v4210 = vadd.f32 %v4192, %v4174
        %v4211 = vadd.f32 %v4193, %v4175
        %4212 = vst.msk [vmem:[#allocation4] sm:$0xff] %vm696, %v4194
        %4213 = vst.msk [vmem:[#allocation4 + $0x8] sm:$0xff] %vm696, %v4195
        %4214 = vst.msk [vmem:[#allocation4 + $0x10] sm:$0xff] %vm696, %v4196
        %4215 = vst.msk [vmem:[#allocation4 + $0x18] sm:$0xff] %vm696, %v4197
        %4216 = vst.msk [vmem:[#allocation4 + $0x20] sm:$0xff] %vm696, %v4198
        %4217 = vst.msk [vmem:[#allocation4 + $0x28] sm:$0xff] %vm696, %v4199
        %4218 = vst.msk [vmem:[#allocation4 + $0x30] sm:$0xff] %vm696, %v4200
        %4219 = vst.msk [vmem:[#allocation4 + $0x38] sm:$0xff] %vm696, %v4201
        %4220 = vst.msk [vmem:[#allocation4 + $0x40] sm:$0xff] %vm696, %v4202
        %4221 = vst.msk [vmem:[#allocation4 + $0x48] sm:$0xff] %vm696, %v4203
        %4222 = vst.msk [vmem:[#allocation4 + $0x50] sm:$0xff] %vm696, %v4204
        %4223 = vst.msk [vmem:[#allocation4 + $0x58] sm:$0xff] %vm696, %v4205
        %4224 = vst.msk [vmem:[#allocation4 + $0x60] sm:$0xff] %vm696, %v4206
        %4225 = vst.msk [vmem:[#allocation4 + $0x68] sm:$0xff] %vm696, %v4207
        %4226 = vst.msk [vmem:[#allocation4 + $0x70] sm:$0xff] %vm696, %v4208
        %4227 = vst.msk [vmem:[#allocation4 + $0x78] sm:$0xff] %vm696, %v4209
        %4228 = vst.msk [vmem:[#allocation4 + $0x80] sm:$0xff] %vm696, %v4210
        %4229 = vst.msk [vmem:[#allocation4 + $0x88] sm:$0xff] %vm696, %v4211
        %v4230 = vld [vmem:[#allocation3 + $0x11] sm:$0xff]
        %v4231 = vld [vmem:[#allocation3 + $0x19] sm:$0xff]
        %v4232 = vld [vmem:[#allocation3 + $0x21] sm:$0xff]
        %v4233 = vld [vmem:[#allocation3 + $0x29] sm:$0xff]
        %v4234 = vld [vmem:[#allocation3 + $0x31] sm:$0xff]
        %v4235 = vld [vmem:[#allocation3 + $0x39] sm:$0xff]
        %v4236 = vld [vmem:[#allocation3 + $0x41] sm:$0xff]
        %v4237 = vld [vmem:[#allocation3 + $0x49] sm:$0xff]
        %v4238 = vld [vmem:[#allocation3 + $0x51] sm:$0xff]
        %v4239 = vld [vmem:[#allocation3 + $0x59] sm:$0xff]
        %v4240 = vld [vmem:[#allocation3 + $0x61] sm:$0xff]
        %v4241 = vld [vmem:[#allocation3 + $0x69] sm:$0xff]
        %v4242 = vld [vmem:[#allocation3 + $0x71] sm:$0xff]
        %v4243 = vld [vmem:[#allocation3 + $0x79] sm:$0xff]
        %v4244 = vld [vmem:[#allocation3 + $0x81] sm:$0xff]
        %v4245 = vld [vmem:[#allocation3 + $0x89] sm:$0xff]
        %v4246 = vld [vmem:[#allocation3 + $0x91] sm:$0xff]
        %v4247 = vld [vmem:[#allocation3 + $0x99] sm:$0xff]
        %v4248 = vld [vmem:[#allocation2 + $0x9] sm:$0x1]
        %v4249 = vperm.slane %v4248, 0
        %v4250 = vmul.f32 %v4230, %v4249
        %v4251 = vmul.f32 %v4231, %v4249
        %v4252 = vmul.f32 %v4232, %v4249
        %v4253 = vmul.f32 %v4233, %v4249
        %v4254 = vmul.f32 %v4234, %v4249
        %v4255 = vmul.f32 %v4235, %v4249
        %v4256 = vmul.f32 %v4236, %v4249
        %v4257 = vmul.f32 %v4237, %v4249
        %v4258 = vmul.f32 %v4238, %v4249
        %v4259 = vmul.f32 %v4239, %v4249
        %v4260 = vmul.f32 %v4240, %v4249
        %v4261 = vmul.f32 %v4241, %v4249
        %v4262 = vmul.f32 %v4242, %v4249
        %v4263 = vmul.f32 %v4243, %v4249
        %v4264 = vmul.f32 %v4244, %v4249
        %v4265 = vmul.f32 %v4245, %v4249
        %v4266 = vmul.f32 %v4246, %v4249
        %v4267 = vmul.f32 %v4247, %v4249
        %v4268 = vld [vmem:[#allocation4] sm:$0xff]
        %v4269 = vld [vmem:[#allocation4 + $0x8] sm:$0xff]
        %v4270 = vld [vmem:[#allocation4 + $0x10] sm:$0xff]
        %v4271 = vld [vmem:[#allocation4 + $0x18] sm:$0xff]
        %v4272 = vld [vmem:[#allocation4 + $0x20] sm:$0xff]
        %v4273 = vld [vmem:[#allocation4 + $0x28] sm:$0xff]
        %v4274 = vld [vmem:[#allocation4 + $0x30] sm:$0xff]
        %v4275 = vld [vmem:[#allocation4 + $0x38] sm:$0xff]
        %v4276 = vld [vmem:[#allocation4 + $0x40] sm:$0xff]
        %v4277 = vld [vmem:[#allocation4 + $0x48] sm:$0xff]
        %v4278 = vld [vmem:[#allocation4 + $0x50] sm:$0xff]
        %v4279 = vld [vmem:[#allocation4 + $0x58] sm:$0xff]
        %v4280 = vld [vmem:[#allocation4 + $0x60] sm:$0xff]
        %v4281 = vld [vmem:[#allocation4 + $0x68] sm:$0xff]
        %v4282 = vld [vmem:[#allocation4 + $0x70] sm:$0xff]
        %v4283 = vld [vmem:[#allocation4 + $0x78] sm:$0xff]
        %v4284 = vld [vmem:[#allocation4 + $0x80] sm:$0xff]
        %v4285 = vld [vmem:[#allocation4 + $0x88] sm:$0xff]
        %v4286 = vadd.f32 %v4268, %v4250
        %v4287 = vadd.f32 %v4269, %v4251
        %v4288 = vadd.f32 %v4270, %v4252
        %v4289 = vadd.f32 %v4271, %v4253
        %v4290 = vadd.f32 %v4272, %v4254
        %v4291 = vadd.f32 %v4273, %v4255
        %v4292 = vadd.f32 %v4274, %v4256
        %v4293 = vadd.f32 %v4275, %v4257
        %v4294 = vadd.f32 %v4276, %v4258
        %v4295 = vadd.f32 %v4277, %v4259
        %v4296 = vadd.f32 %v4278, %v4260
        %v4297 = vadd.f32 %v4279, %v4261
        %v4298 = vadd.f32 %v4280, %v4262
        %v4299 = vadd.f32 %v4281, %v4263
        %v4300 = vadd.f32 %v4282, %v4264
        %v4301 = vadd.f32 %v4283, %v4265
        %v4302 = vadd.f32 %v4284, %v4266
        %v4303 = vadd.f32 %v4285, %v4267
        %4304 = vst.msk [vmem:[#allocation4] sm:$0xff] %vm696, %v4286
        %4305 = vst.msk [vmem:[#allocation4 + $0x8] sm:$0xff] %vm696, %v4287
        %4306 = vst.msk [vmem:[#allocation4 + $0x10] sm:$0xff] %vm696, %v4288
        %4307 = vst.msk [vmem:[#allocation4 + $0x18] sm:$0xff] %vm696, %v4289
        %4308 = vst.msk [vmem:[#allocation4 + $0x20] sm:$0xff] %vm696, %v4290
        %4309 = vst.msk [vmem:[#allocation4 + $0x28] sm:$0xff] %vm696, %v4291
        %4310 = vst.msk [vmem:[#allocation4 + $0x30] sm:$0xff] %vm696, %v4292
        %4311 = vst.msk [vmem:[#allocation4 + $0x38] sm:$0xff] %vm696, %v4293
        %4312 = vst.msk [vmem:[#allocation4 + $0x40] sm:$0xff] %vm696, %v4294
        %4313 = vst.msk [vmem:[#allocation4 + $0x48] sm:$0xff] %vm696, %v4295
        %4314 = vst.msk [vmem:[#allocation4 + $0x50] sm:$0xff] %vm696, %v4296
        %4315 = vst.msk [vmem:[#allocation4 + $0x58] sm:$0xff] %vm696, %v4297
        %4316 = vst.msk [vmem:[#allocation4 + $0x60] sm:$0xff] %vm696, %v4298
        %4317 = vst.msk [vmem:[#allocation4 + $0x68] sm:$0xff] %vm696, %v4299
        %4318 = vst.msk [vmem:[#allocation4 + $0x70] sm:$0xff] %vm696, %v4300
        %4319 = vst.msk [vmem:[#allocation4 + $0x78] sm:$0xff] %vm696, %v4301
        %4320 = vst.msk [vmem:[#allocation4 + $0x80] sm:$0xff] %vm696, %v4302
        %4321 = vst.msk [vmem:[#allocation4 + $0x88] sm:$0xff] %vm696, %v4303
        %v4322 = vld [vmem:[#allocation3 + $0x12] sm:$0xff]
        %v4323 = vld [vmem:[#allocation3 + $0x1a] sm:$0xff]
        %v4324 = vld [vmem:[#allocation3 + $0x22] sm:$0xff]
        %v4325 = vld [vmem:[#allocation3 + $0x2a] sm:$0xff]
        %v4326 = vld [vmem:[#allocation3 + $0x32] sm:$0xff]
        %v4327 = vld [vmem:[#allocation3 + $0x3a] sm:$0xff]
        %v4328 = vld [vmem:[#allocation3 + $0x42] sm:$0xff]
        %v4329 = vld [vmem:[#allocation3 + $0x4a] sm:$0xff]
        %v4330 = vld [vmem:[#allocation3 + $0x52] sm:$0xff]
        %v4331 = vld [vmem:[#allocation3 + $0x5a] sm:$0xff]
        %v4332 = vld [vmem:[#allocation3 + $0x62] sm:$0xff]
        %v4333 = vld [vmem:[#allocation3 + $0x6a] sm:$0xff]
        %v4334 = vld [vmem:[#allocation3 + $0x72] sm:$0xff]
        %v4335 = vld [vmem:[#allocation3 + $0x7a] sm:$0xff]
        %v4336 = vld [vmem:[#allocation3 + $0x82] sm:$0xff]
        %v4337 = vld [vmem:[#allocation3 + $0x8a] sm:$0xff]
        %v4338 = vld [vmem:[#allocation3 + $0x92] sm:$0xff]
        %v4339 = vld [vmem:[#allocation3 + $0x9a] sm:$0xff]
        %v4340 = vld [vmem:[#allocation2 + $0xa] sm:$0x1]
        %v4341 = vperm.slane %v4340, 0
        %v4342 = vmul.f32 %v4322, %v4341
        %v4343 = vmul.f32 %v4323, %v4341
        %v4344 = vmul.f32 %v4324, %v4341
        %v4345 = vmul.f32 %v4325, %v4341
        %v4346 = vmul.f32 %v4326, %v4341
        %v4347 = vmul.f32 %v4327, %v4341
        %v4348 = vmul.f32 %v4328, %v4341
        %v4349 = vmul.f32 %v4329, %v4341
        %v4350 = vmul.f32 %v4330, %v4341
        %v4351 = vmul.f32 %v4331, %v4341
        %v4352 = vmul.f32 %v4332, %v4341
        %v4353 = vmul.f32 %v4333, %v4341
        %v4354 = vmul.f32 %v4334, %v4341
        %v4355 = vmul.f32 %v4335, %v4341
        %v4356 = vmul.f32 %v4336, %v4341
        %v4357 = vmul.f32 %v4337, %v4341
        %v4358 = vmul.f32 %v4338, %v4341
        %v4359 = vmul.f32 %v4339, %v4341
        %v4360 = vld [vmem:[#allocation4] sm:$0xff]
        %v4361 = vld [vmem:[#allocation4 + $0x8] sm:$0xff]
        %v4362 = vld [vmem:[#allocation4 + $0x10] sm:$0xff]
        %v4363 = vld [vmem:[#allocation4 + $0x18] sm:$0xff]
        %v4364 = vld [vmem:[#allocation4 + $0x20] sm:$0xff]
        %v4365 = vld [vmem:[#allocation4 + $0x28] sm:$0xff]
        %v4366 = vld [vmem:[#allocation4 + $0x30] sm:$0xff]
        %v4367 = vld [vmem:[#allocation4 + $0x38] sm:$0xff]
        %v4368 = vld [vmem:[#allocation4 + $0x40] sm:$0xff]
        %v4369 = vld [vmem:[#allocation4 + $0x48] sm:$0xff]
        %v4370 = vld [vmem:[#allocation4 + $0x50] sm:$0xff]
        %v4371 = vld [vmem:[#allocation4 + $0x58] sm:$0xff]
        %v4372 = vld [vmem:[#allocation4 + $0x60] sm:$0xff]
        %v4373 = vld [vmem:[#allocation4 + $0x68] sm:$0xff]
        %v4374 = vld [vmem:[#allocation4 + $0x70] sm:$0xff]
        %v4375 = vld [vmem:[#allocation4 + $0x78] sm:$0xff]
        %v4376 = vld [vmem:[#allocation4 + $0x80] sm:$0xff]
        %v4377 = vld [vmem:[#allocation4 + $0x88] sm:$0xff]
        %v4378 = vadd.f32 %v4360, %v4342
        %v4379 = vadd.f32 %v4361, %v4343
        %v4380 = vadd.f32 %v4362, %v4344
        %v4381 = vadd.f32 %v4363, %v4345
        %v4382 = vadd.f32 %v4364, %v4346
        %v4383 = vadd.f32 %v4365, %v4347
        %v4384 = vadd.f32 %v4366, %v4348
        %v4385 = vadd.f32 %v4367, %v4349
        %v4386 = vadd.f32 %v4368, %v4350
        %v4387 = vadd.f32 %v4369, %v4351
        %v4388 = vadd.f32 %v4370, %v4352
        %v4389 = vadd.f32 %v4371, %v4353
        %v4390 = vadd.f32 %v4372, %v4354
        %v4391 = vadd.f32 %v4373, %v4355
        %v4392 = vadd.f32 %v4374, %v4356
        %v4393 = vadd.f32 %v4375, %v4357
        %v4394 = vadd.f32 %v4376, %v4358
        %v4395 = vadd.f32 %v4377, %v4359
        %4396 = vst.msk [vmem:[#allocation4] sm:$0xff] %vm696, %v4378
        %4397 = vst.msk [vmem:[#allocation4 + $0x8] sm:$0xff] %vm696, %v4379
        %4398 = vst.msk [vmem:[#allocation4 + $0x10] sm:$0xff] %vm696, %v4380
        %4399 = vst.msk [vmem:[#allocation4 + $0x18] sm:$0xff] %vm696, %v4381
        %4400 = vst.msk [vmem:[#allocation4 + $0x20] sm:$0xff] %vm696, %v4382
        %4401 = vst.msk [vmem:[#allocation4 + $0x28] sm:$0xff] %vm696, %v4383
        %4402 = vst.msk [vmem:[#allocation4 + $0x30] sm:$0xff] %vm696, %v4384
        %4403 = vst.msk [vmem:[#allocation4 + $0x38] sm:$0xff] %vm696, %v4385
        %4404 = vst.msk [vmem:[#allocation4 + $0x40] sm:$0xff] %vm696, %v4386
        %4405 = vst.msk [vmem:[#allocation4 + $0x48] sm:$0xff] %vm696, %v4387
        %4406 = vst.msk [vmem:[#allocation4 + $0x50] sm:$0xff] %vm696, %v4388
        %4407 = vst.msk [vmem:[#allocation4 + $0x58] sm:$0xff] %vm696, %v4389
        %4408 = vst.msk [vmem:[#allocation4 + $0x60] sm:$0xff] %vm696, %v4390
        %4409 = vst.msk [vmem:[#allocation4 + $0x68] sm:$0xff] %vm696, %v4391
        %4410 = vst.msk [vmem:[#allocation4 + $0x70] sm:$0xff] %vm696, %v4392
        %4411 = vst.msk [vmem:[#allocation4 + $0x78] sm:$0xff] %vm696, %v4393
        %4412 = vst.msk [vmem:[#allocation4 + $0x80] sm:$0xff] %vm696, %v4394
        %4413 = vst.msk [vmem:[#allocation4 + $0x88] sm:$0xff] %vm696, %v4395
        %v4414 = vld [vmem:[#allocation3 + $0x13] sm:$0xff]
        %v4415 = vld [vmem:[#allocation3 + $0x1b] sm:$0xff]
        %v4416 = vld [vmem:[#allocation3 + $0x23] sm:$0xff]
        %v4417 = vld [vmem:[#allocation3 + $0x2b] sm:$0xff]
        %v4418 = vld [vmem:[#allocation3 + $0x33] sm:$0xff]
        %v4419 = vld [vmem:[#allocation3 + $0x3b] sm:$0xff]
        %v4420 = vld [vmem:[#allocation3 + $0x43] sm:$0xff]
        %v4421 = vld [vmem:[#allocation3 + $0x4b] sm:$0xff]
        %v4422 = vld [vmem:[#allocation3 + $0x53] sm:$0xff]
        %v4423 = vld [vmem:[#allocation3 + $0x5b] sm:$0xff]
        %v4424 = vld [vmem:[#allocation3 + $0x63] sm:$0xff]
        %v4425 = vld [vmem:[#allocation3 + $0x6b] sm:$0xff]
        %v4426 = vld [vmem:[#allocation3 + $0x73] sm:$0xff]
        %v4427 = vld [vmem:[#allocation3 + $0x7b] sm:$0xff]
        %v4428 = vld [vmem:[#allocation3 + $0x83] sm:$0xff]
        %v4429 = vld [vmem:[#allocation3 + $0x8b] sm:$0xff]
        %v4430 = vld [vmem:[#allocation3 + $0x93] sm:$0xff]
        %v4431 = vld [vmem:[#allocation3 + $0x9b] sm:$0xff]
        %v4432 = vld [vmem:[#allocation2 + $0xb] sm:$0x1]
        %v4433 = vperm.slane %v4432, 0
        %v4434 = vmul.f32 %v4414, %v4433
        %v4435 = vmul.f32 %v4415, %v4433
        %v4436 = vmul.f32 %v4416, %v4433
        %v4437 = vmul.f32 %v4417, %v4433
        %v4438 = vmul.f32 %v4418, %v4433
        %v4439 = vmul.f32 %v4419, %v4433
        %v4440 = vmul.f32 %v4420, %v4433
        %v4441 = vmul.f32 %v4421, %v4433
        %v4442 = vmul.f32 %v4422, %v4433
        %v4443 = vmul.f32 %v4423, %v4433
        %v4444 = vmul.f32 %v4424, %v4433
        %v4445 = vmul.f32 %v4425, %v4433
        %v4446 = vmul.f32 %v4426, %v4433
        %v4447 = vmul.f32 %v4427, %v4433
        %v4448 = vmul.f32 %v4428, %v4433
        %v4449 = vmul.f32 %v4429, %v4433
        %v4450 = vmul.f32 %v4430, %v4433
        %v4451 = vmul.f32 %v4431, %v4433
        %v4452 = vld [vmem:[#allocation4] sm:$0xff]
        %v4453 = vld [vmem:[#allocation4 + $0x8] sm:$0xff]
        %v4454 = vld [vmem:[#allocation4 + $0x10] sm:$0xff]
        %v4455 = vld [vmem:[#allocation4 + $0x18] sm:$0xff]
        %v4456 = vld [vmem:[#allocation4 + $0x20] sm:$0xff]
        %v4457 = vld [vmem:[#allocation4 + $0x28] sm:$0xff]
        %v4458 = vld [vmem:[#allocation4 + $0x30] sm:$0xff]
        %v4459 = vld [vmem:[#allocation4 + $0x38] sm:$0xff]
        %v4460 = vld [vmem:[#allocation4 + $0x40] sm:$0xff]
        %v4461 = vld [vmem:[#allocation4 + $0x48] sm:$0xff]
        %v4462 = vld [vmem:[#allocation4 + $0x50] sm:$0xff]
        %v4463 = vld [vmem:[#allocation4 + $0x58] sm:$0xff]
        %v4464 = vld [vmem:[#allocation4 + $0x60] sm:$0xff]
        %v4465 = vld [vmem:[#allocation4 + $0x68] sm:$0xff]
        %v4466 = vld [vmem:[#allocation4 + $0x70] sm:$0xff]
        %v4467 = vld [vmem:[#allocation4 + $0x78] sm:$0xff]
        %v4468 = vld [vmem:[#allocation4 + $0x80] sm:$0xff]
        %v4469 = vld [vmem:[#allocation4 + $0x88] sm:$0xff]
        %v4470 = vadd.f32 %v4452, %v4434
        %v4471 = vadd.f32 %v4453, %v4435
        %v4472 = vadd.f32 %v4454, %v4436
        %v4473 = vadd.f32 %v4455, %v4437
        %v4474 = vadd.f32 %v4456, %v4438
        %v4475 = vadd.f32 %v4457, %v4439
        %v4476 = vadd.f32 %v4458, %v4440
        %v4477 = vadd.f32 %v4459, %v4441
        %v4478 = vadd.f32 %v4460, %v4442
        %v4479 = vadd.f32 %v4461, %v4443
        %v4480 = vadd.f32 %v4462, %v4444
        %v4481 = vadd.f32 %v4463, %v4445
        %v4482 = vadd.f32 %v4464, %v4446
        %v4483 = vadd.f32 %v4465, %v4447
        %v4484 = vadd.f32 %v4466, %v4448
        %v4485 = vadd.f32 %v4467, %v4449
        %v4486 = vadd.f32 %v4468, %v4450
        %v4487 = vadd.f32 %v4469, %v4451
        %4488 = vst.msk [vmem:[#allocation4] sm:$0xff] %vm696, %v4470
        %4489 = vst.msk [vmem:[#allocation4 + $0x8] sm:$0xff] %vm696, %v4471
        %4490 = vst.msk [vmem:[#allocation4 + $0x10] sm:$0xff] %vm696, %v4472
        %4491 = vst.msk [vmem:[#allocation4 + $0x18] sm:$0xff] %vm696, %v4473
        %4492 = vst.msk [vmem:[#allocation4 + $0x20] sm:$0xff] %vm696, %v4474
        %4493 = vst.msk [vmem:[#allocation4 + $0x28] sm:$0xff] %vm696, %v4475
        %4494 = vst.msk [vmem:[#allocation4 + $0x30] sm:$0xff] %vm696, %v4476
        %4495 = vst.msk [vmem:[#allocation4 + $0x38] sm:$0xff] %vm696, %v4477
        %4496 = vst.msk [vmem:[#allocation4 + $0x40] sm:$0xff] %vm696, %v4478
        %4497 = vst.msk [vmem:[#allocation4 + $0x48] sm:$0xff] %vm696, %v4479
        %4498 = vst.msk [vmem:[#allocation4 + $0x50] sm:$0xff] %vm696, %v4480
        %4499 = vst.msk [vmem:[#allocation4 + $0x58] sm:$0xff] %vm696, %v4481
        %4500 = vst.msk [vmem:[#allocation4 + $0x60] sm:$0xff] %vm696, %v4482
        %4501 = vst.msk [vmem:[#allocation4 + $0x68] sm:$0xff] %vm696, %v4483
        %4502 = vst.msk [vmem:[#allocation4 + $0x70] sm:$0xff] %vm696, %v4484
        %4503 = vst.msk [vmem:[#allocation4 + $0x78] sm:$0xff] %vm696, %v4485
        %4504 = vst.msk [vmem:[#allocation4 + $0x80] sm:$0xff] %vm696, %v4486
        %4505 = vst.msk [vmem:[#allocation4 + $0x88] sm:$0xff] %vm696, %v4487
        %v4506 = vld [vmem:[#allocation3 + $0x14] sm:$0xff]
        %v4507 = vld [vmem:[#allocation3 + $0x1c] sm:$0xff]
        %v4508 = vld [vmem:[#allocation3 + $0x24] sm:$0xff]
        %v4509 = vld [vmem:[#allocation3 + $0x2c] sm:$0xff]
        %v4510 = vld [vmem:[#allocation3 + $0x34] sm:$0xff]
        %v4511 = vld [vmem:[#allocation3 + $0x3c] sm:$0xff]
        %v4512 = vld [vmem:[#allocation3 + $0x44] sm:$0xff]
        %v4513 = vld [vmem:[#allocation3 + $0x4c] sm:$0xff]
        %v4514 = vld [vmem:[#allocation3 + $0x54] sm:$0xff]
        %v4515 = vld [vmem:[#allocation3 + $0x5c] sm:$0xff]
        %v4516 = vld [vmem:[#allocation3 + $0x64] sm:$0xff]
        %v4517 = vld [vmem:[#allocation3 + $0x6c] sm:$0xff]
        %v4518 = vld [vmem:[#allocation3 + $0x74] sm:$0xff]
        %v4519 = vld [vmem:[#allocation3 + $0x7c] sm:$0xff]
        %v4520 = vld [vmem:[#allocation3 + $0x84] sm:$0xff]
        %v4521 = vld [vmem:[#allocation3 + $0x8c] sm:$0xff]
        %v4522 = vld [vmem:[#allocation3 + $0x94] sm:$0xff]
        %v4523 = vld [vmem:[#allocation3 + $0x9c] sm:$0xff]
        %v4524 = vld [vmem:[#allocation2 + $0xc] sm:$0x1]
        %v4525 = vperm.slane %v4524, 0
        %v4526 = vmul.f32 %v4506, %v4525
        %v4527 = vmul.f32 %v4507, %v4525
        %v4528 = vmul.f32 %v4508, %v4525
        %v4529 = vmul.f32 %v4509, %v4525
        %v4530 = vmul.f32 %v4510, %v4525
        %v4531 = vmul.f32 %v4511, %v4525
        %v4532 = vmul.f32 %v4512, %v4525
        %v4533 = vmul.f32 %v4513, %v4525
        %v4534 = vmul.f32 %v4514, %v4525
        %v4535 = vmul.f32 %v4515, %v4525
        %v4536 = vmul.f32 %v4516, %v4525
        %v4537 = vmul.f32 %v4517, %v4525
        %v4538 = vmul.f32 %v4518, %v4525
        %v4539 = vmul.f32 %v4519, %v4525
        %v4540 = vmul.f32 %v4520, %v4525
        %v4541 = vmul.f32 %v4521, %v4525
        %v4542 = vmul.f32 %v4522, %v4525
        %v4543 = vmul.f32 %v4523, %v4525
        %v4544 = vld [vmem:[#allocation4] sm:$0xff]
        %v4545 = vld [vmem:[#allocation4 + $0x8] sm:$0xff]
        %v4546 = vld [vmem:[#allocation4 + $0x10] sm:$0xff]
        %v4547 = vld [vmem:[#allocation4 + $0x18] sm:$0xff]
        %v4548 = vld [vmem:[#allocation4 + $0x20] sm:$0xff]
        %v4549 = vld [vmem:[#allocation4 + $0x28] sm:$0xff]
        %v4550 = vld [vmem:[#allocation4 + $0x30] sm:$0xff]
        %v4551 = vld [vmem:[#allocation4 + $0x38] sm:$0xff]
        %v4552 = vld [vmem:[#allocation4 + $0x40] sm:$0xff]
        %v4553 = vld [vmem:[#allocation4 + $0x48] sm:$0xff]
        %v4554 = vld [vmem:[#allocation4 + $0x50] sm:$0xff]
        %v4555 = vld [vmem:[#allocation4 + $0x58] sm:$0xff]
        %v4556 = vld [vmem:[#allocation4 + $0x60] sm:$0xff]
        %v4557 = vld [vmem:[#allocation4 + $0x68] sm:$0xff]
        %v4558 = vld [vmem:[#allocation4 + $0x70] sm:$0xff]
        %v4559 = vld [vmem:[#allocation4 + $0x78] sm:$0xff]
        %v4560 = vld [vmem:[#allocation4 + $0x80] sm:$0xff]
        %v4561 = vld [vmem:[#allocation4 + $0x88] sm:$0xff]
        %v4562 = vadd.f32 %v4544, %v4526
        %v4563 = vadd.f32 %v4545, %v4527
        %v4564 = vadd.f32 %v4546, %v4528
        %v4565 = vadd.f32 %v4547, %v4529
        %v4566 = vadd.f32 %v4548, %v4530
        %v4567 = vadd.f32 %v4549, %v4531
        %v4568 = vadd.f32 %v4550, %v4532
        %v4569 = vadd.f32 %v4551, %v4533
        %v4570 = vadd.f32 %v4552, %v4534
        %v4571 = vadd.f32 %v4553, %v4535
        %v4572 = vadd.f32 %v4554, %v4536
        %v4573 = vadd.f32 %v4555, %v4537
        %v4574 = vadd.f32 %v4556, %v4538
        %v4575 = vadd.f32 %v4557, %v4539
        %v4576 = vadd.f32 %v4558, %v4540
        %v4577 = vadd.f32 %v4559, %v4541
        %v4578 = vadd.f32 %v4560, %v4542
        %v4579 = vadd.f32 %v4561, %v4543
        %4580 = vst.msk [vmem:[#allocation4] sm:$0xff] %vm696, %v4562
        %4581 = vst.msk [vmem:[#allocation4 + $0x8] sm:$0xff] %vm696, %v4563
        %4582 = vst.msk [vmem:[#allocation4 + $0x10] sm:$0xff] %vm696, %v4564
        %4583 = vst.msk [vmem:[#allocation4 + $0x18] sm:$0xff] %vm696, %v4565
        %4584 = vst.msk [vmem:[#allocation4 + $0x20] sm:$0xff] %vm696, %v4566
        %4585 = vst.msk [vmem:[#allocation4 + $0x28] sm:$0xff] %vm696, %v4567
        %4586 = vst.msk [vmem:[#allocation4 + $0x30] sm:$0xff] %vm696, %v4568
        %4587 = vst.msk [vmem:[#allocation4 + $0x38] sm:$0xff] %vm696, %v4569
        %4588 = vst.msk [vmem:[#allocation4 + $0x40] sm:$0xff] %vm696, %v4570
        %4589 = vst.msk [vmem:[#allocation4 + $0x48] sm:$0xff] %vm696, %v4571
        %4590 = vst.msk [vmem:[#allocation4 + $0x50] sm:$0xff] %vm696, %v4572
        %4591 = vst.msk [vmem:[#allocation4 + $0x58] sm:$0xff] %vm696, %v4573
        %4592 = vst.msk [vmem:[#allocation4 + $0x60] sm:$0xff] %vm696, %v4574
        %4593 = vst.msk [vmem:[#allocation4 + $0x68] sm:$0xff] %vm696, %v4575
        %4594 = vst.msk [vmem:[#allocation4 + $0x70] sm:$0xff] %vm696, %v4576
        %4595 = vst.msk [vmem:[#allocation4 + $0x78] sm:$0xff] %vm696, %v4577
        %4596 = vst.msk [vmem:[#allocation4 + $0x80] sm:$0xff] %vm696, %v4578
        %4597 = vst.msk [vmem:[#allocation4 + $0x88] sm:$0xff] %vm696, %v4579
        %v4598 = vld [vmem:[#allocation3 + $0x15] sm:$0xff]
        %v4599 = vld [vmem:[#allocation3 + $0x1d] sm:$0xff]
        %v4600 = vld [vmem:[#allocation3 + $0x25] sm:$0xff]
        %v4601 = vld [vmem:[#allocation3 + $0x2d] sm:$0xff]
        %v4602 = vld [vmem:[#allocation3 + $0x35] sm:$0xff]
        %v4603 = vld [vmem:[#allocation3 + $0x3d] sm:$0xff]
        %v4604 = vld [vmem:[#allocation3 + $0x45] sm:$0xff]
        %v4605 = vld [vmem:[#allocation3 + $0x4d] sm:$0xff]
        %v4606 = vld [vmem:[#allocation3 + $0x55] sm:$0xff]
        %v4607 = vld [vmem:[#allocation3 + $0x5d] sm:$0xff]
        %v4608 = vld [vmem:[#allocation3 + $0x65] sm:$0xff]
        %v4609 = vld [vmem:[#allocation3 + $0x6d] sm:$0xff]
        %v4610 = vld [vmem:[#allocation3 + $0x75] sm:$0xff]
        %v4611 = vld [vmem:[#allocation3 + $0x7d] sm:$0xff]
        %v4612 = vld [vmem:[#allocation3 + $0x85] sm:$0xff]
        %v4613 = vld [vmem:[#allocation3 + $0x8d] sm:$0xff]
        %v4614 = vld [vmem:[#allocation3 + $0x95] sm:$0xff]
        %v4615 = vld [vmem:[#allocation3 + $0x9d] sm:$0xff]
        %v4616 = vld [vmem:[#allocation2 + $0xd] sm:$0x1]
        %v4617 = vperm.slane %v4616, 0
        %v4618 = vmul.f32 %v4598, %v4617
        %v4619 = vmul.f32 %v4599, %v4617
        %v4620 = vmul.f32 %v4600, %v4617
        %v4621 = vmul.f32 %v4601, %v4617
        %v4622 = vmul.f32 %v4602, %v4617
        %v4623 = vmul.f32 %v4603, %v4617
        %v4624 = vmul.f32 %v4604, %v4617
        %v4625 = vmul.f32 %v4605, %v4617
        %v4626 = vmul.f32 %v4606, %v4617
        %v4627 = vmul.f32 %v4607, %v4617
        %v4628 = vmul.f32 %v4608, %v4617
        %v4629 = vmul.f32 %v4609, %v4617
        %v4630 = vmul.f32 %v4610, %v4617
        %v4631 = vmul.f32 %v4611, %v4617
        %v4632 = vmul.f32 %v4612, %v4617
        %v4633 = vmul.f32 %v4613, %v4617
        %v4634 = vmul.f32 %v4614, %v4617
        %v4635 = vmul.f32 %v4615, %v4617
        %v4636 = vld [vmem:[#allocation4] sm:$0xff]
        %v4637 = vld [vmem:[#allocation4 + $0x8] sm:$0xff]
        %v4638 = vld [vmem:[#allocation4 + $0x10] sm:$0xff]
        %v4639 = vld [vmem:[#allocation4 + $0x18] sm:$0xff]
        %v4640 = vld [vmem:[#allocation4 + $0x20] sm:$0xff]
        %v4641 = vld [vmem:[#allocation4 + $0x28] sm:$0xff]
        %v4642 = vld [vmem:[#allocation4 + $0x30] sm:$0xff]
        %v4643 = vld [vmem:[#allocation4 + $0x38] sm:$0xff]
        %v4644 = vld [vmem:[#allocation4 + $0x40] sm:$0xff]
        %v4645 = vld [vmem:[#allocation4 + $0x48] sm:$0xff]
        %v4646 = vld [vmem:[#allocation4 + $0x50] sm:$0xff]
        %v4647 = vld [vmem:[#allocation4 + $0x58] sm:$0xff]
        %v4648 = vld [vmem:[#allocation4 + $0x60] sm:$0xff]
        %v4649 = vld [vmem:[#allocation4 + $0x68] sm:$0xff]
        %v4650 = vld [vmem:[#allocation4 + $0x70] sm:$0xff]
        %v4651 = vld [vmem:[#allocation4 + $0x78] sm:$0xff]
        %v4652 = vld [vmem:[#allocation4 + $0x80] sm:$0xff]
        %v4653 = vld [vmem:[#allocation4 + $0x88] sm:$0xff]
        %v4654 = vadd.f32 %v4636, %v4618
        %v4655 = vadd.f32 %v4637, %v4619
        %v4656 = vadd.f32 %v4638, %v4620
        %v4657 = vadd.f32 %v4639, %v4621
        %v4658 = vadd.f32 %v4640, %v4622
        %v4659 = vadd.f32 %v4641, %v4623
        %v4660 = vadd.f32 %v4642, %v4624
        %v4661 = vadd.f32 %v4643, %v4625
        %v4662 = vadd.f32 %v4644, %v4626
        %v4663 = vadd.f32 %v4645, %v4627
        %v4664 = vadd.f32 %v4646, %v4628
        %v4665 = vadd.f32 %v4647, %v4629
        %v4666 = vadd.f32 %v4648, %v4630
        %v4667 = vadd.f32 %v4649, %v4631
        %v4668 = vadd.f32 %v4650, %v4632
        %v4669 = vadd.f32 %v4651, %v4633
        %v4670 = vadd.f32 %v4652, %v4634
        %v4671 = vadd.f32 %v4653, %v4635
        %4672 = vst.msk [vmem:[#allocation4] sm:$0xff] %vm696, %v4654
        %4673 = vst.msk [vmem:[#allocation4 + $0x8] sm:$0xff] %vm696, %v4655
        %4674 = vst.msk [vmem:[#allocation4 + $0x10] sm:$0xff] %vm696, %v4656
        %4675 = vst.msk [vmem:[#allocation4 + $0x18] sm:$0xff] %vm696, %v4657
        %4676 = vst.msk [vmem:[#allocation4 + $0x20] sm:$0xff] %vm696, %v4658
        %4677 = vst.msk [vmem:[#allocation4 + $0x28] sm:$0xff] %vm696, %v4659
        %4678 = vst.msk [vmem:[#allocation4 + $0x30] sm:$0xff] %vm696, %v4660
        %4679 = vst.msk [vmem:[#allocation4 + $0x38] sm:$0xff] %vm696, %v4661
        %4680 = vst.msk [vmem:[#allocation4 + $0x40] sm:$0xff] %vm696, %v4662
        %4681 = vst.msk [vmem:[#allocation4 + $0x48] sm:$0xff] %vm696, %v4663
        %4682 = vst.msk [vmem:[#allocation4 + $0x50] sm:$0xff] %vm696, %v4664
        %4683 = vst.msk [vmem:[#allocation4 + $0x58] sm:$0xff] %vm696, %v4665
        %4684 = vst.msk [vmem:[#allocation4 + $0x60] sm:$0xff] %vm696, %v4666
        %4685 = vst.msk [vmem:[#allocation4 + $0x68] sm:$0xff] %vm696, %v4667
        %4686 = vst.msk [vmem:[#allocation4 + $0x70] sm:$0xff] %vm696, %v4668
        %4687 = vst.msk [vmem:[#allocation4 + $0x78] sm:$0xff] %vm696, %v4669
        %4688 = vst.msk [vmem:[#allocation4 + $0x80] sm:$0xff] %vm696, %v4670
        %4689 = vst.msk [vmem:[#allocation4 + $0x88] sm:$0xff] %vm696, %v4671
        %v4690 = vld [vmem:[#allocation3 + $0x20] sm:$0xff]
        %v4691 = vld [vmem:[#allocation3 + $0x28] sm:$0xff]
        %v4692 = vld [vmem:[#allocation3 + $0x30] sm:$0xff]
        %v4693 = vld [vmem:[#allocation3 + $0x38] sm:$0xff]
        %v4694 = vld [vmem:[#allocation3 + $0x40] sm:$0xff]
        %v4695 = vld [vmem:[#allocation3 + $0x48] sm:$0xff]
        %v4696 = vld [vmem:[#allocation3 + $0x50] sm:$0xff]
        %v4697 = vld [vmem:[#allocation3 + $0x58] sm:$0xff]
        %v4698 = vld [vmem:[#allocation3 + $0x60] sm:$0xff]
        %v4699 = vld [vmem:[#allocation3 + $0x68] sm:$0xff]
        %v4700 = vld [vmem:[#allocation3 + $0x70] sm:$0xff]
        %v4701 = vld [vmem:[#allocation3 + $0x78] sm:$0xff]
        %v4702 = vld [vmem:[#allocation3 + $0x80] sm:$0xff]
        %v4703 = vld [vmem:[#allocation3 + $0x88] sm:$0xff]
        %v4704 = vld [vmem:[#allocation3 + $0x90] sm:$0xff]
        %v4705 = vld [vmem:[#allocation3 + $0x98] sm:$0xff]
        %v4706 = vld [vmem:[#allocation3 + $0xa0] sm:$0xff]
        %v4707 = vld [vmem:[#allocation3 + $0xa8] sm:$0xff]
        %v4708 = vld [vmem:[#allocation2 + $0x10] sm:$0x1]
        %v4709 = vperm.slane %v4708, 0
        %v4710 = vmul.f32 %v4690, %v4709
        %v4711 = vmul.f32 %v4691, %v4709
        %v4712 = vmul.f32 %v4692, %v4709
        %v4713 = vmul.f32 %v4693, %v4709
        %v4714 = vmul.f32 %v4694, %v4709
        %v4715 = vmul.f32 %v4695, %v4709
        %v4716 = vmul.f32 %v4696, %v4709
        %v4717 = vmul.f32 %v4697, %v4709
        %v4718 = vmul.f32 %v4698, %v4709
        %v4719 = vmul.f32 %v4699, %v4709
        %v4720 = vmul.f32 %v4700, %v4709
        %v4721 = vmul.f32 %v4701, %v4709
        %v4722 = vmul.f32 %v4702, %v4709
        %v4723 = vmul.f32 %v4703, %v4709
        %v4724 = vmul.f32 %v4704, %v4709
        %v4725 = vmul.f32 %v4705, %v4709
        %v4726 = vmul.f32 %v4706, %v4709
        %v4727 = vmul.f32 %v4707, %v4709
        %v4728 = vld [vmem:[#allocation4] sm:$0xff]
        %v4729 = vld [vmem:[#allocation4 + $0x8] sm:$0xff]
        %v4730 = vld [vmem:[#allocation4 + $0x10] sm:$0xff]
        %v4731 = vld [vmem:[#allocation4 + $0x18] sm:$0xff]
        %v4732 = vld [vmem:[#allocation4 + $0x20] sm:$0xff]
        %v4733 = vld [vmem:[#allocation4 + $0x28] sm:$0xff]
        %v4734 = vld [vmem:[#allocation4 + $0x30] sm:$0xff]
        %v4735 = vld [vmem:[#allocation4 + $0x38] sm:$0xff]
        %v4736 = vld [vmem:[#allocation4 + $0x40] sm:$0xff]
        %v4737 = vld [vmem:[#allocation4 + $0x48] sm:$0xff]
        %v4738 = vld [vmem:[#allocation4 + $0x50] sm:$0xff]
        %v4739 = vld [vmem:[#allocation4 + $0x58] sm:$0xff]
        %v4740 = vld [vmem:[#allocation4 + $0x60] sm:$0xff]
        %v4741 = vld [vmem:[#allocation4 + $0x68] sm:$0xff]
        %v4742 = vld [vmem:[#allocation4 + $0x70] sm:$0xff]
        %v4743 = vld [vmem:[#allocation4 + $0x78] sm:$0xff]
        %v4744 = vld [vmem:[#allocation4 + $0x80] sm:$0xff]
        %v4745 = vld [vmem:[#allocation4 + $0x88] sm:$0xff]
        %v4746 = vadd.f32 %v4728, %v4710
        %v4747 = vadd.f32 %v4729, %v4711
        %v4748 = vadd.f32 %v4730, %v4712
        %v4749 = vadd.f32 %v4731, %v4713
        %v4750 = vadd.f32 %v4732, %v4714
        %v4751 = vadd.f32 %v4733, %v4715
        %v4752 = vadd.f32 %v4734, %v4716
        %v4753 = vadd.f32 %v4735, %v4717
        %v4754 = vadd.f32 %v4736, %v4718
        %v4755 = vadd.f32 %v4737, %v4719
        %v4756 = vadd.f32 %v4738, %v4720
        %v4757 = vadd.f32 %v4739, %v4721
        %v4758 = vadd.f32 %v4740, %v4722
        %v4759 = vadd.f32 %v4741, %v4723
        %v4760 = vadd.f32 %v4742, %v4724
        %v4761 = vadd.f32 %v4743, %v4725
        %v4762 = vadd.f32 %v4744, %v4726
        %v4763 = vadd.f32 %v4745, %v4727
        %4764 = vst.msk [vmem:[#allocation4] sm:$0xff] %vm696, %v4746
        %4765 = vst.msk [vmem:[#allocation4 + $0x8] sm:$0xff] %vm696, %v4747
        %4766 = vst.msk [vmem:[#allocation4 + $0x10] sm:$0xff] %vm696, %v4748
        %4767 = vst.msk [vmem:[#allocation4 + $0x18] sm:$0xff] %vm696, %v4749
        %4768 = vst.msk [vmem:[#allocation4 + $0x20] sm:$0xff] %vm696, %v4750
        %4769 = vst.msk [vmem:[#allocation4 + $0x28] sm:$0xff] %vm696, %v4751
        %4770 = vst.msk [vmem:[#allocation4 + $0x30] sm:$0xff] %vm696, %v4752
        %4771 = vst.msk [vmem:[#allocation4 + $0x38] sm:$0xff] %vm696, %v4753
        %4772 = vst.msk [vmem:[#allocation4 + $0x40] sm:$0xff] %vm696, %v4754
        %4773 = vst.msk [vmem:[#allocation4 + $0x48] sm:$0xff] %vm696, %v4755
        %4774 = vst.msk [vmem:[#allocation4 + $0x50] sm:$0xff] %vm696, %v4756
        %4775 = vst.msk [vmem:[#allocation4 + $0x58] sm:$0xff] %vm696, %v4757
        %4776 = vst.msk [vmem:[#allocation4 + $0x60] sm:$0xff] %vm696, %v4758
        %4777 = vst.msk [vmem:[#allocation4 + $0x68] sm:$0xff] %vm696, %v4759
        %4778 = vst.msk [vmem:[#allocation4 + $0x70] sm:$0xff] %vm696, %v4760
        %4779 = vst.msk [vmem:[#allocation4 + $0x78] sm:$0xff] %vm696, %v4761
        %4780 = vst.msk [vmem:[#allocation4 + $0x80] sm:$0xff] %vm696, %v4762
        %4781 = vst.msk [vmem:[#allocation4 + $0x88] sm:$0xff] %vm696, %v4763
        %v4782 = vld [vmem:[#allocation3 + $0x21] sm:$0xff]
        %v4783 = vld [vmem:[#allocation3 + $0x29] sm:$0xff]
        %v4784 = vld [vmem:[#allocation3 + $0x31] sm:$0xff]
        %v4785 = vld [vmem:[#allocation3 + $0x39] sm:$0xff]
        %v4786 = vld [vmem:[#allocation3 + $0x41] sm:$0xff]
        %v4787 = vld [vmem:[#allocation3 + $0x49] sm:$0xff]
        %v4788 = vld [vmem:[#allocation3 + $0x51] sm:$0xff]
        %v4789 = vld [vmem:[#allocation3 + $0x59] sm:$0xff]
        %v4790 = vld [vmem:[#allocation3 + $0x61] sm:$0xff]
        %v4791 = vld [vmem:[#allocation3 + $0x69] sm:$0xff]
        %v4792 = vld [vmem:[#allocation3 + $0x71] sm:$0xff]
        %v4793 = vld [vmem:[#allocation3 + $0x79] sm:$0xff]
        %v4794 = vld [vmem:[#allocation3 + $0x81] sm:$0xff]
        %v4795 = vld [vmem:[#allocation3 + $0x89] sm:$0xff]
        %v4796 = vld [vmem:[#allocation3 + $0x91] sm:$0xff]
        %v4797 = vld [vmem:[#allocation3 + $0x99] sm:$0xff]
        %v4798 = vld [vmem:[#allocation3 + $0xa1] sm:$0xff]
        %v4799 = vld [vmem:[#allocation3 + $0xa9] sm:$0xff]
        %v4800 = vld [vmem:[#allocation2 + $0x11] sm:$0x1]
        %v4801 = vperm.slane %v4800, 0
        %v4802 = vmul.f32 %v4782, %v4801
        %v4803 = vmul.f32 %v4783, %v4801
        %v4804 = vmul.f32 %v4784, %v4801
        %v4805 = vmul.f32 %v4785, %v4801
        %v4806 = vmul.f32 %v4786, %v4801
        %v4807 = vmul.f32 %v4787, %v4801
        %v4808 = vmul.f32 %v4788, %v4801
        %v4809 = vmul.f32 %v4789, %v4801
        %v4810 = vmul.f32 %v4790, %v4801
        %v4811 = vmul.f32 %v4791, %v4801
        %v4812 = vmul.f32 %v4792, %v4801
        %v4813 = vmul.f32 %v4793, %v4801
        %v4814 = vmul.f32 %v4794, %v4801
        %v4815 = vmul.f32 %v4795, %v4801
        %v4816 = vmul.f32 %v4796, %v4801
        %v4817 = vmul.f32 %v4797, %v4801
        %v4818 = vmul.f32 %v4798, %v4801
        %v4819 = vmul.f32 %v4799, %v4801
        %v4820 = vld [vmem:[#allocation4] sm:$0xff]
        %v4821 = vld [vmem:[#allocation4 + $0x8] sm:$0xff]
        %v4822 = vld [vmem:[#allocation4 + $0x10] sm:$0xff]
        %v4823 = vld [vmem:[#allocation4 + $0x18] sm:$0xff]
        %v4824 = vld [vmem:[#allocation4 + $0x20] sm:$0xff]
        %v4825 = vld [vmem:[#allocation4 + $0x28] sm:$0xff]
        %v4826 = vld [vmem:[#allocation4 + $0x30] sm:$0xff]
        %v4827 = vld [vmem:[#allocation4 + $0x38] sm:$0xff]
        %v4828 = vld [vmem:[#allocation4 + $0x40] sm:$0xff]
        %v4829 = vld [vmem:[#allocation4 + $0x48] sm:$0xff]
        %v4830 = vld [vmem:[#allocation4 + $0x50] sm:$0xff]
        %v4831 = vld [vmem:[#allocation4 + $0x58] sm:$0xff]
        %v4832 = vld [vmem:[#allocation4 + $0x60] sm:$0xff]
        %v4833 = vld [vmem:[#allocation4 + $0x68] sm:$0xff]
        %v4834 = vld [vmem:[#allocation4 + $0x70] sm:$0xff]
        %v4835 = vld [vmem:[#allocation4 + $0x78] sm:$0xff]
        %v4836 = vld [vmem:[#allocation4 + $0x80] sm:$0xff]
        %v4837 = vld [vmem:[#allocation4 + $0x88] sm:$0xff]
        %v4838 = vadd.f32 %v4820, %v4802
        %v4839 = vadd.f32 %v4821, %v4803
        %v4840 = vadd.f32 %v4822, %v4804
        %v4841 = vadd.f32 %v4823, %v4805
        %v4842 = vadd.f32 %v4824, %v4806
        %v4843 = vadd.f32 %v4825, %v4807
        %v4844 = vadd.f32 %v4826, %v4808
        %v4845 = vadd.f32 %v4827, %v4809
        %v4846 = vadd.f32 %v4828, %v4810
        %v4847 = vadd.f32 %v4829, %v4811
        %v4848 = vadd.f32 %v4830, %v4812
        %v4849 = vadd.f32 %v4831, %v4813
        %v4850 = vadd.f32 %v4832, %v4814
        %v4851 = vadd.f32 %v4833, %v4815
        %v4852 = vadd.f32 %v4834, %v4816
        %v4853 = vadd.f32 %v4835, %v4817
        %v4854 = vadd.f32 %v4836, %v4818
        %v4855 = vadd.f32 %v4837, %v4819
        %4856 = vst.msk [vmem:[#allocation4] sm:$0xff] %vm696, %v4838
        %4857 = vst.msk [vmem:[#allocation4 + $0x8] sm:$0xff] %vm696, %v4839
        %4858 = vst.msk [vmem:[#allocation4 + $0x10] sm:$0xff] %vm696, %v4840
        %4859 = vst.msk [vmem:[#allocation4 + $0x18] sm:$0xff] %vm696, %v4841
        %4860 = vst.msk [vmem:[#allocation4 + $0x20] sm:$0xff] %vm696, %v4842
        %4861 = vst.msk [vmem:[#allocation4 + $0x28] sm:$0xff] %vm696, %v4843
        %4862 = vst.msk [vmem:[#allocation4 + $0x30] sm:$0xff] %vm696, %v4844
        %4863 = vst.msk [vmem:[#allocation4 + $0x38] sm:$0xff] %vm696, %v4845
        %4864 = vst.msk [vmem:[#allocation4 + $0x40] sm:$0xff] %vm696, %v4846
        %4865 = vst.msk [vmem:[#allocation4 + $0x48] sm:$0xff] %vm696, %v4847
        %4866 = vst.msk [vmem:[#allocation4 + $0x50] sm:$0xff] %vm696, %v4848
        %4867 = vst.msk [vmem:[#allocation4 + $0x58] sm:$0xff] %vm696, %v4849
        %4868 = vst.msk [vmem:[#allocation4 + $0x60] sm:$0xff] %vm696, %v4850
        %4869 = vst.msk [vmem:[#allocation4 + $0x68] sm:$0xff] %vm696, %v4851
        %4870 = vst.msk [vmem:[#allocation4 + $0x70] sm:$0xff] %vm696, %v4852
        %4871 = vst.msk [vmem:[#allocation4 + $0x78] sm:$0xff] %vm696, %v4853
        %4872 = vst.msk [vmem:[#allocation4 + $0x80] sm:$0xff] %vm696, %v4854
        %4873 = vst.msk [vmem:[#allocation4 + $0x88] sm:$0xff] %vm696, %v4855
        %v4874 = vld [vmem:[#allocation3 + $0x22] sm:$0xff]
        %v4875 = vld [vmem:[#allocation3 + $0x2a] sm:$0xff]
        %v4876 = vld [vmem:[#allocation3 + $0x32] sm:$0xff]
        %v4877 = vld [vmem:[#allocation3 + $0x3a] sm:$0xff]
        %v4878 = vld [vmem:[#allocation3 + $0x42] sm:$0xff]
        %v4879 = vld [vmem:[#allocation3 + $0x4a] sm:$0xff]
        %v4880 = vld [vmem:[#allocation3 + $0x52] sm:$0xff]
        %v4881 = vld [vmem:[#allocation3 + $0x5a] sm:$0xff]
        %v4882 = vld [vmem:[#allocation3 + $0x62] sm:$0xff]
        %v4883 = vld [vmem:[#allocation3 + $0x6a] sm:$0xff]
        %v4884 = vld [vmem:[#allocation3 + $0x72] sm:$0xff]
        %v4885 = vld [vmem:[#allocation3 + $0x7a] sm:$0xff]
        %v4886 = vld [vmem:[#allocation3 + $0x82] sm:$0xff]
        %v4887 = vld [vmem:[#allocation3 + $0x8a] sm:$0xff]
        %v4888 = vld [vmem:[#allocation3 + $0x92] sm:$0xff]
        %v4889 = vld [vmem:[#allocation3 + $0x9a] sm:$0xff]
        %v4890 = vld [vmem:[#allocation3 + $0xa2] sm:$0xff]
        %v4891 = vld [vmem:[#allocation3 + $0xaa] sm:$0xff]
        %v4892 = vld [vmem:[#allocation2 + $0x12] sm:$0x1]
        %v4893 = vperm.slane %v4892, 0
        %v4894 = vmul.f32 %v4874, %v4893
        %v4895 = vmul.f32 %v4875, %v4893
        %v4896 = vmul.f32 %v4876, %v4893
        %v4897 = vmul.f32 %v4877, %v4893
        %v4898 = vmul.f32 %v4878, %v4893
        %v4899 = vmul.f32 %v4879, %v4893
        %v4900 = vmul.f32 %v4880, %v4893
        %v4901 = vmul.f32 %v4881, %v4893
        %v4902 = vmul.f32 %v4882, %v4893
        %v4903 = vmul.f32 %v4883, %v4893
        %v4904 = vmul.f32 %v4884, %v4893
        %v4905 = vmul.f32 %v4885, %v4893
        %v4906 = vmul.f32 %v4886, %v4893
        %v4907 = vmul.f32 %v4887, %v4893
        %v4908 = vmul.f32 %v4888, %v4893
        %v4909 = vmul.f32 %v4889, %v4893
        %v4910 = vmul.f32 %v4890, %v4893
        %v4911 = vmul.f32 %v4891, %v4893
        %v4912 = vld [vmem:[#allocation4] sm:$0xff]
        %v4913 = vld [vmem:[#allocation4 + $0x8] sm:$0xff]
        %v4914 = vld [vmem:[#allocation4 + $0x10] sm:$0xff]
        %v4915 = vld [vmem:[#allocation4 + $0x18] sm:$0xff]
        %v4916 = vld [vmem:[#allocation4 + $0x20] sm:$0xff]
        %v4917 = vld [vmem:[#allocation4 + $0x28] sm:$0xff]
        %v4918 = vld [vmem:[#allocation4 + $0x30] sm:$0xff]
        %v4919 = vld [vmem:[#allocation4 + $0x38] sm:$0xff]
        %v4920 = vld [vmem:[#allocation4 + $0x40] sm:$0xff]
        %v4921 = vld [vmem:[#allocation4 + $0x48] sm:$0xff]
        %v4922 = vld [vmem:[#allocation4 + $0x50] sm:$0xff]
        %v4923 = vld [vmem:[#allocation4 + $0x58] sm:$0xff]
        %v4924 = vld [vmem:[#allocation4 + $0x60] sm:$0xff]
        %v4925 = vld [vmem:[#allocation4 + $0x68] sm:$0xff]
        %v4926 = vld [vmem:[#allocation4 + $0x70] sm:$0xff]
        %v4927 = vld [vmem:[#allocation4 + $0x78] sm:$0xff]
        %v4928 = vld [vmem:[#allocation4 + $0x80] sm:$0xff]
        %v4929 = vld [vmem:[#allocation4 + $0x88] sm:$0xff]
        %v4930 = vadd.f32 %v4912, %v4894
        %v4931 = vadd.f32 %v4913, %v4895
        %v4932 = vadd.f32 %v4914, %v4896
        %v4933 = vadd.f32 %v4915, %v4897
        %v4934 = vadd.f32 %v4916, %v4898
        %v4935 = vadd.f32 %v4917, %v4899
        %v4936 = vadd.f32 %v4918, %v4900
        %v4937 = vadd.f32 %v4919, %v4901
        %v4938 = vadd.f32 %v4920, %v4902
        %v4939 = vadd.f32 %v4921, %v4903
        %v4940 = vadd.f32 %v4922, %v4904
        %v4941 = vadd.f32 %v4923, %v4905
        %v4942 = vadd.f32 %v4924, %v4906
        %v4943 = vadd.f32 %v4925, %v4907
        %v4944 = vadd.f32 %v4926, %v4908
        %v4945 = vadd.f32 %v4927, %v4909
        %v4946 = vadd.f32 %v4928, %v4910
        %v4947 = vadd.f32 %v4929, %v4911
        %4948 = vst.msk [vmem:[#allocation4] sm:$0xff] %vm696, %v4930
        %4949 = vst.msk [vmem:[#allocation4 + $0x8] sm:$0xff] %vm696, %v4931
        %4950 = vst.msk [vmem:[#allocation4 + $0x10] sm:$0xff] %vm696, %v4932
        %4951 = vst.msk [vmem:[#allocation4 + $0x18] sm:$0xff] %vm696, %v4933
        %4952 = vst.msk [vmem:[#allocation4 + $0x20] sm:$0xff] %vm696, %v4934
        %4953 = vst.msk [vmem:[#allocation4 + $0x28] sm:$0xff] %vm696, %v4935
        %4954 = vst.msk [vmem:[#allocation4 + $0x30] sm:$0xff] %vm696, %v4936
        %4955 = vst.msk [vmem:[#allocation4 + $0x38] sm:$0xff] %vm696, %v4937
        %4956 = vst.msk [vmem:[#allocation4 + $0x40] sm:$0xff] %vm696, %v4938
        %4957 = vst.msk [vmem:[#allocation4 + $0x48] sm:$0xff] %vm696, %v4939
        %4958 = vst.msk [vmem:[#allocation4 + $0x50] sm:$0xff] %vm696, %v4940
        %4959 = vst.msk [vmem:[#allocation4 + $0x58] sm:$0xff] %vm696, %v4941
        %4960 = vst.msk [vmem:[#allocation4 + $0x60] sm:$0xff] %vm696, %v4942
        %4961 = vst.msk [vmem:[#allocation4 + $0x68] sm:$0xff] %vm696, %v4943
        %4962 = vst.msk [vmem:[#allocation4 + $0x70] sm:$0xff] %vm696, %v4944
        %4963 = vst.msk [vmem:[#allocation4 + $0x78] sm:$0xff] %vm696, %v4945
        %4964 = vst.msk [vmem:[#allocation4 + $0x80] sm:$0xff] %vm696, %v4946
        %4965 = vst.msk [vmem:[#allocation4 + $0x88] sm:$0xff] %vm696, %v4947
        %v4966 = vld [vmem:[#allocation3 + $0x23] sm:$0xff]
        %v4967 = vld [vmem:[#allocation3 + $0x2b] sm:$0xff]
        %v4968 = vld [vmem:[#allocation3 + $0x33] sm:$0xff]
        %v4969 = vld [vmem:[#allocation3 + $0x3b] sm:$0xff]
        %v4970 = vld [vmem:[#allocation3 + $0x43] sm:$0xff]
        %v4971 = vld [vmem:[#allocation3 + $0x4b] sm:$0xff]
        %v4972 = vld [vmem:[#allocation3 + $0x53] sm:$0xff]
        %v4973 = vld [vmem:[#allocation3 + $0x5b] sm:$0xff]
        %v4974 = vld [vmem:[#allocation3 + $0x63] sm:$0xff]
        %v4975 = vld [vmem:[#allocation3 + $0x6b] sm:$0xff]
        %v4976 = vld [vmem:[#allocation3 + $0x73] sm:$0xff]
        %v4977 = vld [vmem:[#allocation3 + $0x7b] sm:$0xff]
        %v4978 = vld [vmem:[#allocation3 + $0x83] sm:$0xff]
        %v4979 = vld [vmem:[#allocation3 + $0x8b] sm:$0xff]
        %v4980 = vld [vmem:[#allocation3 + $0x93] sm:$0xff]
        %v4981 = vld [vmem:[#allocation3 + $0x9b] sm:$0xff]
        %v4982 = vld [vmem:[#allocation3 + $0xa3] sm:$0xff]
        %v4983 = vld [vmem:[#allocation3 + $0xab] sm:$0xff]
        %v4984 = vld [vmem:[#allocation2 + $0x13] sm:$0x1]
        %v4985 = vperm.slane %v4984, 0
        %v4986 = vmul.f32 %v4966, %v4985
        %v4987 = vmul.f32 %v4967, %v4985
        %v4988 = vmul.f32 %v4968, %v4985
        %v4989 = vmul.f32 %v4969, %v4985
        %v4990 = vmul.f32 %v4970, %v4985
        %v4991 = vmul.f32 %v4971, %v4985
        %v4992 = vmul.f32 %v4972, %v4985
        %v4993 = vmul.f32 %v4973, %v4985
        %v4994 = vmul.f32 %v4974, %v4985
        %v4995 = vmul.f32 %v4975, %v4985
        %v4996 = vmul.f32 %v4976, %v4985
        %v4997 = vmul.f32 %v4977, %v4985
        %v4998 = vmul.f32 %v4978, %v4985
        %v4999 = vmul.f32 %v4979, %v4985
        %v5000 = vmul.f32 %v4980, %v4985
        %v5001 = vmul.f32 %v4981, %v4985
        %v5002 = vmul.f32 %v4982, %v4985
        %v5003 = vmul.f32 %v4983, %v4985
        %v5004 = vld [vmem:[#allocation4] sm:$0xff]
        %v5005 = vld [vmem:[#allocation4 + $0x8] sm:$0xff]
        %v5006 = vld [vmem:[#allocation4 + $0x10] sm:$0xff]
        %v5007 = vld [vmem:[#allocation4 + $0x18] sm:$0xff]
        %v5008 = vld [vmem:[#allocation4 + $0x20] sm:$0xff]
        %v5009 = vld [vmem:[#allocation4 + $0x28] sm:$0xff]
        %v5010 = vld [vmem:[#allocation4 + $0x30] sm:$0xff]
        %v5011 = vld [vmem:[#allocation4 + $0x38] sm:$0xff]
        %v5012 = vld [vmem:[#allocation4 + $0x40] sm:$0xff]
        %v5013 = vld [vmem:[#allocation4 + $0x48] sm:$0xff]
        %v5014 = vld [vmem:[#allocation4 + $0x50] sm:$0xff]
        %v5015 = vld [vmem:[#allocation4 + $0x58] sm:$0xff]
        %v5016 = vld [vmem:[#allocation4 + $0x60] sm:$0xff]
        %v5017 = vld [vmem:[#allocation4 + $0x68] sm:$0xff]
        %v5018 = vld [vmem:[#allocation4 + $0x70] sm:$0xff]
        %v5019 = vld [vmem:[#allocation4 + $0x78] sm:$0xff]
        %v5020 = vld [vmem:[#allocation4 + $0x80] sm:$0xff]
        %v5021 = vld [vmem:[#allocation4 + $0x88] sm:$0xff]
        %v5022 = vadd.f32 %v5004, %v4986
        %v5023 = vadd.f32 %v5005, %v4987
        %v5024 = vadd.f32 %v5006, %v4988
        %v5025 = vadd.f32 %v5007, %v4989
        %v5026 = vadd.f32 %v5008, %v4990
        %v5027 = vadd.f32 %v5009, %v4991
        %v5028 = vadd.f32 %v5010, %v4992
        %v5029 = vadd.f32 %v5011, %v4993
        %v5030 = vadd.f32 %v5012, %v4994
        %v5031 = vadd.f32 %v5013, %v4995
        %v5032 = vadd.f32 %v5014, %v4996
        %v5033 = vadd.f32 %v5015, %v4997
        %v5034 = vadd.f32 %v5016, %v4998
        %v5035 = vadd.f32 %v5017, %v4999
        %v5036 = vadd.f32 %v5018, %v5000
        %v5037 = vadd.f32 %v5019, %v5001
        %v5038 = vadd.f32 %v5020, %v5002
        %v5039 = vadd.f32 %v5021, %v5003
        %5040 = vst.msk [vmem:[#allocation4] sm:$0xff] %vm696, %v5022
        %5041 = vst.msk [vmem:[#allocation4 + $0x8] sm:$0xff] %vm696, %v5023
        %5042 = vst.msk [vmem:[#allocation4 + $0x10] sm:$0xff] %vm696, %v5024
        %5043 = vst.msk [vmem:[#allocation4 + $0x18] sm:$0xff] %vm696, %v5025
        %5044 = vst.msk [vmem:[#allocation4 + $0x20] sm:$0xff] %vm696, %v5026
        %5045 = vst.msk [vmem:[#allocation4 + $0x28] sm:$0xff] %vm696, %v5027
        %5046 = vst.msk [vmem:[#allocation4 + $0x30] sm:$0xff] %vm696, %v5028
        %5047 = vst.msk [vmem:[#allocation4 + $0x38] sm:$0xff] %vm696, %v5029
        %5048 = vst.msk [vmem:[#allocation4 + $0x40] sm:$0xff] %vm696, %v5030
        %5049 = vst.msk [vmem:[#allocation4 + $0x48] sm:$0xff] %vm696, %v5031
        %5050 = vst.msk [vmem:[#allocation4 + $0x50] sm:$0xff] %vm696, %v5032
        %5051 = vst.msk [vmem:[#allocation4 + $0x58] sm:$0xff] %vm696, %v5033
        %5052 = vst.msk [vmem:[#allocation4 + $0x60] sm:$0xff] %vm696, %v5034
        %5053 = vst.msk [vmem:[#allocation4 + $0x68] sm:$0xff] %vm696, %v5035
        %5054 = vst.msk [vmem:[#allocation4 + $0x70] sm:$0xff] %vm696, %v5036
        %5055 = vst.msk [vmem:[#allocation4 + $0x78] sm:$0xff] %vm696, %v5037
        %5056 = vst.msk [vmem:[#allocation4 + $0x80] sm:$0xff] %vm696, %v5038
        %5057 = vst.msk [vmem:[#allocation4 + $0x88] sm:$0xff] %vm696, %v5039
        %v5058 = vld [vmem:[#allocation3 + $0x24] sm:$0xff]
        %v5059 = vld [vmem:[#allocation3 + $0x2c] sm:$0xff]
        %v5060 = vld [vmem:[#allocation3 + $0x34] sm:$0xff]
        %v5061 = vld [vmem:[#allocation3 + $0x3c] sm:$0xff]
        %v5062 = vld [vmem:[#allocation3 + $0x44] sm:$0xff]
        %v5063 = vld [vmem:[#allocation3 + $0x4c] sm:$0xff]
        %v5064 = vld [vmem:[#allocation3 + $0x54] sm:$0xff]
        %v5065 = vld [vmem:[#allocation3 + $0x5c] sm:$0xff]
        %v5066 = vld [vmem:[#allocation3 + $0x64] sm:$0xff]
        %v5067 = vld [vmem:[#allocation3 + $0x6c] sm:$0xff]
        %v5068 = vld [vmem:[#allocation3 + $0x74] sm:$0xff]
        %v5069 = vld [vmem:[#allocation3 + $0x7c] sm:$0xff]
        %v5070 = vld [vmem:[#allocation3 + $0x84] sm:$0xff]
        %v5071 = vld [vmem:[#allocation3 + $0x8c] sm:$0xff]
        %v5072 = vld [vmem:[#allocation3 + $0x94] sm:$0xff]
        %v5073 = vld [vmem:[#allocation3 + $0x9c] sm:$0xff]
        %v5074 = vld [vmem:[#allocation3 + $0xa4] sm:$0xff]
        %v5075 = vld [vmem:[#allocation3 + $0xac] sm:$0xff]
        %v5076 = vld [vmem:[#allocation2 + $0x14] sm:$0x1]
        %v5077 = vperm.slane %v5076, 0
        %v5078 = vmul.f32 %v5058, %v5077
        %v5079 = vmul.f32 %v5059, %v5077
        %v5080 = vmul.f32 %v5060, %v5077
        %v5081 = vmul.f32 %v5061, %v5077
        %v5082 = vmul.f32 %v5062, %v5077
        %v5083 = vmul.f32 %v5063, %v5077
        %v5084 = vmul.f32 %v5064, %v5077
        %v5085 = vmul.f32 %v5065, %v5077
        %v5086 = vmul.f32 %v5066, %v5077
        %v5087 = vmul.f32 %v5067, %v5077
        %v5088 = vmul.f32 %v5068, %v5077
        %v5089 = vmul.f32 %v5069, %v5077
        %v5090 = vmul.f32 %v5070, %v5077
        %v5091 = vmul.f32 %v5071, %v5077
        %v5092 = vmul.f32 %v5072, %v5077
        %v5093 = vmul.f32 %v5073, %v5077
        %v5094 = vmul.f32 %v5074, %v5077
        %v5095 = vmul.f32 %v5075, %v5077
        %v5096 = vld [vmem:[#allocation4] sm:$0xff]
        %v5097 = vld [vmem:[#allocation4 + $0x8] sm:$0xff]
        %v5098 = vld [vmem:[#allocation4 + $0x10] sm:$0xff]
        %v5099 = vld [vmem:[#allocation4 + $0x18] sm:$0xff]
        %v5100 = vld [vmem:[#allocation4 + $0x20] sm:$0xff]
        %v5101 = vld [vmem:[#allocation4 + $0x28] sm:$0xff]
        %v5102 = vld [vmem:[#allocation4 + $0x30] sm:$0xff]
        %v5103 = vld [vmem:[#allocation4 + $0x38] sm:$0xff]
        %v5104 = vld [vmem:[#allocation4 + $0x40] sm:$0xff]
        %v5105 = vld [vmem:[#allocation4 + $0x48] sm:$0xff]
        %v5106 = vld [vmem:[#allocation4 + $0x50] sm:$0xff]
        %v5107 = vld [vmem:[#allocation4 + $0x58] sm:$0xff]
        %v5108 = vld [vmem:[#allocation4 + $0x60] sm:$0xff]
        %v5109 = vld [vmem:[#allocation4 + $0x68] sm:$0xff]
        %v5110 = vld [vmem:[#allocation4 + $0x70] sm:$0xff]
        %v5111 = vld [vmem:[#allocation4 + $0x78] sm:$0xff]
        %v5112 = vld [vmem:[#allocation4 + $0x80] sm:$0xff]
        %v5113 = vld [vmem:[#allocation4 + $0x88] sm:$0xff]
        %v5114 = vadd.f32 %v5096, %v5078
        %v5115 = vadd.f32 %v5097, %v5079
        %v5116 = vadd.f32 %v5098, %v5080
        %v5117 = vadd.f32 %v5099, %v5081
        %v5118 = vadd.f32 %v5100, %v5082
        %v5119 = vadd.f32 %v5101, %v5083
        %v5120 = vadd.f32 %v5102, %v5084
        %v5121 = vadd.f32 %v5103, %v5085
        %v5122 = vadd.f32 %v5104, %v5086
        %v5123 = vadd.f32 %v5105, %v5087
        %v5124 = vadd.f32 %v5106, %v5088
        %v5125 = vadd.f32 %v5107, %v5089
        %v5126 = vadd.f32 %v5108, %v5090
        %v5127 = vadd.f32 %v5109, %v5091
        %v5128 = vadd.f32 %v5110, %v5092
        %v5129 = vadd.f32 %v5111, %v5093
        %v5130 = vadd.f32 %v5112, %v5094
        %v5131 = vadd.f32 %v5113, %v5095
        %5132 = vst.msk [vmem:[#allocation4] sm:$0xff] %vm696, %v5114
        %5133 = vst.msk [vmem:[#allocation4 + $0x8] sm:$0xff] %vm696, %v5115
        %5134 = vst.msk [vmem:[#allocation4 + $0x10] sm:$0xff] %vm696, %v5116
        %5135 = vst.msk [vmem:[#allocation4 + $0x18] sm:$0xff] %vm696, %v5117
        %5136 = vst.msk [vmem:[#allocation4 + $0x20] sm:$0xff] %vm696, %v5118
        %5137 = vst.msk [vmem:[#allocation4 + $0x28] sm:$0xff] %vm696, %v5119
        %5138 = vst.msk [vmem:[#allocation4 + $0x30] sm:$0xff] %vm696, %v5120
        %5139 = vst.msk [vmem:[#allocation4 + $0x38] sm:$0xff] %vm696, %v5121
        %5140 = vst.msk [vmem:[#allocation4 + $0x40] sm:$0xff] %vm696, %v5122
        %5141 = vst.msk [vmem:[#allocation4 + $0x48] sm:$0xff] %vm696, %v5123
        %5142 = vst.msk [vmem:[#allocation4 + $0x50] sm:$0xff] %vm696, %v5124
        %5143 = vst.msk [vmem:[#allocation4 + $0x58] sm:$0xff] %vm696, %v5125
        %5144 = vst.msk [vmem:[#allocation4 + $0x60] sm:$0xff] %vm696, %v5126
        %5145 = vst.msk [vmem:[#allocation4 + $0x68] sm:$0xff] %vm696, %v5127
        %5146 = vst.msk [vmem:[#allocation4 + $0x70] sm:$0xff] %vm696, %v5128
        %5147 = vst.msk [vmem:[#allocation4 + $0x78] sm:$0xff] %vm696, %v5129
        %5148 = vst.msk [vmem:[#allocation4 + $0x80] sm:$0xff] %vm696, %v5130
        %5149 = vst.msk [vmem:[#allocation4 + $0x88] sm:$0xff] %vm696, %v5131
        %v5150 = vld [vmem:[#allocation3 + $0x25] sm:$0xff]
        %v5151 = vld [vmem:[#allocation3 + $0x2d] sm:$0xff]
        %v5152 = vld [vmem:[#allocation3 + $0x35] sm:$0xff]
        %v5153 = vld [vmem:[#allocation3 + $0x3d] sm:$0xff]
        %v5154 = vld [vmem:[#allocation3 + $0x45] sm:$0xff]
        %v5155 = vld [vmem:[#allocation3 + $0x4d] sm:$0xff]
        %v5156 = vld [vmem:[#allocation3 + $0x55] sm:$0xff]
        %v5157 = vld [vmem:[#allocation3 + $0x5d] sm:$0xff]
        %v5158 = vld [vmem:[#allocation3 + $0x65] sm:$0xff]
        %v5159 = vld [vmem:[#allocation3 + $0x6d] sm:$0xff]
        %v5160 = vld [vmem:[#allocation3 + $0x75] sm:$0xff]
        %v5161 = vld [vmem:[#allocation3 + $0x7d] sm:$0xff]
        %v5162 = vld [vmem:[#allocation3 + $0x85] sm:$0xff]
        %v5163 = vld [vmem:[#allocation3 + $0x8d] sm:$0xff]
        %v5164 = vld [vmem:[#allocation3 + $0x95] sm:$0xff]
        %v5165 = vld [vmem:[#allocation3 + $0x9d] sm:$0xff]
        %v5166 = vld [vmem:[#allocation3 + $0xa5] sm:$0xff]
        %v5167 = vld [vmem:[#allocation3 + $0xad] sm:$0xff]
        %v5168 = vld [vmem:[#allocation2 + $0x15] sm:$0x1]
        %v5169 = vperm.slane %v5168, 0
        %v5170 = vmul.f32 %v5150, %v5169
        %v5171 = vmul.f32 %v5151, %v5169
        %v5172 = vmul.f32 %v5152, %v5169
        %v5173 = vmul.f32 %v5153, %v5169
        %v5174 = vmul.f32 %v5154, %v5169
        %v5175 = vmul.f32 %v5155, %v5169
        %v5176 = vmul.f32 %v5156, %v5169
        %v5177 = vmul.f32 %v5157, %v5169
        %v5178 = vmul.f32 %v5158, %v5169
        %v5179 = vmul.f32 %v5159, %v5169
        %v5180 = vmul.f32 %v5160, %v5169
        %v5181 = vmul.f32 %v5161, %v5169
        %v5182 = vmul.f32 %v5162, %v5169
        %v5183 = vmul.f32 %v5163, %v5169
        %v5184 = vmul.f32 %v5164, %v5169
        %v5185 = vmul.f32 %v5165, %v5169
        %v5186 = vmul.f32 %v5166, %v5169
        %v5187 = vmul.f32 %v5167, %v5169
        %v5188 = vld [vmem:[#allocation4] sm:$0xff]
        %v5189 = vld [vmem:[#allocation4 + $0x8] sm:$0xff]
        %v5190 = vld [vmem:[#allocation4 + $0x10] sm:$0xff]
        %v5191 = vld [vmem:[#allocation4 + $0x18] sm:$0xff]
        %v5192 = vld [vmem:[#allocation4 + $0x20] sm:$0xff]
        %v5193 = vld [vmem:[#allocation4 + $0x28] sm:$0xff]
        %v5194 = vld [vmem:[#allocation4 + $0x30] sm:$0xff]
        %v5195 = vld [vmem:[#allocation4 + $0x38] sm:$0xff]
        %v5196 = vld [vmem:[#allocation4 + $0x40] sm:$0xff]
        %v5197 = vld [vmem:[#allocation4 + $0x48] sm:$0xff]
        %v5198 = vld [vmem:[#allocation4 + $0x50] sm:$0xff]
        %v5199 = vld [vmem:[#allocation4 + $0x58] sm:$0xff]
        %v5200 = vld [vmem:[#allocation4 + $0x60] sm:$0xff]
        %v5201 = vld [vmem:[#allocation4 + $0x68] sm:$0xff]
        %v5202 = vld [vmem:[#allocation4 + $0x70] sm:$0xff]
        %v5203 = vld [vmem:[#allocation4 + $0x78] sm:$0xff]
        %v5204 = vld [vmem:[#allocation4 + $0x80] sm:$0xff]
        %v5205 = vld [vmem:[#allocation4 + $0x88] sm:$0xff]
        %v5206 = vadd.f32 %v5188, %v5170
        %v5207 = vadd.f32 %v5189, %v5171
        %v5208 = vadd.f32 %v5190, %v5172
        %v5209 = vadd.f32 %v5191, %v5173
        %v5210 = vadd.f32 %v5192, %v5174
        %v5211 = vadd.f32 %v5193, %v5175
        %v5212 = vadd.f32 %v5194, %v5176
        %v5213 = vadd.f32 %v5195, %v5177
        %v5214 = vadd.f32 %v5196, %v5178
        %v5215 = vadd.f32 %v5197, %v5179
        %v5216 = vadd.f32 %v5198, %v5180
        %v5217 = vadd.f32 %v5199, %v5181
        %v5218 = vadd.f32 %v5200, %v5182
        %v5219 = vadd.f32 %v5201, %v5183
        %v5220 = vadd.f32 %v5202, %v5184
        %v5221 = vadd.f32 %v5203, %v5185
        %v5222 = vadd.f32 %v5204, %v5186
        %v5223 = vadd.f32 %v5205, %v5187
        %5224 = vst.msk [vmem:[#allocation4] sm:$0xff] %vm696, %v5206
        %5225 = vst.msk [vmem:[#allocation4 + $0x8] sm:$0xff] %vm696, %v5207
        %5226 = vst.msk [vmem:[#allocation4 + $0x10] sm:$0xff] %vm696, %v5208
        %5227 = vst.msk [vmem:[#allocation4 + $0x18] sm:$0xff] %vm696, %v5209
        %5228 = vst.msk [vmem:[#allocation4 + $0x20] sm:$0xff] %vm696, %v5210
        %5229 = vst.msk [vmem:[#allocation4 + $0x28] sm:$0xff] %vm696, %v5211
        %5230 = vst.msk [vmem:[#allocation4 + $0x30] sm:$0xff] %vm696, %v5212
        %5231 = vst.msk [vmem:[#allocation4 + $0x38] sm:$0xff] %vm696, %v5213
        %5232 = vst.msk [vmem:[#allocation4 + $0x40] sm:$0xff] %vm696, %v5214
        %5233 = vst.msk [vmem:[#allocation4 + $0x48] sm:$0xff] %vm696, %v5215
        %5234 = vst.msk [vmem:[#allocation4 + $0x50] sm:$0xff] %vm696, %v5216
        %5235 = vst.msk [vmem:[#allocation4 + $0x58] sm:$0xff] %vm696, %v5217
        %5236 = vst.msk [vmem:[#allocation4 + $0x60] sm:$0xff] %vm696, %v5218
        %5237 = vst.msk [vmem:[#allocation4 + $0x68] sm:$0xff] %vm696, %v5219
        %5238 = vst.msk [vmem:[#allocation4 + $0x70] sm:$0xff] %vm696, %v5220
        %5239 = vst.msk [vmem:[#allocation4 + $0x78] sm:$0xff] %vm696, %v5221
        %5240 = vst.msk [vmem:[#allocation4 + $0x80] sm:$0xff] %vm696, %v5222
        %5241 = vst.msk [vmem:[#allocation4 + $0x88] sm:$0xff] %vm696, %v5223
        %v5242 = vld [vmem:[#allocation3 + $0x30] sm:$0xff]
        %v5243 = vld [vmem:[#allocation3 + $0x38] sm:$0xff]
        %v5244 = vld [vmem:[#allocation3 + $0x40] sm:$0xff]
        %v5245 = vld [vmem:[#allocation3 + $0x48] sm:$0xff]
        %v5246 = vld [vmem:[#allocation3 + $0x50] sm:$0xff]
        %v5247 = vld [vmem:[#allocation3 + $0x58] sm:$0xff]
        %v5248 = vld [vmem:[#allocation3 + $0x60] sm:$0xff]
        %v5249 = vld [vmem:[#allocation3 + $0x68] sm:$0xff]
        %v5250 = vld [vmem:[#allocation3 + $0x70] sm:$0xff]
        %v5251 = vld [vmem:[#allocation3 + $0x78] sm:$0xff]
        %v5252 = vld [vmem:[#allocation3 + $0x80] sm:$0xff]
        %v5253 = vld [vmem:[#allocation3 + $0x88] sm:$0xff]
        %v5254 = vld [vmem:[#allocation3 + $0x90] sm:$0xff]
        %v5255 = vld [vmem:[#allocation3 + $0x98] sm:$0xff]
        %v5256 = vld [vmem:[#allocation3 + $0xa0] sm:$0xff]
        %v5257 = vld [vmem:[#allocation3 + $0xa8] sm:$0xff]
        %v5258 = vld [vmem:[#allocation3 + $0xb0] sm:$0xff]
        %v5259 = vld [vmem:[#allocation3 + $0xb8] sm:$0xff]
        %v5260 = vld [vmem:[#allocation2 + $0x18] sm:$0x1]
        %v5261 = vperm.slane %v5260, 0
        %v5262 = vmul.f32 %v5242, %v5261
        %v5263 = vmul.f32 %v5243, %v5261
        %v5264 = vmul.f32 %v5244, %v5261
        %v5265 = vmul.f32 %v5245, %v5261
        %v5266 = vmul.f32 %v5246, %v5261
        %v5267 = vmul.f32 %v5247, %v5261
        %v5268 = vmul.f32 %v5248, %v5261
        %v5269 = vmul.f32 %v5249, %v5261
        %v5270 = vmul.f32 %v5250, %v5261
        %v5271 = vmul.f32 %v5251, %v5261
        %v5272 = vmul.f32 %v5252, %v5261
        %v5273 = vmul.f32 %v5253, %v5261
        %v5274 = vmul.f32 %v5254, %v5261
        %v5275 = vmul.f32 %v5255, %v5261
        %v5276 = vmul.f32 %v5256, %v5261
        %v5277 = vmul.f32 %v5257, %v5261
        %v5278 = vmul.f32 %v5258, %v5261
        %v5279 = vmul.f32 %v5259, %v5261
        %v5280 = vld [vmem:[#allocation4] sm:$0xff]
        %v5281 = vld [vmem:[#allocation4 + $0x8] sm:$0xff]
        %v5282 = vld [vmem:[#allocation4 + $0x10] sm:$0xff]
        %v5283 = vld [vmem:[#allocation4 + $0x18] sm:$0xff]
        %v5284 = vld [vmem:[#allocation4 + $0x20] sm:$0xff]
        %v5285 = vld [vmem:[#allocation4 + $0x28] sm:$0xff]
        %v5286 = vld [vmem:[#allocation4 + $0x30] sm:$0xff]
        %v5287 = vld [vmem:[#allocation4 + $0x38] sm:$0xff]
        %v5288 = vld [vmem:[#allocation4 + $0x40] sm:$0xff]
        %v5289 = vld [vmem:[#allocation4 + $0x48] sm:$0xff]
        %v5290 = vld [vmem:[#allocation4 + $0x50] sm:$0xff]
        %v5291 = vld [vmem:[#allocation4 + $0x58] sm:$0xff]
        %v5292 = vld [vmem:[#allocation4 + $0x60] sm:$0xff]
        %v5293 = vld [vmem:[#allocation4 + $0x68] sm:$0xff]
        %v5294 = vld [vmem:[#allocation4 + $0x70] sm:$0xff]
        %v5295 = vld [vmem:[#allocation4 + $0x78] sm:$0xff]
        %v5296 = vld [vmem:[#allocation4 + $0x80] sm:$0xff]
        %v5297 = vld [vmem:[#allocation4 + $0x88] sm:$0xff]
        %v5298 = vadd.f32 %v5280, %v5262
        %v5299 = vadd.f32 %v5281, %v5263
        %v5300 = vadd.f32 %v5282, %v5264
        %v5301 = vadd.f32 %v5283, %v5265
        %v5302 = vadd.f32 %v5284, %v5266
        %v5303 = vadd.f32 %v5285, %v5267
        %v5304 = vadd.f32 %v5286, %v5268
        %v5305 = vadd.f32 %v5287, %v5269
        %v5306 = vadd.f32 %v5288, %v5270
        %v5307 = vadd.f32 %v5289, %v5271
        %v5308 = vadd.f32 %v5290, %v5272
        %v5309 = vadd.f32 %v5291, %v5273
        %v5310 = vadd.f32 %v5292, %v5274
        %v5311 = vadd.f32 %v5293, %v5275
        %v5312 = vadd.f32 %v5294, %v5276
        %v5313 = vadd.f32 %v5295, %v5277
        %v5314 = vadd.f32 %v5296, %v5278
        %v5315 = vadd.f32 %v5297, %v5279
        %5316 = vst.msk [vmem:[#allocation4] sm:$0xff] %vm696, %v5298
        %5317 = vst.msk [vmem:[#allocation4 + $0x8] sm:$0xff] %vm696, %v5299
        %5318 = vst.msk [vmem:[#allocation4 + $0x10] sm:$0xff] %vm696, %v5300
        %5319 = vst.msk [vmem:[#allocation4 + $0x18] sm:$0xff] %vm696, %v5301
        %5320 = vst.msk [vmem:[#allocation4 + $0x20] sm:$0xff] %vm696, %v5302
        %5321 = vst.msk [vmem:[#allocation4 + $0x28] sm:$0xff] %vm696, %v5303
        %5322 = vst.msk [vmem:[#allocation4 + $0x30] sm:$0xff] %vm696, %v5304
        %5323 = vst.msk [vmem:[#allocation4 + $0x38] sm:$0xff] %vm696, %v5305
        %5324 = vst.msk [vmem:[#allocation4 + $0x40] sm:$0xff] %vm696, %v5306
        %5325 = vst.msk [vmem:[#allocation4 + $0x48] sm:$0xff] %vm696, %v5307
        %5326 = vst.msk [vmem:[#allocation4 + $0x50] sm:$0xff] %vm696, %v5308
        %5327 = vst.msk [vmem:[#allocation4 + $0x58] sm:$0xff] %vm696, %v5309
        %5328 = vst.msk [vmem:[#allocation4 + $0x60] sm:$0xff] %vm696, %v5310
        %5329 = vst.msk [vmem:[#allocation4 + $0x68] sm:$0xff] %vm696, %v5311
        %5330 = vst.msk [vmem:[#allocation4 + $0x70] sm:$0xff] %vm696, %v5312
        %5331 = vst.msk [vmem:[#allocation4 + $0x78] sm:$0xff] %vm696, %v5313
        %5332 = vst.msk [vmem:[#allocation4 + $0x80] sm:$0xff] %vm696, %v5314
        %5333 = vst.msk [vmem:[#allocation4 + $0x88] sm:$0xff] %vm696, %v5315
        %v5334 = vld [vmem:[#allocation3 + $0x31] sm:$0xff]
        %v5335 = vld [vmem:[#allocation3 + $0x39] sm:$0xff]
        %v5336 = vld [vmem:[#allocation3 + $0x41] sm:$0xff]
        %v5337 = vld [vmem:[#allocation3 + $0x49] sm:$0xff]
        %v5338 = vld [vmem:[#allocation3 + $0x51] sm:$0xff]
        %v5339 = vld [vmem:[#allocation3 + $0x59] sm:$0xff]
        %v5340 = vld [vmem:[#allocation3 + $0x61] sm:$0xff]
        %v5341 = vld [vmem:[#allocation3 + $0x69] sm:$0xff]
        %v5342 = vld [vmem:[#allocation3 + $0x71] sm:$0xff]
        %v5343 = vld [vmem:[#allocation3 + $0x79] sm:$0xff]
        %v5344 = vld [vmem:[#allocation3 + $0x81] sm:$0xff]
        %v5345 = vld [vmem:[#allocation3 + $0x89] sm:$0xff]
        %v5346 = vld [vmem:[#allocation3 + $0x91] sm:$0xff]
        %v5347 = vld [vmem:[#allocation3 + $0x99] sm:$0xff]
        %v5348 = vld [vmem:[#allocation3 + $0xa1] sm:$0xff]
        %v5349 = vld [vmem:[#allocation3 + $0xa9] sm:$0xff]
        %v5350 = vld [vmem:[#allocation3 + $0xb1] sm:$0xff]
        %v5351 = vld [vmem:[#allocation3 + $0xb9] sm:$0xff]
        %v5352 = vld [vmem:[#allocation2 + $0x19] sm:$0x1]
        %v5353 = vperm.slane %v5352, 0
        %v5354 = vmul.f32 %v5334, %v5353
        %v5355 = vmul.f32 %v5335, %v5353
        %v5356 = vmul.f32 %v5336, %v5353
        %v5357 = vmul.f32 %v5337, %v5353
        %v5358 = vmul.f32 %v5338, %v5353
        %v5359 = vmul.f32 %v5339, %v5353
        %v5360 = vmul.f32 %v5340, %v5353
        %v5361 = vmul.f32 %v5341, %v5353
        %v5362 = vmul.f32 %v5342, %v5353
        %v5363 = vmul.f32 %v5343, %v5353
        %v5364 = vmul.f32 %v5344, %v5353
        %v5365 = vmul.f32 %v5345, %v5353
        %v5366 = vmul.f32 %v5346, %v5353
        %v5367 = vmul.f32 %v5347, %v5353
        %v5368 = vmul.f32 %v5348, %v5353
        %v5369 = vmul.f32 %v5349, %v5353
        %v5370 = vmul.f32 %v5350, %v5353
        %v5371 = vmul.f32 %v5351, %v5353
        %v5372 = vld [vmem:[#allocation4] sm:$0xff]
        %v5373 = vld [vmem:[#allocation4 + $0x8] sm:$0xff]
        %v5374 = vld [vmem:[#allocation4 + $0x10] sm:$0xff]
        %v5375 = vld [vmem:[#allocation4 + $0x18] sm:$0xff]
        %v5376 = vld [vmem:[#allocation4 + $0x20] sm:$0xff]
        %v5377 = vld [vmem:[#allocation4 + $0x28] sm:$0xff]
        %v5378 = vld [vmem:[#allocation4 + $0x30] sm:$0xff]
        %v5379 = vld [vmem:[#allocation4 + $0x38] sm:$0xff]
        %v5380 = vld [vmem:[#allocation4 + $0x40] sm:$0xff]
        %v5381 = vld [vmem:[#allocation4 + $0x48] sm:$0xff]
        %v5382 = vld [vmem:[#allocation4 + $0x50] sm:$0xff]
        %v5383 = vld [vmem:[#allocation4 + $0x58] sm:$0xff]
        %v5384 = vld [vmem:[#allocation4 + $0x60] sm:$0xff]
        %v5385 = vld [vmem:[#allocation4 + $0x68] sm:$0xff]
        %v5386 = vld [vmem:[#allocation4 + $0x70] sm:$0xff]
        %v5387 = vld [vmem:[#allocation4 + $0x78] sm:$0xff]
        %v5388 = vld [vmem:[#allocation4 + $0x80] sm:$0xff]
        %v5389 = vld [vmem:[#allocation4 + $0x88] sm:$0xff]
        %v5390 = vadd.f32 %v5372, %v5354
        %v5391 = vadd.f32 %v5373, %v5355
        %v5392 = vadd.f32 %v5374, %v5356
        %v5393 = vadd.f32 %v5375, %v5357
        %v5394 = vadd.f32 %v5376, %v5358
        %v5395 = vadd.f32 %v5377, %v5359
        %v5396 = vadd.f32 %v5378, %v5360
        %v5397 = vadd.f32 %v5379, %v5361
        %v5398 = vadd.f32 %v5380, %v5362
        %v5399 = vadd.f32 %v5381, %v5363
        %v5400 = vadd.f32 %v5382, %v5364
        %v5401 = vadd.f32 %v5383, %v5365
        %v5402 = vadd.f32 %v5384, %v5366
        %v5403 = vadd.f32 %v5385, %v5367
        %v5404 = vadd.f32 %v5386, %v5368
        %v5405 = vadd.f32 %v5387, %v5369
        %v5406 = vadd.f32 %v5388, %v5370
        %v5407 = vadd.f32 %v5389, %v5371
        %5408 = vst.msk [vmem:[#allocation4] sm:$0xff] %vm696, %v5390
        %5409 = vst.msk [vmem:[#allocation4 + $0x8] sm:$0xff] %vm696, %v5391
        %5410 = vst.msk [vmem:[#allocation4 + $0x10] sm:$0xff] %vm696, %v5392
        %5411 = vst.msk [vmem:[#allocation4 + $0x18] sm:$0xff] %vm696, %v5393
        %5412 = vst.msk [vmem:[#allocation4 + $0x20] sm:$0xff] %vm696, %v5394
        %5413 = vst.msk [vmem:[#allocation4 + $0x28] sm:$0xff] %vm696, %v5395
        %5414 = vst.msk [vmem:[#allocation4 + $0x30] sm:$0xff] %vm696, %v5396
        %5415 = vst.msk [vmem:[#allocation4 + $0x38] sm:$0xff] %vm696, %v5397
        %5416 = vst.msk [vmem:[#allocation4 + $0x40] sm:$0xff] %vm696, %v5398
        %5417 = vst.msk [vmem:[#allocation4 + $0x48] sm:$0xff] %vm696, %v5399
        %5418 = vst.msk [vmem:[#allocation4 + $0x50] sm:$0xff] %vm696, %v5400
        %5419 = vst.msk [vmem:[#allocation4 + $0x58] sm:$0xff] %vm696, %v5401
        %5420 = vst.msk [vmem:[#allocation4 + $0x60] sm:$0xff] %vm696, %v5402
        %5421 = vst.msk [vmem:[#allocation4 + $0x68] sm:$0xff] %vm696, %v5403
        %5422 = vst.msk [vmem:[#allocation4 + $0x70] sm:$0xff] %vm696, %v5404
        %5423 = vst.msk [vmem:[#allocation4 + $0x78] sm:$0xff] %vm696, %v5405
        %5424 = vst.msk [vmem:[#allocation4 + $0x80] sm:$0xff] %vm696, %v5406
        %5425 = vst.msk [vmem:[#allocation4 + $0x88] sm:$0xff] %vm696, %v5407
        %v5426 = vld [vmem:[#allocation3 + $0x32] sm:$0xff]
        %v5427 = vld [vmem:[#allocation3 + $0x3a] sm:$0xff]
        %v5428 = vld [vmem:[#allocation3 + $0x42] sm:$0xff]
        %v5429 = vld [vmem:[#allocation3 + $0x4a] sm:$0xff]
        %v5430 = vld [vmem:[#allocation3 + $0x52] sm:$0xff]
        %v5431 = vld [vmem:[#allocation3 + $0x5a] sm:$0xff]
        %v5432 = vld [vmem:[#allocation3 + $0x62] sm:$0xff]
        %v5433 = vld [vmem:[#allocation3 + $0x6a] sm:$0xff]
        %v5434 = vld [vmem:[#allocation3 + $0x72] sm:$0xff]
        %v5435 = vld [vmem:[#allocation3 + $0x7a] sm:$0xff]
        %v5436 = vld [vmem:[#allocation3 + $0x82] sm:$0xff]
        %v5437 = vld [vmem:[#allocation3 + $0x8a] sm:$0xff]
        %v5438 = vld [vmem:[#allocation3 + $0x92] sm:$0xff]
        %v5439 = vld [vmem:[#allocation3 + $0x9a] sm:$0xff]
        %v5440 = vld [vmem:[#allocation3 + $0xa2] sm:$0xff]
        %v5441 = vld [vmem:[#allocation3 + $0xaa] sm:$0xff]
        %v5442 = vld [vmem:[#allocation3 + $0xb2] sm:$0xff]
        %v5443 = vld [vmem:[#allocation3 + $0xba] sm:$0xff]
        %v5444 = vld [vmem:[#allocation2 + $0x1a] sm:$0x1]
        %v5445 = vperm.slane %v5444, 0
        %v5446 = vmul.f32 %v5426, %v5445
        %v5447 = vmul.f32 %v5427, %v5445
        %v5448 = vmul.f32 %v5428, %v5445
        %v5449 = vmul.f32 %v5429, %v5445
        %v5450 = vmul.f32 %v5430, %v5445
        %v5451 = vmul.f32 %v5431, %v5445
        %v5452 = vmul.f32 %v5432, %v5445
        %v5453 = vmul.f32 %v5433, %v5445
        %v5454 = vmul.f32 %v5434, %v5445
        %v5455 = vmul.f32 %v5435, %v5445
        %v5456 = vmul.f32 %v5436, %v5445
        %v5457 = vmul.f32 %v5437, %v5445
        %v5458 = vmul.f32 %v5438, %v5445
        %v5459 = vmul.f32 %v5439, %v5445
        %v5460 = vmul.f32 %v5440, %v5445
        %v5461 = vmul.f32 %v5441, %v5445
        %v5462 = vmul.f32 %v5442, %v5445
        %v5463 = vmul.f32 %v5443, %v5445
        %v5464 = vld [vmem:[#allocation4] sm:$0xff]
        %v5465 = vld [vmem:[#allocation4 + $0x8] sm:$0xff]
        %v5466 = vld [vmem:[#allocation4 + $0x10] sm:$0xff]
        %v5467 = vld [vmem:[#allocation4 + $0x18] sm:$0xff]
        %v5468 = vld [vmem:[#allocation4 + $0x20] sm:$0xff]
        %v5469 = vld [vmem:[#allocation4 + $0x28] sm:$0xff]
        %v5470 = vld [vmem:[#allocation4 + $0x30] sm:$0xff]
        %v5471 = vld [vmem:[#allocation4 + $0x38] sm:$0xff]
        %v5472 = vld [vmem:[#allocation4 + $0x40] sm:$0xff]
        %v5473 = vld [vmem:[#allocation4 + $0x48] sm:$0xff]
        %v5474 = vld [vmem:[#allocation4 + $0x50] sm:$0xff]
        %v5475 = vld [vmem:[#allocation4 + $0x58] sm:$0xff]
        %v5476 = vld [vmem:[#allocation4 + $0x60] sm:$0xff]
        %v5477 = vld [vmem:[#allocation4 + $0x68] sm:$0xff]
        %v5478 = vld [vmem:[#allocation4 + $0x70] sm:$0xff]
        %v5479 = vld [vmem:[#allocation4 + $0x78] sm:$0xff]
        %v5480 = vld [vmem:[#allocation4 + $0x80] sm:$0xff]
        %v5481 = vld [vmem:[#allocation4 + $0x88] sm:$0xff]
        %v5482 = vadd.f32 %v5464, %v5446
        %v5483 = vadd.f32 %v5465, %v5447
        %v5484 = vadd.f32 %v5466, %v5448
        %v5485 = vadd.f32 %v5467, %v5449
        %v5486 = vadd.f32 %v5468, %v5450
        %v5487 = vadd.f32 %v5469, %v5451
        %v5488 = vadd.f32 %v5470, %v5452
        %v5489 = vadd.f32 %v5471, %v5453
        %v5490 = vadd.f32 %v5472, %v5454
        %v5491 = vadd.f32 %v5473, %v5455
        %v5492 = vadd.f32 %v5474, %v5456
        %v5493 = vadd.f32 %v5475, %v5457
        %v5494 = vadd.f32 %v5476, %v5458
        %v5495 = vadd.f32 %v5477, %v5459
        %v5496 = vadd.f32 %v5478, %v5460
        %v5497 = vadd.f32 %v5479, %v5461
        %v5498 = vadd.f32 %v5480, %v5462
        %v5499 = vadd.f32 %v5481, %v5463
        %5500 = vst.msk [vmem:[#allocation4] sm:$0xff] %vm696, %v5482
        %5501 = vst.msk [vmem:[#allocation4 + $0x8] sm:$0xff] %vm696, %v5483
        %5502 = vst.msk [vmem:[#allocation4 + $0x10] sm:$0xff] %vm696, %v5484
        %5503 = vst.msk [vmem:[#allocation4 + $0x18] sm:$0xff] %vm696, %v5485
        %5504 = vst.msk [vmem:[#allocation4 + $0x20] sm:$0xff] %vm696, %v5486
        %5505 = vst.msk [vmem:[#allocation4 + $0x28] sm:$0xff] %vm696, %v5487
        %5506 = vst.msk [vmem:[#allocation4 + $0x30] sm:$0xff] %vm696, %v5488
        %5507 = vst.msk [vmem:[#allocation4 + $0x38] sm:$0xff] %vm696, %v5489
        %5508 = vst.msk [vmem:[#allocation4 + $0x40] sm:$0xff] %vm696, %v5490
        %5509 = vst.msk [vmem:[#allocation4 + $0x48] sm:$0xff] %vm696, %v5491
        %5510 = vst.msk [vmem:[#allocation4 + $0x50] sm:$0xff] %vm696, %v5492
        %5511 = vst.msk [vmem:[#allocation4 + $0x58] sm:$0xff] %vm696, %v5493
        %5512 = vst.msk [vmem:[#allocation4 + $0x60] sm:$0xff] %vm696, %v5494
        %5513 = vst.msk [vmem:[#allocation4 + $0x68] sm:$0xff] %vm696, %v5495
        %5514 = vst.msk [vmem:[#allocation4 + $0x70] sm:$0xff] %vm696, %v5496
        %5515 = vst.msk [vmem:[#allocation4 + $0x78] sm:$0xff] %vm696, %v5497
        %5516 = vst.msk [vmem:[#allocation4 + $0x80] sm:$0xff] %vm696, %v5498
        %5517 = vst.msk [vmem:[#allocation4 + $0x88] sm:$0xff] %vm696, %v5499
        %v5518 = vld [vmem:[#allocation3 + $0x33] sm:$0xff]
        %v5519 = vld [vmem:[#allocation3 + $0x3b] sm:$0xff]
        %v5520 = vld [vmem:[#allocation3 + $0x43] sm:$0xff]
        %v5521 = vld [vmem:[#allocation3 + $0x4b] sm:$0xff]
        %v5522 = vld [vmem:[#allocation3 + $0x53] sm:$0xff]
        %v5523 = vld [vmem:[#allocation3 + $0x5b] sm:$0xff]
        %v5524 = vld [vmem:[#allocation3 + $0x63] sm:$0xff]
        %v5525 = vld [vmem:[#allocation3 + $0x6b] sm:$0xff]
        %v5526 = vld [vmem:[#allocation3 + $0x73] sm:$0xff]
        %v5527 = vld [vmem:[#allocation3 + $0x7b] sm:$0xff]
        %v5528 = vld [vmem:[#allocation3 + $0x83] sm:$0xff]
        %v5529 = vld [vmem:[#allocation3 + $0x8b] sm:$0xff]
        %v5530 = vld [vmem:[#allocation3 + $0x93] sm:$0xff]
        %v5531 = vld [vmem:[#allocation3 + $0x9b] sm:$0xff]
        %v5532 = vld [vmem:[#allocation3 + $0xa3] sm:$0xff]
        %v5533 = vld [vmem:[#allocation3 + $0xab] sm:$0xff]
        %v5534 = vld [vmem:[#allocation3 + $0xb3] sm:$0xff]
        %v5535 = vld [vmem:[#allocation3 + $0xbb] sm:$0xff]
        %v5536 = vld [vmem:[#allocation2 + $0x1b] sm:$0x1]
        %v5537 = vperm.slane %v5536, 0
        %v5538 = vmul.f32 %v5518, %v5537
        %v5539 = vmul.f32 %v5519, %v5537
        %v5540 = vmul.f32 %v5520, %v5537
        %v5541 = vmul.f32 %v5521, %v5537
        %v5542 = vmul.f32 %v5522, %v5537
        %v5543 = vmul.f32 %v5523, %v5537
        %v5544 = vmul.f32 %v5524, %v5537
        %v5545 = vmul.f32 %v5525, %v5537
        %v5546 = vmul.f32 %v5526, %v5537
        %v5547 = vmul.f32 %v5527, %v5537
        %v5548 = vmul.f32 %v5528, %v5537
        %v5549 = vmul.f32 %v5529, %v5537
        %v5550 = vmul.f32 %v5530, %v5537
        %v5551 = vmul.f32 %v5531, %v5537
        %v5552 = vmul.f32 %v5532, %v5537
        %v5553 = vmul.f32 %v5533, %v5537
        %v5554 = vmul.f32 %v5534, %v5537
        %v5555 = vmul.f32 %v5535, %v5537
        %v5556 = vld [vmem:[#allocation4] sm:$0xff]
        %v5557 = vld [vmem:[#allocation4 + $0x8] sm:$0xff]
        %v5558 = vld [vmem:[#allocation4 + $0x10] sm:$0xff]
        %v5559 = vld [vmem:[#allocation4 + $0x18] sm:$0xff]
        %v5560 = vld [vmem:[#allocation4 + $0x20] sm:$0xff]
        %v5561 = vld [vmem:[#allocation4 + $0x28] sm:$0xff]
        %v5562 = vld [vmem:[#allocation4 + $0x30] sm:$0xff]
        %v5563 = vld [vmem:[#allocation4 + $0x38] sm:$0xff]
        %v5564 = vld [vmem:[#allocation4 + $0x40] sm:$0xff]
        %v5565 = vld [vmem:[#allocation4 + $0x48] sm:$0xff]
        %v5566 = vld [vmem:[#allocation4 + $0x50] sm:$0xff]
        %v5567 = vld [vmem:[#allocation4 + $0x58] sm:$0xff]
        %v5568 = vld [vmem:[#allocation4 + $0x60] sm:$0xff]
        %v5569 = vld [vmem:[#allocation4 + $0x68] sm:$0xff]
        %v5570 = vld [vmem:[#allocation4 + $0x70] sm:$0xff]
        %v5571 = vld [vmem:[#allocation4 + $0x78] sm:$0xff]
        %v5572 = vld [vmem:[#allocation4 + $0x80] sm:$0xff]
        %v5573 = vld [vmem:[#allocation4 + $0x88] sm:$0xff]
        %v5574 = vadd.f32 %v5556, %v5538
        %v5575 = vadd.f32 %v5557, %v5539
        %v5576 = vadd.f32 %v5558, %v5540
        %v5577 = vadd.f32 %v5559, %v5541
        %v5578 = vadd.f32 %v5560, %v5542
        %v5579 = vadd.f32 %v5561, %v5543
        %v5580 = vadd.f32 %v5562, %v5544
        %v5581 = vadd.f32 %v5563, %v5545
        %v5582 = vadd.f32 %v5564, %v5546
        %v5583 = vadd.f32 %v5565, %v5547
        %v5584 = vadd.f32 %v5566, %v5548
        %v5585 = vadd.f32 %v5567, %v5549
        %v5586 = vadd.f32 %v5568, %v5550
        %v5587 = vadd.f32 %v5569, %v5551
        %v5588 = vadd.f32 %v5570, %v5552
        %v5589 = vadd.f32 %v5571, %v5553
        %v5590 = vadd.f32 %v5572, %v5554
        %v5591 = vadd.f32 %v5573, %v5555
        %5592 = vst.msk [vmem:[#allocation4] sm:$0xff] %vm696, %v5574
        %5593 = vst.msk [vmem:[#allocation4 + $0x8] sm:$0xff] %vm696, %v5575
        %5594 = vst.msk [vmem:[#allocation4 + $0x10] sm:$0xff] %vm696, %v5576
        %5595 = vst.msk [vmem:[#allocation4 + $0x18] sm:$0xff] %vm696, %v5577
        %5596 = vst.msk [vmem:[#allocation4 + $0x20] sm:$0xff] %vm696, %v5578
        %5597 = vst.msk [vmem:[#allocation4 + $0x28] sm:$0xff] %vm696, %v5579
        %5598 = vst.msk [vmem:[#allocation4 + $0x30] sm:$0xff] %vm696, %v5580
        %5599 = vst.msk [vmem:[#allocation4 + $0x38] sm:$0xff] %vm696, %v5581
        %5600 = vst.msk [vmem:[#allocation4 + $0x40] sm:$0xff] %vm696, %v5582
        %5601 = vst.msk [vmem:[#allocation4 + $0x48] sm:$0xff] %vm696, %v5583
        %5602 = vst.msk [vmem:[#allocation4 + $0x50] sm:$0xff] %vm696, %v5584
        %5603 = vst.msk [vmem:[#allocation4 + $0x58] sm:$0xff] %vm696, %v5585
        %5604 = vst.msk [vmem:[#allocation4 + $0x60] sm:$0xff] %vm696, %v5586
        %5605 = vst.msk [vmem:[#allocation4 + $0x68] sm:$0xff] %vm696, %v5587
        %5606 = vst.msk [vmem:[#allocation4 + $0x70] sm:$0xff] %vm696, %v5588
        %5607 = vst.msk [vmem:[#allocation4 + $0x78] sm:$0xff] %vm696, %v5589
        %5608 = vst.msk [vmem:[#allocation4 + $0x80] sm:$0xff] %vm696, %v5590
        %5609 = vst.msk [vmem:[#allocation4 + $0x88] sm:$0xff] %vm696, %v5591
        %v5610 = vld [vmem:[#allocation3 + $0x34] sm:$0xff]
        %v5611 = vld [vmem:[#allocation3 + $0x3c] sm:$0xff]
        %v5612 = vld [vmem:[#allocation3 + $0x44] sm:$0xff]
        %v5613 = vld [vmem:[#allocation3 + $0x4c] sm:$0xff]
        %v5614 = vld [vmem:[#allocation3 + $0x54] sm:$0xff]
        %v5615 = vld [vmem:[#allocation3 + $0x5c] sm:$0xff]
        %v5616 = vld [vmem:[#allocation3 + $0x64] sm:$0xff]
        %v5617 = vld [vmem:[#allocation3 + $0x6c] sm:$0xff]
        %v5618 = vld [vmem:[#allocation3 + $0x74] sm:$0xff]
        %v5619 = vld [vmem:[#allocation3 + $0x7c] sm:$0xff]
        %v5620 = vld [vmem:[#allocation3 + $0x84] sm:$0xff]
        %v5621 = vld [vmem:[#allocation3 + $0x8c] sm:$0xff]
        %v5622 = vld [vmem:[#allocation3 + $0x94] sm:$0xff]
        %v5623 = vld [vmem:[#allocation3 + $0x9c] sm:$0xff]
        %v5624 = vld [vmem:[#allocation3 + $0xa4] sm:$0xff]
        %v5625 = vld [vmem:[#allocation3 + $0xac] sm:$0xff]
        %v5626 = vld [vmem:[#allocation3 + $0xb4] sm:$0xff]
        %v5627 = vld [vmem:[#allocation3 + $0xbc] sm:$0xff]
        %v5628 = vld [vmem:[#allocation2 + $0x1c] sm:$0x1]
        %v5629 = vperm.slane %v5628, 0
        %v5630 = vmul.f32 %v5610, %v5629
        %v5631 = vmul.f32 %v5611, %v5629
        %v5632 = vmul.f32 %v5612, %v5629
        %v5633 = vmul.f32 %v5613, %v5629
        %v5634 = vmul.f32 %v5614, %v5629
        %v5635 = vmul.f32 %v5615, %v5629
        %v5636 = vmul.f32 %v5616, %v5629
        %v5637 = vmul.f32 %v5617, %v5629
        %v5638 = vmul.f32 %v5618, %v5629
        %v5639 = vmul.f32 %v5619, %v5629
        %v5640 = vmul.f32 %v5620, %v5629
        %v5641 = vmul.f32 %v5621, %v5629
        %v5642 = vmul.f32 %v5622, %v5629
        %v5643 = vmul.f32 %v5623, %v5629
        %v5644 = vmul.f32 %v5624, %v5629
        %v5645 = vmul.f32 %v5625, %v5629
        %v5646 = vmul.f32 %v5626, %v5629
        %v5647 = vmul.f32 %v5627, %v5629
        %v5648 = vld [vmem:[#allocation4] sm:$0xff]
        %v5649 = vld [vmem:[#allocation4 + $0x8] sm:$0xff]
        %v5650 = vld [vmem:[#allocation4 + $0x10] sm:$0xff]
        %v5651 = vld [vmem:[#allocation4 + $0x18] sm:$0xff]
        %v5652 = vld [vmem:[#allocation4 + $0x20] sm:$0xff]
        %v5653 = vld [vmem:[#allocation4 + $0x28] sm:$0xff]
        %v5654 = vld [vmem:[#allocation4 + $0x30] sm:$0xff]
        %v5655 = vld [vmem:[#allocation4 + $0x38] sm:$0xff]
        %v5656 = vld [vmem:[#allocation4 + $0x40] sm:$0xff]
        %v5657 = vld [vmem:[#allocation4 + $0x48] sm:$0xff]
        %v5658 = vld [vmem:[#allocation4 + $0x50] sm:$0xff]
        %v5659 = vld [vmem:[#allocation4 + $0x58] sm:$0xff]
        %v5660 = vld [vmem:[#allocation4 + $0x60] sm:$0xff]
        %v5661 = vld [vmem:[#allocation4 + $0x68] sm:$0xff]
        %v5662 = vld [vmem:[#allocation4 + $0x70] sm:$0xff]
        %v5663 = vld [vmem:[#allocation4 + $0x78] sm:$0xff]
        %v5664 = vld [vmem:[#allocation4 + $0x80] sm:$0xff]
        %v5665 = vld [vmem:[#allocation4 + $0x88] sm:$0xff]
        %v5666 = vadd.f32 %v5648, %v5630
        %v5667 = vadd.f32 %v5649, %v5631
        %v5668 = vadd.f32 %v5650, %v5632
        %v5669 = vadd.f32 %v5651, %v5633
        %v5670 = vadd.f32 %v5652, %v5634
        %v5671 = vadd.f32 %v5653, %v5635
        %v5672 = vadd.f32 %v5654, %v5636
        %v5673 = vadd.f32 %v5655, %v5637
        %v5674 = vadd.f32 %v5656, %v5638
        %v5675 = vadd.f32 %v5657, %v5639
        %v5676 = vadd.f32 %v5658, %v5640
        %v5677 = vadd.f32 %v5659, %v5641
        %v5678 = vadd.f32 %v5660, %v5642
        %v5679 = vadd.f32 %v5661, %v5643
        %v5680 = vadd.f32 %v5662, %v5644
        %v5681 = vadd.f32 %v5663, %v5645
        %v5682 = vadd.f32 %v5664, %v5646
        %v5683 = vadd.f32 %v5665, %v5647
        %5684 = vst.msk [vmem:[#allocation4] sm:$0xff] %vm696, %v5666
        %5685 = vst.msk [vmem:[#allocation4 + $0x8] sm:$0xff] %vm696, %v5667
        %5686 = vst.msk [vmem:[#allocation4 + $0x10] sm:$0xff] %vm696, %v5668
        %5687 = vst.msk [vmem:[#allocation4 + $0x18] sm:$0xff] %vm696, %v5669
        %5688 = vst.msk [vmem:[#allocation4 + $0x20] sm:$0xff] %vm696, %v5670
        %5689 = vst.msk [vmem:[#allocation4 + $0x28] sm:$0xff] %vm696, %v5671
        %5690 = vst.msk [vmem:[#allocation4 + $0x30] sm:$0xff] %vm696, %v5672
        %5691 = vst.msk [vmem:[#allocation4 + $0x38] sm:$0xff] %vm696, %v5673
        %5692 = vst.msk [vmem:[#allocation4 + $0x40] sm:$0xff] %vm696, %v5674
        %5693 = vst.msk [vmem:[#allocation4 + $0x48] sm:$0xff] %vm696, %v5675
        %5694 = vst.msk [vmem:[#allocation4 + $0x50] sm:$0xff] %vm696, %v5676
        %5695 = vst.msk [vmem:[#allocation4 + $0x58] sm:$0xff] %vm696, %v5677
        %5696 = vst.msk [vmem:[#allocation4 + $0x60] sm:$0xff] %vm696, %v5678
        %5697 = vst.msk [vmem:[#allocation4 + $0x68] sm:$0xff] %vm696, %v5679
        %5698 = vst.msk [vmem:[#allocation4 + $0x70] sm:$0xff] %vm696, %v5680
        %5699 = vst.msk [vmem:[#allocation4 + $0x78] sm:$0xff] %vm696, %v5681
        %5700 = vst.msk [vmem:[#allocation4 + $0x80] sm:$0xff] %vm696, %v5682
        %5701 = vst.msk [vmem:[#allocation4 + $0x88] sm:$0xff] %vm696, %v5683
        %v5702 = vld [vmem:[#allocation3 + $0x35] sm:$0xff]
        %v5703 = vld [vmem:[#allocation3 + $0x3d] sm:$0xff]
        %v5704 = vld [vmem:[#allocation3 + $0x45] sm:$0xff]
        %v5705 = vld [vmem:[#allocation3 + $0x4d] sm:$0xff]
        %v5706 = vld [vmem:[#allocation3 + $0x55] sm:$0xff]
        %v5707 = vld [vmem:[#allocation3 + $0x5d] sm:$0xff]
        %v5708 = vld [vmem:[#allocation3 + $0x65] sm:$0xff]
        %v5709 = vld [vmem:[#allocation3 + $0x6d] sm:$0xff]
        %v5710 = vld [vmem:[#allocation3 + $0x75] sm:$0xff]
        %v5711 = vld [vmem:[#allocation3 + $0x7d] sm:$0xff]
        %v5712 = vld [vmem:[#allocation3 + $0x85] sm:$0xff]
        %v5713 = vld [vmem:[#allocation3 + $0x8d] sm:$0xff]
        %v5714 = vld [vmem:[#allocation3 + $0x95] sm:$0xff]
        %v5715 = vld [vmem:[#allocation3 + $0x9d] sm:$0xff]
        %v5716 = vld [vmem:[#allocation3 + $0xa5] sm:$0xff]
        %v5717 = vld [vmem:[#allocation3 + $0xad] sm:$0xff]
        %v5718 = vld [vmem:[#allocation3 + $0xb5] sm:$0xff]
        %v5719 = vld [vmem:[#allocation3 + $0xbd] sm:$0xff]
        %v5720 = vld [vmem:[#allocation2 + $0x1d] sm:$0x1]
        %v5721 = vperm.slane %v5720, 0
        %v5722 = vmul.f32 %v5702, %v5721
        %v5723 = vmul.f32 %v5703, %v5721
        %v5724 = vmul.f32 %v5704, %v5721
        %v5725 = vmul.f32 %v5705, %v5721
        %v5726 = vmul.f32 %v5706, %v5721
        %v5727 = vmul.f32 %v5707, %v5721
        %v5728 = vmul.f32 %v5708, %v5721
        %v5729 = vmul.f32 %v5709, %v5721
        %v5730 = vmul.f32 %v5710, %v5721
        %v5731 = vmul.f32 %v5711, %v5721
        %v5732 = vmul.f32 %v5712, %v5721
        %v5733 = vmul.f32 %v5713, %v5721
        %v5734 = vmul.f32 %v5714, %v5721
        %v5735 = vmul.f32 %v5715, %v5721
        %v5736 = vmul.f32 %v5716, %v5721
        %v5737 = vmul.f32 %v5717, %v5721
        %v5738 = vmul.f32 %v5718, %v5721
        %v5739 = vmul.f32 %v5719, %v5721
        %v5740 = vld [vmem:[#allocation4] sm:$0xff]
        %v5741 = vld [vmem:[#allocation4 + $0x8] sm:$0xff]
        %v5742 = vld [vmem:[#allocation4 + $0x10] sm:$0xff]
        %v5743 = vld [vmem:[#allocation4 + $0x18] sm:$0xff]
        %v5744 = vld [vmem:[#allocation4 + $0x20] sm:$0xff]
        %v5745 = vld [vmem:[#allocation4 + $0x28] sm:$0xff]
        %v5746 = vld [vmem:[#allocation4 + $0x30] sm:$0xff]
        %v5747 = vld [vmem:[#allocation4 + $0x38] sm:$0xff]
        %v5748 = vld [vmem:[#allocation4 + $0x40] sm:$0xff]
        %v5749 = vld [vmem:[#allocation4 + $0x48] sm:$0xff]
        %v5750 = vld [vmem:[#allocation4 + $0x50] sm:$0xff]
        %v5751 = vld [vmem:[#allocation4 + $0x58] sm:$0xff]
        %v5752 = vld [vmem:[#allocation4 + $0x60] sm:$0xff]
        %v5753 = vld [vmem:[#allocation4 + $0x68] sm:$0xff]
        %v5754 = vld [vmem:[#allocation4 + $0x70] sm:$0xff]
        %v5755 = vld [vmem:[#allocation4 + $0x78] sm:$0xff]
        %v5756 = vld [vmem:[#allocation4 + $0x80] sm:$0xff]
        %v5757 = vld [vmem:[#allocation4 + $0x88] sm:$0xff]
        %v5758 = vadd.f32 %v5740, %v5722
        %v5759 = vadd.f32 %v5741, %v5723
        %v5760 = vadd.f32 %v5742, %v5724
        %v5761 = vadd.f32 %v5743, %v5725
        %v5762 = vadd.f32 %v5744, %v5726
        %v5763 = vadd.f32 %v5745, %v5727
        %v5764 = vadd.f32 %v5746, %v5728
        %v5765 = vadd.f32 %v5747, %v5729
        %v5766 = vadd.f32 %v5748, %v5730
        %v5767 = vadd.f32 %v5749, %v5731
        %v5768 = vadd.f32 %v5750, %v5732
        %v5769 = vadd.f32 %v5751, %v5733
        %v5770 = vadd.f32 %v5752, %v5734
        %v5771 = vadd.f32 %v5753, %v5735
        %v5772 = vadd.f32 %v5754, %v5736
        %v5773 = vadd.f32 %v5755, %v5737
        %v5774 = vadd.f32 %v5756, %v5738
        %v5775 = vadd.f32 %v5757, %v5739
        %5776 = vst.msk [vmem:[#allocation4] sm:$0xff] %vm696, %v5758
        %5777 = vst.msk [vmem:[#allocation4 + $0x8] sm:$0xff] %vm696, %v5759
        %5778 = vst.msk [vmem:[#allocation4 + $0x10] sm:$0xff] %vm696, %v5760
        %5779 = vst.msk [vmem:[#allocation4 + $0x18] sm:$0xff] %vm696, %v5761
        %5780 = vst.msk [vmem:[#allocation4 + $0x20] sm:$0xff] %vm696, %v5762
        %5781 = vst.msk [vmem:[#allocation4 + $0x28] sm:$0xff] %vm696, %v5763
        %5782 = vst.msk [vmem:[#allocation4 + $0x30] sm:$0xff] %vm696, %v5764
        %5783 = vst.msk [vmem:[#allocation4 + $0x38] sm:$0xff] %vm696, %v5765
        %5784 = vst.msk [vmem:[#allocation4 + $0x40] sm:$0xff] %vm696, %v5766
        %5785 = vst.msk [vmem:[#allocation4 + $0x48] sm:$0xff] %vm696, %v5767
        %5786 = vst.msk [vmem:[#allocation4 + $0x50] sm:$0xff] %vm696, %v5768
        %5787 = vst.msk [vmem:[#allocation4 + $0x58] sm:$0xff] %vm696, %v5769
        %5788 = vst.msk [vmem:[#allocation4 + $0x60] sm:$0xff] %vm696, %v5770
        %5789 = vst.msk [vmem:[#allocation4 + $0x68] sm:$0xff] %vm696, %v5771
        %5790 = vst.msk [vmem:[#allocation4 + $0x70] sm:$0xff] %vm696, %v5772
        %5791 = vst.msk [vmem:[#allocation4 + $0x78] sm:$0xff] %vm696, %v5773
        %5792 = vst.msk [vmem:[#allocation4 + $0x80] sm:$0xff] %vm696, %v5774
        %5793 = vst.msk [vmem:[#allocation4 + $0x88] sm:$0xff] %vm696, %v5775
        %v5794 = vld [vmem:[#allocation3 + $0x40] sm:$0xff]
        %v5795 = vld [vmem:[#allocation3 + $0x48] sm:$0xff]
        %v5796 = vld [vmem:[#allocation3 + $0x50] sm:$0xff]
        %v5797 = vld [vmem:[#allocation3 + $0x58] sm:$0xff]
        %v5798 = vld [vmem:[#allocation3 + $0x60] sm:$0xff]
        %v5799 = vld [vmem:[#allocation3 + $0x68] sm:$0xff]
        %v5800 = vld [vmem:[#allocation3 + $0x70] sm:$0xff]
        %v5801 = vld [vmem:[#allocation3 + $0x78] sm:$0xff]
        %v5802 = vld [vmem:[#allocation3 + $0x80] sm:$0xff]
        %v5803 = vld [vmem:[#allocation3 + $0x88] sm:$0xff]
        %v5804 = vld [vmem:[#allocation3 + $0x90] sm:$0xff]
        %v5805 = vld [vmem:[#allocation3 + $0x98] sm:$0xff]
        %v5806 = vld [vmem:[#allocation3 + $0xa0] sm:$0xff]
        %v5807 = vld [vmem:[#allocation3 + $0xa8] sm:$0xff]
        %v5808 = vld [vmem:[#allocation3 + $0xb0] sm:$0xff]
        %v5809 = vld [vmem:[#allocation3 + $0xb8] sm:$0xff]
        %v5810 = vld [vmem:[#allocation3 + $0xc0] sm:$0xff]
        %v5811 = vld [vmem:[#allocation3 + $0xc8] sm:$0xff]
        %v5812 = vld [vmem:[#allocation2 + $0x20] sm:$0x1]
        %v5813 = vperm.slane %v5812, 0
        %v5814 = vmul.f32 %v5794, %v5813
        %v5815 = vmul.f32 %v5795, %v5813
        %v5816 = vmul.f32 %v5796, %v5813
        %v5817 = vmul.f32 %v5797, %v5813
        %v5818 = vmul.f32 %v5798, %v5813
        %v5819 = vmul.f32 %v5799, %v5813
        %v5820 = vmul.f32 %v5800, %v5813
        %v5821 = vmul.f32 %v5801, %v5813
        %v5822 = vmul.f32 %v5802, %v5813
        %v5823 = vmul.f32 %v5803, %v5813
        %v5824 = vmul.f32 %v5804, %v5813
        %v5825 = vmul.f32 %v5805, %v5813
        %v5826 = vmul.f32 %v5806, %v5813
        %v5827 = vmul.f32 %v5807, %v5813
        %v5828 = vmul.f32 %v5808, %v5813
        %v5829 = vmul.f32 %v5809, %v5813
        %v5830 = vmul.f32 %v5810, %v5813
        %v5831 = vmul.f32 %v5811, %v5813
        %v5832 = vld [vmem:[#allocation4] sm:$0xff]
        %v5833 = vld [vmem:[#allocation4 + $0x8] sm:$0xff]
        %v5834 = vld [vmem:[#allocation4 + $0x10] sm:$0xff]
        %v5835 = vld [vmem:[#allocation4 + $0x18] sm:$0xff]
        %v5836 = vld [vmem:[#allocation4 + $0x20] sm:$0xff]
        %v5837 = vld [vmem:[#allocation4 + $0x28] sm:$0xff]
        %v5838 = vld [vmem:[#allocation4 + $0x30] sm:$0xff]
        %v5839 = vld [vmem:[#allocation4 + $0x38] sm:$0xff]
        %v5840 = vld [vmem:[#allocation4 + $0x40] sm:$0xff]
        %v5841 = vld [vmem:[#allocation4 + $0x48] sm:$0xff]
        %v5842 = vld [vmem:[#allocation4 + $0x50] sm:$0xff]
        %v5843 = vld [vmem:[#allocation4 + $0x58] sm:$0xff]
        %v5844 = vld [vmem:[#allocation4 + $0x60] sm:$0xff]
        %v5845 = vld [vmem:[#allocation4 + $0x68] sm:$0xff]
        %v5846 = vld [vmem:[#allocation4 + $0x70] sm:$0xff]
        %v5847 = vld [vmem:[#allocation4 + $0x78] sm:$0xff]
        %v5848 = vld [vmem:[#allocation4 + $0x80] sm:$0xff]
        %v5849 = vld [vmem:[#allocation4 + $0x88] sm:$0xff]
        %v5850 = vadd.f32 %v5832, %v5814
        %v5851 = vadd.f32 %v5833, %v5815
        %v5852 = vadd.f32 %v5834, %v5816
        %v5853 = vadd.f32 %v5835, %v5817
        %v5854 = vadd.f32 %v5836, %v5818
        %v5855 = vadd.f32 %v5837, %v5819
        %v5856 = vadd.f32 %v5838, %v5820
        %v5857 = vadd.f32 %v5839, %v5821
        %v5858 = vadd.f32 %v5840, %v5822
        %v5859 = vadd.f32 %v5841, %v5823
        %v5860 = vadd.f32 %v5842, %v5824
        %v5861 = vadd.f32 %v5843, %v5825
        %v5862 = vadd.f32 %v5844, %v5826
        %v5863 = vadd.f32 %v5845, %v5827
        %v5864 = vadd.f32 %v5846, %v5828
        %v5865 = vadd.f32 %v5847, %v5829
        %v5866 = vadd.f32 %v5848, %v5830
        %v5867 = vadd.f32 %v5849, %v5831
        %5868 = vst.msk [vmem:[#allocation4] sm:$0xff] %vm696, %v5850
        %5869 = vst.msk [vmem:[#allocation4 + $0x8] sm:$0xff] %vm696, %v5851
        %5870 = vst.msk [vmem:[#allocation4 + $0x10] sm:$0xff] %vm696, %v5852
        %5871 = vst.msk [vmem:[#allocation4 + $0x18] sm:$0xff] %vm696, %v5853
        %5872 = vst.msk [vmem:[#allocation4 + $0x20] sm:$0xff] %vm696, %v5854
        %5873 = vst.msk [vmem:[#allocation4 + $0x28] sm:$0xff] %vm696, %v5855
        %5874 = vst.msk [vmem:[#allocation4 + $0x30] sm:$0xff] %vm696, %v5856
        %5875 = vst.msk [vmem:[#allocation4 + $0x38] sm:$0xff] %vm696, %v5857
        %5876 = vst.msk [vmem:[#allocation4 + $0x40] sm:$0xff] %vm696, %v5858
        %5877 = vst.msk [vmem:[#allocation4 + $0x48] sm:$0xff] %vm696, %v5859
        %5878 = vst.msk [vmem:[#allocation4 + $0x50] sm:$0xff] %vm696, %v5860
        %5879 = vst.msk [vmem:[#allocation4 + $0x58] sm:$0xff] %vm696, %v5861
        %5880 = vst.msk [vmem:[#allocation4 + $0x60] sm:$0xff] %vm696, %v5862
        %5881 = vst.msk [vmem:[#allocation4 + $0x68] sm:$0xff] %vm696, %v5863
        %5882 = vst.msk [vmem:[#allocation4 + $0x70] sm:$0xff] %vm696, %v5864
        %5883 = vst.msk [vmem:[#allocation4 + $0x78] sm:$0xff] %vm696, %v5865
        %5884 = vst.msk [vmem:[#allocation4 + $0x80] sm:$0xff] %vm696, %v5866
        %5885 = vst.msk [vmem:[#allocation4 + $0x88] sm:$0xff] %vm696, %v5867
        %v5886 = vld [vmem:[#allocation3 + $0x41] sm:$0xff]
        %v5887 = vld [vmem:[#allocation3 + $0x49] sm:$0xff]
        %v5888 = vld [vmem:[#allocation3 + $0x51] sm:$0xff]
        %v5889 = vld [vmem:[#allocation3 + $0x59] sm:$0xff]
        %v5890 = vld [vmem:[#allocation3 + $0x61] sm:$0xff]
        %v5891 = vld [vmem:[#allocation3 + $0x69] sm:$0xff]
        %v5892 = vld [vmem:[#allocation3 + $0x71] sm:$0xff]
        %v5893 = vld [vmem:[#allocation3 + $0x79] sm:$0xff]
        %v5894 = vld [vmem:[#allocation3 + $0x81] sm:$0xff]
        %v5895 = vld [vmem:[#allocation3 + $0x89] sm:$0xff]
        %v5896 = vld [vmem:[#allocation3 + $0x91] sm:$0xff]
        %v5897 = vld [vmem:[#allocation3 + $0x99] sm:$0xff]
        %v5898 = vld [vmem:[#allocation3 + $0xa1] sm:$0xff]
        %v5899 = vld [vmem:[#allocation3 + $0xa9] sm:$0xff]
        %v5900 = vld [vmem:[#allocation3 + $0xb1] sm:$0xff]
        %v5901 = vld [vmem:[#allocation3 + $0xb9] sm:$0xff]
        %v5902 = vld [vmem:[#allocation3 + $0xc1] sm:$0xff]
        %v5903 = vld [vmem:[#allocation3 + $0xc9] sm:$0xff]
        %v5904 = vld [vmem:[#allocation2 + $0x21] sm:$0x1]
        %v5905 = vperm.slane %v5904, 0
        %v5906 = vmul.f32 %v5886, %v5905
        %v5907 = vmul.f32 %v5887, %v5905
        %v5908 = vmul.f32 %v5888, %v5905
        %v5909 = vmul.f32 %v5889, %v5905
        %v5910 = vmul.f32 %v5890, %v5905
        %v5911 = vmul.f32 %v5891, %v5905
        %v5912 = vmul.f32 %v5892, %v5905
        %v5913 = vmul.f32 %v5893, %v5905
        %v5914 = vmul.f32 %v5894, %v5905
        %v5915 = vmul.f32 %v5895, %v5905
        %v5916 = vmul.f32 %v5896, %v5905
        %v5917 = vmul.f32 %v5897, %v5905
        %v5918 = vmul.f32 %v5898, %v5905
        %v5919 = vmul.f32 %v5899, %v5905
        %v5920 = vmul.f32 %v5900, %v5905
        %v5921 = vmul.f32 %v5901, %v5905
        %v5922 = vmul.f32 %v5902, %v5905
        %v5923 = vmul.f32 %v5903, %v5905
        %v5924 = vld [vmem:[#allocation4] sm:$0xff]
        %v5925 = vld [vmem:[#allocation4 + $0x8] sm:$0xff]
        %v5926 = vld [vmem:[#allocation4 + $0x10] sm:$0xff]
        %v5927 = vld [vmem:[#allocation4 + $0x18] sm:$0xff]
        %v5928 = vld [vmem:[#allocation4 + $0x20] sm:$0xff]
        %v5929 = vld [vmem:[#allocation4 + $0x28] sm:$0xff]
        %v5930 = vld [vmem:[#allocation4 + $0x30] sm:$0xff]
        %v5931 = vld [vmem:[#allocation4 + $0x38] sm:$0xff]
        %v5932 = vld [vmem:[#allocation4 + $0x40] sm:$0xff]
        %v5933 = vld [vmem:[#allocation4 + $0x48] sm:$0xff]
        %v5934 = vld [vmem:[#allocation4 + $0x50] sm:$0xff]
        %v5935 = vld [vmem:[#allocation4 + $0x58] sm:$0xff]
        %v5936 = vld [vmem:[#allocation4 + $0x60] sm:$0xff]
        %v5937 = vld [vmem:[#allocation4 + $0x68] sm:$0xff]
        %v5938 = vld [vmem:[#allocation4 + $0x70] sm:$0xff]
        %v5939 = vld [vmem:[#allocation4 + $0x78] sm:$0xff]
        %v5940 = vld [vmem:[#allocation4 + $0x80] sm:$0xff]
        %v5941 = vld [vmem:[#allocation4 + $0x88] sm:$0xff]
        %v5942 = vadd.f32 %v5924, %v5906
        %v5943 = vadd.f32 %v5925, %v5907
        %v5944 = vadd.f32 %v5926, %v5908
        %v5945 = vadd.f32 %v5927, %v5909
        %v5946 = vadd.f32 %v5928, %v5910
        %v5947 = vadd.f32 %v5929, %v5911
        %v5948 = vadd.f32 %v5930, %v5912
        %v5949 = vadd.f32 %v5931, %v5913
        %v5950 = vadd.f32 %v5932, %v5914
        %v5951 = vadd.f32 %v5933, %v5915
        %v5952 = vadd.f32 %v5934, %v5916
        %v5953 = vadd.f32 %v5935, %v5917
        %v5954 = vadd.f32 %v5936, %v5918
        %v5955 = vadd.f32 %v5937, %v5919
        %v5956 = vadd.f32 %v5938, %v5920
        %v5957 = vadd.f32 %v5939, %v5921
        %v5958 = vadd.f32 %v5940, %v5922
        %v5959 = vadd.f32 %v5941, %v5923
        %5960 = vst.msk [vmem:[#allocation4] sm:$0xff] %vm696, %v5942
        %5961 = vst.msk [vmem:[#allocation4 + $0x8] sm:$0xff] %vm696, %v5943
        %5962 = vst.msk [vmem:[#allocation4 + $0x10] sm:$0xff] %vm696, %v5944
        %5963 = vst.msk [vmem:[#allocation4 + $0x18] sm:$0xff] %vm696, %v5945
        %5964 = vst.msk [vmem:[#allocation4 + $0x20] sm:$0xff] %vm696, %v5946
        %5965 = vst.msk [vmem:[#allocation4 + $0x28] sm:$0xff] %vm696, %v5947
        %5966 = vst.msk [vmem:[#allocation4 + $0x30] sm:$0xff] %vm696, %v5948
        %5967 = vst.msk [vmem:[#allocation4 + $0x38] sm:$0xff] %vm696, %v5949
        %5968 = vst.msk [vmem:[#allocation4 + $0x40] sm:$0xff] %vm696, %v5950
        %5969 = vst.msk [vmem:[#allocation4 + $0x48] sm:$0xff] %vm696, %v5951
        %5970 = vst.msk [vmem:[#allocation4 + $0x50] sm:$0xff] %vm696, %v5952
        %5971 = vst.msk [vmem:[#allocation4 + $0x58] sm:$0xff] %vm696, %v5953
        %5972 = vst.msk [vmem:[#allocation4 + $0x60] sm:$0xff] %vm696, %v5954
        %5973 = vst.msk [vmem:[#allocation4 + $0x68] sm:$0xff] %vm696, %v5955
        %5974 = vst.msk [vmem:[#allocation4 + $0x70] sm:$0xff] %vm696, %v5956
        %5975 = vst.msk [vmem:[#allocation4 + $0x78] sm:$0xff] %vm696, %v5957
        %5976 = vst.msk [vmem:[#allocation4 + $0x80] sm:$0xff] %vm696, %v5958
        %5977 = vst.msk [vmem:[#allocation4 + $0x88] sm:$0xff] %vm696, %v5959
        %v5978 = vld [vmem:[#allocation3 + $0x42] sm:$0xff]
        %v5979 = vld [vmem:[#allocation3 + $0x4a] sm:$0xff]
        %v5980 = vld [vmem:[#allocation3 + $0x52] sm:$0xff]
        %v5981 = vld [vmem:[#allocation3 + $0x5a] sm:$0xff]
        %v5982 = vld [vmem:[#allocation3 + $0x62] sm:$0xff]
        %v5983 = vld [vmem:[#allocation3 + $0x6a] sm:$0xff]
        %v5984 = vld [vmem:[#allocation3 + $0x72] sm:$0xff]
        %v5985 = vld [vmem:[#allocation3 + $0x7a] sm:$0xff]
        %v5986 = vld [vmem:[#allocation3 + $0x82] sm:$0xff]
        %v5987 = vld [vmem:[#allocation3 + $0x8a] sm:$0xff]
        %v5988 = vld [vmem:[#allocation3 + $0x92] sm:$0xff]
        %v5989 = vld [vmem:[#allocation3 + $0x9a] sm:$0xff]
        %v5990 = vld [vmem:[#allocation3 + $0xa2] sm:$0xff]
        %v5991 = vld [vmem:[#allocation3 + $0xaa] sm:$0xff]
        %v5992 = vld [vmem:[#allocation3 + $0xb2] sm:$0xff]
        %v5993 = vld [vmem:[#allocation3 + $0xba] sm:$0xff]
        %v5994 = vld [vmem:[#allocation3 + $0xc2] sm:$0xff]
        %v5995 = vld [vmem:[#allocation3 + $0xca] sm:$0xff]
        %v5996 = vld [vmem:[#allocation2 + $0x22] sm:$0x1]
        %v5997 = vperm.slane %v5996, 0
        %v5998 = vmul.f32 %v5978, %v5997
        %v5999 = vmul.f32 %v5979, %v5997
        %v6000 = vmul.f32 %v5980, %v5997
        %v6001 = vmul.f32 %v5981, %v5997
        %v6002 = vmul.f32 %v5982, %v5997
        %v6003 = vmul.f32 %v5983, %v5997
        %v6004 = vmul.f32 %v5984, %v5997
        %v6005 = vmul.f32 %v5985, %v5997
        %v6006 = vmul.f32 %v5986, %v5997
        %v6007 = vmul.f32 %v5987, %v5997
        %v6008 = vmul.f32 %v5988, %v5997
        %v6009 = vmul.f32 %v5989, %v5997
        %v6010 = vmul.f32 %v5990, %v5997
        %v6011 = vmul.f32 %v5991, %v5997
        %v6012 = vmul.f32 %v5992, %v5997
        %v6013 = vmul.f32 %v5993, %v5997
        %v6014 = vmul.f32 %v5994, %v5997
        %v6015 = vmul.f32 %v5995, %v5997
        %v6016 = vld [vmem:[#allocation4] sm:$0xff]
        %v6017 = vld [vmem:[#allocation4 + $0x8] sm:$0xff]
        %v6018 = vld [vmem:[#allocation4 + $0x10] sm:$0xff]
        %v6019 = vld [vmem:[#allocation4 + $0x18] sm:$0xff]
        %v6020 = vld [vmem:[#allocation4 + $0x20] sm:$0xff]
        %v6021 = vld [vmem:[#allocation4 + $0x28] sm:$0xff]
        %v6022 = vld [vmem:[#allocation4 + $0x30] sm:$0xff]
        %v6023 = vld [vmem:[#allocation4 + $0x38] sm:$0xff]
        %v6024 = vld [vmem:[#allocation4 + $0x40] sm:$0xff]
        %v6025 = vld [vmem:[#allocation4 + $0x48] sm:$0xff]
        %v6026 = vld [vmem:[#allocation4 + $0x50] sm:$0xff]
        %v6027 = vld [vmem:[#allocation4 + $0x58] sm:$0xff]
        %v6028 = vld [vmem:[#allocation4 + $0x60] sm:$0xff]
        %v6029 = vld [vmem:[#allocation4 + $0x68] sm:$0xff]
        %v6030 = vld [vmem:[#allocation4 + $0x70] sm:$0xff]
        %v6031 = vld [vmem:[#allocation4 + $0x78] sm:$0xff]
        %v6032 = vld [vmem:[#allocation4 + $0x80] sm:$0xff]
        %v6033 = vld [vmem:[#allocation4 + $0x88] sm:$0xff]
        %v6034 = vadd.f32 %v6016, %v5998
        %v6035 = vadd.f32 %v6017, %v5999
        %v6036 = vadd.f32 %v6018, %v6000
        %v6037 = vadd.f32 %v6019, %v6001
        %v6038 = vadd.f32 %v6020, %v6002
        %v6039 = vadd.f32 %v6021, %v6003
        %v6040 = vadd.f32 %v6022, %v6004
        %v6041 = vadd.f32 %v6023, %v6005
        %v6042 = vadd.f32 %v6024, %v6006
        %v6043 = vadd.f32 %v6025, %v6007
        %v6044 = vadd.f32 %v6026, %v6008
        %v6045 = vadd.f32 %v6027, %v6009
        %v6046 = vadd.f32 %v6028, %v6010
        %v6047 = vadd.f32 %v6029, %v6011
        %v6048 = vadd.f32 %v6030, %v6012
        %v6049 = vadd.f32 %v6031, %v6013
        %v6050 = vadd.f32 %v6032, %v6014
        %v6051 = vadd.f32 %v6033, %v6015
        %6052 = vst.msk [vmem:[#allocation4] sm:$0xff] %vm696, %v6034
        %6053 = vst.msk [vmem:[#allocation4 + $0x8] sm:$0xff] %vm696, %v6035
        %6054 = vst.msk [vmem:[#allocation4 + $0x10] sm:$0xff] %vm696, %v6036
        %6055 = vst.msk [vmem:[#allocation4 + $0x18] sm:$0xff] %vm696, %v6037
        %6056 = vst.msk [vmem:[#allocation4 + $0x20] sm:$0xff] %vm696, %v6038
        %6057 = vst.msk [vmem:[#allocation4 + $0x28] sm:$0xff] %vm696, %v6039
        %6058 = vst.msk [vmem:[#allocation4 + $0x30] sm:$0xff] %vm696, %v6040
        %6059 = vst.msk [vmem:[#allocation4 + $0x38] sm:$0xff] %vm696, %v6041
        %6060 = vst.msk [vmem:[#allocation4 + $0x40] sm:$0xff] %vm696, %v6042
        %6061 = vst.msk [vmem:[#allocation4 + $0x48] sm:$0xff] %vm696, %v6043
        %6062 = vst.msk [vmem:[#allocation4 + $0x50] sm:$0xff] %vm696, %v6044
        %6063 = vst.msk [vmem:[#allocation4 + $0x58] sm:$0xff] %vm696, %v6045
        %6064 = vst.msk [vmem:[#allocation4 + $0x60] sm:$0xff] %vm696, %v6046
        %6065 = vst.msk [vmem:[#allocation4 + $0x68] sm:$0xff] %vm696, %v6047
        %6066 = vst.msk [vmem:[#allocation4 + $0x70] sm:$0xff] %vm696, %v6048
        %6067 = vst.msk [vmem:[#allocation4 + $0x78] sm:$0xff] %vm696, %v6049
        %6068 = vst.msk [vmem:[#allocation4 + $0x80] sm:$0xff] %vm696, %v6050
        %6069 = vst.msk [vmem:[#allocation4 + $0x88] sm:$0xff] %vm696, %v6051
        %v6070 = vld [vmem:[#allocation3 + $0x43] sm:$0xff]
        %v6071 = vld [vmem:[#allocation3 + $0x4b] sm:$0xff]
        %v6072 = vld [vmem:[#allocation3 + $0x53] sm:$0xff]
        %v6073 = vld [vmem:[#allocation3 + $0x5b] sm:$0xff]
        %v6074 = vld [vmem:[#allocation3 + $0x63] sm:$0xff]
        %v6075 = vld [vmem:[#allocation3 + $0x6b] sm:$0xff]
        %v6076 = vld [vmem:[#allocation3 + $0x73] sm:$0xff]
        %v6077 = vld [vmem:[#allocation3 + $0x7b] sm:$0xff]
        %v6078 = vld [vmem:[#allocation3 + $0x83] sm:$0xff]
        %v6079 = vld [vmem:[#allocation3 + $0x8b] sm:$0xff]
        %v6080 = vld [vmem:[#allocation3 + $0x93] sm:$0xff]
        %v6081 = vld [vmem:[#allocation3 + $0x9b] sm:$0xff]
        %v6082 = vld [vmem:[#allocation3 + $0xa3] sm:$0xff]
        %v6083 = vld [vmem:[#allocation3 + $0xab] sm:$0xff]
        %v6084 = vld [vmem:[#allocation3 + $0xb3] sm:$0xff]
        %v6085 = vld [vmem:[#allocation3 + $0xbb] sm:$0xff]
        %v6086 = vld [vmem:[#allocation3 + $0xc3] sm:$0xff]
        %v6087 = vld [vmem:[#allocation3 + $0xcb] sm:$0xff]
        %v6088 = vld [vmem:[#allocation2 + $0x23] sm:$0x1]
        %v6089 = vperm.slane %v6088, 0
        %v6090 = vmul.f32 %v6070, %v6089
        %v6091 = vmul.f32 %v6071, %v6089
        %v6092 = vmul.f32 %v6072, %v6089
        %v6093 = vmul.f32 %v6073, %v6089
        %v6094 = vmul.f32 %v6074, %v6089
        %v6095 = vmul.f32 %v6075, %v6089
        %v6096 = vmul.f32 %v6076, %v6089
        %v6097 = vmul.f32 %v6077, %v6089
        %v6098 = vmul.f32 %v6078, %v6089
        %v6099 = vmul.f32 %v6079, %v6089
        %v6100 = vmul.f32 %v6080, %v6089
        %v6101 = vmul.f32 %v6081, %v6089
        %v6102 = vmul.f32 %v6082, %v6089
        %v6103 = vmul.f32 %v6083, %v6089
        %v6104 = vmul.f32 %v6084, %v6089
        %v6105 = vmul.f32 %v6085, %v6089
        %v6106 = vmul.f32 %v6086, %v6089
        %v6107 = vmul.f32 %v6087, %v6089
        %v6108 = vld [vmem:[#allocation4] sm:$0xff]
        %v6109 = vld [vmem:[#allocation4 + $0x8] sm:$0xff]
        %v6110 = vld [vmem:[#allocation4 + $0x10] sm:$0xff]
        %v6111 = vld [vmem:[#allocation4 + $0x18] sm:$0xff]
        %v6112 = vld [vmem:[#allocation4 + $0x20] sm:$0xff]
        %v6113 = vld [vmem:[#allocation4 + $0x28] sm:$0xff]
        %v6114 = vld [vmem:[#allocation4 + $0x30] sm:$0xff]
        %v6115 = vld [vmem:[#allocation4 + $0x38] sm:$0xff]
        %v6116 = vld [vmem:[#allocation4 + $0x40] sm:$0xff]
        %v6117 = vld [vmem:[#allocation4 + $0x48] sm:$0xff]
        %v6118 = vld [vmem:[#allocation4 + $0x50] sm:$0xff]
        %v6119 = vld [vmem:[#allocation4 + $0x58] sm:$0xff]
        %v6120 = vld [vmem:[#allocation4 + $0x60] sm:$0xff]
        %v6121 = vld [vmem:[#allocation4 + $0x68] sm:$0xff]
        %v6122 = vld [vmem:[#allocation4 + $0x70] sm:$0xff]
        %v6123 = vld [vmem:[#allocation4 + $0x78] sm:$0xff]
        %v6124 = vld [vmem:[#allocation4 + $0x80] sm:$0xff]
        %v6125 = vld [vmem:[#allocation4 + $0x88] sm:$0xff]
        %v6126 = vadd.f32 %v6108, %v6090
        %v6127 = vadd.f32 %v6109, %v6091
        %v6128 = vadd.f32 %v6110, %v6092
        %v6129 = vadd.f32 %v6111, %v6093
        %v6130 = vadd.f32 %v6112, %v6094
        %v6131 = vadd.f32 %v6113, %v6095
        %v6132 = vadd.f32 %v6114, %v6096
        %v6133 = vadd.f32 %v6115, %v6097
        %v6134 = vadd.f32 %v6116, %v6098
        %v6135 = vadd.f32 %v6117, %v6099
        %v6136 = vadd.f32 %v6118, %v6100
        %v6137 = vadd.f32 %v6119, %v6101
        %v6138 = vadd.f32 %v6120, %v6102
        %v6139 = vadd.f32 %v6121, %v6103
        %v6140 = vadd.f32 %v6122, %v6104
        %v6141 = vadd.f32 %v6123, %v6105
        %v6142 = vadd.f32 %v6124, %v6106
        %v6143 = vadd.f32 %v6125, %v6107
        %6144 = vst.msk [vmem:[#allocation4] sm:$0xff] %vm696, %v6126
        %6145 = vst.msk [vmem:[#allocation4 + $0x8] sm:$0xff] %vm696, %v6127
        %6146 = vst.msk [vmem:[#allocation4 + $0x10] sm:$0xff] %vm696, %v6128
        %6147 = vst.msk [vmem:[#allocation4 + $0x18] sm:$0xff] %vm696, %v6129
        %6148 = vst.msk [vmem:[#allocation4 + $0x20] sm:$0xff] %vm696, %v6130
        %6149 = vst.msk [vmem:[#allocation4 + $0x28] sm:$0xff] %vm696, %v6131
        %6150 = vst.msk [vmem:[#allocation4 + $0x30] sm:$0xff] %vm696, %v6132
        %6151 = vst.msk [vmem:[#allocation4 + $0x38] sm:$0xff] %vm696, %v6133
        %6152 = vst.msk [vmem:[#allocation4 + $0x40] sm:$0xff] %vm696, %v6134
        %6153 = vst.msk [vmem:[#allocation4 + $0x48] sm:$0xff] %vm696, %v6135
        %6154 = vst.msk [vmem:[#allocation4 + $0x50] sm:$0xff] %vm696, %v6136
        %6155 = vst.msk [vmem:[#allocation4 + $0x58] sm:$0xff] %vm696, %v6137
        %6156 = vst.msk [vmem:[#allocation4 + $0x60] sm:$0xff] %vm696, %v6138
        %6157 = vst.msk [vmem:[#allocation4 + $0x68] sm:$0xff] %vm696, %v6139
        %6158 = vst.msk [vmem:[#allocation4 + $0x70] sm:$0xff] %vm696, %v6140
        %6159 = vst.msk [vmem:[#allocation4 + $0x78] sm:$0xff] %vm696, %v6141
        %6160 = vst.msk [vmem:[#allocation4 + $0x80] sm:$0xff] %vm696, %v6142
        %6161 = vst.msk [vmem:[#allocation4 + $0x88] sm:$0xff] %vm696, %v6143
        %v6162 = vld [vmem:[#allocation3 + $0x44] sm:$0xff]
        %v6163 = vld [vmem:[#allocation3 + $0x4c] sm:$0xff]
        %v6164 = vld [vmem:[#allocation3 + $0x54] sm:$0xff]
        %v6165 = vld [vmem:[#allocation3 + $0x5c] sm:$0xff]
        %v6166 = vld [vmem:[#allocation3 + $0x64] sm:$0xff]
        %v6167 = vld [vmem:[#allocation3 + $0x6c] sm:$0xff]
        %v6168 = vld [vmem:[#allocation3 + $0x74] sm:$0xff]
        %v6169 = vld [vmem:[#allocation3 + $0x7c] sm:$0xff]
        %v6170 = vld [vmem:[#allocation3 + $0x84] sm:$0xff]
        %v6171 = vld [vmem:[#allocation3 + $0x8c] sm:$0xff]
        %v6172 = vld [vmem:[#allocation3 + $0x94] sm:$0xff]
        %v6173 = vld [vmem:[#allocation3 + $0x9c] sm:$0xff]
        %v6174 = vld [vmem:[#allocation3 + $0xa4] sm:$0xff]
        %v6175 = vld [vmem:[#allocation3 + $0xac] sm:$0xff]
        %v6176 = vld [vmem:[#allocation3 + $0xb4] sm:$0xff]
        %v6177 = vld [vmem:[#allocation3 + $0xbc] sm:$0xff]
        %v6178 = vld [vmem:[#allocation3 + $0xc4] sm:$0xff]
        %v6179 = vld [vmem:[#allocation3 + $0xcc] sm:$0xff]
        %v6180 = vld [vmem:[#allocation2 + $0x24] sm:$0x1]
        %v6181 = vperm.slane %v6180, 0
        %v6182 = vmul.f32 %v6162, %v6181
        %v6183 = vmul.f32 %v6163, %v6181
        %v6184 = vmul.f32 %v6164, %v6181
        %v6185 = vmul.f32 %v6165, %v6181
        %v6186 = vmul.f32 %v6166, %v6181
        %v6187 = vmul.f32 %v6167, %v6181
        %v6188 = vmul.f32 %v6168, %v6181
        %v6189 = vmul.f32 %v6169, %v6181
        %v6190 = vmul.f32 %v6170, %v6181
        %v6191 = vmul.f32 %v6171, %v6181
        %v6192 = vmul.f32 %v6172, %v6181
        %v6193 = vmul.f32 %v6173, %v6181
        %v6194 = vmul.f32 %v6174, %v6181
        %v6195 = vmul.f32 %v6175, %v6181
        %v6196 = vmul.f32 %v6176, %v6181
        %v6197 = vmul.f32 %v6177, %v6181
        %v6198 = vmul.f32 %v6178, %v6181
        %v6199 = vmul.f32 %v6179, %v6181
        %v6200 = vld [vmem:[#allocation4] sm:$0xff]
        %v6201 = vld [vmem:[#allocation4 + $0x8] sm:$0xff]
        %v6202 = vld [vmem:[#allocation4 + $0x10] sm:$0xff]
        %v6203 = vld [vmem:[#allocation4 + $0x18] sm:$0xff]
        %v6204 = vld [vmem:[#allocation4 + $0x20] sm:$0xff]
        %v6205 = vld [vmem:[#allocation4 + $0x28] sm:$0xff]
        %v6206 = vld [vmem:[#allocation4 + $0x30] sm:$0xff]
        %v6207 = vld [vmem:[#allocation4 + $0x38] sm:$0xff]
        %v6208 = vld [vmem:[#allocation4 + $0x40] sm:$0xff]
        %v6209 = vld [vmem:[#allocation4 + $0x48] sm:$0xff]
        %v6210 = vld [vmem:[#allocation4 + $0x50] sm:$0xff]
        %v6211 = vld [vmem:[#allocation4 + $0x58] sm:$0xff]
        %v6212 = vld [vmem:[#allocation4 + $0x60] sm:$0xff]
        %v6213 = vld [vmem:[#allocation4 + $0x68] sm:$0xff]
        %v6214 = vld [vmem:[#allocation4 + $0x70] sm:$0xff]
        %v6215 = vld [vmem:[#allocation4 + $0x78] sm:$0xff]
        %v6216 = vld [vmem:[#allocation4 + $0x80] sm:$0xff]
        %v6217 = vld [vmem:[#allocation4 + $0x88] sm:$0xff]
        %v6218 = vadd.f32 %v6200, %v6182
        %v6219 = vadd.f32 %v6201, %v6183
        %v6220 = vadd.f32 %v6202, %v6184
        %v6221 = vadd.f32 %v6203, %v6185
        %v6222 = vadd.f32 %v6204, %v6186
        %v6223 = vadd.f32 %v6205, %v6187
        %v6224 = vadd.f32 %v6206, %v6188
        %v6225 = vadd.f32 %v6207, %v6189
        %v6226 = vadd.f32 %v6208, %v6190
        %v6227 = vadd.f32 %v6209, %v6191
        %v6228 = vadd.f32 %v6210, %v6192
        %v6229 = vadd.f32 %v6211, %v6193
        %v6230 = vadd.f32 %v6212, %v6194
        %v6231 = vadd.f32 %v6213, %v6195
        %v6232 = vadd.f32 %v6214, %v6196
        %v6233 = vadd.f32 %v6215, %v6197
        %v6234 = vadd.f32 %v6216, %v6198
        %v6235 = vadd.f32 %v6217, %v6199
        %6236 = vst.msk [vmem:[#allocation4] sm:$0xff] %vm696, %v6218
        %6237 = vst.msk [vmem:[#allocation4 + $0x8] sm:$0xff] %vm696, %v6219
        %6238 = vst.msk [vmem:[#allocation4 + $0x10] sm:$0xff] %vm696, %v6220
        %6239 = vst.msk [vmem:[#allocation4 + $0x18] sm:$0xff] %vm696, %v6221
        %6240 = vst.msk [vmem:[#allocation4 + $0x20] sm:$0xff] %vm696, %v6222
        %6241 = vst.msk [vmem:[#allocation4 + $0x28] sm:$0xff] %vm696, %v6223
        %6242 = vst.msk [vmem:[#allocation4 + $0x30] sm:$0xff] %vm696, %v6224
        %6243 = vst.msk [vmem:[#allocation4 + $0x38] sm:$0xff] %vm696, %v6225
        %6244 = vst.msk [vmem:[#allocation4 + $0x40] sm:$0xff] %vm696, %v6226
        %6245 = vst.msk [vmem:[#allocation4 + $0x48] sm:$0xff] %vm696, %v6227
        %6246 = vst.msk [vmem:[#allocation4 + $0x50] sm:$0xff] %vm696, %v6228
        %6247 = vst.msk [vmem:[#allocation4 + $0x58] sm:$0xff] %vm696, %v6229
        %6248 = vst.msk [vmem:[#allocation4 + $0x60] sm:$0xff] %vm696, %v6230
        %6249 = vst.msk [vmem:[#allocation4 + $0x68] sm:$0xff] %vm696, %v6231
        %6250 = vst.msk [vmem:[#allocation4 + $0x70] sm:$0xff] %vm696, %v6232
        %6251 = vst.msk [vmem:[#allocation4 + $0x78] sm:$0xff] %vm696, %v6233
        %6252 = vst.msk [vmem:[#allocation4 + $0x80] sm:$0xff] %vm696, %v6234
        %6253 = vst.msk [vmem:[#allocation4 + $0x88] sm:$0xff] %vm696, %v6235
        %v6254 = vld [vmem:[#allocation3 + $0x45] sm:$0xff]
        %v6255 = vld [vmem:[#allocation3 + $0x4d] sm:$0xff]
        %v6256 = vld [vmem:[#allocation3 + $0x55] sm:$0xff]
        %v6257 = vld [vmem:[#allocation3 + $0x5d] sm:$0xff]
        %v6258 = vld [vmem:[#allocation3 + $0x65] sm:$0xff]
        %v6259 = vld [vmem:[#allocation3 + $0x6d] sm:$0xff]
        %v6260 = vld [vmem:[#allocation3 + $0x75] sm:$0xff]
        %v6261 = vld [vmem:[#allocation3 + $0x7d] sm:$0xff]
        %v6262 = vld [vmem:[#allocation3 + $0x85] sm:$0xff]
        %v6263 = vld [vmem:[#allocation3 + $0x8d] sm:$0xff]
        %v6264 = vld [vmem:[#allocation3 + $0x95] sm:$0xff]
        %v6265 = vld [vmem:[#allocation3 + $0x9d] sm:$0xff]
        %v6266 = vld [vmem:[#allocation3 + $0xa5] sm:$0xff]
        %v6267 = vld [vmem:[#allocation3 + $0xad] sm:$0xff]
        %v6268 = vld [vmem:[#allocation3 + $0xb5] sm:$0xff]
        %v6269 = vld [vmem:[#allocation3 + $0xbd] sm:$0xff]
        %v6270 = vld [vmem:[#allocation3 + $0xc5] sm:$0xff]
        %v6271 = vld [vmem:[#allocation3 + $0xcd] sm:$0xff]
        %v6272 = vld [vmem:[#allocation2 + $0x25] sm:$0x1]
        %v6273 = vperm.slane %v6272, 0
        %v6274 = vmul.f32 %v6254, %v6273
        %v6275 = vmul.f32 %v6255, %v6273
        %v6276 = vmul.f32 %v6256, %v6273
        %v6277 = vmul.f32 %v6257, %v6273
        %v6278 = vmul.f32 %v6258, %v6273
        %v6279 = vmul.f32 %v6259, %v6273
        %v6280 = vmul.f32 %v6260, %v6273
        %v6281 = vmul.f32 %v6261, %v6273
        %v6282 = vmul.f32 %v6262, %v6273
        %v6283 = vmul.f32 %v6263, %v6273
        %v6284 = vmul.f32 %v6264, %v6273
        %v6285 = vmul.f32 %v6265, %v6273
        %v6286 = vmul.f32 %v6266, %v6273
        %v6287 = vmul.f32 %v6267, %v6273
        %v6288 = vmul.f32 %v6268, %v6273
        %v6289 = vmul.f32 %v6269, %v6273
        %v6290 = vmul.f32 %v6270, %v6273
        %v6291 = vmul.f32 %v6271, %v6273
        %v6292 = vld [vmem:[#allocation4] sm:$0xff]
        %v6293 = vld [vmem:[#allocation4 + $0x8] sm:$0xff]
        %v6294 = vld [vmem:[#allocation4 + $0x10] sm:$0xff]
        %v6295 = vld [vmem:[#allocation4 + $0x18] sm:$0xff]
        %v6296 = vld [vmem:[#allocation4 + $0x20] sm:$0xff]
        %v6297 = vld [vmem:[#allocation4 + $0x28] sm:$0xff]
        %v6298 = vld [vmem:[#allocation4 + $0x30] sm:$0xff]
        %v6299 = vld [vmem:[#allocation4 + $0x38] sm:$0xff]
        %v6300 = vld [vmem:[#allocation4 + $0x40] sm:$0xff]
        %v6301 = vld [vmem:[#allocation4 + $0x48] sm:$0xff]
        %v6302 = vld [vmem:[#allocation4 + $0x50] sm:$0xff]
        %v6303 = vld [vmem:[#allocation4 + $0x58] sm:$0xff]
        %v6304 = vld [vmem:[#allocation4 + $0x60] sm:$0xff]
        %v6305 = vld [vmem:[#allocation4 + $0x68] sm:$0xff]
        %v6306 = vld [vmem:[#allocation4 + $0x70] sm:$0xff]
        %v6307 = vld [vmem:[#allocation4 + $0x78] sm:$0xff]
        %v6308 = vld [vmem:[#allocation4 + $0x80] sm:$0xff]
        %v6309 = vld [vmem:[#allocation4 + $0x88] sm:$0xff]
        %v6310 = vadd.f32 %v6292, %v6274
        %v6311 = vadd.f32 %v6293, %v6275
        %v6312 = vadd.f32 %v6294, %v6276
        %v6313 = vadd.f32 %v6295, %v6277
        %v6314 = vadd.f32 %v6296, %v6278
        %v6315 = vadd.f32 %v6297, %v6279
        %v6316 = vadd.f32 %v6298, %v6280
        %v6317 = vadd.f32 %v6299, %v6281
        %v6318 = vadd.f32 %v6300, %v6282
        %v6319 = vadd.f32 %v6301, %v6283
        %v6320 = vadd.f32 %v6302, %v6284
        %v6321 = vadd.f32 %v6303, %v6285
        %v6322 = vadd.f32 %v6304, %v6286
        %v6323 = vadd.f32 %v6305, %v6287
        %v6324 = vadd.f32 %v6306, %v6288
        %v6325 = vadd.f32 %v6307, %v6289
        %v6326 = vadd.f32 %v6308, %v6290
        %v6327 = vadd.f32 %v6309, %v6291
        %6328 = vst.msk [vmem:[#allocation4] sm:$0xff] %vm696, %v6310
        %6329 = vst.msk [vmem:[#allocation4 + $0x8] sm:$0xff] %vm696, %v6311
        %6330 = vst.msk [vmem:[#allocation4 + $0x10] sm:$0xff] %vm696, %v6312
        %6331 = vst.msk [vmem:[#allocation4 + $0x18] sm:$0xff] %vm696, %v6313
        %6332 = vst.msk [vmem:[#allocation4 + $0x20] sm:$0xff] %vm696, %v6314
        %6333 = vst.msk [vmem:[#allocation4 + $0x28] sm:$0xff] %vm696, %v6315
        %6334 = vst.msk [vmem:[#allocation4 + $0x30] sm:$0xff] %vm696, %v6316
        %6335 = vst.msk [vmem:[#allocation4 + $0x38] sm:$0xff] %vm696, %v6317
        %6336 = vst.msk [vmem:[#allocation4 + $0x40] sm:$0xff] %vm696, %v6318
        %6337 = vst.msk [vmem:[#allocation4 + $0x48] sm:$0xff] %vm696, %v6319
        %6338 = vst.msk [vmem:[#allocation4 + $0x50] sm:$0xff] %vm696, %v6320
        %6339 = vst.msk [vmem:[#allocation4 + $0x58] sm:$0xff] %vm696, %v6321
        %6340 = vst.msk [vmem:[#allocation4 + $0x60] sm:$0xff] %vm696, %v6322
        %6341 = vst.msk [vmem:[#allocation4 + $0x68] sm:$0xff] %vm696, %v6323
        %6342 = vst.msk [vmem:[#allocation4 + $0x70] sm:$0xff] %vm696, %v6324
        %6343 = vst.msk [vmem:[#allocation4 + $0x78] sm:$0xff] %vm696, %v6325
        %6344 = vst.msk [vmem:[#allocation4 + $0x80] sm:$0xff] %vm696, %v6326
        %6345 = vst.msk [vmem:[#allocation4 + $0x88] sm:$0xff] %vm696, %v6327
        %v6346 = vld [vmem:[#allocation3 + $0x50] sm:$0xff]
        %v6347 = vld [vmem:[#allocation3 + $0x58] sm:$0xff]
        %v6348 = vld [vmem:[#allocation3 + $0x60] sm:$0xff]
        %v6349 = vld [vmem:[#allocation3 + $0x68] sm:$0xff]
        %v6350 = vld [vmem:[#allocation3 + $0x70] sm:$0xff]
        %v6351 = vld [vmem:[#allocation3 + $0x78] sm:$0xff]
        %v6352 = vld [vmem:[#allocation3 + $0x80] sm:$0xff]
        %v6353 = vld [vmem:[#allocation3 + $0x88] sm:$0xff]
        %v6354 = vld [vmem:[#allocation3 + $0x90] sm:$0xff]
        %v6355 = vld [vmem:[#allocation3 + $0x98] sm:$0xff]
        %v6356 = vld [vmem:[#allocation3 + $0xa0] sm:$0xff]
        %v6357 = vld [vmem:[#allocation3 + $0xa8] sm:$0xff]
        %v6358 = vld [vmem:[#allocation3 + $0xb0] sm:$0xff]
        %v6359 = vld [vmem:[#allocation3 + $0xb8] sm:$0xff]
        %v6360 = vld [vmem:[#allocation3 + $0xc0] sm:$0xff]
        %v6361 = vld [vmem:[#allocation3 + $0xc8] sm:$0xff]
        %v6362 = vld [vmem:[#allocation3 + $0xd0] sm:$0xff]
        %v6363 = vld [vmem:[#allocation3 + $0xd8] sm:$0xff]
        %v6364 = vld [vmem:[#allocation2 + $0x28] sm:$0x1]
        %v6365 = vperm.slane %v6364, 0
        %v6366 = vmul.f32 %v6346, %v6365
        %v6367 = vmul.f32 %v6347, %v6365
        %v6368 = vmul.f32 %v6348, %v6365
        %v6369 = vmul.f32 %v6349, %v6365
        %v6370 = vmul.f32 %v6350, %v6365
        %v6371 = vmul.f32 %v6351, %v6365
        %v6372 = vmul.f32 %v6352, %v6365
        %v6373 = vmul.f32 %v6353, %v6365
        %v6374 = vmul.f32 %v6354, %v6365
        %v6375 = vmul.f32 %v6355, %v6365
        %v6376 = vmul.f32 %v6356, %v6365
        %v6377 = vmul.f32 %v6357, %v6365
        %v6378 = vmul.f32 %v6358, %v6365
        %v6379 = vmul.f32 %v6359, %v6365
        %v6380 = vmul.f32 %v6360, %v6365
        %v6381 = vmul.f32 %v6361, %v6365
        %v6382 = vmul.f32 %v6362, %v6365
        %v6383 = vmul.f32 %v6363, %v6365
        %v6384 = vld [vmem:[#allocation4] sm:$0xff]
        %v6385 = vld [vmem:[#allocation4 + $0x8] sm:$0xff]
        %v6386 = vld [vmem:[#allocation4 + $0x10] sm:$0xff]
        %v6387 = vld [vmem:[#allocation4 + $0x18] sm:$0xff]
        %v6388 = vld [vmem:[#allocation4 + $0x20] sm:$0xff]
        %v6389 = vld [vmem:[#allocation4 + $0x28] sm:$0xff]
        %v6390 = vld [vmem:[#allocation4 + $0x30] sm:$0xff]
        %v6391 = vld [vmem:[#allocation4 + $0x38] sm:$0xff]
        %v6392 = vld [vmem:[#allocation4 + $0x40] sm:$0xff]
        %v6393 = vld [vmem:[#allocation4 + $0x48] sm:$0xff]
        %v6394 = vld [vmem:[#allocation4 + $0x50] sm:$0xff]
        %v6395 = vld [vmem:[#allocation4 + $0x58] sm:$0xff]
        %v6396 = vld [vmem:[#allocation4 + $0x60] sm:$0xff]
        %v6397 = vld [vmem:[#allocation4 + $0x68] sm:$0xff]
        %v6398 = vld [vmem:[#allocation4 + $0x70] sm:$0xff]
        %v6399 = vld [vmem:[#allocation4 + $0x78] sm:$0xff]
        %v6400 = vld [vmem:[#allocation4 + $0x80] sm:$0xff]
        %v6401 = vld [vmem:[#allocation4 + $0x88] sm:$0xff]
        %v6402 = vadd.f32 %v6384, %v6366
        %v6403 = vadd.f32 %v6385, %v6367
        %v6404 = vadd.f32 %v6386, %v6368
        %v6405 = vadd.f32 %v6387, %v6369
        %v6406 = vadd.f32 %v6388, %v6370
        %v6407 = vadd.f32 %v6389, %v6371
        %v6408 = vadd.f32 %v6390, %v6372
        %v6409 = vadd.f32 %v6391, %v6373
        %v6410 = vadd.f32 %v6392, %v6374
        %v6411 = vadd.f32 %v6393, %v6375
        %v6412 = vadd.f32 %v6394, %v6376
        %v6413 = vadd.f32 %v6395, %v6377
        %v6414 = vadd.f32 %v6396, %v6378
        %v6415 = vadd.f32 %v6397, %v6379
        %v6416 = vadd.f32 %v6398, %v6380
        %v6417 = vadd.f32 %v6399, %v6381
        %v6418 = vadd.f32 %v6400, %v6382
        %v6419 = vadd.f32 %v6401, %v6383
        %6420 = vst.msk [vmem:[#allocation4] sm:$0xff] %vm696, %v6402
        %6421 = vst.msk [vmem:[#allocation4 + $0x8] sm:$0xff] %vm696, %v6403
        %6422 = vst.msk [vmem:[#allocation4 + $0x10] sm:$0xff] %vm696, %v6404
        %6423 = vst.msk [vmem:[#allocation4 + $0x18] sm:$0xff] %vm696, %v6405
        %6424 = vst.msk [vmem:[#allocation4 + $0x20] sm:$0xff] %vm696, %v6406
        %6425 = vst.msk [vmem:[#allocation4 + $0x28] sm:$0xff] %vm696, %v6407
        %6426 = vst.msk [vmem:[#allocation4 + $0x30] sm:$0xff] %vm696, %v6408
        %6427 = vst.msk [vmem:[#allocation4 + $0x38] sm:$0xff] %vm696, %v6409
        %6428 = vst.msk [vmem:[#allocation4 + $0x40] sm:$0xff] %vm696, %v6410
        %6429 = vst.msk [vmem:[#allocation4 + $0x48] sm:$0xff] %vm696, %v6411
        %6430 = vst.msk [vmem:[#allocation4 + $0x50] sm:$0xff] %vm696, %v6412
        %6431 = vst.msk [vmem:[#allocation4 + $0x58] sm:$0xff] %vm696, %v6413
        %6432 = vst.msk [vmem:[#allocation4 + $0x60] sm:$0xff] %vm696, %v6414
        %6433 = vst.msk [vmem:[#allocation4 + $0x68] sm:$0xff] %vm696, %v6415
        %6434 = vst.msk [vmem:[#allocation4 + $0x70] sm:$0xff] %vm696, %v6416
        %6435 = vst.msk [vmem:[#allocation4 + $0x78] sm:$0xff] %vm696, %v6417
        %6436 = vst.msk [vmem:[#allocation4 + $0x80] sm:$0xff] %vm696, %v6418
        %6437 = vst.msk [vmem:[#allocation4 + $0x88] sm:$0xff] %vm696, %v6419
        %v6438 = vld [vmem:[#allocation3 + $0x51] sm:$0xff]
        %v6439 = vld [vmem:[#allocation3 + $0x59] sm:$0xff]
        %v6440 = vld [vmem:[#allocation3 + $0x61] sm:$0xff]
        %v6441 = vld [vmem:[#allocation3 + $0x69] sm:$0xff]
        %v6442 = vld [vmem:[#allocation3 + $0x71] sm:$0xff]
        %v6443 = vld [vmem:[#allocation3 + $0x79] sm:$0xff]
        %v6444 = vld [vmem:[#allocation3 + $0x81] sm:$0xff]
        %v6445 = vld [vmem:[#allocation3 + $0x89] sm:$0xff]
        %v6446 = vld [vmem:[#allocation3 + $0x91] sm:$0xff]
        %v6447 = vld [vmem:[#allocation3 + $0x99] sm:$0xff]
        %v6448 = vld [vmem:[#allocation3 + $0xa1] sm:$0xff]
        %v6449 = vld [vmem:[#allocation3 + $0xa9] sm:$0xff]
        %v6450 = vld [vmem:[#allocation3 + $0xb1] sm:$0xff]
        %v6451 = vld [vmem:[#allocation3 + $0xb9] sm:$0xff]
        %v6452 = vld [vmem:[#allocation3 + $0xc1] sm:$0xff]
        %v6453 = vld [vmem:[#allocation3 + $0xc9] sm:$0xff]
        %v6454 = vld [vmem:[#allocation3 + $0xd1] sm:$0xff]
        %v6455 = vld [vmem:[#allocation3 + $0xd9] sm:$0xff]
        %v6456 = vld [vmem:[#allocation2 + $0x29] sm:$0x1]
        %v6457 = vperm.slane %v6456, 0
        %v6458 = vmul.f32 %v6438, %v6457
        %v6459 = vmul.f32 %v6439, %v6457
        %v6460 = vmul.f32 %v6440, %v6457
        %v6461 = vmul.f32 %v6441, %v6457
        %v6462 = vmul.f32 %v6442, %v6457
        %v6463 = vmul.f32 %v6443, %v6457
        %v6464 = vmul.f32 %v6444, %v6457
        %v6465 = vmul.f32 %v6445, %v6457
        %v6466 = vmul.f32 %v6446, %v6457
        %v6467 = vmul.f32 %v6447, %v6457
        %v6468 = vmul.f32 %v6448, %v6457
        %v6469 = vmul.f32 %v6449, %v6457
        %v6470 = vmul.f32 %v6450, %v6457
        %v6471 = vmul.f32 %v6451, %v6457
        %v6472 = vmul.f32 %v6452, %v6457
        %v6473 = vmul.f32 %v6453, %v6457
        %v6474 = vmul.f32 %v6454, %v6457
        %v6475 = vmul.f32 %v6455, %v6457
        %v6476 = vld [vmem:[#allocation4] sm:$0xff]
        %v6477 = vld [vmem:[#allocation4 + $0x8] sm:$0xff]
        %v6478 = vld [vmem:[#allocation4 + $0x10] sm:$0xff]
        %v6479 = vld [vmem:[#allocation4 + $0x18] sm:$0xff]
        %v6480 = vld [vmem:[#allocation4 + $0x20] sm:$0xff]
        %v6481 = vld [vmem:[#allocation4 + $0x28] sm:$0xff]
        %v6482 = vld [vmem:[#allocation4 + $0x30] sm:$0xff]
        %v6483 = vld [vmem:[#allocation4 + $0x38] sm:$0xff]
        %v6484 = vld [vmem:[#allocation4 + $0x40] sm:$0xff]
        %v6485 = vld [vmem:[#allocation4 + $0x48] sm:$0xff]
        %v6486 = vld [vmem:[#allocation4 + $0x50] sm:$0xff]
        %v6487 = vld [vmem:[#allocation4 + $0x58] sm:$0xff]
        %v6488 = vld [vmem:[#allocation4 + $0x60] sm:$0xff]
        %v6489 = vld [vmem:[#allocation4 + $0x68] sm:$0xff]
        %v6490 = vld [vmem:[#allocation4 + $0x70] sm:$0xff]
        %v6491 = vld [vmem:[#allocation4 + $0x78] sm:$0xff]
        %v6492 = vld [vmem:[#allocation4 + $0x80] sm:$0xff]
        %v6493 = vld [vmem:[#allocation4 + $0x88] sm:$0xff]
        %v6494 = vadd.f32 %v6476, %v6458
        %v6495 = vadd.f32 %v6477, %v6459
        %v6496 = vadd.f32 %v6478, %v6460
        %v6497 = vadd.f32 %v6479, %v6461
        %v6498 = vadd.f32 %v6480, %v6462
        %v6499 = vadd.f32 %v6481, %v6463
        %v6500 = vadd.f32 %v6482, %v6464
        %v6501 = vadd.f32 %v6483, %v6465
        %v6502 = vadd.f32 %v6484, %v6466
        %v6503 = vadd.f32 %v6485, %v6467
        %v6504 = vadd.f32 %v6486, %v6468
        %v6505 = vadd.f32 %v6487, %v6469
        %v6506 = vadd.f32 %v6488, %v6470
        %v6507 = vadd.f32 %v6489, %v6471
        %v6508 = vadd.f32 %v6490, %v6472
        %v6509 = vadd.f32 %v6491, %v6473
        %v6510 = vadd.f32 %v6492, %v6474
        %v6511 = vadd.f32 %v6493, %v6475
        %6512 = vst.msk [vmem:[#allocation4] sm:$0xff] %vm696, %v6494
        %6513 = vst.msk [vmem:[#allocation4 + $0x8] sm:$0xff] %vm696, %v6495
        %6514 = vst.msk [vmem:[#allocation4 + $0x10] sm:$0xff] %vm696, %v6496
        %6515 = vst.msk [vmem:[#allocation4 + $0x18] sm:$0xff] %vm696, %v6497
        %6516 = vst.msk [vmem:[#allocation4 + $0x20] sm:$0xff] %vm696, %v6498
        %6517 = vst.msk [vmem:[#allocation4 + $0x28] sm:$0xff] %vm696, %v6499
        %6518 = vst.msk [vmem:[#allocation4 + $0x30] sm:$0xff] %vm696, %v6500
        %6519 = vst.msk [vmem:[#allocation4 + $0x38] sm:$0xff] %vm696, %v6501
        %6520 = vst.msk [vmem:[#allocation4 + $0x40] sm:$0xff] %vm696, %v6502
        %6521 = vst.msk [vmem:[#allocation4 + $0x48] sm:$0xff] %vm696, %v6503
        %6522 = vst.msk [vmem:[#allocation4 + $0x50] sm:$0xff] %vm696, %v6504
        %6523 = vst.msk [vmem:[#allocation4 + $0x58] sm:$0xff] %vm696, %v6505
        %6524 = vst.msk [vmem:[#allocation4 + $0x60] sm:$0xff] %vm696, %v6506
        %6525 = vst.msk [vmem:[#allocation4 + $0x68] sm:$0xff] %vm696, %v6507
        %6526 = vst.msk [vmem:[#allocation4 + $0x70] sm:$0xff] %vm696, %v6508
        %6527 = vst.msk [vmem:[#allocation4 + $0x78] sm:$0xff] %vm696, %v6509
        %6528 = vst.msk [vmem:[#allocation4 + $0x80] sm:$0xff] %vm696, %v6510
        %6529 = vst.msk [vmem:[#allocation4 + $0x88] sm:$0xff] %vm696, %v6511
        %v6530 = vld [vmem:[#allocation3 + $0x52] sm:$0xff]
        %v6531 = vld [vmem:[#allocation3 + $0x5a] sm:$0xff]
        %v6532 = vld [vmem:[#allocation3 + $0x62] sm:$0xff]
        %v6533 = vld [vmem:[#allocation3 + $0x6a] sm:$0xff]
        %v6534 = vld [vmem:[#allocation3 + $0x72] sm:$0xff]
        %v6535 = vld [vmem:[#allocation3 + $0x7a] sm:$0xff]
        %v6536 = vld [vmem:[#allocation3 + $0x82] sm:$0xff]
        %v6537 = vld [vmem:[#allocation3 + $0x8a] sm:$0xff]
        %v6538 = vld [vmem:[#allocation3 + $0x92] sm:$0xff]
        %v6539 = vld [vmem:[#allocation3 + $0x9a] sm:$0xff]
        %v6540 = vld [vmem:[#allocation3 + $0xa2] sm:$0xff]
        %v6541 = vld [vmem:[#allocation3 + $0xaa] sm:$0xff]
        %v6542 = vld [vmem:[#allocation3 + $0xb2] sm:$0xff]
        %v6543 = vld [vmem:[#allocation3 + $0xba] sm:$0xff]
        %v6544 = vld [vmem:[#allocation3 + $0xc2] sm:$0xff]
        %v6545 = vld [vmem:[#allocation3 + $0xca] sm:$0xff]
        %v6546 = vld [vmem:[#allocation3 + $0xd2] sm:$0xff]
        %v6547 = vld [vmem:[#allocation3 + $0xda] sm:$0xff]
        %v6548 = vld [vmem:[#allocation2 + $0x2a] sm:$0x1]
        %v6549 = vperm.slane %v6548, 0
        %v6550 = vmul.f32 %v6530, %v6549
        %v6551 = vmul.f32 %v6531, %v6549
        %v6552 = vmul.f32 %v6532, %v6549
        %v6553 = vmul.f32 %v6533, %v6549
        %v6554 = vmul.f32 %v6534, %v6549
        %v6555 = vmul.f32 %v6535, %v6549
        %v6556 = vmul.f32 %v6536, %v6549
        %v6557 = vmul.f32 %v6537, %v6549
        %v6558 = vmul.f32 %v6538, %v6549
        %v6559 = vmul.f32 %v6539, %v6549
        %v6560 = vmul.f32 %v6540, %v6549
        %v6561 = vmul.f32 %v6541, %v6549
        %v6562 = vmul.f32 %v6542, %v6549
        %v6563 = vmul.f32 %v6543, %v6549
        %v6564 = vmul.f32 %v6544, %v6549
        %v6565 = vmul.f32 %v6545, %v6549
        %v6566 = vmul.f32 %v6546, %v6549
        %v6567 = vmul.f32 %v6547, %v6549
        %v6568 = vld [vmem:[#allocation4] sm:$0xff]
        %v6569 = vld [vmem:[#allocation4 + $0x8] sm:$0xff]
        %v6570 = vld [vmem:[#allocation4 + $0x10] sm:$0xff]
        %v6571 = vld [vmem:[#allocation4 + $0x18] sm:$0xff]
        %v6572 = vld [vmem:[#allocation4 + $0x20] sm:$0xff]
        %v6573 = vld [vmem:[#allocation4 + $0x28] sm:$0xff]
        %v6574 = vld [vmem:[#allocation4 + $0x30] sm:$0xff]
        %v6575 = vld [vmem:[#allocation4 + $0x38] sm:$0xff]
        %v6576 = vld [vmem:[#allocation4 + $0x40] sm:$0xff]
        %v6577 = vld [vmem:[#allocation4 + $0x48] sm:$0xff]
        %v6578 = vld [vmem:[#allocation4 + $0x50] sm:$0xff]
        %v6579 = vld [vmem:[#allocation4 + $0x58] sm:$0xff]
        %v6580 = vld [vmem:[#allocation4 + $0x60] sm:$0xff]
        %v6581 = vld [vmem:[#allocation4 + $0x68] sm:$0xff]
        %v6582 = vld [vmem:[#allocation4 + $0x70] sm:$0xff]
        %v6583 = vld [vmem:[#allocation4 + $0x78] sm:$0xff]
        %v6584 = vld [vmem:[#allocation4 + $0x80] sm:$0xff]
        %v6585 = vld [vmem:[#allocation4 + $0x88] sm:$0xff]
        %v6586 = vadd.f32 %v6568, %v6550
        %v6587 = vadd.f32 %v6569, %v6551
        %v6588 = vadd.f32 %v6570, %v6552
        %v6589 = vadd.f32 %v6571, %v6553
        %v6590 = vadd.f32 %v6572, %v6554
        %v6591 = vadd.f32 %v6573, %v6555
        %v6592 = vadd.f32 %v6574, %v6556
        %v6593 = vadd.f32 %v6575, %v6557
        %v6594 = vadd.f32 %v6576, %v6558
        %v6595 = vadd.f32 %v6577, %v6559
        %v6596 = vadd.f32 %v6578, %v6560
        %v6597 = vadd.f32 %v6579, %v6561
        %v6598 = vadd.f32 %v6580, %v6562
        %v6599 = vadd.f32 %v6581, %v6563
        %v6600 = vadd.f32 %v6582, %v6564
        %v6601 = vadd.f32 %v6583, %v6565
        %v6602 = vadd.f32 %v6584, %v6566
        %v6603 = vadd.f32 %v6585, %v6567
        %6604 = vst.msk [vmem:[#allocation4] sm:$0xff] %vm696, %v6586
        %6605 = vst.msk [vmem:[#allocation4 + $0x8] sm:$0xff] %vm696, %v6587
        %6606 = vst.msk [vmem:[#allocation4 + $0x10] sm:$0xff] %vm696, %v6588
        %6607 = vst.msk [vmem:[#allocation4 + $0x18] sm:$0xff] %vm696, %v6589
        %6608 = vst.msk [vmem:[#allocation4 + $0x20] sm:$0xff] %vm696, %v6590
        %6609 = vst.msk [vmem:[#allocation4 + $0x28] sm:$0xff] %vm696, %v6591
        %6610 = vst.msk [vmem:[#allocation4 + $0x30] sm:$0xff] %vm696, %v6592
        %6611 = vst.msk [vmem:[#allocation4 + $0x38] sm:$0xff] %vm696, %v6593
        %6612 = vst.msk [vmem:[#allocation4 + $0x40] sm:$0xff] %vm696, %v6594
        %6613 = vst.msk [vmem:[#allocation4 + $0x48] sm:$0xff] %vm696, %v6595
        %6614 = vst.msk [vmem:[#allocation4 + $0x50] sm:$0xff] %vm696, %v6596
        %6615 = vst.msk [vmem:[#allocation4 + $0x58] sm:$0xff] %vm696, %v6597
        %6616 = vst.msk [vmem:[#allocation4 + $0x60] sm:$0xff] %vm696, %v6598
        %6617 = vst.msk [vmem:[#allocation4 + $0x68] sm:$0xff] %vm696, %v6599
        %6618 = vst.msk [vmem:[#allocation4 + $0x70] sm:$0xff] %vm696, %v6600
        %6619 = vst.msk [vmem:[#allocation4 + $0x78] sm:$0xff] %vm696, %v6601
        %6620 = vst.msk [vmem:[#allocation4 + $0x80] sm:$0xff] %vm696, %v6602
        %6621 = vst.msk [vmem:[#allocation4 + $0x88] sm:$0xff] %vm696, %v6603
        %v6622 = vld [vmem:[#allocation3 + $0x53] sm:$0xff]
        %v6623 = vld [vmem:[#allocation3 + $0x5b] sm:$0xff]
        %v6624 = vld [vmem:[#allocation3 + $0x63] sm:$0xff]
        %v6625 = vld [vmem:[#allocation3 + $0x6b] sm:$0xff]
        %v6626 = vld [vmem:[#allocation3 + $0x73] sm:$0xff]
        %v6627 = vld [vmem:[#allocation3 + $0x7b] sm:$0xff]
        %v6628 = vld [vmem:[#allocation3 + $0x83] sm:$0xff]
        %v6629 = vld [vmem:[#allocation3 + $0x8b] sm:$0xff]
        %v6630 = vld [vmem:[#allocation3 + $0x93] sm:$0xff]
        %v6631 = vld [vmem:[#allocation3 + $0x9b] sm:$0xff]
        %v6632 = vld [vmem:[#allocation3 + $0xa3] sm:$0xff]
        %v6633 = vld [vmem:[#allocation3 + $0xab] sm:$0xff]
        %v6634 = vld [vmem:[#allocation3 + $0xb3] sm:$0xff]
        %v6635 = vld [vmem:[#allocation3 + $0xbb] sm:$0xff]
        %v6636 = vld [vmem:[#allocation3 + $0xc3] sm:$0xff]
        %v6637 = vld [vmem:[#allocation3 + $0xcb] sm:$0xff]
        %v6638 = vld [vmem:[#allocation3 + $0xd3] sm:$0xff]
        %v6639 = vld [vmem:[#allocation3 + $0xdb] sm:$0xff]
        %v6640 = vld [vmem:[#allocation2 + $0x2b] sm:$0x1]
        %v6641 = vperm.slane %v6640, 0
        %v6642 = vmul.f32 %v6622, %v6641
        %v6643 = vmul.f32 %v6623, %v6641
        %v6644 = vmul.f32 %v6624, %v6641
        %v6645 = vmul.f32 %v6625, %v6641
        %v6646 = vmul.f32 %v6626, %v6641
        %v6647 = vmul.f32 %v6627, %v6641
        %v6648 = vmul.f32 %v6628, %v6641
        %v6649 = vmul.f32 %v6629, %v6641
        %v6650 = vmul.f32 %v6630, %v6641
        %v6651 = vmul.f32 %v6631, %v6641
        %v6652 = vmul.f32 %v6632, %v6641
        %v6653 = vmul.f32 %v6633, %v6641
        %v6654 = vmul.f32 %v6634, %v6641
        %v6655 = vmul.f32 %v6635, %v6641
        %v6656 = vmul.f32 %v6636, %v6641
        %v6657 = vmul.f32 %v6637, %v6641
        %v6658 = vmul.f32 %v6638, %v6641
        %v6659 = vmul.f32 %v6639, %v6641
        %v6660 = vld [vmem:[#allocation4] sm:$0xff]
        %v6661 = vld [vmem:[#allocation4 + $0x8] sm:$0xff]
        %v6662 = vld [vmem:[#allocation4 + $0x10] sm:$0xff]
        %v6663 = vld [vmem:[#allocation4 + $0x18] sm:$0xff]
        %v6664 = vld [vmem:[#allocation4 + $0x20] sm:$0xff]
        %v6665 = vld [vmem:[#allocation4 + $0x28] sm:$0xff]
        %v6666 = vld [vmem:[#allocation4 + $0x30] sm:$0xff]
        %v6667 = vld [vmem:[#allocation4 + $0x38] sm:$0xff]
        %v6668 = vld [vmem:[#allocation4 + $0x40] sm:$0xff]
        %v6669 = vld [vmem:[#allocation4 + $0x48] sm:$0xff]
        %v6670 = vld [vmem:[#allocation4 + $0x50] sm:$0xff]
        %v6671 = vld [vmem:[#allocation4 + $0x58] sm:$0xff]
        %v6672 = vld [vmem:[#allocation4 + $0x60] sm:$0xff]
        %v6673 = vld [vmem:[#allocation4 + $0x68] sm:$0xff]
        %v6674 = vld [vmem:[#allocation4 + $0x70] sm:$0xff]
        %v6675 = vld [vmem:[#allocation4 + $0x78] sm:$0xff]
        %v6676 = vld [vmem:[#allocation4 + $0x80] sm:$0xff]
        %v6677 = vld [vmem:[#allocation4 + $0x88] sm:$0xff]
        %v6678 = vadd.f32 %v6660, %v6642
        %v6679 = vadd.f32 %v6661, %v6643
        %v6680 = vadd.f32 %v6662, %v6644
        %v6681 = vadd.f32 %v6663, %v6645
        %v6682 = vadd.f32 %v6664, %v6646
        %v6683 = vadd.f32 %v6665, %v6647
        %v6684 = vadd.f32 %v6666, %v6648
        %v6685 = vadd.f32 %v6667, %v6649
        %v6686 = vadd.f32 %v6668, %v6650
        %v6687 = vadd.f32 %v6669, %v6651
        %v6688 = vadd.f32 %v6670, %v6652
        %v6689 = vadd.f32 %v6671, %v6653
        %v6690 = vadd.f32 %v6672, %v6654
        %v6691 = vadd.f32 %v6673, %v6655
        %v6692 = vadd.f32 %v6674, %v6656
        %v6693 = vadd.f32 %v6675, %v6657
        %v6694 = vadd.f32 %v6676, %v6658
        %v6695 = vadd.f32 %v6677, %v6659
        %6696 = vst.msk [vmem:[#allocation4] sm:$0xff] %vm696, %v6678
        %6697 = vst.msk [vmem:[#allocation4 + $0x8] sm:$0xff] %vm696, %v6679
        %6698 = vst.msk [vmem:[#allocation4 + $0x10] sm:$0xff] %vm696, %v6680
        %6699 = vst.msk [vmem:[#allocation4 + $0x18] sm:$0xff] %vm696, %v6681
        %6700 = vst.msk [vmem:[#allocation4 + $0x20] sm:$0xff] %vm696, %v6682
        %6701 = vst.msk [vmem:[#allocation4 + $0x28] sm:$0xff] %vm696, %v6683
        %6702 = vst.msk [vmem:[#allocation4 + $0x30] sm:$0xff] %vm696, %v6684
        %6703 = vst.msk [vmem:[#allocation4 + $0x38] sm:$0xff] %vm696, %v6685
        %6704 = vst.msk [vmem:[#allocation4 + $0x40] sm:$0xff] %vm696, %v6686
        %6705 = vst.msk [vmem:[#allocation4 + $0x48] sm:$0xff] %vm696, %v6687
        %6706 = vst.msk [vmem:[#allocation4 + $0x50] sm:$0xff] %vm696, %v6688
        %6707 = vst.msk [vmem:[#allocation4 + $0x58] sm:$0xff] %vm696, %v6689
        %6708 = vst.msk [vmem:[#allocation4 + $0x60] sm:$0xff] %vm696, %v6690
        %6709 = vst.msk [vmem:[#allocation4 + $0x68] sm:$0xff] %vm696, %v6691
        %6710 = vst.msk [vmem:[#allocation4 + $0x70] sm:$0xff] %vm696, %v6692
        %6711 = vst.msk [vmem:[#allocation4 + $0x78] sm:$0xff] %vm696, %v6693
        %6712 = vst.msk [vmem:[#allocation4 + $0x80] sm:$0xff] %vm696, %v6694
        %6713 = vst.msk [vmem:[#allocation4 + $0x88] sm:$0xff] %vm696, %v6695
        %v6714 = vld [vmem:[#allocation3 + $0x54] sm:$0xff]
        %v6715 = vld [vmem:[#allocation3 + $0x5c] sm:$0xff]
        %v6716 = vld [vmem:[#allocation3 + $0x64] sm:$0xff]
        %v6717 = vld [vmem:[#allocation3 + $0x6c] sm:$0xff]
        %v6718 = vld [vmem:[#allocation3 + $0x74] sm:$0xff]
        %v6719 = vld [vmem:[#allocation3 + $0x7c] sm:$0xff]
        %v6720 = vld [vmem:[#allocation3 + $0x84] sm:$0xff]
        %v6721 = vld [vmem:[#allocation3 + $0x8c] sm:$0xff]
        %v6722 = vld [vmem:[#allocation3 + $0x94] sm:$0xff]
        %v6723 = vld [vmem:[#allocation3 + $0x9c] sm:$0xff]
        %v6724 = vld [vmem:[#allocation3 + $0xa4] sm:$0xff]
        %v6725 = vld [vmem:[#allocation3 + $0xac] sm:$0xff]
        %v6726 = vld [vmem:[#allocation3 + $0xb4] sm:$0xff]
        %v6727 = vld [vmem:[#allocation3 + $0xbc] sm:$0xff]
        %v6728 = vld [vmem:[#allocation3 + $0xc4] sm:$0xff]
        %v6729 = vld [vmem:[#allocation3 + $0xcc] sm:$0xff]
        %v6730 = vld [vmem:[#allocation3 + $0xd4] sm:$0xff]
        %v6731 = vld [vmem:[#allocation3 + $0xdc] sm:$0xff]
        %v6732 = vld [vmem:[#allocation2 + $0x2c] sm:$0x1]
        %v6733 = vperm.slane %v6732, 0
        %v6734 = vmul.f32 %v6714, %v6733
        %v6735 = vmul.f32 %v6715, %v6733
        %v6736 = vmul.f32 %v6716, %v6733
        %v6737 = vmul.f32 %v6717, %v6733
        %v6738 = vmul.f32 %v6718, %v6733
        %v6739 = vmul.f32 %v6719, %v6733
        %v6740 = vmul.f32 %v6720, %v6733
        %v6741 = vmul.f32 %v6721, %v6733
        %v6742 = vmul.f32 %v6722, %v6733
        %v6743 = vmul.f32 %v6723, %v6733
        %v6744 = vmul.f32 %v6724, %v6733
        %v6745 = vmul.f32 %v6725, %v6733
        %v6746 = vmul.f32 %v6726, %v6733
        %v6747 = vmul.f32 %v6727, %v6733
        %v6748 = vmul.f32 %v6728, %v6733
        %v6749 = vmul.f32 %v6729, %v6733
        %v6750 = vmul.f32 %v6730, %v6733
        %v6751 = vmul.f32 %v6731, %v6733
        %v6752 = vld [vmem:[#allocation4] sm:$0xff]
        %v6753 = vld [vmem:[#allocation4 + $0x8] sm:$0xff]
        %v6754 = vld [vmem:[#allocation4 + $0x10] sm:$0xff]
        %v6755 = vld [vmem:[#allocation4 + $0x18] sm:$0xff]
        %v6756 = vld [vmem:[#allocation4 + $0x20] sm:$0xff]
        %v6757 = vld [vmem:[#allocation4 + $0x28] sm:$0xff]
        %v6758 = vld [vmem:[#allocation4 + $0x30] sm:$0xff]
        %v6759 = vld [vmem:[#allocation4 + $0x38] sm:$0xff]
        %v6760 = vld [vmem:[#allocation4 + $0x40] sm:$0xff]
        %v6761 = vld [vmem:[#allocation4 + $0x48] sm:$0xff]
        %v6762 = vld [vmem:[#allocation4 + $0x50] sm:$0xff]
        %v6763 = vld [vmem:[#allocation4 + $0x58] sm:$0xff]
        %v6764 = vld [vmem:[#allocation4 + $0x60] sm:$0xff]
        %v6765 = vld [vmem:[#allocation4 + $0x68] sm:$0xff]
        %v6766 = vld [vmem:[#allocation4 + $0x70] sm:$0xff]
        %v6767 = vld [vmem:[#allocation4 + $0x78] sm:$0xff]
        %v6768 = vld [vmem:[#allocation4 + $0x80] sm:$0xff]
        %v6769 = vld [vmem:[#allocation4 + $0x88] sm:$0xff]
        %v6770 = vadd.f32 %v6752, %v6734
        %v6771 = vadd.f32 %v6753, %v6735
        %v6772 = vadd.f32 %v6754, %v6736
        %v6773 = vadd.f32 %v6755, %v6737
        %v6774 = vadd.f32 %v6756, %v6738
        %v6775 = vadd.f32 %v6757, %v6739
        %v6776 = vadd.f32 %v6758, %v6740
        %v6777 = vadd.f32 %v6759, %v6741
        %v6778 = vadd.f32 %v6760, %v6742
        %v6779 = vadd.f32 %v6761, %v6743
        %v6780 = vadd.f32 %v6762, %v6744
        %v6781 = vadd.f32 %v6763, %v6745
        %v6782 = vadd.f32 %v6764, %v6746
        %v6783 = vadd.f32 %v6765, %v6747
        %v6784 = vadd.f32 %v6766, %v6748
        %v6785 = vadd.f32 %v6767, %v6749
        %v6786 = vadd.f32 %v6768, %v6750
        %v6787 = vadd.f32 %v6769, %v6751
        %6788 = vst.msk [vmem:[#allocation4] sm:$0xff] %vm696, %v6770
        %6789 = vst.msk [vmem:[#allocation4 + $0x8] sm:$0xff] %vm696, %v6771
        %6790 = vst.msk [vmem:[#allocation4 + $0x10] sm:$0xff] %vm696, %v6772
        %6791 = vst.msk [vmem:[#allocation4 + $0x18] sm:$0xff] %vm696, %v6773
        %6792 = vst.msk [vmem:[#allocation4 + $0x20] sm:$0xff] %vm696, %v6774
        %6793 = vst.msk [vmem:[#allocation4 + $0x28] sm:$0xff] %vm696, %v6775
        %6794 = vst.msk [vmem:[#allocation4 + $0x30] sm:$0xff] %vm696, %v6776
        %6795 = vst.msk [vmem:[#allocation4 + $0x38] sm:$0xff] %vm696, %v6777
        %6796 = vst.msk [vmem:[#allocation4 + $0x40] sm:$0xff] %vm696, %v6778
        %6797 = vst.msk [vmem:[#allocation4 + $0x48] sm:$0xff] %vm696, %v6779
        %6798 = vst.msk [vmem:[#allocation4 + $0x50] sm:$0xff] %vm696, %v6780
        %6799 = vst.msk [vmem:[#allocation4 + $0x58] sm:$0xff] %vm696, %v6781
        %6800 = vst.msk [vmem:[#allocation4 + $0x60] sm:$0xff] %vm696, %v6782
        %6801 = vst.msk [vmem:[#allocation4 + $0x68] sm:$0xff] %vm696, %v6783
        %6802 = vst.msk [vmem:[#allocation4 + $0x70] sm:$0xff] %vm696, %v6784
        %6803 = vst.msk [vmem:[#allocation4 + $0x78] sm:$0xff] %vm696, %v6785
        %6804 = vst.msk [vmem:[#allocation4 + $0x80] sm:$0xff] %vm696, %v6786
        %6805 = vst.msk [vmem:[#allocation4 + $0x88] sm:$0xff] %vm696, %v6787
        %v6806 = vld [vmem:[#allocation3 + $0x55] sm:$0xff]
        %v6807 = vld [vmem:[#allocation3 + $0x5d] sm:$0xff]
        %v6808 = vld [vmem:[#allocation3 + $0x65] sm:$0xff]
        %v6809 = vld [vmem:[#allocation3 + $0x6d] sm:$0xff]
        %v6810 = vld [vmem:[#allocation3 + $0x75] sm:$0xff]
        %v6811 = vld [vmem:[#allocation3 + $0x7d] sm:$0xff]
        %v6812 = vld [vmem:[#allocation3 + $0x85] sm:$0xff]
        %v6813 = vld [vmem:[#allocation3 + $0x8d] sm:$0xff]
        %v6814 = vld [vmem:[#allocation3 + $0x95] sm:$0xff]
        %v6815 = vld [vmem:[#allocation3 + $0x9d] sm:$0xff]
        %v6816 = vld [vmem:[#allocation3 + $0xa5] sm:$0xff]
        %v6817 = vld [vmem:[#allocation3 + $0xad] sm:$0xff]
        %v6818 = vld [vmem:[#allocation3 + $0xb5] sm:$0xff]
        %v6819 = vld [vmem:[#allocation3 + $0xbd] sm:$0xff]
        %v6820 = vld [vmem:[#allocation3 + $0xc5] sm:$0xff]
        %v6821 = vld [vmem:[#allocation3 + $0xcd] sm:$0xff]
        %v6822 = vld [vmem:[#allocation3 + $0xd5] sm:$0xff]
        %v6823 = vld [vmem:[#allocation3 + $0xdd] sm:$0xff]
        %v6824 = vld [vmem:[#allocation2 + $0x2d] sm:$0x1]
        %v6825 = vperm.slane %v6824, 0
        %v6826 = vmul.f32 %v6806, %v6825
        %v6827 = vmul.f32 %v6807, %v6825
        %v6828 = vmul.f32 %v6808, %v6825
        %v6829 = vmul.f32 %v6809, %v6825
        %v6830 = vmul.f32 %v6810, %v6825
        %v6831 = vmul.f32 %v6811, %v6825
        %v6832 = vmul.f32 %v6812, %v6825
        %v6833 = vmul.f32 %v6813, %v6825
        %v6834 = vmul.f32 %v6814, %v6825
        %v6835 = vmul.f32 %v6815, %v6825
        %v6836 = vmul.f32 %v6816, %v6825
        %v6837 = vmul.f32 %v6817, %v6825
        %v6838 = vmul.f32 %v6818, %v6825
        %v6839 = vmul.f32 %v6819, %v6825
        %v6840 = vmul.f32 %v6820, %v6825
        %v6841 = vmul.f32 %v6821, %v6825
        %v6842 = vmul.f32 %v6822, %v6825
        %v6843 = vmul.f32 %v6823, %v6825
        %v6844 = vld [vmem:[#allocation4] sm:$0xff]
        %v6845 = vld [vmem:[#allocation4 + $0x8] sm:$0xff]
        %v6846 = vld [vmem:[#allocation4 + $0x10] sm:$0xff]
        %v6847 = vld [vmem:[#allocation4 + $0x18] sm:$0xff]
        %v6848 = vld [vmem:[#allocation4 + $0x20] sm:$0xff]
        %v6849 = vld [vmem:[#allocation4 + $0x28] sm:$0xff]
        %v6850 = vld [vmem:[#allocation4 + $0x30] sm:$0xff]
        %v6851 = vld [vmem:[#allocation4 + $0x38] sm:$0xff]
        %v6852 = vld [vmem:[#allocation4 + $0x40] sm:$0xff]
        %v6853 = vld [vmem:[#allocation4 + $0x48] sm:$0xff]
        %v6854 = vld [vmem:[#allocation4 + $0x50] sm:$0xff]
        %v6855 = vld [vmem:[#allocation4 + $0x58] sm:$0xff]
        %v6856 = vld [vmem:[#allocation4 + $0x60] sm:$0xff]
        %v6857 = vld [vmem:[#allocation4 + $0x68] sm:$0xff]
        %v6858 = vld [vmem:[#allocation4 + $0x70] sm:$0xff]
        %v6859 = vld [vmem:[#allocation4 + $0x78] sm:$0xff]
        %v6860 = vld [vmem:[#allocation4 + $0x80] sm:$0xff]
        %v6861 = vld [vmem:[#allocation4 + $0x88] sm:$0xff]
        %v6862 = vadd.f32 %v6844, %v6826
        %v6863 = vadd.f32 %v6845, %v6827
        %v6864 = vadd.f32 %v6846, %v6828
        %v6865 = vadd.f32 %v6847, %v6829
        %v6866 = vadd.f32 %v6848, %v6830
        %v6867 = vadd.f32 %v6849, %v6831
        %v6868 = vadd.f32 %v6850, %v6832
        %v6869 = vadd.f32 %v6851, %v6833
        %v6870 = vadd.f32 %v6852, %v6834
        %v6871 = vadd.f32 %v6853, %v6835
        %v6872 = vadd.f32 %v6854, %v6836
        %v6873 = vadd.f32 %v6855, %v6837
        %v6874 = vadd.f32 %v6856, %v6838
        %v6875 = vadd.f32 %v6857, %v6839
        %v6876 = vadd.f32 %v6858, %v6840
        %v6877 = vadd.f32 %v6859, %v6841
        %v6878 = vadd.f32 %v6860, %v6842
        %v6879 = vadd.f32 %v6861, %v6843
        %6880 = vst.msk [vmem:[#allocation4] sm:$0xff] %vm696, %v6862
        %6881 = vst.msk [vmem:[#allocation4 + $0x8] sm:$0xff] %vm696, %v6863
        %6882 = vst.msk [vmem:[#allocation4 + $0x10] sm:$0xff] %vm696, %v6864
        %6883 = vst.msk [vmem:[#allocation4 + $0x18] sm:$0xff] %vm696, %v6865
        %6884 = vst.msk [vmem:[#allocation4 + $0x20] sm:$0xff] %vm696, %v6866
        %6885 = vst.msk [vmem:[#allocation4 + $0x28] sm:$0xff] %vm696, %v6867
        %6886 = vst.msk [vmem:[#allocation4 + $0x30] sm:$0xff] %vm696, %v6868
        %6887 = vst.msk [vmem:[#allocation4 + $0x38] sm:$0xff] %vm696, %v6869
        %6888 = vst.msk [vmem:[#allocation4 + $0x40] sm:$0xff] %vm696, %v6870
        %6889 = vst.msk [vmem:[#allocation4 + $0x48] sm:$0xff] %vm696, %v6871
        %6890 = vst.msk [vmem:[#allocation4 + $0x50] sm:$0xff] %vm696, %v6872
        %6891 = vst.msk [vmem:[#allocation4 + $0x58] sm:$0xff] %vm696, %v6873
        %6892 = vst.msk [vmem:[#allocation4 + $0x60] sm:$0xff] %vm696, %v6874
        %6893 = vst.msk [vmem:[#allocation4 + $0x68] sm:$0xff] %vm696, %v6875
        %6894 = vst.msk [vmem:[#allocation4 + $0x70] sm:$0xff] %vm696, %v6876
        %6895 = vst.msk [vmem:[#allocation4 + $0x78] sm:$0xff] %vm696, %v6877
        %6896 = vst.msk [vmem:[#allocation4 + $0x80] sm:$0xff] %vm696, %v6878
        %6897 = vst.msk [vmem:[#allocation4 + $0x88] sm:$0xff] %vm696, %v6879
        %v6898 = vld [vmem:[#allocation4] sm:$0xff]
        %v6899 = vld [vmem:[#allocation4 + $0x8] sm:$0xff]
        %v6900 = vld [vmem:[#allocation4 + $0x10] sm:$0xff]
        %v6901 = vld [vmem:[#allocation4 + $0x18] sm:$0xff]
        %v6902 = vld [vmem:[#allocation4 + $0x20] sm:$0xff]
        %v6903 = vld [vmem:[#allocation4 + $0x28] sm:$0xff]
        %v6904 = vld [vmem:[#allocation4 + $0x30] sm:$0xff]
        %v6905 = vld [vmem:[#allocation4 + $0x38] sm:$0xff]
        %v6906 = vld [vmem:[#allocation4 + $0x40] sm:$0xff]
        %v6907 = vld [vmem:[#allocation4 + $0x48] sm:$0xff]
        %v6908 = vld [vmem:[#allocation4 + $0x50] sm:$0xff]
        %v6909 = vld [vmem:[#allocation4 + $0x58] sm:$0xff]
        %v6910 = vld [vmem:[#allocation4 + $0x60] sm:$0xff]
        %v6911 = vld [vmem:[#allocation4 + $0x68] sm:$0xff]
        %v6912 = vld [vmem:[#allocation4 + $0x70] sm:$0xff]
        %v6913 = vld [vmem:[#allocation4 + $0x78] sm:$0xff]
        %v6914 = vld [vmem:[#allocation4 + $0x80] sm:$0xff]
        %v6915 = vld [vmem:[#allocation4 + $0x88] sm:$0xff]
        %v6916 = vpack.c.bf16 %v6899, %v6898
        %v6917 = vpack.c.bf16 %v6901, %v6900
        %v6918 = vpack.c.bf16 %v6903, %v6902
        %v6919 = vpack.c.bf16 %v6905, %v6904
        %v6920 = vpack.c.bf16 %v6907, %v6906
        %v6921 = vpack.c.bf16 %v6909, %v6908
        %v6922 = vpack.c.bf16 %v6911, %v6910
        %v6923 = vpack.c.bf16 %v6913, %v6912
        %v6924 = vpack.c.bf16 %v6915, %v6914
        %v6925 = vld [vmem:[%s632] sm:$0xf]
        %v6926 = vld [vmem:[%s632 + $0x4] sm:$0xf]
        %v6929 = vunpack.c.l.b16 %v6925
        %v6930 = vunpack.c.l.b16 %v6926
        %v6931 = vpack.c.b16 %v6930, %v6929
        %v6934 = vsel %vm696, %v6916, 0
        %v6937 = vsel %vm696, %v6917, 0
        %v6940 = vsel %vm696, %v6918, 0
        %v6943 = vsel %vm696, %v6919, 0
        %v6946 = vsel %vm696, %v6920, 0
        %v6949 = vsel %vm696, %v6921, 0
        %v6952 = vsel %vm696, %v6922, 0
        %v6955 = vsel %vm696, %v6923, 0
        %v6958 = vsel %vm696, %v6924, 0
        %6960 = vmatpush.bf16.msra.mxu0 0
        %6961 = vmatpush.bf16.msra.mxu0 0
        %6962 = vmatpush.bf16.msra.mxu0 0
        %6963 = vmatpush.bf16.msra.mxu0 0
        %6964 = vmatpush.bf16.msra.mxu0 0
        %6965 = vmatpush.bf16.msra.mxu0 0
        %6966 = vmatpush.bf16.msra.mxu0 0
        %6967 = vmatpush.bf16.msra.mxu0 %v6931
        %6968 = vmatmul.bf16.gmra.mxu0 %v6934
        %v6969 = vpop.f32.mrf.mxu0
        %v6970 = vadd.f32 0.0, %v6969
        %v6971 = vpop.f32.mrf.mxu0
        %v6972 = vadd.f32 0.0, %v6971
        %6973 = vmatmul.bf16.gmra.mxu0 %v6937
        %v6974 = vpop.f32.mrf.mxu0
        %v6975 = vadd.f32 0.0, %v6974
        %v6976 = vpop.f32.mrf.mxu0
        %v6977 = vadd.f32 0.0, %v6976
        %6978 = vmatmul.bf16.gmra.mxu0 %v6940
        %v6979 = vpop.f32.mrf.mxu0
        %v6980 = vadd.f32 0.0, %v6979
        %v6981 = vpop.f32.mrf.mxu0
        %v6982 = vadd.f32 0.0, %v6981
        %6983 = vmatmul.bf16.gmra.mxu0 %v6943
        %v6984 = vpop.f32.mrf.mxu0
        %v6985 = vadd.f32 0.0, %v6984
        %v6986 = vpop.f32.mrf.mxu0
        %v6987 = vadd.f32 0.0, %v6986
        %6988 = vmatmul.bf16.gmra.mxu0 %v6946
        %v6989 = vpop.f32.mrf.mxu0
        %v6990 = vadd.f32 0.0, %v6989
        %v6991 = vpop.f32.mrf.mxu0
        %v6992 = vadd.f32 0.0, %v6991
        %6993 = vmatmul.bf16.gmra.mxu0 %v6949
        %v6994 = vpop.f32.mrf.mxu0
        %v6995 = vadd.f32 0.0, %v6994
        %v6996 = vpop.f32.mrf.mxu0
        %v6997 = vadd.f32 0.0, %v6996
        %6998 = vmatmul.bf16.gmra.mxu0 %v6952
        %v6999 = vpop.f32.mrf.mxu0
        %v7000 = vadd.f32 0.0, %v6999
        %v7001 = vpop.f32.mrf.mxu0
        %v7002 = vadd.f32 0.0, %v7001
        %7003 = vmatmul.bf16.gmra.mxu0 %v6955
        %v7004 = vpop.f32.mrf.mxu0
        %v7005 = vadd.f32 0.0, %v7004
        %v7006 = vpop.f32.mrf.mxu0
        %v7007 = vadd.f32 0.0, %v7006
        %7008 = vmatmul.bf16.gmra.mxu0 %v6958
        %v7009 = vpop.f32.mrf.mxu0
        %v7010 = vadd.f32 0.0, %v7009
        %v7011 = vpop.f32.mrf.mxu0
        %v7012 = vadd.f32 0.0, %v7011
        %7013 = vdwg.mxu0
        %v7014 = vld [vmem:[%s635] sm:$0x1]
        %v7016 = vperm.slane %v7014, 0
        %v7018 = vmul.f32 %v6970, %v7016
        %v7019 = vmul.f32 %v6972, %v7016
        %v7020 = vmul.f32 %v6975, %v7016
        %v7021 = vmul.f32 %v6977, %v7016
        %v7022 = vmul.f32 %v6980, %v7016
        %v7023 = vmul.f32 %v6982, %v7016
        %v7024 = vmul.f32 %v6985, %v7016
        %v7025 = vmul.f32 %v6987, %v7016
        %v7026 = vmul.f32 %v6990, %v7016
        %v7027 = vmul.f32 %v6992, %v7016
        %v7028 = vmul.f32 %v6995, %v7016
        %v7029 = vmul.f32 %v6997, %v7016
        %v7030 = vmul.f32 %v7000, %v7016
        %v7031 = vmul.f32 %v7002, %v7016
        %v7032 = vmul.f32 %v7005, %v7016
        %v7033 = vmul.f32 %v7007, %v7016
        %v7034 = vmul.f32 %v7010, %v7016
        %v7035 = vmul.f32 %v7012, %v7016
        %v7036 = vld [vmem:[%s638] sm:$0x1]
        %v7038 = vperm.slane %v7036, 0
        %v7040 = vadd.f32 %v7018, %v7038
        %v7041 = vadd.f32 %v7019, %v7038
        %v7042 = vadd.f32 %v7020, %v7038
        %v7043 = vadd.f32 %v7021, %v7038
        %v7044 = vadd.f32 %v7022, %v7038
        %v7045 = vadd.f32 %v7023, %v7038
        %v7046 = vadd.f32 %v7024, %v7038
        %v7047 = vadd.f32 %v7025, %v7038
        %v7048 = vadd.f32 %v7026, %v7038
        %v7049 = vadd.f32 %v7027, %v7038
        %v7050 = vadd.f32 %v7028, %v7038
        %v7051 = vadd.f32 %v7029, %v7038
        %v7052 = vadd.f32 %v7030, %v7038
        %v7053 = vadd.f32 %v7031, %v7038
        %v7054 = vadd.f32 %v7032, %v7038
        %v7055 = vadd.f32 %v7033, %v7038
        %v7056 = vadd.f32 %v7034, %v7038
        %v7057 = vadd.f32 %v7035, %v7038
        %v7058 = vmax.f32 %v7040, 0.0
        %v7059 = vmax.f32 %v7041, 0.0
        %v7060 = vmax.f32 %v7042, 0.0
        %v7061 = vmax.f32 %v7043, 0.0
        %v7062 = vmax.f32 %v7044, 0.0
        %v7063 = vmax.f32 %v7045, 0.0
        %v7064 = vmax.f32 %v7046, 0.0
        %v7065 = vmax.f32 %v7047, 0.0
        %v7066 = vmax.f32 %v7048, 0.0
        %v7067 = vmax.f32 %v7049, 0.0
        %v7068 = vmax.f32 %v7050, 0.0
        %v7069 = vmax.f32 %v7051, 0.0
        %v7070 = vmax.f32 %v7052, 0.0
        %v7071 = vmax.f32 %v7053, 0.0
        %v7072 = vmax.f32 %v7054, 0.0
        %v7073 = vmax.f32 %v7055, 0.0
        %v7074 = vmax.f32 %v7056, 0.0
        %v7075 = vmax.f32 %v7057, 0.0
        %v7076 = vpack.c.bf16 %v7059, %v7058
        %v7077 = vpack.c.bf16 %v7061, %v7060
        %v7078 = vpack.c.bf16 %v7063, %v7062
        %v7079 = vpack.c.bf16 %v7065, %v7064
        %v7080 = vpack.c.bf16 %v7067, %v7066
        %v7081 = vpack.c.bf16 %v7069, %v7068
        %v7082 = vpack.c.bf16 %v7071, %v7070
        %v7083 = vpack.c.bf16 %v7073, %v7072
        %v7084 = vpack.c.bf16 %v7075, %v7074
        %v7085 = vld [vmem:[%s643] sm:$0xf]
        %v7086 = vld [vmem:[%s643 + $0x4] sm:$0xf]
        %v7087 = vld [vmem:[%s646] sm:$0x1]
        %v7089 = vperm.slane %v7087, 0
        %v7093 = vunpack.c.l.b16 %v7085
        %v7094 = vunpack.c.l.b16 %v7086
        %v7095 = vpack.c.b16 %v7094, %v7093
        %v7098 = vsel %vm696, %v7076, 0
        %v7101 = vsel %vm696, %v7077, 0
        %v7104 = vsel %vm696, %v7078, 0
        %v7107 = vsel %vm696, %v7079, 0
        %v7110 = vsel %vm696, %v7080, 0
        %v7113 = vsel %vm696, %v7081, 0
        %v7116 = vsel %vm696, %v7082, 0
        %v7119 = vsel %vm696, %v7083, 0
        %v7122 = vsel %vm696, %v7084, 0
        %7124 = vmatpush.bf16.msra.mxu0 0
        %7125 = vmatpush.bf16.msra.mxu0 0
        %7126 = vmatpush.bf16.msra.mxu0 0
        %7127 = vmatpush.bf16.msra.mxu0 0
        %7128 = vmatpush.bf16.msra.mxu0 0
        %7129 = vmatpush.bf16.msra.mxu0 0
        %7130 = vmatpush.bf16.msra.mxu0 0
        %7131 = vmatpush.bf16.msra.mxu0 %v7095
        %7132 = vmatmul.bf16.gmra.mxu0 %v7098
        %v7133 = vpop.f32.mrf.mxu0
        %v7134 = vadd.f32 %v7089, %v7133
        %v7135 = vpop.f32.mrf.mxu0
        %v7136 = vadd.f32 %v7089, %v7135
        %7137 = vmatmul.bf16.gmra.mxu0 %v7101
        %v7138 = vpop.f32.mrf.mxu0
        %v7139 = vadd.f32 %v7089, %v7138
        %v7140 = vpop.f32.mrf.mxu0
        %v7141 = vadd.f32 %v7089, %v7140
        %7142 = vmatmul.bf16.gmra.mxu0 %v7104
        %v7143 = vpop.f32.mrf.mxu0
        %v7144 = vadd.f32 %v7089, %v7143
        %v7145 = vpop.f32.mrf.mxu0
        %v7146 = vadd.f32 %v7089, %v7145
        %7147 = vmatmul.bf16.gmra.mxu0 %v7107
        %v7148 = vpop.f32.mrf.mxu0
        %v7149 = vadd.f32 %v7089, %v7148
        %v7150 = vpop.f32.mrf.mxu0
        %v7151 = vadd.f32 %v7089, %v7150
        %7152 = vmatmul.bf16.gmra.mxu0 %v7110
        %v7153 = vpop.f32.mrf.mxu0
        %v7154 = vadd.f32 %v7089, %v7153
        %v7155 = vpop.f32.mrf.mxu0
        %v7156 = vadd.f32 %v7089, %v7155
        %7157 = vmatmul.bf16.gmra.mxu0 %v7113
        %v7158 = vpop.f32.mrf.mxu0
        %v7159 = vadd.f32 %v7089, %v7158
        %v7160 = vpop.f32.mrf.mxu0
        %v7161 = vadd.f32 %v7089, %v7160
        %7162 = vmatmul.bf16.gmra.mxu0 %v7116
        %v7163 = vpop.f32.mrf.mxu0
        %v7164 = vadd.f32 %v7089, %v7163
        %v7165 = vpop.f32.mrf.mxu0
        %v7166 = vadd.f32 %v7089, %v7165
        %7167 = vmatmul.bf16.gmra.mxu0 %v7119
        %v7168 = vpop.f32.mrf.mxu0
        %v7169 = vadd.f32 %v7089, %v7168
        %v7170 = vpop.f32.mrf.mxu0
        %v7171 = vadd.f32 %v7089, %v7170
        %7172 = vmatmul.bf16.gmra.mxu0 %v7122
        %v7173 = vpop.f32.mrf.mxu0
        %v7174 = vadd.f32 %v7089, %v7173
        %v7175 = vpop.f32.mrf.mxu0
        %v7176 = vadd.f32 %v7089, %v7175
        %7177 = vdwg.mxu0
        %7178 = vst [vmem:[%s595] sm:$0xff] %v7134
        %7179 = vst [vmem:[%s595 + $0x8] sm:$0xff] %v7136
        %7180 = vst [vmem:[%s595 + $0x10] sm:$0xff] %v7139
        %7181 = vst [vmem:[%s595 + $0x18] sm:$0xff] %v7141
        %7182 = vst [vmem:[%s595 + $0x20] sm:$0xff] %v7144
        %7183 = vst [vmem:[%s595 + $0x28] sm:$0xff] %v7146
        %7184 = vst [vmem:[%s595 + $0x30] sm:$0xff] %v7149
        %7185 = vst [vmem:[%s595 + $0x38] sm:$0xff] %v7151
        %7186 = vst [vmem:[%s595 + $0x40] sm:$0xff] %v7154
        %7187 = vst [vmem:[%s595 + $0x48] sm:$0xff] %v7156
        %7188 = vst [vmem:[%s595 + $0x50] sm:$0xff] %v7159
        %7189 = vst [vmem:[%s595 + $0x58] sm:$0xff] %v7161
        %7190 = vst [vmem:[%s595 + $0x60] sm:$0xff] %v7164
        %7191 = vst [vmem:[%s595 + $0x68] sm:$0xff] %v7166
        %7192 = vst [vmem:[%s595 + $0x70] sm:$0xff] %v7169
        %7193 = vst [vmem:[%s595 + $0x78] sm:$0xff] %v7171
        %7194 = vst [vmem:[%s595 + $0x80] sm:$0xff] %v7174
        %7195 = vst [vmem:[%s595 + $0x88] sm:$0xff] %v7176
        %s7196 = sand.u32 %s384, 1
        %s7197 = sand.u32 %s384, 1
        %s7198 = smul.addr %s7197, 144
        %s7199 = scalar_lea.vmem [#allocation5], %s7198
        // Predicated region
        $region73: #{depthwise_rpn_forward.1} parent=71 // pred_check
          %p7200 = pneg %p394
        $region74: #{depthwise_rpn_forward.1} parent=71 // pred_check_branch
          %7202 = sbr.rel (%p7200) target = $region76
        $region75: #{depthwise_rpn_forward.1} parent=71 // pred_region
          %s7203 = smul.addr %s29, 36
          %s7204 = sadd.s32 %s28, %s7203
          %s7205 = smul.addr %s7204, 8
          %s7206 = scalar_lea.vmem %s13, %s7205
          // Predicated region
          $region77: #{depthwise_rpn_forward.1} parent=75 // pred_check
            _
          $region78: #{depthwise_rpn_forward.1} parent=75 // pred_check_branch
            %7208 = sbr.rel (0) target = $region80
          $region79: #{depthwise_rpn_forward.1} parent=75 // pred_region
            // Predicated region
            $region81: #{depthwise_rpn_forward.1} parent=79 // pred_check
              _
            $region82: #{depthwise_rpn_forward.1} parent=79 // pred_check_branch
              %7210 = sbr.rel (0) target = $region84
            $region83: #{depthwise_rpn_forward.1} parent=79 // pred_region
              // Predicated region
              $region96: #{depthwise_rpn_forward.1} parent=83 // pred_check
                _
              $region97: #{depthwise_rpn_forward.1} parent=83 // pred_check_branch
                %7260 = sbr.rel (0) target = $region99
              $region98: #{depthwise_rpn_forward.1} parent=83 // pred_region
                loop: start=0, step=1, limit=1
                $region100: #{depthwise_rpn_forward.1} parent=98 // loop_pre_header
                  _
                $region101: #{depthwise_rpn_forward.1} parent=98 // loop_header
                  %s7262 = sphi 0, %s7266
                  %p7263 = scmp.ge.s32.totalorder %s7262, 1
                  %s7267 = sphi %s7199, %s7199
                  %s7268 = sphi %s7206, %s7206
                $region102: #{depthwise_rpn_forward.1} parent=98 // loop_header_branch
                  %7265 = sbr.rel (%p7263) target = $region106
                $region103: #{depthwise_rpn_forward.1} parent=98 // loop_body
                  %v7269 = vld [vmem:[%s7267] sm:$0xff]
                  %7270 = vst [vmem:[%s7268] sm:$0xff] %v7269
                  %v7271 = vld [vmem:[%s7267 + $0x8] sm:$0xff]
                  %7272 = vst [vmem:[%s7268 + $0x10] sm:$0xff] %v7271
                  %v7273 = vld [vmem:[%s7267 + $0x10] sm:$0xff]
                  %7274 = vst [vmem:[%s7268 + $0x20] sm:$0xff] %v7273
                  %v7275 = vld [vmem:[%s7267 + $0x18] sm:$0xff]
                  %7276 = vst [vmem:[%s7268 + $0x30] sm:$0xff] %v7275
                  %v7277 = vld [vmem:[%s7267 + $0x20] sm:$0xff]
                  %7278 = vst [vmem:[%s7268 + $0x40] sm:$0xff] %v7277
                  %v7279 = vld [vmem:[%s7267 + $0x28] sm:$0xff]
                  %7280 = vst [vmem:[%s7268 + $0x50] sm:$0xff] %v7279
                  %v7281 = vld [vmem:[%s7267 + $0x30] sm:$0xff]
                  %7282 = vst [vmem:[%s7268 + $0x60] sm:$0xff] %v7281
                  %v7283 = vld [vmem:[%s7267 + $0x38] sm:$0xff]
                  %7284 = vst [vmem:[%s7268 + $0x70] sm:$0xff] %v7283
                  %v7285 = vld [vmem:[%s7267 + $0x40] sm:$0xff]
                  %7286 = vst [vmem:[%s7268 + $0x80] sm:$0xff] %v7285
                  %v7287 = vld [vmem:[%s7267 + $0x48] sm:$0xff]
                  %7288 = vst [vmem:[%s7268 + $0x90] sm:$0xff] %v7287
                  %v7289 = vld [vmem:[%s7267 + $0x50] sm:$0xff]
                  %7290 = vst [vmem:[%s7268 + $0xa0] sm:$0xff] %v7289
                  %v7291 = vld [vmem:[%s7267 + $0x58] sm:$0xff]
                  %7292 = vst [vmem:[%s7268 + $0xb0] sm:$0xff] %v7291
                  %v7293 = vld [vmem:[%s7267 + $0x60] sm:$0xff]
                  %7294 = vst [vmem:[%s7268 + $0xc0] sm:$0xff] %v7293
                  %v7295 = vld [vmem:[%s7267 + $0x68] sm:$0xff]
                  %7296 = vst [vmem:[%s7268 + $0xd0] sm:$0xff] %v7295
                  %v7297 = vld [vmem:[%s7267 + $0x70] sm:$0xff]
                  %7298 = vst [vmem:[%s7268 + $0xe0] sm:$0xff] %v7297
                  %v7299 = vld [vmem:[%s7267 + $0x78] sm:$0xff]
                  %7300 = vst [vmem:[%s7268 + $0xf0] sm:$0xff] %v7299
                  %v7301 = vld [vmem:[%s7267 + $0x80] sm:$0xff]
                  %7302 = vst [vmem:[%s7268 + $0x100] sm:$0xff] %v7301
                  %v7303 = vld [vmem:[%s7267 + $0x88] sm:$0xff]
                  %7304 = vst [vmem:[%s7268 + $0x110] sm:$0xff] %v7303
                $region104: #{depthwise_rpn_forward.1} parent=98 // loop_footer
                  %s7266 = sadd.s32 1, %s7262
                $region105: #{depthwise_rpn_forward.1} parent=98 // loop_footer_branch
                  %7261 = sbr.rel target = $region101
                $region106: #{depthwise_rpn_forward.1} parent=98 // loop_exit
                  _
              $region99: #{depthwise_rpn_forward.1} parent=83 // pred_fallthru
                _
              // Predicated region
              $region107: #{depthwise_rpn_forward.1} parent=83 // pred_check
                _
              $region108: #{depthwise_rpn_forward.1} parent=83 // pred_check_branch
                %7306 = sbr.rel target = $region110
              $region109: #{depthwise_rpn_forward.1} parent=83 // pred_region
                _
              $region110: #{depthwise_rpn_forward.1} parent=83 // pred_fallthru
                _
            $region84: #{depthwise_rpn_forward.1} parent=79 // pred_fallthru
              _
            // Predicated region
            $region85: #{depthwise_rpn_forward.1} parent=79 // pred_check
              _
            $region86: #{depthwise_rpn_forward.1} parent=79 // pred_check_branch
              %7212 = sbr.rel target = $region88
            $region87: #{depthwise_rpn_forward.1} parent=79 // pred_region
              %s7214 = ssub.s32 256, 1
              loop: start=0, step=1, limit=1
              $region89: #{depthwise_rpn_forward.1} parent=87 // loop_pre_header
                _
              $region90: #{depthwise_rpn_forward.1} parent=87 // loop_header
                %s7216 = sphi 0, %s7220
                %p7217 = scmp.ge.s32.totalorder %s7216, 1
                %s7221 = sphi %s7199, %s7199
                %s7222 = sphi %s7206, %s7206
              $region91: #{depthwise_rpn_forward.1} parent=87 // loop_header_branch
                %7219 = sbr.rel (%p7217) target = $region95
              $region92: #{depthwise_rpn_forward.1} parent=87 // loop_body
                %v7223 = vld [vmem:[%s7221] sm:%s7214]
                %7224 = vst [vmem:[%s7222] sm:%s7214] %v7223
                %v7225 = vld [vmem:[%s7221 + $0x8] sm:%s7214]
                %7226 = vst [vmem:[%s7222 + $0x10] sm:%s7214] %v7225
                %v7227 = vld [vmem:[%s7221 + $0x10] sm:%s7214]
                %7228 = vst [vmem:[%s7222 + $0x20] sm:%s7214] %v7227
                %v7229 = vld [vmem:[%s7221 + $0x18] sm:%s7214]
                %7230 = vst [vmem:[%s7222 + $0x30] sm:%s7214] %v7229
                %v7231 = vld [vmem:[%s7221 + $0x20] sm:%s7214]
                %7232 = vst [vmem:[%s7222 + $0x40] sm:%s7214] %v7231
                %v7233 = vld [vmem:[%s7221 + $0x28] sm:%s7214]
                %7234 = vst [vmem:[%s7222 + $0x50] sm:%s7214] %v7233
                %v7235 = vld [vmem:[%s7221 + $0x30] sm:%s7214]
                %7236 = vst [vmem:[%s7222 + $0x60] sm:%s7214] %v7235
                %v7237 = vld [vmem:[%s7221 + $0x38] sm:%s7214]
                %7238 = vst [vmem:[%s7222 + $0x70] sm:%s7214] %v7237
                %v7239 = vld [vmem:[%s7221 + $0x40] sm:%s7214]
                %7240 = vst [vmem:[%s7222 + $0x80] sm:%s7214] %v7239
                %v7241 = vld [vmem:[%s7221 + $0x48] sm:%s7214]
                %7242 = vst [vmem:[%s7222 + $0x90] sm:%s7214] %v7241
                %v7243 = vld [vmem:[%s7221 + $0x50] sm:%s7214]
                %7244 = vst [vmem:[%s7222 + $0xa0] sm:%s7214] %v7243
                %v7245 = vld [vmem:[%s7221 + $0x58] sm:%s7214]
                %7246 = vst [vmem:[%s7222 + $0xb0] sm:%s7214] %v7245
                %v7247 = vld [vmem:[%s7221 + $0x60] sm:%s7214]
                %7248 = vst [vmem:[%s7222 + $0xc0] sm:%s7214] %v7247
                %v7249 = vld [vmem:[%s7221 + $0x68] sm:%s7214]
                %7250 = vst [vmem:[%s7222 + $0xd0] sm:%s7214] %v7249
                %v7251 = vld [vmem:[%s7221 + $0x70] sm:%s7214]
                %7252 = vst [vmem:[%s7222 + $0xe0] sm:%s7214] %v7251
                %v7253 = vld [vmem:[%s7221 + $0x78] sm:%s7214]
                %7254 = vst [vmem:[%s7222 + $0xf0] sm:%s7214] %v7253
                %v7255 = vld [vmem:[%s7221 + $0x80] sm:%s7214]
                %7256 = vst [vmem:[%s7222 + $0x100] sm:%s7214] %v7255
                %v7257 = vld [vmem:[%s7221 + $0x88] sm:%s7214]
                %7258 = vst [vmem:[%s7222 + $0x110] sm:%s7214] %v7257
              $region93: #{depthwise_rpn_forward.1} parent=87 // loop_footer
                %s7220 = sadd.s32 1, %s7216
              $region94: #{depthwise_rpn_forward.1} parent=87 // loop_footer_branch
                %7215 = sbr.rel target = $region90
              $region95: #{depthwise_rpn_forward.1} parent=87 // loop_exit
                _
            $region88: #{depthwise_rpn_forward.1} parent=79 // pred_fallthru
              _
          $region80: #{depthwise_rpn_forward.1} parent=75 // pred_fallthru
            _
          %7307 = vnop
        $region76: #{depthwise_rpn_forward.1} parent=71 // pred_fallthru
          _
      $region72: #{depthwise_rpn_forward.1} parent=5 // pred_fallthru
        _
      %p7308 = scmp.le.s32.totalorder 2, %s19
      // Predicated region
      $region111: #{depthwise_rpn_forward.1} parent=5 // pred_check
        %p7309 = pneg %p7308
      $region112: #{depthwise_rpn_forward.1} parent=5 // pred_check_branch
        %7311 = sbr.rel (%p7309) target = $region114
      $region113: #{depthwise_rpn_forward.1} parent=5 // pred_region
        %s7312 = ssub.s32 %s19, 2
        // Predicated region
        $region115: #{depthwise_rpn_forward.1} parent=113 // pred_check
          %p7313 = pneg %p400
        $region116: #{depthwise_rpn_forward.1} parent=113 // pred_check_branch
          %7315 = sbr.rel (%p7313) target = $region118
        $region117: #{depthwise_rpn_forward.1} parent=113 // pred_region
          %s7316 = sand.u32 %s385, 1
          %s7317 = sand.u32 %s385, 1
          %s7318 = smul.addr %s7317, 144
          %s7319 = scalar_lea.vmem [#allocation5], %s7318
        $region118: #{depthwise_rpn_forward.1} parent=113 // pred_fallthru
          _
      $region114: #{depthwise_rpn_forward.1} parent=5 // pred_fallthru
        _
    $region6: #{depthwise_rpn_forward.1} parent=1 // loop_footer
      %s23 = sadd.s32 1, %s19
    $region7: #{depthwise_rpn_forward.1} parent=1 // loop_footer_branch
      %18 = sbr.rel target = $region3
    $region8: #{depthwise_rpn_forward.1} parent=1 // loop_exit
      _

</llo_original>
